<compile_context>
chip_gen: v5e
topology: v5e:2x2
jax: 0.10.0
libtpu: 0.0.40
codegen_flags: <defaults>
</compile_context>

<pallas_src>
import jax
import jax.numpy as jnp
import numpy as np
from jax import lax
from jax.experimental import pallas as pl
from jax.experimental.pallas import tpu as pltpu


MATMUL_DTYPE = jnp.bfloat16  # MXU operand dtype (f32 accumulate everywhere)


# ---------------------------------------------------------------------------
# Pallas kernels
# ---------------------------------------------------------------------------

def _conv_relu_pool_kernel(p_ref, w_ref, b_ref, o_ref):
    """Fused conv-as-matmul + bias + ReLU + 2x2 max-pool for one image.

    p_ref: (4*P, K)  im2col patches, rows ordered as 4 contiguous blocks, one per
                     position (py,px) inside the 2x2 pooling window; within a
                     block rows are (ho*Wo + wo).
    w_ref: (K, Cout) conv weight as a matrix, b_ref: (1, Cout) f32 bias.
    o_ref: (P, Cout) pooled output, P = Ho*Wo.
    """
    P = o_ref.shape[0]
    acc = jnp.dot(p_ref[...], w_ref[...],
                  preferred_element_type=jnp.float32)          # (4P, Cout) f32
    # 2x2 max-pool == max over the four contiguous row blocks (bias is uniform
    # and ReLU is monotone, so both commute with the max and run on 1/4 the data).
    m = jnp.maximum(jnp.maximum(acc[0:P], acc[P:2 * P]),
                    jnp.maximum(acc[2 * P:3 * P], acc[3 * P:4 * P]))
    o_ref[...] = jnp.maximum(m + b_ref[...], 0.0)


def _mlp_kernel(x_ref, w1_ref, b1_ref, w2_ref, b2_ref, o_ref):
    """Fused relu(relu(x @ W1 + b1) @ W2 + b2)."""
    h = jnp.dot(x_ref[...], w1_ref[...], preferred_element_type=jnp.float32)
    h = jnp.maximum(h + b1_ref[...], 0.0).astype(w2_ref.dtype)
    y = jnp.dot(h, w2_ref[...], preferred_element_type=jnp.float32)
    o_ref[...] = jnp.maximum(y + b2_ref[...], 0.0)


# ---------------------------------------------------------------------------
# Wrappers (pallas_call plumbing)
# ---------------------------------------------------------------------------

def _build_pool_ordered_patches(x_nhwc, dtype=MATMUL_DTYPE):
    """x: (B,H,W,C) -> (B, 4*Ho*Wo, 9*C) bf16 im2col patches.

    Row order: [ (py*2+px) block ][ ho*Wo + wo ]; feature order: (dy, dx, c).
    """
    B, H, W, C = x_nhwc.shape
    Ho, Wo = H // 2, W // 2
    xp = jnp.pad(x_nhwc, ((0, 0), (1, 1), (1, 1), (0, 0)))
    cols = [xp[:, dy:dy + H, dx:dx + W, :] for dy in range(3) for dx in range(3)]
    p = jnp.stack(cols, axis=-2).reshape(B, H, W, 9 * C)        # (B,H,W,9C)
    p = p.reshape(B, Ho, 2, Wo, 2, 9 * C).transpose(0, 2, 4, 1, 3, 5)
    return p.reshape(B, 4 * Ho * Wo, 9 * C).astype(dtype)


def conv_relu_pool(x_nhwc, w2d, b_row):
    """3x3 'same' conv + ReLU + 2x2 max-pool, fused in one Pallas kernel."""
    B, H, W, C = x_nhwc.shape
    Ho, Wo = H // 2, W // 2
    P = Ho * Wo
    K, Cout = w2d.shape
    patches = _build_pool_ordered_patches(x_nhwc)               # XLA glue
    out = pl.pallas_call(
        _conv_relu_pool_kernel,
        out_shape=jax.ShapeDtypeStruct((B, P, Cout), jnp.float32),
        grid=(B,),
        in_specs=[
            pl.BlockSpec((None, 4 * P, K), lambda b: (b, 0, 0)),
            pl.BlockSpec((K, Cout), lambda b: (0, 0)),
            pl.BlockSpec((1, Cout), lambda b: (0, 0)),
        ],
        out_specs=pl.BlockSpec((None, P, Cout), lambda b: (b, 0, 0)),
        compiler_params=pltpu.CompilerParams(
            dimension_semantics=("parallel",),
            vmem_limit_bytes=32 * 1024 * 1024,
        ),
    )(patches, w2d, b_row)
    return out.reshape(B, Ho, Wo, Cout)                         # NHWC


def mlp_forward(x, w1, b1, w2, b2):
    """relu(relu(x @ w1 + b1) @ w2 + b2) in a single Pallas kernel."""
    B, K1 = x.shape
    N1 = w1.shape[1]
    N2 = w2.shape[1]
    return pl.pallas_call(
        _mlp_kernel,
        out_shape=jax.ShapeDtypeStruct((B, N2), jnp.float32),
        grid=(1,),
        in_specs=[
            pl.BlockSpec((B, K1), lambda i: (0, 0)),
            pl.BlockSpec((K1, N1), lambda i: (0, 0)),
            pl.BlockSpec((1, N1), lambda i: (0, 0)),
            pl.BlockSpec((N1, N2), lambda i: (0, 0)),
            pl.BlockSpec((1, N2), lambda i: (0, 0)),
        ],
        out_specs=pl.BlockSpec((B, N2), lambda i: (0, 0)),
        compiler_params=pltpu.CompilerParams(
            dimension_semantics=("arbitrary",),
            vmem_limit_bytes=32 * 1024 * 1024,
        ),
    )(x, w1, b1, w2, b2)


# ---------------------------------------------------------------------------
# One-time parameter preparation (matches torch layouts; no per-forward work)
# ---------------------------------------------------------------------------

def prepare_params(params, matmul_dtype=MATMUL_DTYPE):
    def conv_w(w):  # (O, I, 3, 3) -> (9*I, O), feature order (dy, dx, c)
        O, I = w.shape[0], w.shape[1]
        return jnp.transpose(w, (2, 3, 1, 0)).reshape(9 * I, O).astype(matmul_dtype)

    # The conv trunk emits features in (s=h*16+w, c) order; permute wl1's input
    # columns once so no flatten transpose is needed per forward.
    wl1 = params["wl1"]                                          # (128, 32*16*16), torch (out,in)
    w1p = (wl1.reshape(128, 32, 16 * 16)                         # (out, c, s)
              .transpose(2, 1, 0)                                # (s, c, out)
              .reshape(32 * 16 * 16, 128))                       # row = s*32 + c

    return {
        "cw1": conv_w(params["w1"]),
        "cb1": params["b1"].reshape(1, -1).astype(jnp.float32),
        "cw2": conv_w(params["w2"]),
        "cb2": params["b2"].reshape(1, -1).astype(jnp.float32),
        "wl1": w1p.astype(matmul_dtype),
        "bl1": params["bl1"].reshape(1, -1).astype(jnp.float32),
        "wl2": params["wl2"].T.astype(matmul_dtype),             # (in, out)
        "bl2": params["bl2"].reshape(1, -1).astype(jnp.float32),
    }


@jax.jit
def simple_cnn_forward(prepped, x_nchw, xc):
    del xc  # accepted but unused, exactly like the reference forward
    x = jnp.transpose(x_nchw, (0, 2, 3, 1)).astype(jnp.float32)   # NCHW -> NHWC
    x = conv_relu_pool(x, prepped["cw1"], prepped["cb1"])         # (B,32,32,16)
    x = conv_relu_pool(x, prepped["cw2"], prepped["cb2"])         # (B,16,16,32)
    B = x.shape[0]
    x = x.reshape(B, -1).astype(MATMUL_DTYPE)                     # (s, c) order (wl1 pre-permuted)
    return mlp_forward(x, prepped["wl1"], prepped["bl1"],
                       prepped["wl2"], prepped["bl2"])            # (B,128)


# ---------------------------------------------------------------------------
# Pure-JAX f32 reference for the correctness check
# ---------------------------------------------------------------------------

def reference_forward(params, x_nchw, xc):
    del xc
    x = jnp.transpose(x_nchw, (0, 2, 3, 1)).astype(jnp.float32)

    def conv(x, w, b):
        y = lax.conv_general_dilated(
            x, jnp.transpose(w, (2, 3, 1, 0)),
            window_strides=(1, 1), padding="SAME",
            dimension_numbers=("NHWC", "HWIO", "NHWC"))
        return jax.nn.relu(y + b[None, None, None, :])

    def pool(x):
        return lax.reduce_window(x, -jnp.inf, lax.max,
                                 (1, 2, 2, 1), (1, 2, 2, 1), "VALID")

    x = pool(conv(x, params["w1"], params["b1"]))
    x = pool(conv(x, params["w2"], params["b2"]))
    B = x.shape[0]
    x = jnp.transpose(x, (0, 3, 1, 2)).reshape(B, -1)             # torch flatten order
    x = jax.nn.relu(x @ params["wl1"].T + params["bl1"])
    x = jax.nn.relu(x @ params["wl2"].T + params["bl2"])
    return x


# ---------------------------------------------------------------------------
# Main
# ---------------------------------------------------------------------------

if __name__ == "__main__":
    key = jax.random.PRNGKey(0)
    ks = jax.random.split(key, 10)

    def uinit(k, shape, fan_in):
        bound = 1.0 / float(np.sqrt(fan_in))
        return jax.random.uniform(k, shape, jnp.float32, -bound, bound)

    params = {
        "w1": uinit(ks[0], (16, 3, 3, 3), 3 * 9),                 # conv1 weight (O,I,kh,kw)
        "b1": uinit(ks[1], (16,), 3 * 9),
        "w2": uinit(ks[2], (32, 16, 3, 3), 16 * 9),               # conv2 weight
        "b2": uinit(ks[3], (32,), 16 * 9),
        "wl1": uinit(ks[4], (128, 32 * 16 * 16), 32 * 16 * 16),   # torch Linear (out,in)
        "bl1": uinit(ks[5], (128,), 32 * 16 * 16),
        "wl2": uinit(ks[6], (128, 128), 128),
        "bl2": uinit(ks[7], (128,), 128),
    }

    # linear1 expects 32*16*16 features -> spatial input must be 64x64 (NCHW).
    x = jax.random.normal(ks[8], (2, 3, 64, 64), jnp.float32)
    xc = jax.random.normal(ks[9], (2, 8), jnp.float32)            # unused by forward

    prepped = prepare_params(params)                              # one-time weight prep

    out = jax.block_until_ready(simple_cnn_forward(prepped, x, xc))
    ref = jax.block_until_ready(reference_forward(params, x, xc))

    assert out.shape == (2, 128), out.shape
    # bf16 matmul operands (f32 accumulate) vs the f32 reference -> loose-ish atol.
    max_err = float(jnp.max(jnp.abs(out - ref)))
    assert max_err < 5e-2, f"mismatch vs reference: {max_err}"
    print("KERNEL_OK")
</pallas_src>

<mosaic_0001>
module attributes {stable_mosaic.version = 11 : i64} {
  func.func @_conv_relu_pool_kernel(%arg0: i32, %arg1: memref<1x4096x27xbf16, #tpu.memory_space<vmem>>, %arg2: memref<27x16xbf16, #tpu.memory_space<vmem>>, %arg3: memref<1x16xf32, #tpu.memory_space<vmem>>, %arg4: memref<1x1024x16xf32, #tpu.memory_space<vmem>>) attributes {dimension_semantics = [#tpu.dimension_semantics<parallel>], iteration_bounds = array<i64: 2>, scalar_prefetch = 0 : i64, scratch_operands = 0 : i64, tpu.core_type = #tpu.core_type<tc>, window_params = [{transform_indices = @transform_0, window_bounds = array<i64: 1, 4096, 27>}, {pipeline_mode = #tpu.pipeline_mode<synchronous>, transform_indices = @transform_1, window_bounds = array<i64: 27, 16>}, {pipeline_mode = #tpu.pipeline_mode<synchronous>, transform_indices = @transform_2, window_bounds = array<i64: 1, 16>}, {transform_indices = @transform_3, window_bounds = array<i64: 1, 1024, 16>}]} {
    %c0 = arith.constant 0 : index
    %c0_0 = arith.constant 0 : index
    %c0_1 = arith.constant 0 : index
    %0 = vector.load %arg1[%c0, %c0_0, %c0_1] : memref<1x4096x27xbf16, #tpu.memory_space<vmem>>, vector<1x4096x27xbf16>
    %1 = vector.shape_cast %0 : vector<1x4096x27xbf16> to vector<4096x27xbf16>
    %c0_2 = arith.constant 0 : index
    %c0_3 = arith.constant 0 : index
    %2 = vector.load %arg2[%c0_2, %c0_3] : memref<27x16xbf16, #tpu.memory_space<vmem>>, vector<27x16xbf16>
    %cst = arith.constant dense<0.000000e+00> : vector<4096x16xf32>
    %3 = tpu.matmul %1, %2, %cst {dimension_numbers = #tpu.dot_dimension_numbers<[1], [0], [0], [1], [0, 0, 1, 1], [], []>} : vector<4096x27xbf16>, vector<27x16xbf16>, vector<4096x16xf32> -> vector<4096x16xf32>
    %4 = vector.extract_strided_slice %3 {offsets = [0, 0], sizes = [1024, 16], strides = [1, 1]} : vector<4096x16xf32> to vector<1024x16xf32>
    %5 = vector.extract_strided_slice %3 {offsets = [1024, 0], sizes = [1024, 16], strides = [1, 1]} : vector<4096x16xf32> to vector<1024x16xf32>
    %6 = arith.maximumf %4, %5 : vector<1024x16xf32>
    %7 = vector.extract_strided_slice %3 {offsets = [2048, 0], sizes = [1024, 16], strides = [1, 1]} : vector<4096x16xf32> to vector<1024x16xf32>
    %8 = vector.extract_strided_slice %3 {offsets = [3072, 0], sizes = [1024, 16], strides = [1, 1]} : vector<4096x16xf32> to vector<1024x16xf32>
    %9 = arith.maximumf %7, %8 : vector<1024x16xf32>
    %10 = arith.maximumf %6, %9 : vector<1024x16xf32>
    %c0_4 = arith.constant 0 : index
    %c0_5 = arith.constant 0 : index
    %11 = vector.load %arg3[%c0_4, %c0_5] : memref<1x16xf32, #tpu.memory_space<vmem>>, vector<1x16xf32>
    %12 = vector.broadcast %11 : vector<1x16xf32> to vector<1024x16xf32>
    %13 = arith.addf %10, %12 : vector<1024x16xf32>
    %cst_6 = arith.constant 0.000000e+00 : f32
    %14 = vector.broadcast %cst_6 : f32 to vector<1024x16xf32>
    %15 = arith.maximumf %13, %14 : vector<1024x16xf32>
    %c0_7 = arith.constant 0 : index
    %c0_8 = arith.constant 0 : index
    %c0_9 = arith.constant 0 : index
    %16 = vector.load %arg4[%c0_7, %c0_8, %c0_9] : memref<1x1024x16xf32, #tpu.memory_space<vmem>>, vector<1x1024x16xf32>
    %17 = vector.shape_cast %16 : vector<1x1024x16xf32> to vector<1024x16xf32>
    %18 = vector.shape_cast %15 : vector<1024x16xf32> to vector<1x1024x16xf32>
    tpu.vector_store %arg4[%c0_7, %c0_8, %c0_9], %18 {strides = array<i32>} : memref<1x1024x16xf32, #tpu.memory_space<vmem>>, vector<1x1024x16xf32>,
    return
  }
  func.func @transform_0(%arg0: i32) -> (i32, i32, i32) {
    %c0_i32 = arith.constant 0 : i32
    %c0_i32_0 = arith.constant 0 : i32
    %c0_i32_1 = arith.constant 0 : i32
    return %arg0, %c0_i32, %c0_i32_0 : i32, i32, i32
  }
  func.func @transform_1(%arg0: i32) -> (i32, i32) {
    %c0_i32 = arith.constant 0 : i32
    %c0_i32_0 = arith.constant 0 : i32
    %c0_i32_1 = arith.constant 0 : i32
    return %c0_i32, %c0_i32_0 : i32, i32
  }
  func.func @transform_2(%arg0: i32) -> (i32, i32) {
    %c0_i32 = arith.constant 0 : i32
    %c0_i32_0 = arith.constant 0 : i32
    %c0_i32_1 = arith.constant 0 : i32
    return %c0_i32, %c0_i32_0 : i32, i32
  }
  func.func @transform_3(%arg0: i32) -> (i32, i32, i32) {
    %c0_i32 = arith.constant 0 : i32
    %c0_i32_0 = arith.constant 0 : i32
    %c0_i32_1 = arith.constant 0 : i32
    return %arg0, %c0_i32, %c0_i32_0 : i32, i32, i32
  }
}

module attributes {stable_mosaic.version = 11 : i64} {
  func.func @_conv_relu_pool_kernel(%arg0: i32, %arg1: memref<1x1024x144xbf16, #tpu.memory_space<vmem>>, %arg2: memref<144x32xbf16, #tpu.memory_space<vmem>>, %arg3: memref<1x32xf32, #tpu.memory_space<vmem>>, %arg4: memref<1x256x32xf32, #tpu.memory_space<vmem>>) attributes {dimension_semantics = [#tpu.dimension_semantics<parallel>], iteration_bounds = array<i64: 2>, scalar_prefetch = 0 : i64, scratch_operands = 0 : i64, tpu.core_type = #tpu.core_type<tc>, window_params = [{transform_indices = @transform_0, window_bounds = array<i64: 1, 1024, 144>}, {pipeline_mode = #tpu.pipeline_mode<synchronous>, transform_indices = @transform_1, window_bounds = array<i64: 144, 32>}, {pipeline_mode = #tpu.pipeline_mode<synchronous>, transform_indices = @transform_2, window_bounds = array<i64: 1, 32>}, {transform_indices = @transform_3, window_bounds = array<i64: 1, 256, 32>}]} {
    %c0 = arith.constant 0 : index
    %c0_0 = arith.constant 0 : index
    %c0_1 = arith.constant 0 : index
    %0 = vector.load %arg1[%c0, %c0_0, %c0_1] : memref<1x1024x144xbf16, #tpu.memory_space<vmem>>, vector<1x1024x144xbf16>
    %1 = vector.shape_cast %0 : vector<1x1024x144xbf16> to vector<1024x144xbf16>
    %c0_2 = arith.constant 0 : index
    %c0_3 = arith.constant 0 : index
    %2 = vector.load %arg2[%c0_2, %c0_3] : memref<144x32xbf16, #tpu.memory_space<vmem>>, vector<144x32xbf16>
    %cst = arith.constant dense<0.000000e+00> : vector<1024x32xf32>
    %3 = tpu.matmul %1, %2, %cst {dimension_numbers = #tpu.dot_dimension_numbers<[1], [0], [0], [1], [0, 0, 1, 1], [], []>} : vector<1024x144xbf16>, vector<144x32xbf16>, vector<1024x32xf32> -> vector<1024x32xf32>
    %4 = vector.extract_strided_slice %3 {offsets = [0, 0], sizes = [256, 32], strides = [1, 1]} : vector<1024x32xf32> to vector<256x32xf32>
    %5 = vector.extract_strided_slice %3 {offsets = [256, 0], sizes = [256, 32], strides = [1, 1]} : vector<1024x32xf32> to vector<256x32xf32>
    %6 = arith.maximumf %4, %5 : vector<256x32xf32>
    %7 = vector.extract_strided_slice %3 {offsets = [512, 0], sizes = [256, 32], strides = [1, 1]} : vector<1024x32xf32> to vector<256x32xf32>
    %8 = vector.extract_strided_slice %3 {offsets = [768, 0], sizes = [256, 32], strides = [1, 1]} : vector<1024x32xf32> to vector<256x32xf32>
    %9 = arith.maximumf %7, %8 : vector<256x32xf32>
    %10 = arith.maximumf %6, %9 : vector<256x32xf32>
    %c0_4 = arith.constant 0 : index
    %c0_5 = arith.constant 0 : index
    %11 = vector.load %arg3[%c0_4, %c0_5] : memref<1x32xf32, #tpu.memory_space<vmem>>, vector<1x32xf32>
    %12 = vector.broadcast %11 : vector<1x32xf32> to vector<256x32xf32>
    %13 = arith.addf %10, %12 : vector<256x32xf32>
    %cst_6 = arith.constant 0.000000e+00 : f32
    %14 = vector.broadcast %cst_6 : f32 to vector<256x32xf32>
    %15 = arith.maximumf %13, %14 : vector<256x32xf32>
    %c0_7 = arith.constant 0 : index
    %c0_8 = arith.constant 0 : index
    %c0_9 = arith.constant 0 : index
    %16 = vector.load %arg4[%c0_7, %c0_8, %c0_9] : memref<1x256x32xf32, #tpu.memory_space<vmem>>, vector<1x256x32xf32>
    %17 = vector.shape_cast %16 : vector<1x256x32xf32> to vector<256x32xf32>
    %18 = vector.shape_cast %15 : vector<256x32xf32> to vector<1x256x32xf32>
    tpu.vector_store %arg4[%c0_7, %c0_8, %c0_9], %18 {strides = array<i32>} : memref<1x256x32xf32, #tpu.memory_space<vmem>>, vector<1x256x32xf32>,
    return
  }
  func.func @transform_0(%arg0: i32) -> (i32, i32, i32) {
    %c0_i32 = arith.constant 0 : i32
    %c0_i32_0 = arith.constant 0 : i32
    %c0_i32_1 = arith.constant 0 : i32
    return %arg0, %c0_i32, %c0_i32_0 : i32, i32, i32
  }
  func.func @transform_1(%arg0: i32) -> (i32, i32) {
    %c0_i32 = arith.constant 0 : i32
    %c0_i32_0 = arith.constant 0 : i32
    %c0_i32_1 = arith.constant 0 : i32
    return %c0_i32, %c0_i32_0 : i32, i32
  }
  func.func @transform_2(%arg0: i32) -> (i32, i32) {
    %c0_i32 = arith.constant 0 : i32
    %c0_i32_0 = arith.constant 0 : i32
    %c0_i32_1 = arith.constant 0 : i32
    return %c0_i32, %c0_i32_0 : i32, i32
  }
  func.func @transform_3(%arg0: i32) -> (i32, i32, i32) {
    %c0_i32 = arith.constant 0 : i32
    %c0_i32_0 = arith.constant 0 : i32
    %c0_i32_1 = arith.constant 0 : i32
    return %arg0, %c0_i32, %c0_i32_0 : i32, i32, i32
  }
}

module attributes {stable_mosaic.version = 11 : i64} {
  func.func @_mlp_kernel(%arg0: i32, %arg1: memref<2x8192xbf16, #tpu.memory_space<vmem>>, %arg2: memref<8192x128xbf16, #tpu.memory_space<vmem>>, %arg3: memref<1x128xf32, #tpu.memory_space<vmem>>, %arg4: memref<128x128xbf16, #tpu.memory_space<vmem>>, %arg5: memref<1x128xf32, #tpu.memory_space<vmem>>, %arg6: memref<2x128xf32, #tpu.memory_space<vmem>>) attributes {dimension_semantics = [#tpu.dimension_semantics<arbitrary>], iteration_bounds = array<i64: 1>, scalar_prefetch = 0 : i64, scratch_operands = 0 : i64, tpu.core_type = #tpu.core_type<tc>, window_params = [{pipeline_mode = #tpu.pipeline_mode<synchronous>, transform_indices = @transform_0, window_bounds = array<i64: 2, 8192>}, {pipeline_mode = #tpu.pipeline_mode<synchronous>, transform_indices = @transform_1, window_bounds = array<i64: 8192, 128>}, {pipeline_mode = #tpu.pipeline_mode<synchronous>, transform_indices = @transform_2, window_bounds = array<i64: 1, 128>}, {pipeline_mode = #tpu.pipeline_mode<synchronous>, transform_indices = @transform_3, window_bounds = array<i64: 128, 128>}, {pipeline_mode = #tpu.pipeline_mode<synchronous>, transform_indices = @transform_4, window_bounds = array<i64: 1, 128>}, {pipeline_mode = #tpu.pipeline_mode<synchronous>, transform_indices = @transform_5, window_bounds = array<i64: 2, 128>}]} {
    %c0 = arith.constant 0 : index
    %c0_0 = arith.constant 0 : index
    %0 = vector.load %arg1[%c0, %c0_0] : memref<2x8192xbf16, #tpu.memory_space<vmem>>, vector<2x8192xbf16>
    %c0_1 = arith.constant 0 : index
    %c0_2 = arith.constant 0 : index
    %1 = vector.load %arg2[%c0_1, %c0_2] : memref<8192x128xbf16, #tpu.memory_space<vmem>>, vector<8192x128xbf16>
    %cst = arith.constant dense<0.000000e+00> : vector<2x128xf32>
    %2 = tpu.matmul %0, %1, %cst {dimension_numbers = #tpu.dot_dimension_numbers<[1], [0], [0], [1], [0, 0, 1, 1], [], []>} : vector<2x8192xbf16>, vector<8192x128xbf16>, vector<2x128xf32> -> vector<2x128xf32>
    %c0_3 = arith.constant 0 : index
    %c0_4 = arith.constant 0 : index
    %3 = vector.load %arg3[%c0_3, %c0_4] : memref<1x128xf32, #tpu.memory_space<vmem>>, vector<1x128xf32>
    %4 = vector.broadcast %3 : vector<1x128xf32> to vector<2x128xf32>
    %5 = arith.addf %2, %4 : vector<2x128xf32>
    %cst_5 = arith.constant 0.000000e+00 : f32
    %6 = vector.broadcast %cst_5 : f32 to vector<2x128xf32>
    %7 = arith.maximumf %5, %6 : vector<2x128xf32>
    %8 = arith.truncf %7 : vector<2x128xf32> to vector<2x128xbf16>
    %c0_6 = arith.constant 0 : index
    %c0_7 = arith.constant 0 : index
    %9 = vector.load %arg4[%c0_6, %c0_7] : memref<128x128xbf16, #tpu.memory_space<vmem>>, vector<128x128xbf16>
    %cst_8 = arith.constant dense<0.000000e+00> : vector<2x128xf32>
    %10 = tpu.matmul %8, %9, %cst_8 {dimension_numbers = #tpu.dot_dimension_numbers<[1], [0], [0], [1], [0, 0, 1, 1], [], []>} : vector<2x128xbf16>, vector<128x128xbf16>, vector<2x128xf32> -> vector<2x128xf32>
    %c0_9 = arith.constant 0 : index
    %c0_10 = arith.constant 0 : index
    %11 = vector.load %arg5[%c0_9, %c0_10] : memref<1x128xf32, #tpu.memory_space<vmem>>, vector<1x128xf32>
    %12 = vector.broadcast %11 : vector<1x128xf32> to vector<2x128xf32>
    %13 = arith.addf %10, %12 : vector<2x128xf32>
    %cst_11 = arith.constant 0.000000e+00 : f32
    %14 = vector.broadcast %cst_11 : f32 to vector<2x128xf32>
    %15 = arith.maximumf %13, %14 : vector<2x128xf32>
    %c0_12 = arith.constant 0 : index
    %c0_13 = arith.constant 0 : index
    %16 = vector.load %arg6[%c0_12, %c0_13] : memref<2x128xf32, #tpu.memory_space<vmem>>, vector<2x128xf32>
    tpu.vector_store %arg6[%c0_12, %c0_13], %15 {strides = array<i32>} : memref<2x128xf32, #tpu.memory_space<vmem>>, vector<2x128xf32>,
    return
  }
  func.func @transform_0(%arg0: i32) -> (i32, i32) {
    %c0_i32 = arith.constant 0 : i32
    %c0_i32_0 = arith.constant 0 : i32
    %c0_i32_1 = arith.constant 0 : i32
    return %c0_i32, %c0_i32_0 : i32, i32
  }
  func.func @transform_1(%arg0: i32) -> (i32, i32) {
    %c0_i32 = arith.constant 0 : i32
    %c0_i32_0 = arith.constant 0 : i32
    %c0_i32_1 = arith.constant 0 : i32
    return %c0_i32, %c0_i32_0 : i32, i32
  }
  func.func @transform_2(%arg0: i32) -> (i32, i32) {
    %c0_i32 = arith.constant 0 : i32
    %c0_i32_0 = arith.constant 0 : i32
    %c0_i32_1 = arith.constant 0 : i32
    return %c0_i32, %c0_i32_0 : i32, i32
  }
  func.func @transform_3(%arg0: i32) -> (i32, i32) {
    %c0_i32 = arith.constant 0 : i32
    %c0_i32_0 = arith.constant 0 : i32
    %c0_i32_1 = arith.constant 0 : i32
    return %c0_i32, %c0_i32_0 : i32, i32
  }
  func.func @transform_4(%arg0: i32) -> (i32, i32) {
    %c0_i32 = arith.constant 0 : i32
    %c0_i32_0 = arith.constant 0 : i32
    %c0_i32_1 = arith.constant 0 : i32
    return %c0_i32, %c0_i32_0 : i32, i32
  }
  func.func @transform_5(%arg0: i32) -> (i32, i32) {
    %c0_i32 = arith.constant 0 : i32
    %c0_i32_0 = arith.constant 0 : i32
    %c0_i32_1 = arith.constant 0 : i32
    return %c0_i32, %c0_i32_0 : i32, i32
  }
}

</mosaic_0001>

<llo_original>
// kernel: simple_cnn_forward.3
$region0: #{simple_cnn_forward.3}
  #allocation0 [shape = 'u32[]', space=smem, size = 0x4, offset = 0x4, fixed_abs, tag = 'smem constant byte address 0x4 - core index']
  #allocation1 [shape = 'u32[72,128]{1,0:T(1,128)}', space=vmem, size = 0x9000, scoped, tag = 'internal scratch']
  %s0 = inlined_call_operand.vmem [shape: bf16[2,4096,27], index: 0, kind: input, shape index: {}]
  %s1 = inlined_call_operand.vmem [shape: bf16[27,16], index: 1, kind: input, shape index: {}]
  %s2 = inlined_call_operand.vmem [shape: f32[1,16], index: 2, kind: input, shape index: {}]
  %s3 = inlined_call_operand.vmem [shape: f32[2,1024,16], index: 3, kind: output, shape index: {}]
  %s4 = sld [smem:[#allocation0]]
  $region45: #{simple_cnn_forward.3} parent=0
    _
  %s6 = ssub.s32 1, %s4
  %s7 = scalar_select 0, %s6, %s4
  loop: start=0, step=1, limit=4
  $region2: #{simple_cnn_forward.3} parent=0 // loop_pre_header
    _
  $region3: #{simple_cnn_forward.3} parent=0 // loop_header
    %s9 = sphi 0, %s13
    %p10 = scmp.ge.s32.totalorder %s9, 4
    %s19 = sphi 0, %s21
    %s22 = sphi 0, %s19
    %s23 = sphi 0, %s22
    %s39 = sphi 0, %s23
    %s43 = sphi 0, %s43
    %s45 = sphi 0, %s43
    %s46 = sphi 0, %s45
    %s60 = sphi 0, %s46
    %s64 = sphi 0, %s64
    %s66 = sphi 0, %s64
    %s67 = sphi 0, %s66
    %s81 = sphi 0, %s67
    %s87 = sphi 0, %s89
    %s90 = sphi 0, %s87
    %s91 = sphi 0, %s90
    %s107 = sphi 0, %s91
  $region4: #{simple_cnn_forward.3} parent=0 // loop_header_branch
    %12 = sbr.rel (%p10) target = $region8
  $region5: #{simple_cnn_forward.3} parent=0 // loop_body
    %s14 = ssub.s32 %s9, 1
    %s15 = ssub.s32 %s9, 2
    %s16 = sadd.s32 %s9, 1
    %s17 = ssub.s32 %s9, %s16
    %p18 = scmp.eq.s32.totalorder %s17, 0
    %s20 = sadd.s32 %s19, 1
    %s21 = scalar_select %p18, %s19, %s20
    %p24 = pneg %p18
    %p25 = scmp.eq.s32.totalorder %s9, 1
    %p26 = por %p24, %p25
    %p27 = scmp.ne.s32.totalorder %s19, %s22
    %p28 = scmp.eq.s32.totalorder %s9, 0
    %p29 = por %p27, %p28
    %p30 = scmp.ne.s32.totalorder %s19, %s22
    %p31 = scmp.eq.s32.totalorder %s14, 1
    %p32 = por %p30, %p31
    %p33 = scmp.ne.s32.totalorder %s22, %s23
    %p34 = scmp.eq.s32.totalorder %s14, 0
    %p35 = por %p33, %p34
    %p36 = scmp.ne.s32.totalorder %s22, %s23
    %p37 = scmp.eq.s32.totalorder %s15, 1
    %p38 = por %p36, %p37
    %p40 = scmp.ne.s32.totalorder %s23, %s39
    %p41 = scmp.eq.s32.totalorder %s15, 0
    %p42 = por %p40, %p41
    %s44 = sadd.s32 %s43, 1
    %p47 = scmp.eq.s32.totalorder %s9, 1
    %p48 = scmp.ne.s32.totalorder %s43, %s45
    %p49 = scmp.eq.s32.totalorder %s9, 0
    %p50 = por %p48, %p49
    %p51 = scmp.ne.s32.totalorder %s43, %s45
    %p52 = scmp.eq.s32.totalorder %s14, 1
    %p53 = por %p51, %p52
    %p54 = scmp.ne.s32.totalorder %s45, %s46
    %p55 = scmp.eq.s32.totalorder %s14, 0
    %p56 = por %p54, %p55
    %p57 = scmp.ne.s32.totalorder %s45, %s46
    %p58 = scmp.eq.s32.totalorder %s15, 1
    %p59 = por %p57, %p58
    %p61 = scmp.ne.s32.totalorder %s46, %s60
    %p62 = scmp.eq.s32.totalorder %s15, 0
    %p63 = por %p61, %p62
    %s65 = sadd.s32 %s64, 1
    %p68 = scmp.eq.s32.totalorder %s9, 1
    %p69 = scmp.ne.s32.totalorder %s64, %s66
    %p70 = scmp.eq.s32.totalorder %s9, 0
    %p71 = por %p69, %p70
    %p72 = scmp.ne.s32.totalorder %s64, %s66
    %p73 = scmp.eq.s32.totalorder %s14, 1
    %p74 = por %p72, %p73
    %p75 = scmp.ne.s32.totalorder %s66, %s67
    %p76 = scmp.eq.s32.totalorder %s14, 0
    %p77 = por %p75, %p76
    %p78 = scmp.ne.s32.totalorder %s66, %s67
    %p79 = scmp.eq.s32.totalorder %s15, 1
    %p80 = por %p78, %p79
    %p82 = scmp.ne.s32.totalorder %s67, %s81
    %p83 = scmp.eq.s32.totalorder %s15, 0
    %p84 = por %p82, %p83
    %s85 = ssub.s32 %s9, %s16
    %p86 = scmp.eq.s32.totalorder %s85, 0
    %s88 = sadd.s32 %s87, 1
    %s89 = scalar_select %p86, %s87, %s88
    %p92 = pneg %p86
    %p93 = scmp.eq.s32.totalorder %s9, 1
    %p94 = por %p92, %p93
    %p95 = scmp.ne.s32.totalorder %s87, %s90
    %p96 = scmp.eq.s32.totalorder %s9, 0
    %p97 = por %p95, %p96
    %p98 = scmp.ne.s32.totalorder %s87, %s90
    %p99 = scmp.eq.s32.totalorder %s14, 1
    %p100 = por %p98, %p99
    %p101 = scmp.ne.s32.totalorder %s90, %s91
    %p102 = scmp.eq.s32.totalorder %s14, 0
    %p103 = por %p101, %p102
    %p104 = scmp.ne.s32.totalorder %s90, %s91
    %p105 = scmp.eq.s32.totalorder %s15, 1
    %p106 = por %p104, %p105
    %p108 = scmp.ne.s32.totalorder %s91, %s107
    %p109 = scmp.eq.s32.totalorder %s15, 0
    %p110 = por %p108, %p109
    %p111 = scmp.le.s32.totalorder 1, %s9
    %p112 = scmp.lt.s32.totalorder %s9, 3
    %p113 = pnand %p111, %p112
    %p114 = pneg %p113
    // Predicated region
    $region9: #{simple_cnn_forward.3} parent=5 // pred_check
      _
    $region10: #{simple_cnn_forward.3} parent=5 // pred_check_branch
      %116 = sbr.rel (%p113) target = $region12
    $region11: #{simple_cnn_forward.3} parent=5 // pred_region
      %s117 = ssub.s32 %s9, 1
      // Predicated region
      $region13: #{simple_cnn_forward.3} parent=11 // pred_check
        %p118 = pneg %p56
      $region14: #{simple_cnn_forward.3} parent=11 // pred_check_branch
        %120 = sbr.rel (%p118) target = $region16
      $region15: #{simple_cnn_forward.3} parent=11 // pred_region
        _
      $region16: #{simple_cnn_forward.3} parent=11 // pred_fallthru
        _
      // Predicated region
      $region17: #{simple_cnn_forward.3} parent=11 // pred_check
        %p121 = pneg %p77
      $region18: #{simple_cnn_forward.3} parent=11 // pred_check_branch
        %123 = sbr.rel (%p121) target = $region20
      $region19: #{simple_cnn_forward.3} parent=11 // pred_region
        _
      $region20: #{simple_cnn_forward.3} parent=11 // pred_fallthru
        _
    $region12: #{simple_cnn_forward.3} parent=5 // pred_fallthru
      _
    %p124 = scmp.lt.s32.totalorder %s9, 2
    // Predicated region
    $region21: #{simple_cnn_forward.3} parent=5 // pred_check
      %p125 = pneg %p124
    $region22: #{simple_cnn_forward.3} parent=5 // pred_check_branch
      %127 = sbr.rel (%p125) target = $region24
    $region23: #{simple_cnn_forward.3} parent=5 // pred_region
      // Predicated region
      $region25: #{simple_cnn_forward.3} parent=23 // pred_check
        %p128 = pneg %p29
      $region26: #{simple_cnn_forward.3} parent=23 // pred_check_branch
        %130 = sbr.rel (%p128) target = $region28
      $region27: #{simple_cnn_forward.3} parent=23 // pred_region
        %p131 = scmp.lt.s32.totalorder %s9, 1
        %s132 = scalar_select %p131, %s9, 1
        %s133 = smul.addr %s132, 512
        %s134 = smul.addr %s133, 4
        %s135 = scalar_lea.vmem %s0, %s134
      $region28: #{simple_cnn_forward.3} parent=23 // pred_fallthru
        _
    $region24: #{simple_cnn_forward.3} parent=5 // pred_fallthru
      _
    %p136 = scmp.le.s32.totalorder 1, %s9
    %p137 = scmp.lt.s32.totalorder %s9, 3
    %p138 = pnand %p136, %p137
    %p139 = pneg %p138
    // Predicated region
    $region29: #{simple_cnn_forward.3} parent=5 // pred_check
      _
    $region30: #{simple_cnn_forward.3} parent=5 // pred_check_branch
      %141 = sbr.rel (%p138) target = $region32
    $region31: #{simple_cnn_forward.3} parent=5 // pred_region
      %s142 = ssub.s32 %s9, 1
      %p143 = scmp.lt.s32.totalorder %s14, 1
      %s144 = scalar_select %p143, %s14, 1
      %s145 = smul.addr %s144, 512
      %s146 = smul.addr %s145, 4
      %s147 = scalar_lea.vmem %s0, %s146
      %p148 = pneg %p35
      %p149 = pneg %p32
      %p150 = pneg %p56
      %p151 = pneg %p53
      %p152 = pneg %p77
      %p153 = pneg %p74
      %p154 = pneg %p103
      %p155 = pneg %p100
      %p156 = scmp.lt.s32.totalorder %s14, 1
      %s157 = scalar_select %p156, %s14, 1
      %s158 = smul.addr %s157, 128
      %s159 = smul.addr %s158, 8
      %s160 = scalar_lea.vmem %s3, %s159
      %p161 = scmp.lt.s32.totalorder %s14, 1
      %s162 = scalar_select %p161, %s14, 1
      %s163 = smul.addr %s162, 512
      %s164 = smul.addr %s163, 4
      %s165 = scalar_lea.vmem %s0, %s164
      %p166 = scmp.lt.s32.totalorder %s14, 1
      %s167 = scalar_select %p166, %s14, 1
      %s168 = smul.addr %s167, 128
      %s169 = smul.addr %s168, 8
      %s170 = scalar_lea.vmem %s3, %s169
      %v172 = vld [vmem:[%s165] sm:$0xf]
      %v173 = vld [vmem:[%s165 + $0x4] sm:$0xf]
      %v174 = vld [vmem:[%s165 + $0x8] sm:$0xf]
      %v175 = vld [vmem:[%s165 + $0xc] sm:$0xf]
      %v176 = vld [vmem:[%s165 + $0x10] sm:$0xf]
      %v177 = vld [vmem:[%s165 + $0x14] sm:$0xf]
      %v178 = vld [vmem:[%s165 + $0x18] sm:$0xf]
      %v179 = vld [vmem:[%s165 + $0x1c] sm:$0xf]
      %v180 = vld [vmem:[%s165 + $0x20] sm:$0xf]
      %v181 = vld [vmem:[%s165 + $0x24] sm:$0xf]
      %v182 = vld [vmem:[%s165 + $0x28] sm:$0xf]
      %v183 = vld [vmem:[%s165 + $0x2c] sm:$0xf]
      %v184 = vld [vmem:[%s165 + $0x30] sm:$0xf]
      %v185 = vld [vmem:[%s165 + $0x34] sm:$0xf]
      %v186 = vld [vmem:[%s165 + $0x38] sm:$0xf]
      %v187 = vld [vmem:[%s165 + $0x3c] sm:$0xf]
      %v188 = vld [vmem:[%s165 + $0x40] sm:$0xf]
      %v189 = vld [vmem:[%s165 + $0x44] sm:$0xf]
      %v190 = vld [vmem:[%s165 + $0x48] sm:$0xf]
      %v191 = vld [vmem:[%s165 + $0x4c] sm:$0xf]
      %v192 = vld [vmem:[%s165 + $0x50] sm:$0xf]
      %v193 = vld [vmem:[%s165 + $0x54] sm:$0xf]
      %v194 = vld [vmem:[%s165 + $0x58] sm:$0xf]
      %v195 = vld [vmem:[%s165 + $0x5c] sm:$0xf]
      %v196 = vld [vmem:[%s165 + $0x60] sm:$0xf]
      %v197 = vld [vmem:[%s165 + $0x64] sm:$0xf]
      %v198 = vld [vmem:[%s165 + $0x68] sm:$0xf]
      %v199 = vld [vmem:[%s165 + $0x6c] sm:$0xf]
      %v200 = vld [vmem:[%s165 + $0x70] sm:$0xf]
      %v201 = vld [vmem:[%s165 + $0x74] sm:$0xf]
      %v202 = vld [vmem:[%s165 + $0x78] sm:$0xf]
      %v203 = vld [vmem:[%s165 + $0x7c] sm:$0xf]
      %v204 = vld [vmem:[%s165 + $0x80] sm:$0xf]
      %v205 = vld [vmem:[%s165 + $0x84] sm:$0xf]
      %v206 = vld [vmem:[%s165 + $0x88] sm:$0xf]
      %v207 = vld [vmem:[%s165 + $0x8c] sm:$0xf]
      %v208 = vld [vmem:[%s165 + $0x90] sm:$0xf]
      %v209 = vld [vmem:[%s165 + $0x94] sm:$0xf]
      %v210 = vld [vmem:[%s165 + $0x98] sm:$0xf]
      %v211 = vld [vmem:[%s165 + $0x9c] sm:$0xf]
      %v212 = vld [vmem:[%s165 + $0xa0] sm:$0xf]
      %v213 = vld [vmem:[%s165 + $0xa4] sm:$0xf]
      %v214 = vld [vmem:[%s165 + $0xa8] sm:$0xf]
      %v215 = vld [vmem:[%s165 + $0xac] sm:$0xf]
      %v216 = vld [vmem:[%s165 + $0xb0] sm:$0xf]
      %v217 = vld [vmem:[%s165 + $0xb4] sm:$0xf]
      %v218 = vld [vmem:[%s165 + $0xb8] sm:$0xf]
      %v219 = vld [vmem:[%s165 + $0xbc] sm:$0xf]
      %v220 = vld [vmem:[%s165 + $0xc0] sm:$0xf]
      %v221 = vld [vmem:[%s165 + $0xc4] sm:$0xf]
      %v222 = vld [vmem:[%s165 + $0xc8] sm:$0xf]
      %v223 = vld [vmem:[%s165 + $0xcc] sm:$0xf]
      %v224 = vld [vmem:[%s165 + $0xd0] sm:$0xf]
      %v225 = vld [vmem:[%s165 + $0xd4] sm:$0xf]
      %v226 = vld [vmem:[%s165 + $0xd8] sm:$0xf]
      %v227 = vld [vmem:[%s165 + $0xdc] sm:$0xf]
      %v228 = vld [vmem:[%s165 + $0xe0] sm:$0xf]
      %v229 = vld [vmem:[%s165 + $0xe4] sm:$0xf]
      %v230 = vld [vmem:[%s165 + $0xe8] sm:$0xf]
      %v231 = vld [vmem:[%s165 + $0xec] sm:$0xf]
      %v232 = vld [vmem:[%s165 + $0xf0] sm:$0xf]
      %v233 = vld [vmem:[%s165 + $0xf4] sm:$0xf]
      %v234 = vld [vmem:[%s165 + $0xf8] sm:$0xf]
      %v235 = vld [vmem:[%s165 + $0xfc] sm:$0xf]
      %v236 = vld [vmem:[%s165 + $0x100] sm:$0xf]
      %v237 = vld [vmem:[%s165 + $0x104] sm:$0xf]
      %v238 = vld [vmem:[%s165 + $0x108] sm:$0xf]
      %v239 = vld [vmem:[%s165 + $0x10c] sm:$0xf]
      %v240 = vld [vmem:[%s165 + $0x110] sm:$0xf]
      %v241 = vld [vmem:[%s165 + $0x114] sm:$0xf]
      %v242 = vld [vmem:[%s165 + $0x118] sm:$0xf]
      %v243 = vld [vmem:[%s165 + $0x11c] sm:$0xf]
      %v244 = vld [vmem:[%s165 + $0x120] sm:$0xf]
      %v245 = vld [vmem:[%s165 + $0x124] sm:$0xf]
      %v246 = vld [vmem:[%s165 + $0x128] sm:$0xf]
      %v247 = vld [vmem:[%s165 + $0x12c] sm:$0xf]
      %v248 = vld [vmem:[%s165 + $0x130] sm:$0xf]
      %v249 = vld [vmem:[%s165 + $0x134] sm:$0xf]
      %v250 = vld [vmem:[%s165 + $0x138] sm:$0xf]
      %v251 = vld [vmem:[%s165 + $0x13c] sm:$0xf]
      %v252 = vld [vmem:[%s165 + $0x140] sm:$0xf]
      %v253 = vld [vmem:[%s165 + $0x144] sm:$0xf]
      %v254 = vld [vmem:[%s165 + $0x148] sm:$0xf]
      %v255 = vld [vmem:[%s165 + $0x14c] sm:$0xf]
      %v256 = vld [vmem:[%s165 + $0x150] sm:$0xf]
      %v257 = vld [vmem:[%s165 + $0x154] sm:$0xf]
      %v258 = vld [vmem:[%s165 + $0x158] sm:$0xf]
      %v259 = vld [vmem:[%s165 + $0x15c] sm:$0xf]
      %v260 = vld [vmem:[%s165 + $0x160] sm:$0xf]
      %v261 = vld [vmem:[%s165 + $0x164] sm:$0xf]
      %v262 = vld [vmem:[%s165 + $0x168] sm:$0xf]
      %v263 = vld [vmem:[%s165 + $0x16c] sm:$0xf]
      %v264 = vld [vmem:[%s165 + $0x170] sm:$0xf]
      %v265 = vld [vmem:[%s165 + $0x174] sm:$0xf]
      %v266 = vld [vmem:[%s165 + $0x178] sm:$0xf]
      %v267 = vld [vmem:[%s165 + $0x17c] sm:$0xf]
      %v268 = vld [vmem:[%s165 + $0x180] sm:$0xf]
      %v269 = vld [vmem:[%s165 + $0x184] sm:$0xf]
      %v270 = vld [vmem:[%s165 + $0x188] sm:$0xf]
      %v271 = vld [vmem:[%s165 + $0x18c] sm:$0xf]
      %v272 = vld [vmem:[%s165 + $0x190] sm:$0xf]
      %v273 = vld [vmem:[%s165 + $0x194] sm:$0xf]
      %v274 = vld [vmem:[%s165 + $0x198] sm:$0xf]
      %v275 = vld [vmem:[%s165 + $0x19c] sm:$0xf]
      %v276 = vld [vmem:[%s165 + $0x1a0] sm:$0xf]
      %v277 = vld [vmem:[%s165 + $0x1a4] sm:$0xf]
      %v278 = vld [vmem:[%s165 + $0x1a8] sm:$0xf]
      %v279 = vld [vmem:[%s165 + $0x1ac] sm:$0xf]
      %v280 = vld [vmem:[%s165 + $0x1b0] sm:$0xf]
      %v281 = vld [vmem:[%s165 + $0x1b4] sm:$0xf]
      %v282 = vld [vmem:[%s165 + $0x1b8] sm:$0xf]
      %v283 = vld [vmem:[%s165 + $0x1bc] sm:$0xf]
      %v284 = vld [vmem:[%s165 + $0x1c0] sm:$0xf]
      %v285 = vld [vmem:[%s165 + $0x1c4] sm:$0xf]
      %v286 = vld [vmem:[%s165 + $0x1c8] sm:$0xf]
      %v287 = vld [vmem:[%s165 + $0x1cc] sm:$0xf]
      %v288 = vld [vmem:[%s165 + $0x1d0] sm:$0xf]
      %v289 = vld [vmem:[%s165 + $0x1d4] sm:$0xf]
      %v290 = vld [vmem:[%s165 + $0x1d8] sm:$0xf]
      %v291 = vld [vmem:[%s165 + $0x1dc] sm:$0xf]
      %v292 = vld [vmem:[%s165 + $0x1e0] sm:$0xf]
      %v293 = vld [vmem:[%s165 + $0x1e4] sm:$0xf]
      %v294 = vld [vmem:[%s165 + $0x1e8] sm:$0xf]
      %v295 = vld [vmem:[%s165 + $0x1ec] sm:$0xf]
      %v296 = vld [vmem:[%s165 + $0x1f0] sm:$0xf]
      %v297 = vld [vmem:[%s165 + $0x1f4] sm:$0xf]
      %v298 = vld [vmem:[%s165 + $0x1f8] sm:$0xf]
      %v299 = vld [vmem:[%s165 + $0x1fc] sm:$0xf]
      %v300 = vld [vmem:[%s165 + $0x200] sm:$0xf]
      %v301 = vld [vmem:[%s165 + $0x204] sm:$0xf]
      %v302 = vld [vmem:[%s165 + $0x208] sm:$0xf]
      %v303 = vld [vmem:[%s165 + $0x20c] sm:$0xf]
      %v304 = vld [vmem:[%s165 + $0x210] sm:$0xf]
      %v305 = vld [vmem:[%s165 + $0x214] sm:$0xf]
      %v306 = vld [vmem:[%s165 + $0x218] sm:$0xf]
      %v307 = vld [vmem:[%s165 + $0x21c] sm:$0xf]
      %v308 = vld [vmem:[%s165 + $0x220] sm:$0xf]
      %v309 = vld [vmem:[%s165 + $0x224] sm:$0xf]
      %v310 = vld [vmem:[%s165 + $0x228] sm:$0xf]
      %v311 = vld [vmem:[%s165 + $0x22c] sm:$0xf]
      %v312 = vld [vmem:[%s165 + $0x230] sm:$0xf]
      %v313 = vld [vmem:[%s165 + $0x234] sm:$0xf]
      %v314 = vld [vmem:[%s165 + $0x238] sm:$0xf]
      %v315 = vld [vmem:[%s165 + $0x23c] sm:$0xf]
      %v316 = vld [vmem:[%s165 + $0x240] sm:$0xf]
      %v317 = vld [vmem:[%s165 + $0x244] sm:$0xf]
      %v318 = vld [vmem:[%s165 + $0x248] sm:$0xf]
      %v319 = vld [vmem:[%s165 + $0x24c] sm:$0xf]
      %v320 = vld [vmem:[%s165 + $0x250] sm:$0xf]
      %v321 = vld [vmem:[%s165 + $0x254] sm:$0xf]
      %v322 = vld [vmem:[%s165 + $0x258] sm:$0xf]
      %v323 = vld [vmem:[%s165 + $0x25c] sm:$0xf]
      %v324 = vld [vmem:[%s165 + $0x260] sm:$0xf]
      %v325 = vld [vmem:[%s165 + $0x264] sm:$0xf]
      %v326 = vld [vmem:[%s165 + $0x268] sm:$0xf]
      %v327 = vld [vmem:[%s165 + $0x26c] sm:$0xf]
      %v328 = vld [vmem:[%s165 + $0x270] sm:$0xf]
      %v329 = vld [vmem:[%s165 + $0x274] sm:$0xf]
      %v330 = vld [vmem:[%s165 + $0x278] sm:$0xf]
      %v331 = vld [vmem:[%s165 + $0x27c] sm:$0xf]
      %v332 = vld [vmem:[%s165 + $0x280] sm:$0xf]
      %v333 = vld [vmem:[%s165 + $0x284] sm:$0xf]
      %v334 = vld [vmem:[%s165 + $0x288] sm:$0xf]
      %v335 = vld [vmem:[%s165 + $0x28c] sm:$0xf]
      %v336 = vld [vmem:[%s165 + $0x290] sm:$0xf]
      %v337 = vld [vmem:[%s165 + $0x294] sm:$0xf]
      %v338 = vld [vmem:[%s165 + $0x298] sm:$0xf]
      %v339 = vld [vmem:[%s165 + $0x29c] sm:$0xf]
      %v340 = vld [vmem:[%s165 + $0x2a0] sm:$0xf]
      %v341 = vld [vmem:[%s165 + $0x2a4] sm:$0xf]
      %v342 = vld [vmem:[%s165 + $0x2a8] sm:$0xf]
      %v343 = vld [vmem:[%s165 + $0x2ac] sm:$0xf]
      %v344 = vld [vmem:[%s165 + $0x2b0] sm:$0xf]
      %v345 = vld [vmem:[%s165 + $0x2b4] sm:$0xf]
      %v346 = vld [vmem:[%s165 + $0x2b8] sm:$0xf]
      %v347 = vld [vmem:[%s165 + $0x2bc] sm:$0xf]
      %v348 = vld [vmem:[%s165 + $0x2c0] sm:$0xf]
      %v349 = vld [vmem:[%s165 + $0x2c4] sm:$0xf]
      %v350 = vld [vmem:[%s165 + $0x2c8] sm:$0xf]
      %v351 = vld [vmem:[%s165 + $0x2cc] sm:$0xf]
      %v352 = vld [vmem:[%s165 + $0x2d0] sm:$0xf]
      %v353 = vld [vmem:[%s165 + $0x2d4] sm:$0xf]
      %v354 = vld [vmem:[%s165 + $0x2d8] sm:$0xf]
      %v355 = vld [vmem:[%s165 + $0x2dc] sm:$0xf]
      %v356 = vld [vmem:[%s165 + $0x2e0] sm:$0xf]
      %v357 = vld [vmem:[%s165 + $0x2e4] sm:$0xf]
      %v358 = vld [vmem:[%s165 + $0x2e8] sm:$0xf]
      %v359 = vld [vmem:[%s165 + $0x2ec] sm:$0xf]
      %v360 = vld [vmem:[%s165 + $0x2f0] sm:$0xf]
      %v361 = vld [vmem:[%s165 + $0x2f4] sm:$0xf]
      %v362 = vld [vmem:[%s165 + $0x2f8] sm:$0xf]
      %v363 = vld [vmem:[%s165 + $0x2fc] sm:$0xf]
      %v364 = vld [vmem:[%s165 + $0x300] sm:$0xf]
      %v365 = vld [vmem:[%s165 + $0x304] sm:$0xf]
      %v366 = vld [vmem:[%s165 + $0x308] sm:$0xf]
      %v367 = vld [vmem:[%s165 + $0x30c] sm:$0xf]
      %v368 = vld [vmem:[%s165 + $0x310] sm:$0xf]
      %v369 = vld [vmem:[%s165 + $0x314] sm:$0xf]
      %v370 = vld [vmem:[%s165 + $0x318] sm:$0xf]
      %v371 = vld [vmem:[%s165 + $0x31c] sm:$0xf]
      %v372 = vld [vmem:[%s165 + $0x320] sm:$0xf]
      %v373 = vld [vmem:[%s165 + $0x324] sm:$0xf]
      %v374 = vld [vmem:[%s165 + $0x328] sm:$0xf]
      %v375 = vld [vmem:[%s165 + $0x32c] sm:$0xf]
      %v376 = vld [vmem:[%s165 + $0x330] sm:$0xf]
      %v377 = vld [vmem:[%s165 + $0x334] sm:$0xf]
      %v378 = vld [vmem:[%s165 + $0x338] sm:$0xf]
      %v379 = vld [vmem:[%s165 + $0x33c] sm:$0xf]
      %v380 = vld [vmem:[%s165 + $0x340] sm:$0xf]
      %v381 = vld [vmem:[%s165 + $0x344] sm:$0xf]
      %v382 = vld [vmem:[%s165 + $0x348] sm:$0xf]
      %v383 = vld [vmem:[%s165 + $0x34c] sm:$0xf]
      %v384 = vld [vmem:[%s165 + $0x350] sm:$0xf]
      %v385 = vld [vmem:[%s165 + $0x354] sm:$0xf]
      %v386 = vld [vmem:[%s165 + $0x358] sm:$0xf]
      %v387 = vld [vmem:[%s165 + $0x35c] sm:$0xf]
      %v388 = vld [vmem:[%s165 + $0x360] sm:$0xf]
      %v389 = vld [vmem:[%s165 + $0x364] sm:$0xf]
      %v390 = vld [vmem:[%s165 + $0x368] sm:$0xf]
      %v391 = vld [vmem:[%s165 + $0x36c] sm:$0xf]
      %v392 = vld [vmem:[%s165 + $0x370] sm:$0xf]
      %v393 = vld [vmem:[%s165 + $0x374] sm:$0xf]
      %v394 = vld [vmem:[%s165 + $0x378] sm:$0xf]
      %v395 = vld [vmem:[%s165 + $0x37c] sm:$0xf]
      %v396 = vld [vmem:[%s165 + $0x380] sm:$0xf]
      %v397 = vld [vmem:[%s165 + $0x384] sm:$0xf]
      %v398 = vld [vmem:[%s165 + $0x388] sm:$0xf]
      %v399 = vld [vmem:[%s165 + $0x38c] sm:$0xf]
      %v400 = vld [vmem:[%s165 + $0x390] sm:$0xf]
      %v401 = vld [vmem:[%s165 + $0x394] sm:$0xf]
      %v402 = vld [vmem:[%s165 + $0x398] sm:$0xf]
      %v403 = vld [vmem:[%s165 + $0x39c] sm:$0xf]
      %v404 = vld [vmem:[%s165 + $0x3a0] sm:$0xf]
      %v405 = vld [vmem:[%s165 + $0x3a4] sm:$0xf]
      %v406 = vld [vmem:[%s165 + $0x3a8] sm:$0xf]
      %v407 = vld [vmem:[%s165 + $0x3ac] sm:$0xf]
      %v408 = vld [vmem:[%s165 + $0x3b0] sm:$0xf]
      %v409 = vld [vmem:[%s165 + $0x3b4] sm:$0xf]
      %v410 = vld [vmem:[%s165 + $0x3b8] sm:$0xf]
      %v411 = vld [vmem:[%s165 + $0x3bc] sm:$0xf]
      %v412 = vld [vmem:[%s165 + $0x3c0] sm:$0xf]
      %v413 = vld [vmem:[%s165 + $0x3c4] sm:$0xf]
      %v414 = vld [vmem:[%s165 + $0x3c8] sm:$0xf]
      %v415 = vld [vmem:[%s165 + $0x3cc] sm:$0xf]
      %v416 = vld [vmem:[%s165 + $0x3d0] sm:$0xf]
      %v417 = vld [vmem:[%s165 + $0x3d4] sm:$0xf]
      %v418 = vld [vmem:[%s165 + $0x3d8] sm:$0xf]
      %v419 = vld [vmem:[%s165 + $0x3dc] sm:$0xf]
      %v420 = vld [vmem:[%s165 + $0x3e0] sm:$0xf]
      %v421 = vld [vmem:[%s165 + $0x3e4] sm:$0xf]
      %v422 = vld [vmem:[%s165 + $0x3e8] sm:$0xf]
      %v423 = vld [vmem:[%s165 + $0x3ec] sm:$0xf]
      %v424 = vld [vmem:[%s165 + $0x3f0] sm:$0xf]
      %v425 = vld [vmem:[%s165 + $0x3f4] sm:$0xf]
      %v426 = vld [vmem:[%s165 + $0x3f8] sm:$0xf]
      %v427 = vld [vmem:[%s165 + $0x3fc] sm:$0xf]
      %v428 = vld [vmem:[%s165 + $0x400] sm:$0xf]
      %v429 = vld [vmem:[%s165 + $0x404] sm:$0xf]
      %v430 = vld [vmem:[%s165 + $0x408] sm:$0xf]
      %v431 = vld [vmem:[%s165 + $0x40c] sm:$0xf]
      %v432 = vld [vmem:[%s165 + $0x410] sm:$0xf]
      %v433 = vld [vmem:[%s165 + $0x414] sm:$0xf]
      %v434 = vld [vmem:[%s165 + $0x418] sm:$0xf]
      %v435 = vld [vmem:[%s165 + $0x41c] sm:$0xf]
      %v436 = vld [vmem:[%s165 + $0x420] sm:$0xf]
      %v437 = vld [vmem:[%s165 + $0x424] sm:$0xf]
      %v438 = vld [vmem:[%s165 + $0x428] sm:$0xf]
      %v439 = vld [vmem:[%s165 + $0x42c] sm:$0xf]
      %v440 = vld [vmem:[%s165 + $0x430] sm:$0xf]
      %v441 = vld [vmem:[%s165 + $0x434] sm:$0xf]
      %v442 = vld [vmem:[%s165 + $0x438] sm:$0xf]
      %v443 = vld [vmem:[%s165 + $0x43c] sm:$0xf]
      %v444 = vld [vmem:[%s165 + $0x440] sm:$0xf]
      %v445 = vld [vmem:[%s165 + $0x444] sm:$0xf]
      %v446 = vld [vmem:[%s165 + $0x448] sm:$0xf]
      %v447 = vld [vmem:[%s165 + $0x44c] sm:$0xf]
      %v448 = vld [vmem:[%s165 + $0x450] sm:$0xf]
      %v449 = vld [vmem:[%s165 + $0x454] sm:$0xf]
      %v450 = vld [vmem:[%s165 + $0x458] sm:$0xf]
      %v451 = vld [vmem:[%s165 + $0x45c] sm:$0xf]
      %v452 = vld [vmem:[%s165 + $0x460] sm:$0xf]
      %v453 = vld [vmem:[%s165 + $0x464] sm:$0xf]
      %v454 = vld [vmem:[%s165 + $0x468] sm:$0xf]
      %v455 = vld [vmem:[%s165 + $0x46c] sm:$0xf]
      %v456 = vld [vmem:[%s165 + $0x470] sm:$0xf]
      %v457 = vld [vmem:[%s165 + $0x474] sm:$0xf]
      %v458 = vld [vmem:[%s165 + $0x478] sm:$0xf]
      %v459 = vld [vmem:[%s165 + $0x47c] sm:$0xf]
      %v460 = vld [vmem:[%s165 + $0x480] sm:$0xf]
      %v461 = vld [vmem:[%s165 + $0x484] sm:$0xf]
      %v462 = vld [vmem:[%s165 + $0x488] sm:$0xf]
      %v463 = vld [vmem:[%s165 + $0x48c] sm:$0xf]
      %v464 = vld [vmem:[%s165 + $0x490] sm:$0xf]
      %v465 = vld [vmem:[%s165 + $0x494] sm:$0xf]
      %v466 = vld [vmem:[%s165 + $0x498] sm:$0xf]
      %v467 = vld [vmem:[%s165 + $0x49c] sm:$0xf]
      %v468 = vld [vmem:[%s165 + $0x4a0] sm:$0xf]
      %v469 = vld [vmem:[%s165 + $0x4a4] sm:$0xf]
      %v470 = vld [vmem:[%s165 + $0x4a8] sm:$0xf]
      %v471 = vld [vmem:[%s165 + $0x4ac] sm:$0xf]
      %v472 = vld [vmem:[%s165 + $0x4b0] sm:$0xf]
      %v473 = vld [vmem:[%s165 + $0x4b4] sm:$0xf]
      %v474 = vld [vmem:[%s165 + $0x4b8] sm:$0xf]
      %v475 = vld [vmem:[%s165 + $0x4bc] sm:$0xf]
      %v476 = vld [vmem:[%s165 + $0x4c0] sm:$0xf]
      %v477 = vld [vmem:[%s165 + $0x4c4] sm:$0xf]
      %v478 = vld [vmem:[%s165 + $0x4c8] sm:$0xf]
      %v479 = vld [vmem:[%s165 + $0x4cc] sm:$0xf]
      %v480 = vld [vmem:[%s165 + $0x4d0] sm:$0xf]
      %v481 = vld [vmem:[%s165 + $0x4d4] sm:$0xf]
      %v482 = vld [vmem:[%s165 + $0x4d8] sm:$0xf]
      %v483 = vld [vmem:[%s165 + $0x4dc] sm:$0xf]
      %v484 = vld [vmem:[%s165 + $0x4e0] sm:$0xf]
      %v485 = vld [vmem:[%s165 + $0x4e4] sm:$0xf]
      %v486 = vld [vmem:[%s165 + $0x4e8] sm:$0xf]
      %v487 = vld [vmem:[%s165 + $0x4ec] sm:$0xf]
      %v488 = vld [vmem:[%s165 + $0x4f0] sm:$0xf]
      %v489 = vld [vmem:[%s165 + $0x4f4] sm:$0xf]
      %v490 = vld [vmem:[%s165 + $0x4f8] sm:$0xf]
      %v491 = vld [vmem:[%s165 + $0x4fc] sm:$0xf]
      %v492 = vld [vmem:[%s165 + $0x500] sm:$0xf]
      %v493 = vld [vmem:[%s165 + $0x504] sm:$0xf]
      %v494 = vld [vmem:[%s165 + $0x508] sm:$0xf]
      %v495 = vld [vmem:[%s165 + $0x50c] sm:$0xf]
      %v496 = vld [vmem:[%s165 + $0x510] sm:$0xf]
      %v497 = vld [vmem:[%s165 + $0x514] sm:$0xf]
      %v498 = vld [vmem:[%s165 + $0x518] sm:$0xf]
      %v499 = vld [vmem:[%s165 + $0x51c] sm:$0xf]
      %v500 = vld [vmem:[%s165 + $0x520] sm:$0xf]
      %v501 = vld [vmem:[%s165 + $0x524] sm:$0xf]
      %v502 = vld [vmem:[%s165 + $0x528] sm:$0xf]
      %v503 = vld [vmem:[%s165 + $0x52c] sm:$0xf]
      %v504 = vld [vmem:[%s165 + $0x530] sm:$0xf]
      %v505 = vld [vmem:[%s165 + $0x534] sm:$0xf]
      %v506 = vld [vmem:[%s165 + $0x538] sm:$0xf]
      %v507 = vld [vmem:[%s165 + $0x53c] sm:$0xf]
      %v508 = vld [vmem:[%s165 + $0x540] sm:$0xf]
      %v509 = vld [vmem:[%s165 + $0x544] sm:$0xf]
      %v510 = vld [vmem:[%s165 + $0x548] sm:$0xf]
      %v511 = vld [vmem:[%s165 + $0x54c] sm:$0xf]
      %v512 = vld [vmem:[%s165 + $0x550] sm:$0xf]
      %v513 = vld [vmem:[%s165 + $0x554] sm:$0xf]
      %v514 = vld [vmem:[%s165 + $0x558] sm:$0xf]
      %v515 = vld [vmem:[%s165 + $0x55c] sm:$0xf]
      %v516 = vld [vmem:[%s165 + $0x560] sm:$0xf]
      %v517 = vld [vmem:[%s165 + $0x564] sm:$0xf]
      %v518 = vld [vmem:[%s165 + $0x568] sm:$0xf]
      %v519 = vld [vmem:[%s165 + $0x56c] sm:$0xf]
      %v520 = vld [vmem:[%s165 + $0x570] sm:$0xf]
      %v521 = vld [vmem:[%s165 + $0x574] sm:$0xf]
      %v522 = vld [vmem:[%s165 + $0x578] sm:$0xf]
      %v523 = vld [vmem:[%s165 + $0x57c] sm:$0xf]
      %v524 = vld [vmem:[%s165 + $0x580] sm:$0xf]
      %v525 = vld [vmem:[%s165 + $0x584] sm:$0xf]
      %v526 = vld [vmem:[%s165 + $0x588] sm:$0xf]
      %v527 = vld [vmem:[%s165 + $0x58c] sm:$0xf]
      %v528 = vld [vmem:[%s165 + $0x590] sm:$0xf]
      %v529 = vld [vmem:[%s165 + $0x594] sm:$0xf]
      %v530 = vld [vmem:[%s165 + $0x598] sm:$0xf]
      %v531 = vld [vmem:[%s165 + $0x59c] sm:$0xf]
      %v532 = vld [vmem:[%s165 + $0x5a0] sm:$0xf]
      %v533 = vld [vmem:[%s165 + $0x5a4] sm:$0xf]
      %v534 = vld [vmem:[%s165 + $0x5a8] sm:$0xf]
      %v535 = vld [vmem:[%s165 + $0x5ac] sm:$0xf]
      %v536 = vld [vmem:[%s165 + $0x5b0] sm:$0xf]
      %v537 = vld [vmem:[%s165 + $0x5b4] sm:$0xf]
      %v538 = vld [vmem:[%s165 + $0x5b8] sm:$0xf]
      %v539 = vld [vmem:[%s165 + $0x5bc] sm:$0xf]
      %v540 = vld [vmem:[%s165 + $0x5c0] sm:$0xf]
      %v541 = vld [vmem:[%s165 + $0x5c4] sm:$0xf]
      %v542 = vld [vmem:[%s165 + $0x5c8] sm:$0xf]
      %v543 = vld [vmem:[%s165 + $0x5cc] sm:$0xf]
      %v544 = vld [vmem:[%s165 + $0x5d0] sm:$0xf]
      %v545 = vld [vmem:[%s165 + $0x5d4] sm:$0xf]
      %v546 = vld [vmem:[%s165 + $0x5d8] sm:$0xf]
      %v547 = vld [vmem:[%s165 + $0x5dc] sm:$0xf]
      %v548 = vld [vmem:[%s165 + $0x5e0] sm:$0xf]
      %v549 = vld [vmem:[%s165 + $0x5e4] sm:$0xf]
      %v550 = vld [vmem:[%s165 + $0x5e8] sm:$0xf]
      %v551 = vld [vmem:[%s165 + $0x5ec] sm:$0xf]
      %v552 = vld [vmem:[%s165 + $0x5f0] sm:$0xf]
      %v553 = vld [vmem:[%s165 + $0x5f4] sm:$0xf]
      %v554 = vld [vmem:[%s165 + $0x5f8] sm:$0xf]
      %v555 = vld [vmem:[%s165 + $0x5fc] sm:$0xf]
      %v556 = vld [vmem:[%s165 + $0x600] sm:$0xf]
      %v557 = vld [vmem:[%s165 + $0x604] sm:$0xf]
      %v558 = vld [vmem:[%s165 + $0x608] sm:$0xf]
      %v559 = vld [vmem:[%s165 + $0x60c] sm:$0xf]
      %v560 = vld [vmem:[%s165 + $0x610] sm:$0xf]
      %v561 = vld [vmem:[%s165 + $0x614] sm:$0xf]
      %v562 = vld [vmem:[%s165 + $0x618] sm:$0xf]
      %v563 = vld [vmem:[%s165 + $0x61c] sm:$0xf]
      %v564 = vld [vmem:[%s165 + $0x620] sm:$0xf]
      %v565 = vld [vmem:[%s165 + $0x624] sm:$0xf]
      %v566 = vld [vmem:[%s165 + $0x628] sm:$0xf]
      %v567 = vld [vmem:[%s165 + $0x62c] sm:$0xf]
      %v568 = vld [vmem:[%s165 + $0x630] sm:$0xf]
      %v569 = vld [vmem:[%s165 + $0x634] sm:$0xf]
      %v570 = vld [vmem:[%s165 + $0x638] sm:$0xf]
      %v571 = vld [vmem:[%s165 + $0x63c] sm:$0xf]
      %v572 = vld [vmem:[%s165 + $0x640] sm:$0xf]
      %v573 = vld [vmem:[%s165 + $0x644] sm:$0xf]
      %v574 = vld [vmem:[%s165 + $0x648] sm:$0xf]
      %v575 = vld [vmem:[%s165 + $0x64c] sm:$0xf]
      %v576 = vld [vmem:[%s165 + $0x650] sm:$0xf]
      %v577 = vld [vmem:[%s165 + $0x654] sm:$0xf]
      %v578 = vld [vmem:[%s165 + $0x658] sm:$0xf]
      %v579 = vld [vmem:[%s165 + $0x65c] sm:$0xf]
      %v580 = vld [vmem:[%s165 + $0x660] sm:$0xf]
      %v581 = vld [vmem:[%s165 + $0x664] sm:$0xf]
      %v582 = vld [vmem:[%s165 + $0x668] sm:$0xf]
      %v583 = vld [vmem:[%s165 + $0x66c] sm:$0xf]
      %v584 = vld [vmem:[%s165 + $0x670] sm:$0xf]
      %v585 = vld [vmem:[%s165 + $0x674] sm:$0xf]
      %v586 = vld [vmem:[%s165 + $0x678] sm:$0xf]
      %v587 = vld [vmem:[%s165 + $0x67c] sm:$0xf]
      %v588 = vld [vmem:[%s165 + $0x680] sm:$0xf]
      %v589 = vld [vmem:[%s165 + $0x684] sm:$0xf]
      %v590 = vld [vmem:[%s165 + $0x688] sm:$0xf]
      %v591 = vld [vmem:[%s165 + $0x68c] sm:$0xf]
      %v592 = vld [vmem:[%s165 + $0x690] sm:$0xf]
      %v593 = vld [vmem:[%s165 + $0x694] sm:$0xf]
      %v594 = vld [vmem:[%s165 + $0x698] sm:$0xf]
      %v595 = vld [vmem:[%s165 + $0x69c] sm:$0xf]
      %v596 = vld [vmem:[%s165 + $0x6a0] sm:$0xf]
      %v597 = vld [vmem:[%s165 + $0x6a4] sm:$0xf]
      %v598 = vld [vmem:[%s165 + $0x6a8] sm:$0xf]
      %v599 = vld [vmem:[%s165 + $0x6ac] sm:$0xf]
      %v600 = vld [vmem:[%s165 + $0x6b0] sm:$0xf]
      %v601 = vld [vmem:[%s165 + $0x6b4] sm:$0xf]
      %v602 = vld [vmem:[%s165 + $0x6b8] sm:$0xf]
      %v603 = vld [vmem:[%s165 + $0x6bc] sm:$0xf]
      %v604 = vld [vmem:[%s165 + $0x6c0] sm:$0xf]
      %v605 = vld [vmem:[%s165 + $0x6c4] sm:$0xf]
      %v606 = vld [vmem:[%s165 + $0x6c8] sm:$0xf]
      %v607 = vld [vmem:[%s165 + $0x6cc] sm:$0xf]
      %v608 = vld [vmem:[%s165 + $0x6d0] sm:$0xf]
      %v609 = vld [vmem:[%s165 + $0x6d4] sm:$0xf]
      %v610 = vld [vmem:[%s165 + $0x6d8] sm:$0xf]
      %v611 = vld [vmem:[%s165 + $0x6dc] sm:$0xf]
      %v612 = vld [vmem:[%s165 + $0x6e0] sm:$0xf]
      %v613 = vld [vmem:[%s165 + $0x6e4] sm:$0xf]
      %v614 = vld [vmem:[%s165 + $0x6e8] sm:$0xf]
      %v615 = vld [vmem:[%s165 + $0x6ec] sm:$0xf]
      %v616 = vld [vmem:[%s165 + $0x6f0] sm:$0xf]
      %v617 = vld [vmem:[%s165 + $0x6f4] sm:$0xf]
      %v618 = vld [vmem:[%s165 + $0x6f8] sm:$0xf]
      %v619 = vld [vmem:[%s165 + $0x6fc] sm:$0xf]
      %v620 = vld [vmem:[%s165 + $0x700] sm:$0xf]
      %v621 = vld [vmem:[%s165 + $0x704] sm:$0xf]
      %v622 = vld [vmem:[%s165 + $0x708] sm:$0xf]
      %v623 = vld [vmem:[%s165 + $0x70c] sm:$0xf]
      %v624 = vld [vmem:[%s165 + $0x710] sm:$0xf]
      %v625 = vld [vmem:[%s165 + $0x714] sm:$0xf]
      %v626 = vld [vmem:[%s165 + $0x718] sm:$0xf]
      %v627 = vld [vmem:[%s165 + $0x71c] sm:$0xf]
      %v628 = vld [vmem:[%s165 + $0x720] sm:$0xf]
      %v629 = vld [vmem:[%s165 + $0x724] sm:$0xf]
      %v630 = vld [vmem:[%s165 + $0x728] sm:$0xf]
      %v631 = vld [vmem:[%s165 + $0x72c] sm:$0xf]
      %v632 = vld [vmem:[%s165 + $0x730] sm:$0xf]
      %v633 = vld [vmem:[%s165 + $0x734] sm:$0xf]
      %v634 = vld [vmem:[%s165 + $0x738] sm:$0xf]
      %v635 = vld [vmem:[%s165 + $0x73c] sm:$0xf]
      %v636 = vld [vmem:[%s165 + $0x740] sm:$0xf]
      %v637 = vld [vmem:[%s165 + $0x744] sm:$0xf]
      %v638 = vld [vmem:[%s165 + $0x748] sm:$0xf]
      %v639 = vld [vmem:[%s165 + $0x74c] sm:$0xf]
      %v640 = vld [vmem:[%s165 + $0x750] sm:$0xf]
      %v641 = vld [vmem:[%s165 + $0x754] sm:$0xf]
      %v642 = vld [vmem:[%s165 + $0x758] sm:$0xf]
      %v643 = vld [vmem:[%s165 + $0x75c] sm:$0xf]
      %v644 = vld [vmem:[%s165 + $0x760] sm:$0xf]
      %v645 = vld [vmem:[%s165 + $0x764] sm:$0xf]
      %v646 = vld [vmem:[%s165 + $0x768] sm:$0xf]
      %v647 = vld [vmem:[%s165 + $0x76c] sm:$0xf]
      %v648 = vld [vmem:[%s165 + $0x770] sm:$0xf]
      %v649 = vld [vmem:[%s165 + $0x774] sm:$0xf]
      %v650 = vld [vmem:[%s165 + $0x778] sm:$0xf]
      %v651 = vld [vmem:[%s165 + $0x77c] sm:$0xf]
      %v652 = vld [vmem:[%s165 + $0x780] sm:$0xf]
      %v653 = vld [vmem:[%s165 + $0x784] sm:$0xf]
      %v654 = vld [vmem:[%s165 + $0x788] sm:$0xf]
      %v655 = vld [vmem:[%s165 + $0x78c] sm:$0xf]
      %v656 = vld [vmem:[%s165 + $0x790] sm:$0xf]
      %v657 = vld [vmem:[%s165 + $0x794] sm:$0xf]
      %v658 = vld [vmem:[%s165 + $0x798] sm:$0xf]
      %v659 = vld [vmem:[%s165 + $0x79c] sm:$0xf]
      %v660 = vld [vmem:[%s165 + $0x7a0] sm:$0xf]
      %v661 = vld [vmem:[%s165 + $0x7a4] sm:$0xf]
      %v662 = vld [vmem:[%s165 + $0x7a8] sm:$0xf]
      %v663 = vld [vmem:[%s165 + $0x7ac] sm:$0xf]
      %v664 = vld [vmem:[%s165 + $0x7b0] sm:$0xf]
      %v665 = vld [vmem:[%s165 + $0x7b4] sm:$0xf]
      %v666 = vld [vmem:[%s165 + $0x7b8] sm:$0xf]
      %v667 = vld [vmem:[%s165 + $0x7bc] sm:$0xf]
      %v668 = vld [vmem:[%s165 + $0x7c0] sm:$0xf]
      %v669 = vld [vmem:[%s165 + $0x7c4] sm:$0xf]
      %v670 = vld [vmem:[%s165 + $0x7c8] sm:$0xf]
      %v671 = vld [vmem:[%s165 + $0x7cc] sm:$0xf]
      %v672 = vld [vmem:[%s165 + $0x7d0] sm:$0xf]
      %v673 = vld [vmem:[%s165 + $0x7d4] sm:$0xf]
      %v674 = vld [vmem:[%s165 + $0x7d8] sm:$0xf]
      %v675 = vld [vmem:[%s165 + $0x7dc] sm:$0xf]
      %v676 = vld [vmem:[%s165 + $0x7e0] sm:$0xf]
      %v677 = vld [vmem:[%s165 + $0x7e4] sm:$0xf]
      %v678 = vld [vmem:[%s165 + $0x7e8] sm:$0xf]
      %v679 = vld [vmem:[%s165 + $0x7ec] sm:$0xf]
      %v680 = vld [vmem:[%s165 + $0x7f0] sm:$0xf]
      %v681 = vld [vmem:[%s165 + $0x7f4] sm:$0xf]
      %v682 = vld [vmem:[%s165 + $0x7f8] sm:$0xf]
      %v683 = vld [vmem:[%s165 + $0x7fc] sm:$0xf]
      %v684 = vld [vmem:[%s1] sm:$0xf]
      %v685 = vld [vmem:[%s1 + $0x4] sm:$0xf]
      %v686 = vld [vmem:[%s1 + $0x8] sm:$0xf]
      %v687 = vld [vmem:[%s1 + $0xc] sm:$0x3]
      %v1200 = vunpack.c.l.b16 %v172
      %v1201 = vunpack.c.l.b16 %v173
      %v1202 = vunpack.c.l.b16 %v174
      %v1203 = vunpack.c.l.b16 %v175
      %v1204 = vunpack.c.l.b16 %v176
      %v1205 = vunpack.c.l.b16 %v177
      %v1206 = vunpack.c.l.b16 %v178
      %v1207 = vunpack.c.l.b16 %v179
      %v1208 = vunpack.c.l.b16 %v180
      %v1209 = vunpack.c.l.b16 %v181
      %v1210 = vunpack.c.l.b16 %v182
      %v1211 = vunpack.c.l.b16 %v183
      %v1212 = vunpack.c.l.b16 %v184
      %v1213 = vunpack.c.l.b16 %v185
      %v1214 = vunpack.c.l.b16 %v186
      %v1215 = vunpack.c.l.b16 %v187
      %v1216 = vunpack.c.l.b16 %v188
      %v1217 = vunpack.c.l.b16 %v189
      %v1218 = vunpack.c.l.b16 %v190
      %v1219 = vunpack.c.l.b16 %v191
      %v1220 = vunpack.c.l.b16 %v192
      %v1221 = vunpack.c.l.b16 %v193
      %v1222 = vunpack.c.l.b16 %v194
      %v1223 = vunpack.c.l.b16 %v195
      %v1224 = vunpack.c.l.b16 %v196
      %v1225 = vunpack.c.l.b16 %v197
      %v1226 = vunpack.c.l.b16 %v198
      %v1227 = vunpack.c.l.b16 %v199
      %v1228 = vunpack.c.l.b16 %v200
      %v1229 = vunpack.c.l.b16 %v201
      %v1230 = vunpack.c.l.b16 %v202
      %v1231 = vunpack.c.l.b16 %v203
      %v1232 = vunpack.c.l.b16 %v204
      %v1233 = vunpack.c.l.b16 %v205
      %v1234 = vunpack.c.l.b16 %v206
      %v1235 = vunpack.c.l.b16 %v207
      %v1236 = vunpack.c.l.b16 %v208
      %v1237 = vunpack.c.l.b16 %v209
      %v1238 = vunpack.c.l.b16 %v210
      %v1239 = vunpack.c.l.b16 %v211
      %v1240 = vunpack.c.l.b16 %v212
      %v1241 = vunpack.c.l.b16 %v213
      %v1242 = vunpack.c.l.b16 %v214
      %v1243 = vunpack.c.l.b16 %v215
      %v1244 = vunpack.c.l.b16 %v216
      %v1245 = vunpack.c.l.b16 %v217
      %v1246 = vunpack.c.l.b16 %v218
      %v1247 = vunpack.c.l.b16 %v219
      %v1248 = vunpack.c.l.b16 %v220
      %v1249 = vunpack.c.l.b16 %v221
      %v1250 = vunpack.c.l.b16 %v222
      %v1251 = vunpack.c.l.b16 %v223
      %v1252 = vunpack.c.l.b16 %v224
      %v1253 = vunpack.c.l.b16 %v225
      %v1254 = vunpack.c.l.b16 %v226
      %v1255 = vunpack.c.l.b16 %v227
      %v1256 = vunpack.c.l.b16 %v228
      %v1257 = vunpack.c.l.b16 %v229
      %v1258 = vunpack.c.l.b16 %v230
      %v1259 = vunpack.c.l.b16 %v231
      %v1260 = vunpack.c.l.b16 %v232
      %v1261 = vunpack.c.l.b16 %v233
      %v1262 = vunpack.c.l.b16 %v234
      %v1263 = vunpack.c.l.b16 %v235
      %v1264 = vunpack.c.l.b16 %v236
      %v1265 = vunpack.c.l.b16 %v237
      %v1266 = vunpack.c.l.b16 %v238
      %v1267 = vunpack.c.l.b16 %v239
      %v1268 = vunpack.c.l.b16 %v240
      %v1269 = vunpack.c.l.b16 %v241
      %v1270 = vunpack.c.l.b16 %v242
      %v1271 = vunpack.c.l.b16 %v243
      %v1272 = vunpack.c.l.b16 %v244
      %v1273 = vunpack.c.l.b16 %v245
      %v1274 = vunpack.c.l.b16 %v246
      %v1275 = vunpack.c.l.b16 %v247
      %v1276 = vunpack.c.l.b16 %v248
      %v1277 = vunpack.c.l.b16 %v249
      %v1278 = vunpack.c.l.b16 %v250
      %v1279 = vunpack.c.l.b16 %v251
      %v1280 = vunpack.c.l.b16 %v252
      %v1281 = vunpack.c.l.b16 %v253
      %v1282 = vunpack.c.l.b16 %v254
      %v1283 = vunpack.c.l.b16 %v255
      %v1284 = vunpack.c.l.b16 %v256
      %v1285 = vunpack.c.l.b16 %v257
      %v1286 = vunpack.c.l.b16 %v258
      %v1287 = vunpack.c.l.b16 %v259
      %v1288 = vunpack.c.l.b16 %v260
      %v1289 = vunpack.c.l.b16 %v261
      %v1290 = vunpack.c.l.b16 %v262
      %v1291 = vunpack.c.l.b16 %v263
      %v1292 = vunpack.c.l.b16 %v264
      %v1293 = vunpack.c.l.b16 %v265
      %v1294 = vunpack.c.l.b16 %v266
      %v1295 = vunpack.c.l.b16 %v267
      %v1296 = vunpack.c.l.b16 %v268
      %v1297 = vunpack.c.l.b16 %v269
      %v1298 = vunpack.c.l.b16 %v270
      %v1299 = vunpack.c.l.b16 %v271
      %v1300 = vunpack.c.l.b16 %v272
      %v1301 = vunpack.c.l.b16 %v273
      %v1302 = vunpack.c.l.b16 %v274
      %v1303 = vunpack.c.l.b16 %v275
      %v1304 = vunpack.c.l.b16 %v276
      %v1305 = vunpack.c.l.b16 %v277
      %v1306 = vunpack.c.l.b16 %v278
      %v1307 = vunpack.c.l.b16 %v279
      %v1308 = vunpack.c.l.b16 %v280
      %v1309 = vunpack.c.l.b16 %v281
      %v1310 = vunpack.c.l.b16 %v282
      %v1311 = vunpack.c.l.b16 %v283
      %v1312 = vunpack.c.l.b16 %v284
      %v1313 = vunpack.c.l.b16 %v285
      %v1314 = vunpack.c.l.b16 %v286
      %v1315 = vunpack.c.l.b16 %v287
      %v1316 = vunpack.c.l.b16 %v288
      %v1317 = vunpack.c.l.b16 %v289
      %v1318 = vunpack.c.l.b16 %v290
      %v1319 = vunpack.c.l.b16 %v291
      %v1320 = vunpack.c.l.b16 %v292
      %v1321 = vunpack.c.l.b16 %v293
      %v1322 = vunpack.c.l.b16 %v294
      %v1323 = vunpack.c.l.b16 %v295
      %v1324 = vunpack.c.l.b16 %v296
      %v1325 = vunpack.c.l.b16 %v297
      %v1326 = vunpack.c.l.b16 %v298
      %v1327 = vunpack.c.l.b16 %v299
      %v1328 = vunpack.c.l.b16 %v300
      %v1329 = vunpack.c.l.b16 %v301
      %v1330 = vunpack.c.l.b16 %v302
      %v1331 = vunpack.c.l.b16 %v303
      %v1332 = vunpack.c.l.b16 %v304
      %v1333 = vunpack.c.l.b16 %v305
      %v1334 = vunpack.c.l.b16 %v306
      %v1335 = vunpack.c.l.b16 %v307
      %v1336 = vunpack.c.l.b16 %v308
      %v1337 = vunpack.c.l.b16 %v309
      %v1338 = vunpack.c.l.b16 %v310
      %v1339 = vunpack.c.l.b16 %v311
      %v1340 = vunpack.c.l.b16 %v312
      %v1341 = vunpack.c.l.b16 %v313
      %v1342 = vunpack.c.l.b16 %v314
      %v1343 = vunpack.c.l.b16 %v315
      %v1344 = vunpack.c.l.b16 %v316
      %v1345 = vunpack.c.l.b16 %v317
      %v1346 = vunpack.c.l.b16 %v318
      %v1347 = vunpack.c.l.b16 %v319
      %v1348 = vunpack.c.l.b16 %v320
      %v1349 = vunpack.c.l.b16 %v321
      %v1350 = vunpack.c.l.b16 %v322
      %v1351 = vunpack.c.l.b16 %v323
      %v1352 = vunpack.c.l.b16 %v324
      %v1353 = vunpack.c.l.b16 %v325
      %v1354 = vunpack.c.l.b16 %v326
      %v1355 = vunpack.c.l.b16 %v327
      %v1356 = vunpack.c.l.b16 %v328
      %v1357 = vunpack.c.l.b16 %v329
      %v1358 = vunpack.c.l.b16 %v330
      %v1359 = vunpack.c.l.b16 %v331
      %v1360 = vunpack.c.l.b16 %v332
      %v1361 = vunpack.c.l.b16 %v333
      %v1362 = vunpack.c.l.b16 %v334
      %v1363 = vunpack.c.l.b16 %v335
      %v1364 = vunpack.c.l.b16 %v336
      %v1365 = vunpack.c.l.b16 %v337
      %v1366 = vunpack.c.l.b16 %v338
      %v1367 = vunpack.c.l.b16 %v339
      %v1368 = vunpack.c.l.b16 %v340
      %v1369 = vunpack.c.l.b16 %v341
      %v1370 = vunpack.c.l.b16 %v342
      %v1371 = vunpack.c.l.b16 %v343
      %v1372 = vunpack.c.l.b16 %v344
      %v1373 = vunpack.c.l.b16 %v345
      %v1374 = vunpack.c.l.b16 %v346
      %v1375 = vunpack.c.l.b16 %v347
      %v1376 = vunpack.c.l.b16 %v348
      %v1377 = vunpack.c.l.b16 %v349
      %v1378 = vunpack.c.l.b16 %v350
      %v1379 = vunpack.c.l.b16 %v351
      %v1380 = vunpack.c.l.b16 %v352
      %v1381 = vunpack.c.l.b16 %v353
      %v1382 = vunpack.c.l.b16 %v354
      %v1383 = vunpack.c.l.b16 %v355
      %v1384 = vunpack.c.l.b16 %v356
      %v1385 = vunpack.c.l.b16 %v357
      %v1386 = vunpack.c.l.b16 %v358
      %v1387 = vunpack.c.l.b16 %v359
      %v1388 = vunpack.c.l.b16 %v360
      %v1389 = vunpack.c.l.b16 %v361
      %v1390 = vunpack.c.l.b16 %v362
      %v1391 = vunpack.c.l.b16 %v363
      %v1392 = vunpack.c.l.b16 %v364
      %v1393 = vunpack.c.l.b16 %v365
      %v1394 = vunpack.c.l.b16 %v366
      %v1395 = vunpack.c.l.b16 %v367
      %v1396 = vunpack.c.l.b16 %v368
      %v1397 = vunpack.c.l.b16 %v369
      %v1398 = vunpack.c.l.b16 %v370
      %v1399 = vunpack.c.l.b16 %v371
      %v1400 = vunpack.c.l.b16 %v372
      %v1401 = vunpack.c.l.b16 %v373
      %v1402 = vunpack.c.l.b16 %v374
      %v1403 = vunpack.c.l.b16 %v375
      %v1404 = vunpack.c.l.b16 %v376
      %v1405 = vunpack.c.l.b16 %v377
      %v1406 = vunpack.c.l.b16 %v378
      %v1407 = vunpack.c.l.b16 %v379
      %v1408 = vunpack.c.l.b16 %v380
      %v1409 = vunpack.c.l.b16 %v381
      %v1410 = vunpack.c.l.b16 %v382
      %v1411 = vunpack.c.l.b16 %v383
      %v1412 = vunpack.c.l.b16 %v384
      %v1413 = vunpack.c.l.b16 %v385
      %v1414 = vunpack.c.l.b16 %v386
      %v1415 = vunpack.c.l.b16 %v387
      %v1416 = vunpack.c.l.b16 %v388
      %v1417 = vunpack.c.l.b16 %v389
      %v1418 = vunpack.c.l.b16 %v390
      %v1419 = vunpack.c.l.b16 %v391
      %v1420 = vunpack.c.l.b16 %v392
      %v1421 = vunpack.c.l.b16 %v393
      %v1422 = vunpack.c.l.b16 %v394
      %v1423 = vunpack.c.l.b16 %v395
      %v1424 = vunpack.c.l.b16 %v396
      %v1425 = vunpack.c.l.b16 %v397
      %v1426 = vunpack.c.l.b16 %v398
      %v1427 = vunpack.c.l.b16 %v399
      %v1428 = vunpack.c.l.b16 %v400
      %v1429 = vunpack.c.l.b16 %v401
      %v1430 = vunpack.c.l.b16 %v402
      %v1431 = vunpack.c.l.b16 %v403
      %v1432 = vunpack.c.l.b16 %v404
      %v1433 = vunpack.c.l.b16 %v405
      %v1434 = vunpack.c.l.b16 %v406
      %v1435 = vunpack.c.l.b16 %v407
      %v1436 = vunpack.c.l.b16 %v408
      %v1437 = vunpack.c.l.b16 %v409
      %v1438 = vunpack.c.l.b16 %v410
      %v1439 = vunpack.c.l.b16 %v411
      %v1440 = vunpack.c.l.b16 %v412
      %v1441 = vunpack.c.l.b16 %v413
      %v1442 = vunpack.c.l.b16 %v414
      %v1443 = vunpack.c.l.b16 %v415
      %v1444 = vunpack.c.l.b16 %v416
      %v1445 = vunpack.c.l.b16 %v417
      %v1446 = vunpack.c.l.b16 %v418
      %v1447 = vunpack.c.l.b16 %v419
      %v1448 = vunpack.c.l.b16 %v420
      %v1449 = vunpack.c.l.b16 %v421
      %v1450 = vunpack.c.l.b16 %v422
      %v1451 = vunpack.c.l.b16 %v423
      %v1452 = vunpack.c.l.b16 %v424
      %v1453 = vunpack.c.l.b16 %v425
      %v1454 = vunpack.c.l.b16 %v426
      %v1455 = vunpack.c.l.b16 %v427
      %v1456 = vunpack.c.l.b16 %v428
      %v1457 = vunpack.c.l.b16 %v429
      %v1458 = vunpack.c.l.b16 %v430
      %v1459 = vunpack.c.l.b16 %v431
      %v1460 = vunpack.c.l.b16 %v432
      %v1461 = vunpack.c.l.b16 %v433
      %v1462 = vunpack.c.l.b16 %v434
      %v1463 = vunpack.c.l.b16 %v435
      %v1464 = vunpack.c.l.b16 %v436
      %v1465 = vunpack.c.l.b16 %v437
      %v1466 = vunpack.c.l.b16 %v438
      %v1467 = vunpack.c.l.b16 %v439
      %v1468 = vunpack.c.l.b16 %v440
      %v1469 = vunpack.c.l.b16 %v441
      %v1470 = vunpack.c.l.b16 %v442
      %v1471 = vunpack.c.l.b16 %v443
      %v1472 = vunpack.c.l.b16 %v444
      %v1473 = vunpack.c.l.b16 %v445
      %v1474 = vunpack.c.l.b16 %v446
      %v1475 = vunpack.c.l.b16 %v447
      %v1476 = vunpack.c.l.b16 %v448
      %v1477 = vunpack.c.l.b16 %v449
      %v1478 = vunpack.c.l.b16 %v450
      %v1479 = vunpack.c.l.b16 %v451
      %v1480 = vunpack.c.l.b16 %v452
      %v1481 = vunpack.c.l.b16 %v453
      %v1482 = vunpack.c.l.b16 %v454
      %v1483 = vunpack.c.l.b16 %v455
      %v1484 = vunpack.c.l.b16 %v456
      %v1485 = vunpack.c.l.b16 %v457
      %v1486 = vunpack.c.l.b16 %v458
      %v1487 = vunpack.c.l.b16 %v459
      %v1488 = vunpack.c.l.b16 %v460
      %v1489 = vunpack.c.l.b16 %v461
      %v1490 = vunpack.c.l.b16 %v462
      %v1491 = vunpack.c.l.b16 %v463
      %v1492 = vunpack.c.l.b16 %v464
      %v1493 = vunpack.c.l.b16 %v465
      %v1494 = vunpack.c.l.b16 %v466
      %v1495 = vunpack.c.l.b16 %v467
      %v1496 = vunpack.c.l.b16 %v468
      %v1497 = vunpack.c.l.b16 %v469
      %v1498 = vunpack.c.l.b16 %v470
      %v1499 = vunpack.c.l.b16 %v471
      %v1500 = vunpack.c.l.b16 %v472
      %v1501 = vunpack.c.l.b16 %v473
      %v1502 = vunpack.c.l.b16 %v474
      %v1503 = vunpack.c.l.b16 %v475
      %v1504 = vunpack.c.l.b16 %v476
      %v1505 = vunpack.c.l.b16 %v477
      %v1506 = vunpack.c.l.b16 %v478
      %v1507 = vunpack.c.l.b16 %v479
      %v1508 = vunpack.c.l.b16 %v480
      %v1509 = vunpack.c.l.b16 %v481
      %v1510 = vunpack.c.l.b16 %v482
      %v1511 = vunpack.c.l.b16 %v483
      %v1512 = vunpack.c.l.b16 %v484
      %v1513 = vunpack.c.l.b16 %v485
      %v1514 = vunpack.c.l.b16 %v486
      %v1515 = vunpack.c.l.b16 %v487
      %v1516 = vunpack.c.l.b16 %v488
      %v1517 = vunpack.c.l.b16 %v489
      %v1518 = vunpack.c.l.b16 %v490
      %v1519 = vunpack.c.l.b16 %v491
      %v1520 = vunpack.c.l.b16 %v492
      %v1521 = vunpack.c.l.b16 %v493
      %v1522 = vunpack.c.l.b16 %v494
      %v1523 = vunpack.c.l.b16 %v495
      %v1524 = vunpack.c.l.b16 %v496
      %v1525 = vunpack.c.l.b16 %v497
      %v1526 = vunpack.c.l.b16 %v498
      %v1527 = vunpack.c.l.b16 %v499
      %v1528 = vunpack.c.l.b16 %v500
      %v1529 = vunpack.c.l.b16 %v501
      %v1530 = vunpack.c.l.b16 %v502
      %v1531 = vunpack.c.l.b16 %v503
      %v1532 = vunpack.c.l.b16 %v504
      %v1533 = vunpack.c.l.b16 %v505
      %v1534 = vunpack.c.l.b16 %v506
      %v1535 = vunpack.c.l.b16 %v507
      %v1536 = vunpack.c.l.b16 %v508
      %v1537 = vunpack.c.l.b16 %v509
      %v1538 = vunpack.c.l.b16 %v510
      %v1539 = vunpack.c.l.b16 %v511
      %v1540 = vunpack.c.l.b16 %v512
      %v1541 = vunpack.c.l.b16 %v513
      %v1542 = vunpack.c.l.b16 %v514
      %v1543 = vunpack.c.l.b16 %v515
      %v1544 = vunpack.c.l.b16 %v516
      %v1545 = vunpack.c.l.b16 %v517
      %v1546 = vunpack.c.l.b16 %v518
      %v1547 = vunpack.c.l.b16 %v519
      %v1548 = vunpack.c.l.b16 %v520
      %v1549 = vunpack.c.l.b16 %v521
      %v1550 = vunpack.c.l.b16 %v522
      %v1551 = vunpack.c.l.b16 %v523
      %v1552 = vunpack.c.l.b16 %v524
      %v1553 = vunpack.c.l.b16 %v525
      %v1554 = vunpack.c.l.b16 %v526
      %v1555 = vunpack.c.l.b16 %v527
      %v1556 = vunpack.c.l.b16 %v528
      %v1557 = vunpack.c.l.b16 %v529
      %v1558 = vunpack.c.l.b16 %v530
      %v1559 = vunpack.c.l.b16 %v531
      %v1560 = vunpack.c.l.b16 %v532
      %v1561 = vunpack.c.l.b16 %v533
      %v1562 = vunpack.c.l.b16 %v534
      %v1563 = vunpack.c.l.b16 %v535
      %v1564 = vunpack.c.l.b16 %v536
      %v1565 = vunpack.c.l.b16 %v537
      %v1566 = vunpack.c.l.b16 %v538
      %v1567 = vunpack.c.l.b16 %v539
      %v1568 = vunpack.c.l.b16 %v540
      %v1569 = vunpack.c.l.b16 %v541
      %v1570 = vunpack.c.l.b16 %v542
      %v1571 = vunpack.c.l.b16 %v543
      %v1572 = vunpack.c.l.b16 %v544
      %v1573 = vunpack.c.l.b16 %v545
      %v1574 = vunpack.c.l.b16 %v546
      %v1575 = vunpack.c.l.b16 %v547
      %v1576 = vunpack.c.l.b16 %v548
      %v1577 = vunpack.c.l.b16 %v549
      %v1578 = vunpack.c.l.b16 %v550
      %v1579 = vunpack.c.l.b16 %v551
      %v1580 = vunpack.c.l.b16 %v552
      %v1581 = vunpack.c.l.b16 %v553
      %v1582 = vunpack.c.l.b16 %v554
      %v1583 = vunpack.c.l.b16 %v555
      %v1584 = vunpack.c.l.b16 %v556
      %v1585 = vunpack.c.l.b16 %v557
      %v1586 = vunpack.c.l.b16 %v558
      %v1587 = vunpack.c.l.b16 %v559
      %v1588 = vunpack.c.l.b16 %v560
      %v1589 = vunpack.c.l.b16 %v561
      %v1590 = vunpack.c.l.b16 %v562
      %v1591 = vunpack.c.l.b16 %v563
      %v1592 = vunpack.c.l.b16 %v564
      %v1593 = vunpack.c.l.b16 %v565
      %v1594 = vunpack.c.l.b16 %v566
      %v1595 = vunpack.c.l.b16 %v567
      %v1596 = vunpack.c.l.b16 %v568
      %v1597 = vunpack.c.l.b16 %v569
      %v1598 = vunpack.c.l.b16 %v570
      %v1599 = vunpack.c.l.b16 %v571
      %v1600 = vunpack.c.l.b16 %v572
      %v1601 = vunpack.c.l.b16 %v573
      %v1602 = vunpack.c.l.b16 %v574
      %v1603 = vunpack.c.l.b16 %v575
      %v1604 = vunpack.c.l.b16 %v576
      %v1605 = vunpack.c.l.b16 %v577
      %v1606 = vunpack.c.l.b16 %v578
      %v1607 = vunpack.c.l.b16 %v579
      %v1608 = vunpack.c.l.b16 %v580
      %v1609 = vunpack.c.l.b16 %v581
      %v1610 = vunpack.c.l.b16 %v582
      %v1611 = vunpack.c.l.b16 %v583
      %v1612 = vunpack.c.l.b16 %v584
      %v1613 = vunpack.c.l.b16 %v585
      %v1614 = vunpack.c.l.b16 %v586
      %v1615 = vunpack.c.l.b16 %v587
      %v1616 = vunpack.c.l.b16 %v588
      %v1617 = vunpack.c.l.b16 %v589
      %v1618 = vunpack.c.l.b16 %v590
      %v1619 = vunpack.c.l.b16 %v591
      %v1620 = vunpack.c.l.b16 %v592
      %v1621 = vunpack.c.l.b16 %v593
      %v1622 = vunpack.c.l.b16 %v594
      %v1623 = vunpack.c.l.b16 %v595
      %v1624 = vunpack.c.l.b16 %v596
      %v1625 = vunpack.c.l.b16 %v597
      %v1626 = vunpack.c.l.b16 %v598
      %v1627 = vunpack.c.l.b16 %v599
      %v1628 = vunpack.c.l.b16 %v600
      %v1629 = vunpack.c.l.b16 %v601
      %v1630 = vunpack.c.l.b16 %v602
      %v1631 = vunpack.c.l.b16 %v603
      %v1632 = vunpack.c.l.b16 %v604
      %v1633 = vunpack.c.l.b16 %v605
      %v1634 = vunpack.c.l.b16 %v606
      %v1635 = vunpack.c.l.b16 %v607
      %v1636 = vunpack.c.l.b16 %v608
      %v1637 = vunpack.c.l.b16 %v609
      %v1638 = vunpack.c.l.b16 %v610
      %v1639 = vunpack.c.l.b16 %v611
      %v1640 = vunpack.c.l.b16 %v612
      %v1641 = vunpack.c.l.b16 %v613
      %v1642 = vunpack.c.l.b16 %v614
      %v1643 = vunpack.c.l.b16 %v615
      %v1644 = vunpack.c.l.b16 %v616
      %v1645 = vunpack.c.l.b16 %v617
      %v1646 = vunpack.c.l.b16 %v618
      %v1647 = vunpack.c.l.b16 %v619
      %v1648 = vunpack.c.l.b16 %v620
      %v1649 = vunpack.c.l.b16 %v621
      %v1650 = vunpack.c.l.b16 %v622
      %v1651 = vunpack.c.l.b16 %v623
      %v1652 = vunpack.c.l.b16 %v624
      %v1653 = vunpack.c.l.b16 %v625
      %v1654 = vunpack.c.l.b16 %v626
      %v1655 = vunpack.c.l.b16 %v627
      %v1656 = vunpack.c.l.b16 %v628
      %v1657 = vunpack.c.l.b16 %v629
      %v1658 = vunpack.c.l.b16 %v630
      %v1659 = vunpack.c.l.b16 %v631
      %v1660 = vunpack.c.l.b16 %v632
      %v1661 = vunpack.c.l.b16 %v633
      %v1662 = vunpack.c.l.b16 %v634
      %v1663 = vunpack.c.l.b16 %v635
      %v1664 = vunpack.c.l.b16 %v636
      %v1665 = vunpack.c.l.b16 %v637
      %v1666 = vunpack.c.l.b16 %v638
      %v1667 = vunpack.c.l.b16 %v639
      %v1668 = vunpack.c.l.b16 %v640
      %v1669 = vunpack.c.l.b16 %v641
      %v1670 = vunpack.c.l.b16 %v642
      %v1671 = vunpack.c.l.b16 %v643
      %v1672 = vunpack.c.l.b16 %v644
      %v1673 = vunpack.c.l.b16 %v645
      %v1674 = vunpack.c.l.b16 %v646
      %v1675 = vunpack.c.l.b16 %v647
      %v1676 = vunpack.c.l.b16 %v648
      %v1677 = vunpack.c.l.b16 %v649
      %v1678 = vunpack.c.l.b16 %v650
      %v1679 = vunpack.c.l.b16 %v651
      %v1680 = vunpack.c.l.b16 %v652
      %v1681 = vunpack.c.l.b16 %v653
      %v1682 = vunpack.c.l.b16 %v654
      %v1683 = vunpack.c.l.b16 %v655
      %v1684 = vunpack.c.l.b16 %v656
      %v1685 = vunpack.c.l.b16 %v657
      %v1686 = vunpack.c.l.b16 %v658
      %v1687 = vunpack.c.l.b16 %v659
      %v1688 = vunpack.c.l.b16 %v660
      %v1689 = vunpack.c.l.b16 %v661
      %v1690 = vunpack.c.l.b16 %v662
      %v1691 = vunpack.c.l.b16 %v663
      %v1692 = vunpack.c.l.b16 %v664
      %v1693 = vunpack.c.l.b16 %v665
      %v1694 = vunpack.c.l.b16 %v666
      %v1695 = vunpack.c.l.b16 %v667
      %v1696 = vunpack.c.l.b16 %v668
      %v1697 = vunpack.c.l.b16 %v669
      %v1698 = vunpack.c.l.b16 %v670
      %v1699 = vunpack.c.l.b16 %v671
      %v1700 = vunpack.c.l.b16 %v672
      %v1701 = vunpack.c.l.b16 %v673
      %v1702 = vunpack.c.l.b16 %v674
      %v1703 = vunpack.c.l.b16 %v675
      %v1704 = vunpack.c.l.b16 %v676
      %v1705 = vunpack.c.l.b16 %v677
      %v1706 = vunpack.c.l.b16 %v678
      %v1707 = vunpack.c.l.b16 %v679
      %v1708 = vunpack.c.l.b16 %v680
      %v1709 = vunpack.c.l.b16 %v681
      %v1710 = vunpack.c.l.b16 %v682
      %v1711 = vunpack.c.l.b16 %v683
      %v1712 = vpack.c.b16 %v1201, %v1200
      %v1713 = vpack.c.b16 %v1203, %v1202
      %v1714 = vpack.c.b16 %v1205, %v1204
      %v1715 = vpack.c.b16 %v1207, %v1206
      %v1716 = vpack.c.b16 %v1209, %v1208
      %v1717 = vpack.c.b16 %v1211, %v1210
      %v1718 = vpack.c.b16 %v1213, %v1212
      %v1719 = vpack.c.b16 %v1215, %v1214
      %v1720 = vpack.c.b16 %v1217, %v1216
      %v1721 = vpack.c.b16 %v1219, %v1218
      %v1722 = vpack.c.b16 %v1221, %v1220
      %v1723 = vpack.c.b16 %v1223, %v1222
      %v1724 = vpack.c.b16 %v1225, %v1224
      %v1725 = vpack.c.b16 %v1227, %v1226
      %v1726 = vpack.c.b16 %v1229, %v1228
      %v1727 = vpack.c.b16 %v1231, %v1230
      %v1728 = vpack.c.b16 %v1233, %v1232
      %v1729 = vpack.c.b16 %v1235, %v1234
      %v1730 = vpack.c.b16 %v1237, %v1236
      %v1731 = vpack.c.b16 %v1239, %v1238
      %v1732 = vpack.c.b16 %v1241, %v1240
      %v1733 = vpack.c.b16 %v1243, %v1242
      %v1734 = vpack.c.b16 %v1245, %v1244
      %v1735 = vpack.c.b16 %v1247, %v1246
      %v1736 = vpack.c.b16 %v1249, %v1248
      %v1737 = vpack.c.b16 %v1251, %v1250
      %v1738 = vpack.c.b16 %v1253, %v1252
      %v1739 = vpack.c.b16 %v1255, %v1254
      %v1740 = vpack.c.b16 %v1257, %v1256
      %v1741 = vpack.c.b16 %v1259, %v1258
      %v1742 = vpack.c.b16 %v1261, %v1260
      %v1743 = vpack.c.b16 %v1263, %v1262
      %v1744 = vpack.c.b16 %v1265, %v1264
      %v1745 = vpack.c.b16 %v1267, %v1266
      %v1746 = vpack.c.b16 %v1269, %v1268
      %v1747 = vpack.c.b16 %v1271, %v1270
      %v1748 = vpack.c.b16 %v1273, %v1272
      %v1749 = vpack.c.b16 %v1275, %v1274
      %v1750 = vpack.c.b16 %v1277, %v1276
      %v1751 = vpack.c.b16 %v1279, %v1278
      %v1752 = vpack.c.b16 %v1281, %v1280
      %v1753 = vpack.c.b16 %v1283, %v1282
      %v1754 = vpack.c.b16 %v1285, %v1284
      %v1755 = vpack.c.b16 %v1287, %v1286
      %v1756 = vpack.c.b16 %v1289, %v1288
      %v1757 = vpack.c.b16 %v1291, %v1290
      %v1758 = vpack.c.b16 %v1293, %v1292
      %v1759 = vpack.c.b16 %v1295, %v1294
      %v1760 = vpack.c.b16 %v1297, %v1296
      %v1761 = vpack.c.b16 %v1299, %v1298
      %v1762 = vpack.c.b16 %v1301, %v1300
      %v1763 = vpack.c.b16 %v1303, %v1302
      %v1764 = vpack.c.b16 %v1305, %v1304
      %v1765 = vpack.c.b16 %v1307, %v1306
      %v1766 = vpack.c.b16 %v1309, %v1308
      %v1767 = vpack.c.b16 %v1311, %v1310
      %v1768 = vpack.c.b16 %v1313, %v1312
      %v1769 = vpack.c.b16 %v1315, %v1314
      %v1770 = vpack.c.b16 %v1317, %v1316
      %v1771 = vpack.c.b16 %v1319, %v1318
      %v1772 = vpack.c.b16 %v1321, %v1320
      %v1773 = vpack.c.b16 %v1323, %v1322
      %v1774 = vpack.c.b16 %v1325, %v1324
      %v1775 = vpack.c.b16 %v1327, %v1326
      %v1776 = vpack.c.b16 %v1329, %v1328
      %v1777 = vpack.c.b16 %v1331, %v1330
      %v1778 = vpack.c.b16 %v1333, %v1332
      %v1779 = vpack.c.b16 %v1335, %v1334
      %v1780 = vpack.c.b16 %v1337, %v1336
      %v1781 = vpack.c.b16 %v1339, %v1338
      %v1782 = vpack.c.b16 %v1341, %v1340
      %v1783 = vpack.c.b16 %v1343, %v1342
      %v1784 = vpack.c.b16 %v1345, %v1344
      %v1785 = vpack.c.b16 %v1347, %v1346
      %v1786 = vpack.c.b16 %v1349, %v1348
      %v1787 = vpack.c.b16 %v1351, %v1350
      %v1788 = vpack.c.b16 %v1353, %v1352
      %v1789 = vpack.c.b16 %v1355, %v1354
      %v1790 = vpack.c.b16 %v1357, %v1356
      %v1791 = vpack.c.b16 %v1359, %v1358
      %v1792 = vpack.c.b16 %v1361, %v1360
      %v1793 = vpack.c.b16 %v1363, %v1362
      %v1794 = vpack.c.b16 %v1365, %v1364
      %v1795 = vpack.c.b16 %v1367, %v1366
      %v1796 = vpack.c.b16 %v1369, %v1368
      %v1797 = vpack.c.b16 %v1371, %v1370
      %v1798 = vpack.c.b16 %v1373, %v1372
      %v1799 = vpack.c.b16 %v1375, %v1374
      %v1800 = vpack.c.b16 %v1377, %v1376
      %v1801 = vpack.c.b16 %v1379, %v1378
      %v1802 = vpack.c.b16 %v1381, %v1380
      %v1803 = vpack.c.b16 %v1383, %v1382
      %v1804 = vpack.c.b16 %v1385, %v1384
      %v1805 = vpack.c.b16 %v1387, %v1386
      %v1806 = vpack.c.b16 %v1389, %v1388
      %v1807 = vpack.c.b16 %v1391, %v1390
      %v1808 = vpack.c.b16 %v1393, %v1392
      %v1809 = vpack.c.b16 %v1395, %v1394
      %v1810 = vpack.c.b16 %v1397, %v1396
      %v1811 = vpack.c.b16 %v1399, %v1398
      %v1812 = vpack.c.b16 %v1401, %v1400
      %v1813 = vpack.c.b16 %v1403, %v1402
      %v1814 = vpack.c.b16 %v1405, %v1404
      %v1815 = vpack.c.b16 %v1407, %v1406
      %v1816 = vpack.c.b16 %v1409, %v1408
      %v1817 = vpack.c.b16 %v1411, %v1410
      %v1818 = vpack.c.b16 %v1413, %v1412
      %v1819 = vpack.c.b16 %v1415, %v1414
      %v1820 = vpack.c.b16 %v1417, %v1416
      %v1821 = vpack.c.b16 %v1419, %v1418
      %v1822 = vpack.c.b16 %v1421, %v1420
      %v1823 = vpack.c.b16 %v1423, %v1422
      %v1824 = vpack.c.b16 %v1425, %v1424
      %v1825 = vpack.c.b16 %v1427, %v1426
      %v1826 = vpack.c.b16 %v1429, %v1428
      %v1827 = vpack.c.b16 %v1431, %v1430
      %v1828 = vpack.c.b16 %v1433, %v1432
      %v1829 = vpack.c.b16 %v1435, %v1434
      %v1830 = vpack.c.b16 %v1437, %v1436
      %v1831 = vpack.c.b16 %v1439, %v1438
      %v1832 = vpack.c.b16 %v1441, %v1440
      %v1833 = vpack.c.b16 %v1443, %v1442
      %v1834 = vpack.c.b16 %v1445, %v1444
      %v1835 = vpack.c.b16 %v1447, %v1446
      %v1836 = vpack.c.b16 %v1449, %v1448
      %v1837 = vpack.c.b16 %v1451, %v1450
      %v1838 = vpack.c.b16 %v1453, %v1452
      %v1839 = vpack.c.b16 %v1455, %v1454
      %v1840 = vpack.c.b16 %v1457, %v1456
      %v1841 = vpack.c.b16 %v1459, %v1458
      %v1842 = vpack.c.b16 %v1461, %v1460
      %v1843 = vpack.c.b16 %v1463, %v1462
      %v1844 = vpack.c.b16 %v1465, %v1464
      %v1845 = vpack.c.b16 %v1467, %v1466
      %v1846 = vpack.c.b16 %v1469, %v1468
      %v1847 = vpack.c.b16 %v1471, %v1470
      %v1848 = vpack.c.b16 %v1473, %v1472
      %v1849 = vpack.c.b16 %v1475, %v1474
      %v1850 = vpack.c.b16 %v1477, %v1476
      %v1851 = vpack.c.b16 %v1479, %v1478
      %v1852 = vpack.c.b16 %v1481, %v1480
      %v1853 = vpack.c.b16 %v1483, %v1482
      %v1854 = vpack.c.b16 %v1485, %v1484
      %v1855 = vpack.c.b16 %v1487, %v1486
      %v1856 = vpack.c.b16 %v1489, %v1488
      %v1857 = vpack.c.b16 %v1491, %v1490
      %v1858 = vpack.c.b16 %v1493, %v1492
      %v1859 = vpack.c.b16 %v1495, %v1494
      %v1860 = vpack.c.b16 %v1497, %v1496
      %v1861 = vpack.c.b16 %v1499, %v1498
      %v1862 = vpack.c.b16 %v1501, %v1500
      %v1863 = vpack.c.b16 %v1503, %v1502
      %v1864 = vpack.c.b16 %v1505, %v1504
      %v1865 = vpack.c.b16 %v1507, %v1506
      %v1866 = vpack.c.b16 %v1509, %v1508
      %v1867 = vpack.c.b16 %v1511, %v1510
      %v1868 = vpack.c.b16 %v1513, %v1512
      %v1869 = vpack.c.b16 %v1515, %v1514
      %v1870 = vpack.c.b16 %v1517, %v1516
      %v1871 = vpack.c.b16 %v1519, %v1518
      %v1872 = vpack.c.b16 %v1521, %v1520
      %v1873 = vpack.c.b16 %v1523, %v1522
      %v1874 = vpack.c.b16 %v1525, %v1524
      %v1875 = vpack.c.b16 %v1527, %v1526
      %v1876 = vpack.c.b16 %v1529, %v1528
      %v1877 = vpack.c.b16 %v1531, %v1530
      %v1878 = vpack.c.b16 %v1533, %v1532
      %v1879 = vpack.c.b16 %v1535, %v1534
      %v1880 = vpack.c.b16 %v1537, %v1536
      %v1881 = vpack.c.b16 %v1539, %v1538
      %v1882 = vpack.c.b16 %v1541, %v1540
      %v1883 = vpack.c.b16 %v1543, %v1542
      %v1884 = vpack.c.b16 %v1545, %v1544
      %v1885 = vpack.c.b16 %v1547, %v1546
      %v1886 = vpack.c.b16 %v1549, %v1548
      %v1887 = vpack.c.b16 %v1551, %v1550
      %v1888 = vpack.c.b16 %v1553, %v1552
      %v1889 = vpack.c.b16 %v1555, %v1554
      %v1890 = vpack.c.b16 %v1557, %v1556
      %v1891 = vpack.c.b16 %v1559, %v1558
      %v1892 = vpack.c.b16 %v1561, %v1560
      %v1893 = vpack.c.b16 %v1563, %v1562
      %v1894 = vpack.c.b16 %v1565, %v1564
      %v1895 = vpack.c.b16 %v1567, %v1566
      %v1896 = vpack.c.b16 %v1569, %v1568
      %v1897 = vpack.c.b16 %v1571, %v1570
      %v1898 = vpack.c.b16 %v1573, %v1572
      %v1899 = vpack.c.b16 %v1575, %v1574
      %v1900 = vpack.c.b16 %v1577, %v1576
      %v1901 = vpack.c.b16 %v1579, %v1578
      %v1902 = vpack.c.b16 %v1581, %v1580
      %v1903 = vpack.c.b16 %v1583, %v1582
      %v1904 = vpack.c.b16 %v1585, %v1584
      %v1905 = vpack.c.b16 %v1587, %v1586
      %v1906 = vpack.c.b16 %v1589, %v1588
      %v1907 = vpack.c.b16 %v1591, %v1590
      %v1908 = vpack.c.b16 %v1593, %v1592
      %v1909 = vpack.c.b16 %v1595, %v1594
      %v1910 = vpack.c.b16 %v1597, %v1596
      %v1911 = vpack.c.b16 %v1599, %v1598
      %v1912 = vpack.c.b16 %v1601, %v1600
      %v1913 = vpack.c.b16 %v1603, %v1602
      %v1914 = vpack.c.b16 %v1605, %v1604
      %v1915 = vpack.c.b16 %v1607, %v1606
      %v1916 = vpack.c.b16 %v1609, %v1608
      %v1917 = vpack.c.b16 %v1611, %v1610
      %v1918 = vpack.c.b16 %v1613, %v1612
      %v1919 = vpack.c.b16 %v1615, %v1614
      %v1920 = vpack.c.b16 %v1617, %v1616
      %v1921 = vpack.c.b16 %v1619, %v1618
      %v1922 = vpack.c.b16 %v1621, %v1620
      %v1923 = vpack.c.b16 %v1623, %v1622
      %v1924 = vpack.c.b16 %v1625, %v1624
      %v1925 = vpack.c.b16 %v1627, %v1626
      %v1926 = vpack.c.b16 %v1629, %v1628
      %v1927 = vpack.c.b16 %v1631, %v1630
      %v1928 = vpack.c.b16 %v1633, %v1632
      %v1929 = vpack.c.b16 %v1635, %v1634
      %v1930 = vpack.c.b16 %v1637, %v1636
      %v1931 = vpack.c.b16 %v1639, %v1638
      %v1932 = vpack.c.b16 %v1641, %v1640
      %v1933 = vpack.c.b16 %v1643, %v1642
      %v1934 = vpack.c.b16 %v1645, %v1644
      %v1935 = vpack.c.b16 %v1647, %v1646
      %v1936 = vpack.c.b16 %v1649, %v1648
      %v1937 = vpack.c.b16 %v1651, %v1650
      %v1938 = vpack.c.b16 %v1653, %v1652
      %v1939 = vpack.c.b16 %v1655, %v1654
      %v1940 = vpack.c.b16 %v1657, %v1656
      %v1941 = vpack.c.b16 %v1659, %v1658
      %v1942 = vpack.c.b16 %v1661, %v1660
      %v1943 = vpack.c.b16 %v1663, %v1662
      %v1944 = vpack.c.b16 %v1665, %v1664
      %v1945 = vpack.c.b16 %v1667, %v1666
      %v1946 = vpack.c.b16 %v1669, %v1668
      %v1947 = vpack.c.b16 %v1671, %v1670
      %v1948 = vpack.c.b16 %v1673, %v1672
      %v1949 = vpack.c.b16 %v1675, %v1674
      %v1950 = vpack.c.b16 %v1677, %v1676
      %v1951 = vpack.c.b16 %v1679, %v1678
      %v1952 = vpack.c.b16 %v1681, %v1680
      %v1953 = vpack.c.b16 %v1683, %v1682
      %v1954 = vpack.c.b16 %v1685, %v1684
      %v1955 = vpack.c.b16 %v1687, %v1686
      %v1956 = vpack.c.b16 %v1689, %v1688
      %v1957 = vpack.c.b16 %v1691, %v1690
      %v1958 = vpack.c.b16 %v1693, %v1692
      %v1959 = vpack.c.b16 %v1695, %v1694
      %v1960 = vpack.c.b16 %v1697, %v1696
      %v1961 = vpack.c.b16 %v1699, %v1698
      %v1962 = vpack.c.b16 %v1701, %v1700
      %v1963 = vpack.c.b16 %v1703, %v1702
      %v1964 = vpack.c.b16 %v1705, %v1704
      %v1965 = vpack.c.b16 %v1707, %v1706
      %v1966 = vpack.c.b16 %v1709, %v1708
      %v1967 = vpack.c.b16 %v1711, %v1710
      %v1972 = vunpack.c.l.b16 %v684
      %v1973 = vunpack.c.l.b16 %v685
      %v1974 = vunpack.c.l.b16 %v686
      %v1975 = vunpack.c.l.b16 %v687
      %v1976 = vpack.c.b16 %v1973, %v1972
      %v1977 = vpack.c.b16 %v1975, %v1974
      %vm1979 = vcmask 220160
      %v1981 = vsel %vm1979, %v1712, 0
      %v1984 = vsel %vm1979, %v1713, 0
      %v1987 = vsel %vm1979, %v1714, 0
      %v1990 = vsel %vm1979, %v1715, 0
      %v1993 = vsel %vm1979, %v1716, 0
      %v1996 = vsel %vm1979, %v1717, 0
      %v1999 = vsel %vm1979, %v1718, 0
      %v2002 = vsel %vm1979, %v1719, 0
      %v2005 = vsel %vm1979, %v1720, 0
      %v2008 = vsel %vm1979, %v1721, 0
      %v2011 = vsel %vm1979, %v1722, 0
      %v2014 = vsel %vm1979, %v1723, 0
      %v2017 = vsel %vm1979, %v1724, 0
      %v2020 = vsel %vm1979, %v1725, 0
      %v2023 = vsel %vm1979, %v1726, 0
      %v2026 = vsel %vm1979, %v1727, 0
      %v2029 = vsel %vm1979, %v1728, 0
      %v2032 = vsel %vm1979, %v1729, 0
      %v2035 = vsel %vm1979, %v1730, 0
      %v2038 = vsel %vm1979, %v1731, 0
      %v2041 = vsel %vm1979, %v1732, 0
      %v2044 = vsel %vm1979, %v1733, 0
      %v2047 = vsel %vm1979, %v1734, 0
      %v2050 = vsel %vm1979, %v1735, 0
      %v2053 = vsel %vm1979, %v1736, 0
      %v2056 = vsel %vm1979, %v1737, 0
      %v2059 = vsel %vm1979, %v1738, 0
      %v2062 = vsel %vm1979, %v1739, 0
      %v2065 = vsel %vm1979, %v1740, 0
      %v2068 = vsel %vm1979, %v1741, 0
      %v2071 = vsel %vm1979, %v1742, 0
      %v2074 = vsel %vm1979, %v1743, 0
      %v2077 = vsel %vm1979, %v1744, 0
      %v2080 = vsel %vm1979, %v1745, 0
      %v2083 = vsel %vm1979, %v1746, 0
      %v2086 = vsel %vm1979, %v1747, 0
      %v2089 = vsel %vm1979, %v1748, 0
      %v2092 = vsel %vm1979, %v1749, 0
      %v2095 = vsel %vm1979, %v1750, 0
      %v2098 = vsel %vm1979, %v1751, 0
      %v2101 = vsel %vm1979, %v1752, 0
      %v2104 = vsel %vm1979, %v1753, 0
      %v2107 = vsel %vm1979, %v1754, 0
      %v2110 = vsel %vm1979, %v1755, 0
      %v2113 = vsel %vm1979, %v1756, 0
      %v2116 = vsel %vm1979, %v1757, 0
      %v2119 = vsel %vm1979, %v1758, 0
      %v2122 = vsel %vm1979, %v1759, 0
      %v2125 = vsel %vm1979, %v1760, 0
      %v2128 = vsel %vm1979, %v1761, 0
      %v2131 = vsel %vm1979, %v1762, 0
      %v2134 = vsel %vm1979, %v1763, 0
      %v2137 = vsel %vm1979, %v1764, 0
      %v2140 = vsel %vm1979, %v1765, 0
      %v2143 = vsel %vm1979, %v1766, 0
      %v2146 = vsel %vm1979, %v1767, 0
      %v2149 = vsel %vm1979, %v1768, 0
      %v2152 = vsel %vm1979, %v1769, 0
      %v2155 = vsel %vm1979, %v1770, 0
      %v2158 = vsel %vm1979, %v1771, 0
      %v2161 = vsel %vm1979, %v1772, 0
      %v2164 = vsel %vm1979, %v1773, 0
      %v2167 = vsel %vm1979, %v1774, 0
      %v2170 = vsel %vm1979, %v1775, 0
      %v2173 = vsel %vm1979, %v1776, 0
      %v2176 = vsel %vm1979, %v1777, 0
      %v2179 = vsel %vm1979, %v1778, 0
      %v2182 = vsel %vm1979, %v1779, 0
      %v2185 = vsel %vm1979, %v1780, 0
      %v2188 = vsel %vm1979, %v1781, 0
      %v2191 = vsel %vm1979, %v1782, 0
      %v2194 = vsel %vm1979, %v1783, 0
      %v2197 = vsel %vm1979, %v1784, 0
      %v2200 = vsel %vm1979, %v1785, 0
      %v2203 = vsel %vm1979, %v1786, 0
      %v2206 = vsel %vm1979, %v1787, 0
      %v2209 = vsel %vm1979, %v1788, 0
      %v2212 = vsel %vm1979, %v1789, 0
      %v2215 = vsel %vm1979, %v1790, 0
      %v2218 = vsel %vm1979, %v1791, 0
      %v2221 = vsel %vm1979, %v1792, 0
      %v2224 = vsel %vm1979, %v1793, 0
      %v2227 = vsel %vm1979, %v1794, 0
      %v2230 = vsel %vm1979, %v1795, 0
      %v2233 = vsel %vm1979, %v1796, 0
      %v2236 = vsel %vm1979, %v1797, 0
      %v2239 = vsel %vm1979, %v1798, 0
      %v2242 = vsel %vm1979, %v1799, 0
      %v2245 = vsel %vm1979, %v1800, 0
      %v2248 = vsel %vm1979, %v1801, 0
      %v2251 = vsel %vm1979, %v1802, 0
      %v2254 = vsel %vm1979, %v1803, 0
      %v2257 = vsel %vm1979, %v1804, 0
      %v2260 = vsel %vm1979, %v1805, 0
      %v2263 = vsel %vm1979, %v1806, 0
      %v2266 = vsel %vm1979, %v1807, 0
      %v2269 = vsel %vm1979, %v1808, 0
      %v2272 = vsel %vm1979, %v1809, 0
      %v2275 = vsel %vm1979, %v1810, 0
      %v2278 = vsel %vm1979, %v1811, 0
      %v2281 = vsel %vm1979, %v1812, 0
      %v2284 = vsel %vm1979, %v1813, 0
      %v2287 = vsel %vm1979, %v1814, 0
      %v2290 = vsel %vm1979, %v1815, 0
      %v2293 = vsel %vm1979, %v1816, 0
      %v2296 = vsel %vm1979, %v1817, 0
      %v2299 = vsel %vm1979, %v1818, 0
      %v2302 = vsel %vm1979, %v1819, 0
      %v2305 = vsel %vm1979, %v1820, 0
      %v2308 = vsel %vm1979, %v1821, 0
      %v2311 = vsel %vm1979, %v1822, 0
      %v2314 = vsel %vm1979, %v1823, 0
      %v2317 = vsel %vm1979, %v1824, 0
      %v2320 = vsel %vm1979, %v1825, 0
      %v2323 = vsel %vm1979, %v1826, 0
      %v2326 = vsel %vm1979, %v1827, 0
      %v2329 = vsel %vm1979, %v1828, 0
      %v2332 = vsel %vm1979, %v1829, 0
      %v2335 = vsel %vm1979, %v1830, 0
      %v2338 = vsel %vm1979, %v1831, 0
      %v2341 = vsel %vm1979, %v1832, 0
      %v2344 = vsel %vm1979, %v1833, 0
      %v2347 = vsel %vm1979, %v1834, 0
      %v2350 = vsel %vm1979, %v1835, 0
      %v2353 = vsel %vm1979, %v1836, 0
      %v2356 = vsel %vm1979, %v1837, 0
      %v2359 = vsel %vm1979, %v1838, 0
      %v2362 = vsel %vm1979, %v1839, 0
      %v2365 = vsel %vm1979, %v1840, 0
      %v2368 = vsel %vm1979, %v1841, 0
      %v2371 = vsel %vm1979, %v1842, 0
      %v2374 = vsel %vm1979, %v1843, 0
      %v2377 = vsel %vm1979, %v1844, 0
      %v2380 = vsel %vm1979, %v1845, 0
      %v2383 = vsel %vm1979, %v1846, 0
      %v2386 = vsel %vm1979, %v1847, 0
      %v2389 = vsel %vm1979, %v1848, 0
      %v2392 = vsel %vm1979, %v1849, 0
      %v2395 = vsel %vm1979, %v1850, 0
      %v2398 = vsel %vm1979, %v1851, 0
      %v2401 = vsel %vm1979, %v1852, 0
      %v2404 = vsel %vm1979, %v1853, 0
      %v2407 = vsel %vm1979, %v1854, 0
      %v2410 = vsel %vm1979, %v1855, 0
      %v2413 = vsel %vm1979, %v1856, 0
      %v2416 = vsel %vm1979, %v1857, 0
      %v2419 = vsel %vm1979, %v1858, 0
      %v2422 = vsel %vm1979, %v1859, 0
      %v2425 = vsel %vm1979, %v1860, 0
      %v2428 = vsel %vm1979, %v1861, 0
      %v2431 = vsel %vm1979, %v1862, 0
      %v2434 = vsel %vm1979, %v1863, 0
      %v2437 = vsel %vm1979, %v1864, 0
      %v2440 = vsel %vm1979, %v1865, 0
      %v2443 = vsel %vm1979, %v1866, 0
      %v2446 = vsel %vm1979, %v1867, 0
      %v2449 = vsel %vm1979, %v1868, 0
      %v2452 = vsel %vm1979, %v1869, 0
      %v2455 = vsel %vm1979, %v1870, 0
      %v2458 = vsel %vm1979, %v1871, 0
      %v2461 = vsel %vm1979, %v1872, 0
      %v2464 = vsel %vm1979, %v1873, 0
      %v2467 = vsel %vm1979, %v1874, 0
      %v2470 = vsel %vm1979, %v1875, 0
      %v2473 = vsel %vm1979, %v1876, 0
      %v2476 = vsel %vm1979, %v1877, 0
      %v2479 = vsel %vm1979, %v1878, 0
      %v2482 = vsel %vm1979, %v1879, 0
      %v2485 = vsel %vm1979, %v1880, 0
      %v2488 = vsel %vm1979, %v1881, 0
      %v2491 = vsel %vm1979, %v1882, 0
      %v2494 = vsel %vm1979, %v1883, 0
      %v2497 = vsel %vm1979, %v1884, 0
      %v2500 = vsel %vm1979, %v1885, 0
      %v2503 = vsel %vm1979, %v1886, 0
      %v2506 = vsel %vm1979, %v1887, 0
      %v2509 = vsel %vm1979, %v1888, 0
      %v2512 = vsel %vm1979, %v1889, 0
      %v2515 = vsel %vm1979, %v1890, 0
      %v2518 = vsel %vm1979, %v1891, 0
      %v2521 = vsel %vm1979, %v1892, 0
      %v2524 = vsel %vm1979, %v1893, 0
      %v2527 = vsel %vm1979, %v1894, 0
      %v2530 = vsel %vm1979, %v1895, 0
      %v2533 = vsel %vm1979, %v1896, 0
      %v2536 = vsel %vm1979, %v1897, 0
      %v2539 = vsel %vm1979, %v1898, 0
      %v2542 = vsel %vm1979, %v1899, 0
      %v2545 = vsel %vm1979, %v1900, 0
      %v2548 = vsel %vm1979, %v1901, 0
      %v2551 = vsel %vm1979, %v1902, 0
      %v2554 = vsel %vm1979, %v1903, 0
      %v2557 = vsel %vm1979, %v1904, 0
      %v2560 = vsel %vm1979, %v1905, 0
      %v2563 = vsel %vm1979, %v1906, 0
      %v2566 = vsel %vm1979, %v1907, 0
      %v2569 = vsel %vm1979, %v1908, 0
      %v2572 = vsel %vm1979, %v1909, 0
      %v2575 = vsel %vm1979, %v1910, 0
      %v2578 = vsel %vm1979, %v1911, 0
      %v2581 = vsel %vm1979, %v1912, 0
      %v2584 = vsel %vm1979, %v1913, 0
      %v2587 = vsel %vm1979, %v1914, 0
      %v2590 = vsel %vm1979, %v1915, 0
      %v2593 = vsel %vm1979, %v1916, 0
      %v2596 = vsel %vm1979, %v1917, 0
      %v2599 = vsel %vm1979, %v1918, 0
      %v2602 = vsel %vm1979, %v1919, 0
      %v2605 = vsel %vm1979, %v1920, 0
      %v2608 = vsel %vm1979, %v1921, 0
      %v2611 = vsel %vm1979, %v1922, 0
      %v2614 = vsel %vm1979, %v1923, 0
      %v2617 = vsel %vm1979, %v1924, 0
      %v2620 = vsel %vm1979, %v1925, 0
      %v2623 = vsel %vm1979, %v1926, 0
      %v2626 = vsel %vm1979, %v1927, 0
      %v2629 = vsel %vm1979, %v1928, 0
      %v2632 = vsel %vm1979, %v1929, 0
      %v2635 = vsel %vm1979, %v1930, 0
      %v2638 = vsel %vm1979, %v1931, 0
      %v2641 = vsel %vm1979, %v1932, 0
      %v2644 = vsel %vm1979, %v1933, 0
      %v2647 = vsel %vm1979, %v1934, 0
      %v2650 = vsel %vm1979, %v1935, 0
      %v2653 = vsel %vm1979, %v1936, 0
      %v2656 = vsel %vm1979, %v1937, 0
      %v2659 = vsel %vm1979, %v1938, 0
      %v2662 = vsel %vm1979, %v1939, 0
      %v2665 = vsel %vm1979, %v1940, 0
      %v2668 = vsel %vm1979, %v1941, 0
      %v2671 = vsel %vm1979, %v1942, 0
      %v2674 = vsel %vm1979, %v1943, 0
      %v2677 = vsel %vm1979, %v1944, 0
      %v2680 = vsel %vm1979, %v1945, 0
      %v2683 = vsel %vm1979, %v1946, 0
      %v2686 = vsel %vm1979, %v1947, 0
      %v2689 = vsel %vm1979, %v1948, 0
      %v2692 = vsel %vm1979, %v1949, 0
      %v2695 = vsel %vm1979, %v1950, 0
      %v2698 = vsel %vm1979, %v1951, 0
      %v2701 = vsel %vm1979, %v1952, 0
      %v2704 = vsel %vm1979, %v1953, 0
      %v2707 = vsel %vm1979, %v1954, 0
      %v2710 = vsel %vm1979, %v1955, 0
      %v2713 = vsel %vm1979, %v1956, 0
      %v2716 = vsel %vm1979, %v1957, 0
      %v2719 = vsel %vm1979, %v1958, 0
      %v2722 = vsel %vm1979, %v1959, 0
      %v2725 = vsel %vm1979, %v1960, 0
      %v2728 = vsel %vm1979, %v1961, 0
      %v2731 = vsel %vm1979, %v1962, 0
      %v2734 = vsel %vm1979, %v1963, 0
      %v2737 = vsel %vm1979, %v1964, 0
      %v2740 = vsel %vm1979, %v1965, 0
      %v2743 = vsel %vm1979, %v1966, 0
      %v2746 = vsel %vm1979, %v1967, 0
      %vm2748 = vcmask 1044480
      %vm2749 = vcmask 1045504
      %v2750 = vsel %vm2748, 4294967295, 65535
      %v2751 = vsel %vm2749, %v2750, 0
      %v2753 = vand.u32 %v1977, %v2751
      %2755 = vmatpush.bf16.msra.mxu0 0
      %2756 = vmatpush.bf16.msra.mxu0 0
      %2757 = vmatpush.bf16.msra.mxu0 0
      %2758 = vmatpush.bf16.msra.mxu0 0
      %2759 = vmatpush.bf16.msra.mxu0 0
      %2760 = vmatpush.bf16.msra.mxu0 0
      %2761 = vmatpush.bf16.msra.mxu0 %v2753
      %2762 = vmatpush.bf16.msra.mxu0 %v1976
      %2763 = vmatmul.bf16.gmra.mxu0 %v1981
      %v2764 = vpop.f32.mrf.mxu0
      %v2765 = vadd.f32 0.0, %v2764
      %v2766 = vpop.f32.mrf.mxu0
      %v2767 = vadd.f32 0.0, %v2766
      %2768 = vmatmul.bf16.gmra.mxu0 %v1984
      %v2769 = vpop.f32.mrf.mxu0
      %v2770 = vadd.f32 0.0, %v2769
      %v2771 = vpop.f32.mrf.mxu0
      %v2772 = vadd.f32 0.0, %v2771
      %2773 = vmatmul.bf16.gmra.mxu0 %v1987
      %v2774 = vpop.f32.mrf.mxu0
      %v2775 = vadd.f32 0.0, %v2774
      %v2776 = vpop.f32.mrf.mxu0
      %v2777 = vadd.f32 0.0, %v2776
      %2778 = vmatmul.bf16.gmra.mxu0 %v1990
      %v2779 = vpop.f32.mrf.mxu0
      %v2780 = vadd.f32 0.0, %v2779
      %v2781 = vpop.f32.mrf.mxu0
      %v2782 = vadd.f32 0.0, %v2781
      %2783 = vmatmul.bf16.gmra.mxu0 %v1993
      %v2784 = vpop.f32.mrf.mxu0
      %v2785 = vadd.f32 0.0, %v2784
      %v2786 = vpop.f32.mrf.mxu0
      %v2787 = vadd.f32 0.0, %v2786
      %2788 = vmatmul.bf16.gmra.mxu0 %v1996
      %v2789 = vpop.f32.mrf.mxu0
      %v2790 = vadd.f32 0.0, %v2789
      %v2791 = vpop.f32.mrf.mxu0
      %v2792 = vadd.f32 0.0, %v2791
      %2793 = vmatmul.bf16.gmra.mxu0 %v1999
      %v2794 = vpop.f32.mrf.mxu0
      %v2795 = vadd.f32 0.0, %v2794
      %v2796 = vpop.f32.mrf.mxu0
      %v2797 = vadd.f32 0.0, %v2796
      %2798 = vmatmul.bf16.gmra.mxu0 %v2002
      %v2799 = vpop.f32.mrf.mxu0
      %v2800 = vadd.f32 0.0, %v2799
      %v2801 = vpop.f32.mrf.mxu0
      %v2802 = vadd.f32 0.0, %v2801
      %2803 = vmatmul.bf16.gmra.mxu0 %v2005
      %v2804 = vpop.f32.mrf.mxu0
      %v2805 = vadd.f32 0.0, %v2804
      %v2806 = vpop.f32.mrf.mxu0
      %v2807 = vadd.f32 0.0, %v2806
      %2808 = vmatmul.bf16.gmra.mxu0 %v2008
      %v2809 = vpop.f32.mrf.mxu0
      %v2810 = vadd.f32 0.0, %v2809
      %v2811 = vpop.f32.mrf.mxu0
      %v2812 = vadd.f32 0.0, %v2811
      %2813 = vmatmul.bf16.gmra.mxu0 %v2011
      %v2814 = vpop.f32.mrf.mxu0
      %v2815 = vadd.f32 0.0, %v2814
      %v2816 = vpop.f32.mrf.mxu0
      %v2817 = vadd.f32 0.0, %v2816
      %2818 = vmatmul.bf16.gmra.mxu0 %v2014
      %v2819 = vpop.f32.mrf.mxu0
      %v2820 = vadd.f32 0.0, %v2819
      %v2821 = vpop.f32.mrf.mxu0
      %v2822 = vadd.f32 0.0, %v2821
      %2823 = vmatmul.bf16.gmra.mxu0 %v2017
      %v2824 = vpop.f32.mrf.mxu0
      %v2825 = vadd.f32 0.0, %v2824
      %v2826 = vpop.f32.mrf.mxu0
      %v2827 = vadd.f32 0.0, %v2826
      %2828 = vmatmul.bf16.gmra.mxu0 %v2020
      %v2829 = vpop.f32.mrf.mxu0
      %v2830 = vadd.f32 0.0, %v2829
      %v2831 = vpop.f32.mrf.mxu0
      %v2832 = vadd.f32 0.0, %v2831
      %2833 = vmatmul.bf16.gmra.mxu0 %v2023
      %v2834 = vpop.f32.mrf.mxu0
      %v2835 = vadd.f32 0.0, %v2834
      %v2836 = vpop.f32.mrf.mxu0
      %v2837 = vadd.f32 0.0, %v2836
      %2838 = vmatmul.bf16.gmra.mxu0 %v2026
      %v2839 = vpop.f32.mrf.mxu0
      %v2840 = vadd.f32 0.0, %v2839
      %v2841 = vpop.f32.mrf.mxu0
      %v2842 = vadd.f32 0.0, %v2841
      %2843 = vmatmul.bf16.gmra.mxu0 %v2029
      %v2844 = vpop.f32.mrf.mxu0
      %v2845 = vadd.f32 0.0, %v2844
      %v2846 = vpop.f32.mrf.mxu0
      %v2847 = vadd.f32 0.0, %v2846
      %2848 = vmatmul.bf16.gmra.mxu0 %v2032
      %v2849 = vpop.f32.mrf.mxu0
      %v2850 = vadd.f32 0.0, %v2849
      %v2851 = vpop.f32.mrf.mxu0
      %v2852 = vadd.f32 0.0, %v2851
      %2853 = vmatmul.bf16.gmra.mxu0 %v2035
      %v2854 = vpop.f32.mrf.mxu0
      %v2855 = vadd.f32 0.0, %v2854
      %v2856 = vpop.f32.mrf.mxu0
      %v2857 = vadd.f32 0.0, %v2856
      %2858 = vmatmul.bf16.gmra.mxu0 %v2038
      %v2859 = vpop.f32.mrf.mxu0
      %v2860 = vadd.f32 0.0, %v2859
      %v2861 = vpop.f32.mrf.mxu0
      %v2862 = vadd.f32 0.0, %v2861
      %2863 = vmatmul.bf16.gmra.mxu0 %v2041
      %v2864 = vpop.f32.mrf.mxu0
      %v2865 = vadd.f32 0.0, %v2864
      %v2866 = vpop.f32.mrf.mxu0
      %v2867 = vadd.f32 0.0, %v2866
      %2868 = vmatmul.bf16.gmra.mxu0 %v2044
      %v2869 = vpop.f32.mrf.mxu0
      %v2870 = vadd.f32 0.0, %v2869
      %v2871 = vpop.f32.mrf.mxu0
      %v2872 = vadd.f32 0.0, %v2871
      %2873 = vmatmul.bf16.gmra.mxu0 %v2047
      %v2874 = vpop.f32.mrf.mxu0
      %v2875 = vadd.f32 0.0, %v2874
      %v2876 = vpop.f32.mrf.mxu0
      %v2877 = vadd.f32 0.0, %v2876
      %2878 = vmatmul.bf16.gmra.mxu0 %v2050
      %v2879 = vpop.f32.mrf.mxu0
      %v2880 = vadd.f32 0.0, %v2879
      %v2881 = vpop.f32.mrf.mxu0
      %v2882 = vadd.f32 0.0, %v2881
      %2883 = vmatmul.bf16.gmra.mxu0 %v2053
      %v2884 = vpop.f32.mrf.mxu0
      %v2885 = vadd.f32 0.0, %v2884
      %v2886 = vpop.f32.mrf.mxu0
      %v2887 = vadd.f32 0.0, %v2886
      %2888 = vmatmul.bf16.gmra.mxu0 %v2056
      %v2889 = vpop.f32.mrf.mxu0
      %v2890 = vadd.f32 0.0, %v2889
      %v2891 = vpop.f32.mrf.mxu0
      %v2892 = vadd.f32 0.0, %v2891
      %2893 = vmatmul.bf16.gmra.mxu0 %v2059
      %v2894 = vpop.f32.mrf.mxu0
      %v2895 = vadd.f32 0.0, %v2894
      %v2896 = vpop.f32.mrf.mxu0
      %v2897 = vadd.f32 0.0, %v2896
      %2898 = vmatmul.bf16.gmra.mxu0 %v2062
      %v2899 = vpop.f32.mrf.mxu0
      %v2900 = vadd.f32 0.0, %v2899
      %v2901 = vpop.f32.mrf.mxu0
      %v2902 = vadd.f32 0.0, %v2901
      %2903 = vmatmul.bf16.gmra.mxu0 %v2065
      %v2904 = vpop.f32.mrf.mxu0
      %v2905 = vadd.f32 0.0, %v2904
      %v2906 = vpop.f32.mrf.mxu0
      %v2907 = vadd.f32 0.0, %v2906
      %2908 = vmatmul.bf16.gmra.mxu0 %v2068
      %v2909 = vpop.f32.mrf.mxu0
      %v2910 = vadd.f32 0.0, %v2909
      %v2911 = vpop.f32.mrf.mxu0
      %v2912 = vadd.f32 0.0, %v2911
      %2913 = vmatmul.bf16.gmra.mxu0 %v2071
      %v2914 = vpop.f32.mrf.mxu0
      %v2915 = vadd.f32 0.0, %v2914
      %v2916 = vpop.f32.mrf.mxu0
      %v2917 = vadd.f32 0.0, %v2916
      %2918 = vmatmul.bf16.gmra.mxu0 %v2074
      %v2919 = vpop.f32.mrf.mxu0
      %v2920 = vadd.f32 0.0, %v2919
      %v2921 = vpop.f32.mrf.mxu0
      %v2922 = vadd.f32 0.0, %v2921
      %2923 = vmatmul.bf16.gmra.mxu0 %v2077
      %v2924 = vpop.f32.mrf.mxu0
      %v2925 = vadd.f32 0.0, %v2924
      %v2926 = vpop.f32.mrf.mxu0
      %v2927 = vadd.f32 0.0, %v2926
      %2928 = vmatmul.bf16.gmra.mxu0 %v2080
      %v2929 = vpop.f32.mrf.mxu0
      %v2930 = vadd.f32 0.0, %v2929
      %v2931 = vpop.f32.mrf.mxu0
      %v2932 = vadd.f32 0.0, %v2931
      %2933 = vmatmul.bf16.gmra.mxu0 %v2083
      %v2934 = vpop.f32.mrf.mxu0
      %v2935 = vadd.f32 0.0, %v2934
      %v2936 = vpop.f32.mrf.mxu0
      %v2937 = vadd.f32 0.0, %v2936
      %2938 = vmatmul.bf16.gmra.mxu0 %v2086
      %v2939 = vpop.f32.mrf.mxu0
      %v2940 = vadd.f32 0.0, %v2939
      %v2941 = vpop.f32.mrf.mxu0
      %v2942 = vadd.f32 0.0, %v2941
      %2943 = vmatmul.bf16.gmra.mxu0 %v2089
      %v2944 = vpop.f32.mrf.mxu0
      %v2945 = vadd.f32 0.0, %v2944
      %v2946 = vpop.f32.mrf.mxu0
      %v2947 = vadd.f32 0.0, %v2946
      %2948 = vmatmul.bf16.gmra.mxu0 %v2092
      %v2949 = vpop.f32.mrf.mxu0
      %v2950 = vadd.f32 0.0, %v2949
      %v2951 = vpop.f32.mrf.mxu0
      %v2952 = vadd.f32 0.0, %v2951
      %2953 = vmatmul.bf16.gmra.mxu0 %v2095
      %v2954 = vpop.f32.mrf.mxu0
      %v2955 = vadd.f32 0.0, %v2954
      %v2956 = vpop.f32.mrf.mxu0
      %v2957 = vadd.f32 0.0, %v2956
      %2958 = vmatmul.bf16.gmra.mxu0 %v2098
      %v2959 = vpop.f32.mrf.mxu0
      %v2960 = vadd.f32 0.0, %v2959
      %v2961 = vpop.f32.mrf.mxu0
      %v2962 = vadd.f32 0.0, %v2961
      %2963 = vmatmul.bf16.gmra.mxu0 %v2101
      %v2964 = vpop.f32.mrf.mxu0
      %v2965 = vadd.f32 0.0, %v2964
      %v2966 = vpop.f32.mrf.mxu0
      %v2967 = vadd.f32 0.0, %v2966
      %2968 = vmatmul.bf16.gmra.mxu0 %v2104
      %v2969 = vpop.f32.mrf.mxu0
      %v2970 = vadd.f32 0.0, %v2969
      %v2971 = vpop.f32.mrf.mxu0
      %v2972 = vadd.f32 0.0, %v2971
      %2973 = vmatmul.bf16.gmra.mxu0 %v2107
      %v2974 = vpop.f32.mrf.mxu0
      %v2975 = vadd.f32 0.0, %v2974
      %v2976 = vpop.f32.mrf.mxu0
      %v2977 = vadd.f32 0.0, %v2976
      %2978 = vmatmul.bf16.gmra.mxu0 %v2110
      %v2979 = vpop.f32.mrf.mxu0
      %v2980 = vadd.f32 0.0, %v2979
      %v2981 = vpop.f32.mrf.mxu0
      %v2982 = vadd.f32 0.0, %v2981
      %2983 = vmatmul.bf16.gmra.mxu0 %v2113
      %v2984 = vpop.f32.mrf.mxu0
      %v2985 = vadd.f32 0.0, %v2984
      %v2986 = vpop.f32.mrf.mxu0
      %v2987 = vadd.f32 0.0, %v2986
      %2988 = vmatmul.bf16.gmra.mxu0 %v2116
      %v2989 = vpop.f32.mrf.mxu0
      %v2990 = vadd.f32 0.0, %v2989
      %v2991 = vpop.f32.mrf.mxu0
      %v2992 = vadd.f32 0.0, %v2991
      %2993 = vmatmul.bf16.gmra.mxu0 %v2119
      %v2994 = vpop.f32.mrf.mxu0
      %v2995 = vadd.f32 0.0, %v2994
      %v2996 = vpop.f32.mrf.mxu0
      %v2997 = vadd.f32 0.0, %v2996
      %2998 = vmatmul.bf16.gmra.mxu0 %v2122
      %v2999 = vpop.f32.mrf.mxu0
      %v3000 = vadd.f32 0.0, %v2999
      %v3001 = vpop.f32.mrf.mxu0
      %v3002 = vadd.f32 0.0, %v3001
      %3003 = vmatmul.bf16.gmra.mxu0 %v2125
      %v3004 = vpop.f32.mrf.mxu0
      %v3005 = vadd.f32 0.0, %v3004
      %v3006 = vpop.f32.mrf.mxu0
      %v3007 = vadd.f32 0.0, %v3006
      %3008 = vmatmul.bf16.gmra.mxu0 %v2128
      %v3009 = vpop.f32.mrf.mxu0
      %v3010 = vadd.f32 0.0, %v3009
      %v3011 = vpop.f32.mrf.mxu0
      %v3012 = vadd.f32 0.0, %v3011
      %3013 = vmatmul.bf16.gmra.mxu0 %v2131
      %v3014 = vpop.f32.mrf.mxu0
      %v3015 = vadd.f32 0.0, %v3014
      %v3016 = vpop.f32.mrf.mxu0
      %v3017 = vadd.f32 0.0, %v3016
      %3018 = vmatmul.bf16.gmra.mxu0 %v2134
      %v3019 = vpop.f32.mrf.mxu0
      %v3020 = vadd.f32 0.0, %v3019
      %v3021 = vpop.f32.mrf.mxu0
      %v3022 = vadd.f32 0.0, %v3021
      %3023 = vmatmul.bf16.gmra.mxu0 %v2137
      %v3024 = vpop.f32.mrf.mxu0
      %v3025 = vadd.f32 0.0, %v3024
      %v3026 = vpop.f32.mrf.mxu0
      %v3027 = vadd.f32 0.0, %v3026
      %3028 = vmatmul.bf16.gmra.mxu0 %v2140
      %v3029 = vpop.f32.mrf.mxu0
      %v3030 = vadd.f32 0.0, %v3029
      %v3031 = vpop.f32.mrf.mxu0
      %v3032 = vadd.f32 0.0, %v3031
      %3033 = vmatmul.bf16.gmra.mxu0 %v2143
      %v3034 = vpop.f32.mrf.mxu0
      %v3035 = vadd.f32 0.0, %v3034
      %v3036 = vpop.f32.mrf.mxu0
      %v3037 = vadd.f32 0.0, %v3036
      %3038 = vmatmul.bf16.gmra.mxu0 %v2146
      %v3039 = vpop.f32.mrf.mxu0
      %v3040 = vadd.f32 0.0, %v3039
      %v3041 = vpop.f32.mrf.mxu0
      %v3042 = vadd.f32 0.0, %v3041
      %3043 = vmatmul.bf16.gmra.mxu0 %v2149
      %v3044 = vpop.f32.mrf.mxu0
      %v3045 = vadd.f32 0.0, %v3044
      %v3046 = vpop.f32.mrf.mxu0
      %v3047 = vadd.f32 0.0, %v3046
      %3048 = vmatmul.bf16.gmra.mxu0 %v2152
      %v3049 = vpop.f32.mrf.mxu0
      %v3050 = vadd.f32 0.0, %v3049
      %v3051 = vpop.f32.mrf.mxu0
      %v3052 = vadd.f32 0.0, %v3051
      %3053 = vmatmul.bf16.gmra.mxu0 %v2155
      %v3054 = vpop.f32.mrf.mxu0
      %v3055 = vadd.f32 0.0, %v3054
      %v3056 = vpop.f32.mrf.mxu0
      %v3057 = vadd.f32 0.0, %v3056
      %3058 = vmatmul.bf16.gmra.mxu0 %v2158
      %v3059 = vpop.f32.mrf.mxu0
      %v3060 = vadd.f32 0.0, %v3059
      %v3061 = vpop.f32.mrf.mxu0
      %v3062 = vadd.f32 0.0, %v3061
      %3063 = vmatmul.bf16.gmra.mxu0 %v2161
      %v3064 = vpop.f32.mrf.mxu0
      %v3065 = vadd.f32 0.0, %v3064
      %v3066 = vpop.f32.mrf.mxu0
      %v3067 = vadd.f32 0.0, %v3066
      %3068 = vmatmul.bf16.gmra.mxu0 %v2164
      %v3069 = vpop.f32.mrf.mxu0
      %v3070 = vadd.f32 0.0, %v3069
      %v3071 = vpop.f32.mrf.mxu0
      %v3072 = vadd.f32 0.0, %v3071
      %3073 = vmatmul.bf16.gmra.mxu0 %v2167
      %v3074 = vpop.f32.mrf.mxu0
      %v3075 = vadd.f32 0.0, %v3074
      %v3076 = vpop.f32.mrf.mxu0
      %v3077 = vadd.f32 0.0, %v3076
      %3078 = vmatmul.bf16.gmra.mxu0 %v2170
      %v3079 = vpop.f32.mrf.mxu0
      %v3080 = vadd.f32 0.0, %v3079
      %v3081 = vpop.f32.mrf.mxu0
      %v3082 = vadd.f32 0.0, %v3081
      %3083 = vmatmul.bf16.gmra.mxu0 %v2173
      %v3084 = vpop.f32.mrf.mxu0
      %v3085 = vadd.f32 0.0, %v3084
      %v3086 = vpop.f32.mrf.mxu0
      %v3087 = vadd.f32 0.0, %v3086
      %3088 = vmatmul.bf16.gmra.mxu0 %v2176
      %v3089 = vpop.f32.mrf.mxu0
      %v3090 = vadd.f32 0.0, %v3089
      %v3091 = vpop.f32.mrf.mxu0
      %v3092 = vadd.f32 0.0, %v3091
      %3093 = vmatmul.bf16.gmra.mxu0 %v2179
      %v3094 = vpop.f32.mrf.mxu0
      %v3095 = vadd.f32 0.0, %v3094
      %v3096 = vpop.f32.mrf.mxu0
      %v3097 = vadd.f32 0.0, %v3096
      %3098 = vmatmul.bf16.gmra.mxu0 %v2182
      %v3099 = vpop.f32.mrf.mxu0
      %v3100 = vadd.f32 0.0, %v3099
      %v3101 = vpop.f32.mrf.mxu0
      %v3102 = vadd.f32 0.0, %v3101
      %3103 = vmatmul.bf16.gmra.mxu0 %v2185
      %v3104 = vpop.f32.mrf.mxu0
      %v3105 = vadd.f32 0.0, %v3104
      %v3106 = vpop.f32.mrf.mxu0
      %v3107 = vadd.f32 0.0, %v3106
      %3108 = vmatmul.bf16.gmra.mxu0 %v2188
      %v3109 = vpop.f32.mrf.mxu0
      %v3110 = vadd.f32 0.0, %v3109
      %v3111 = vpop.f32.mrf.mxu0
      %v3112 = vadd.f32 0.0, %v3111
      %3113 = vmatmul.bf16.gmra.mxu0 %v2191
      %v3114 = vpop.f32.mrf.mxu0
      %v3115 = vadd.f32 0.0, %v3114
      %v3116 = vpop.f32.mrf.mxu0
      %v3117 = vadd.f32 0.0, %v3116
      %3118 = vmatmul.bf16.gmra.mxu0 %v2194
      %v3119 = vpop.f32.mrf.mxu0
      %v3120 = vadd.f32 0.0, %v3119
      %v3121 = vpop.f32.mrf.mxu0
      %v3122 = vadd.f32 0.0, %v3121
      %3123 = vmatmul.bf16.gmra.mxu0 %v2197
      %v3124 = vpop.f32.mrf.mxu0
      %v3125 = vadd.f32 0.0, %v3124
      %v3126 = vpop.f32.mrf.mxu0
      %v3127 = vadd.f32 0.0, %v3126
      %3128 = vmatmul.bf16.gmra.mxu0 %v2200
      %v3129 = vpop.f32.mrf.mxu0
      %v3130 = vadd.f32 0.0, %v3129
      %v3131 = vpop.f32.mrf.mxu0
      %v3132 = vadd.f32 0.0, %v3131
      %3133 = vmatmul.bf16.gmra.mxu0 %v2203
      %v3134 = vpop.f32.mrf.mxu0
      %v3135 = vadd.f32 0.0, %v3134
      %v3136 = vpop.f32.mrf.mxu0
      %v3137 = vadd.f32 0.0, %v3136
      %3138 = vmatmul.bf16.gmra.mxu0 %v2206
      %v3139 = vpop.f32.mrf.mxu0
      %v3140 = vadd.f32 0.0, %v3139
      %v3141 = vpop.f32.mrf.mxu0
      %v3142 = vadd.f32 0.0, %v3141
      %3143 = vmatmul.bf16.gmra.mxu0 %v2209
      %v3144 = vpop.f32.mrf.mxu0
      %v3145 = vadd.f32 0.0, %v3144
      %v3146 = vpop.f32.mrf.mxu0
      %v3147 = vadd.f32 0.0, %v3146
      %3148 = vmatmul.bf16.gmra.mxu0 %v2212
      %v3149 = vpop.f32.mrf.mxu0
      %v3150 = vadd.f32 0.0, %v3149
      %v3151 = vpop.f32.mrf.mxu0
      %v3152 = vadd.f32 0.0, %v3151
      %3153 = vmatmul.bf16.gmra.mxu0 %v2215
      %v3154 = vpop.f32.mrf.mxu0
      %v3155 = vadd.f32 0.0, %v3154
      %v3156 = vpop.f32.mrf.mxu0
      %v3157 = vadd.f32 0.0, %v3156
      %3158 = vmatmul.bf16.gmra.mxu0 %v2218
      %v3159 = vpop.f32.mrf.mxu0
      %v3160 = vadd.f32 0.0, %v3159
      %v3161 = vpop.f32.mrf.mxu0
      %v3162 = vadd.f32 0.0, %v3161
      %3163 = vmatmul.bf16.gmra.mxu0 %v2221
      %v3164 = vpop.f32.mrf.mxu0
      %v3165 = vadd.f32 0.0, %v3164
      %v3166 = vpop.f32.mrf.mxu0
      %v3167 = vadd.f32 0.0, %v3166
      %3168 = vmatmul.bf16.gmra.mxu0 %v2224
      %v3169 = vpop.f32.mrf.mxu0
      %v3170 = vadd.f32 0.0, %v3169
      %v3171 = vpop.f32.mrf.mxu0
      %v3172 = vadd.f32 0.0, %v3171
      %3173 = vmatmul.bf16.gmra.mxu0 %v2227
      %v3174 = vpop.f32.mrf.mxu0
      %v3175 = vadd.f32 0.0, %v3174
      %v3176 = vpop.f32.mrf.mxu0
      %v3177 = vadd.f32 0.0, %v3176
      %3178 = vmatmul.bf16.gmra.mxu0 %v2230
      %v3179 = vpop.f32.mrf.mxu0
      %v3180 = vadd.f32 0.0, %v3179
      %v3181 = vpop.f32.mrf.mxu0
      %v3182 = vadd.f32 0.0, %v3181
      %3183 = vmatmul.bf16.gmra.mxu0 %v2233
      %v3184 = vpop.f32.mrf.mxu0
      %v3185 = vadd.f32 0.0, %v3184
      %v3186 = vpop.f32.mrf.mxu0
      %v3187 = vadd.f32 0.0, %v3186
      %3188 = vmatmul.bf16.gmra.mxu0 %v2236
      %v3189 = vpop.f32.mrf.mxu0
      %v3190 = vadd.f32 0.0, %v3189
      %v3191 = vpop.f32.mrf.mxu0
      %v3192 = vadd.f32 0.0, %v3191
      %3193 = vmatmul.bf16.gmra.mxu0 %v2239
      %v3194 = vpop.f32.mrf.mxu0
      %v3195 = vadd.f32 0.0, %v3194
      %v3196 = vpop.f32.mrf.mxu0
      %v3197 = vadd.f32 0.0, %v3196
      %3198 = vmatmul.bf16.gmra.mxu0 %v2242
      %v3199 = vpop.f32.mrf.mxu0
      %v3200 = vadd.f32 0.0, %v3199
      %v3201 = vpop.f32.mrf.mxu0
      %v3202 = vadd.f32 0.0, %v3201
      %3203 = vmatmul.bf16.gmra.mxu0 %v2245
      %v3204 = vpop.f32.mrf.mxu0
      %v3205 = vadd.f32 0.0, %v3204
      %v3206 = vpop.f32.mrf.mxu0
      %v3207 = vadd.f32 0.0, %v3206
      %3208 = vmatmul.bf16.gmra.mxu0 %v2248
      %v3209 = vpop.f32.mrf.mxu0
      %v3210 = vadd.f32 0.0, %v3209
      %v3211 = vpop.f32.mrf.mxu0
      %v3212 = vadd.f32 0.0, %v3211
      %3213 = vmatmul.bf16.gmra.mxu0 %v2251
      %v3214 = vpop.f32.mrf.mxu0
      %v3215 = vadd.f32 0.0, %v3214
      %v3216 = vpop.f32.mrf.mxu0
      %v3217 = vadd.f32 0.0, %v3216
      %3218 = vmatmul.bf16.gmra.mxu0 %v2254
      %v3219 = vpop.f32.mrf.mxu0
      %v3220 = vadd.f32 0.0, %v3219
      %v3221 = vpop.f32.mrf.mxu0
      %v3222 = vadd.f32 0.0, %v3221
      %3223 = vmatmul.bf16.gmra.mxu0 %v2257
      %v3224 = vpop.f32.mrf.mxu0
      %v3225 = vadd.f32 0.0, %v3224
      %v3226 = vpop.f32.mrf.mxu0
      %v3227 = vadd.f32 0.0, %v3226
      %3228 = vmatmul.bf16.gmra.mxu0 %v2260
      %v3229 = vpop.f32.mrf.mxu0
      %v3230 = vadd.f32 0.0, %v3229
      %v3231 = vpop.f32.mrf.mxu0
      %v3232 = vadd.f32 0.0, %v3231
      %3233 = vmatmul.bf16.gmra.mxu0 %v2263
      %v3234 = vpop.f32.mrf.mxu0
      %v3235 = vadd.f32 0.0, %v3234
      %v3236 = vpop.f32.mrf.mxu0
      %v3237 = vadd.f32 0.0, %v3236
      %3238 = vmatmul.bf16.gmra.mxu0 %v2266
      %v3239 = vpop.f32.mrf.mxu0
      %v3240 = vadd.f32 0.0, %v3239
      %v3241 = vpop.f32.mrf.mxu0
      %v3242 = vadd.f32 0.0, %v3241
      %3243 = vmatmul.bf16.gmra.mxu0 %v2269
      %v3244 = vpop.f32.mrf.mxu0
      %v3245 = vadd.f32 0.0, %v3244
      %v3246 = vpop.f32.mrf.mxu0
      %v3247 = vadd.f32 0.0, %v3246
      %3248 = vmatmul.bf16.gmra.mxu0 %v2272
      %v3249 = vpop.f32.mrf.mxu0
      %v3250 = vadd.f32 0.0, %v3249
      %v3251 = vpop.f32.mrf.mxu0
      %v3252 = vadd.f32 0.0, %v3251
      %3253 = vmatmul.bf16.gmra.mxu0 %v2275
      %v3254 = vpop.f32.mrf.mxu0
      %v3255 = vadd.f32 0.0, %v3254
      %v3256 = vpop.f32.mrf.mxu0
      %v3257 = vadd.f32 0.0, %v3256
      %3258 = vmatmul.bf16.gmra.mxu0 %v2278
      %v3259 = vpop.f32.mrf.mxu0
      %v3260 = vadd.f32 0.0, %v3259
      %v3261 = vpop.f32.mrf.mxu0
      %v3262 = vadd.f32 0.0, %v3261
      %3263 = vmatmul.bf16.gmra.mxu0 %v2281
      %v3264 = vpop.f32.mrf.mxu0
      %v3265 = vadd.f32 0.0, %v3264
      %v3266 = vpop.f32.mrf.mxu0
      %v3267 = vadd.f32 0.0, %v3266
      %3268 = vmatmul.bf16.gmra.mxu0 %v2284
      %v3269 = vpop.f32.mrf.mxu0
      %v3270 = vadd.f32 0.0, %v3269
      %v3271 = vpop.f32.mrf.mxu0
      %v3272 = vadd.f32 0.0, %v3271
      %3273 = vmatmul.bf16.gmra.mxu0 %v2287
      %v3274 = vpop.f32.mrf.mxu0
      %v3275 = vadd.f32 0.0, %v3274
      %v3276 = vpop.f32.mrf.mxu0
      %v3277 = vadd.f32 0.0, %v3276
      %3278 = vmatmul.bf16.gmra.mxu0 %v2290
      %v3279 = vpop.f32.mrf.mxu0
      %v3280 = vadd.f32 0.0, %v3279
      %v3281 = vpop.f32.mrf.mxu0
      %v3282 = vadd.f32 0.0, %v3281
      %3283 = vmatmul.bf16.gmra.mxu0 %v2293
      %v3284 = vpop.f32.mrf.mxu0
      %v3285 = vadd.f32 0.0, %v3284
      %v3286 = vpop.f32.mrf.mxu0
      %v3287 = vadd.f32 0.0, %v3286
      %3288 = vmatmul.bf16.gmra.mxu0 %v2296
      %v3289 = vpop.f32.mrf.mxu0
      %v3290 = vadd.f32 0.0, %v3289
      %v3291 = vpop.f32.mrf.mxu0
      %v3292 = vadd.f32 0.0, %v3291
      %3293 = vmatmul.bf16.gmra.mxu0 %v2299
      %v3294 = vpop.f32.mrf.mxu0
      %v3295 = vadd.f32 0.0, %v3294
      %v3296 = vpop.f32.mrf.mxu0
      %v3297 = vadd.f32 0.0, %v3296
      %3298 = vmatmul.bf16.gmra.mxu0 %v2302
      %v3299 = vpop.f32.mrf.mxu0
      %v3300 = vadd.f32 0.0, %v3299
      %v3301 = vpop.f32.mrf.mxu0
      %v3302 = vadd.f32 0.0, %v3301
      %3303 = vmatmul.bf16.gmra.mxu0 %v2305
      %v3304 = vpop.f32.mrf.mxu0
      %v3305 = vadd.f32 0.0, %v3304
      %v3306 = vpop.f32.mrf.mxu0
      %v3307 = vadd.f32 0.0, %v3306
      %3308 = vmatmul.bf16.gmra.mxu0 %v2308
      %v3309 = vpop.f32.mrf.mxu0
      %v3310 = vadd.f32 0.0, %v3309
      %v3311 = vpop.f32.mrf.mxu0
      %v3312 = vadd.f32 0.0, %v3311
      %3313 = vmatmul.bf16.gmra.mxu0 %v2311
      %v3314 = vpop.f32.mrf.mxu0
      %v3315 = vadd.f32 0.0, %v3314
      %v3316 = vpop.f32.mrf.mxu0
      %v3317 = vadd.f32 0.0, %v3316
      %3318 = vmatmul.bf16.gmra.mxu0 %v2314
      %v3319 = vpop.f32.mrf.mxu0
      %v3320 = vadd.f32 0.0, %v3319
      %v3321 = vpop.f32.mrf.mxu0
      %v3322 = vadd.f32 0.0, %v3321
      %3323 = vmatmul.bf16.gmra.mxu0 %v2317
      %v3324 = vpop.f32.mrf.mxu0
      %v3325 = vadd.f32 0.0, %v3324
      %v3326 = vpop.f32.mrf.mxu0
      %v3327 = vadd.f32 0.0, %v3326
      %3328 = vmatmul.bf16.gmra.mxu0 %v2320
      %v3329 = vpop.f32.mrf.mxu0
      %v3330 = vadd.f32 0.0, %v3329
      %v3331 = vpop.f32.mrf.mxu0
      %v3332 = vadd.f32 0.0, %v3331
      %3333 = vmatmul.bf16.gmra.mxu0 %v2323
      %v3334 = vpop.f32.mrf.mxu0
      %v3335 = vadd.f32 0.0, %v3334
      %v3336 = vpop.f32.mrf.mxu0
      %v3337 = vadd.f32 0.0, %v3336
      %3338 = vmatmul.bf16.gmra.mxu0 %v2326
      %v3339 = vpop.f32.mrf.mxu0
      %v3340 = vadd.f32 0.0, %v3339
      %v3341 = vpop.f32.mrf.mxu0
      %v3342 = vadd.f32 0.0, %v3341
      %3343 = vmatmul.bf16.gmra.mxu0 %v2329
      %v3344 = vpop.f32.mrf.mxu0
      %v3345 = vadd.f32 0.0, %v3344
      %v3346 = vpop.f32.mrf.mxu0
      %v3347 = vadd.f32 0.0, %v3346
      %3348 = vmatmul.bf16.gmra.mxu0 %v2332
      %v3349 = vpop.f32.mrf.mxu0
      %v3350 = vadd.f32 0.0, %v3349
      %v3351 = vpop.f32.mrf.mxu0
      %v3352 = vadd.f32 0.0, %v3351
      %3353 = vmatmul.bf16.gmra.mxu0 %v2335
      %v3354 = vpop.f32.mrf.mxu0
      %v3355 = vadd.f32 0.0, %v3354
      %v3356 = vpop.f32.mrf.mxu0
      %v3357 = vadd.f32 0.0, %v3356
      %3358 = vmatmul.bf16.gmra.mxu0 %v2338
      %v3359 = vpop.f32.mrf.mxu0
      %v3360 = vadd.f32 0.0, %v3359
      %v3361 = vpop.f32.mrf.mxu0
      %v3362 = vadd.f32 0.0, %v3361
      %3363 = vmatmul.bf16.gmra.mxu0 %v2341
      %v3364 = vpop.f32.mrf.mxu0
      %v3365 = vadd.f32 0.0, %v3364
      %v3366 = vpop.f32.mrf.mxu0
      %v3367 = vadd.f32 0.0, %v3366
      %3368 = vmatmul.bf16.gmra.mxu0 %v2344
      %v3369 = vpop.f32.mrf.mxu0
      %v3370 = vadd.f32 0.0, %v3369
      %v3371 = vpop.f32.mrf.mxu0
      %v3372 = vadd.f32 0.0, %v3371
      %3373 = vmatmul.bf16.gmra.mxu0 %v2347
      %v3374 = vpop.f32.mrf.mxu0
      %v3375 = vadd.f32 0.0, %v3374
      %v3376 = vpop.f32.mrf.mxu0
      %v3377 = vadd.f32 0.0, %v3376
      %3378 = vmatmul.bf16.gmra.mxu0 %v2350
      %v3379 = vpop.f32.mrf.mxu0
      %v3380 = vadd.f32 0.0, %v3379
      %v3381 = vpop.f32.mrf.mxu0
      %v3382 = vadd.f32 0.0, %v3381
      %3383 = vmatmul.bf16.gmra.mxu0 %v2353
      %v3384 = vpop.f32.mrf.mxu0
      %v3385 = vadd.f32 0.0, %v3384
      %v3386 = vpop.f32.mrf.mxu0
      %v3387 = vadd.f32 0.0, %v3386
      %3388 = vmatmul.bf16.gmra.mxu0 %v2356
      %v3389 = vpop.f32.mrf.mxu0
      %v3390 = vadd.f32 0.0, %v3389
      %v3391 = vpop.f32.mrf.mxu0
      %v3392 = vadd.f32 0.0, %v3391
      %3393 = vmatmul.bf16.gmra.mxu0 %v2359
      %v3394 = vpop.f32.mrf.mxu0
      %v3395 = vadd.f32 0.0, %v3394
      %v3396 = vpop.f32.mrf.mxu0
      %v3397 = vadd.f32 0.0, %v3396
      %3398 = vmatmul.bf16.gmra.mxu0 %v2362
      %v3399 = vpop.f32.mrf.mxu0
      %v3400 = vadd.f32 0.0, %v3399
      %v3401 = vpop.f32.mrf.mxu0
      %v3402 = vadd.f32 0.0, %v3401
      %3403 = vmatmul.bf16.gmra.mxu0 %v2365
      %v3404 = vpop.f32.mrf.mxu0
      %v3405 = vadd.f32 0.0, %v3404
      %v3406 = vpop.f32.mrf.mxu0
      %v3407 = vadd.f32 0.0, %v3406
      %3408 = vmatmul.bf16.gmra.mxu0 %v2368
      %v3409 = vpop.f32.mrf.mxu0
      %v3410 = vadd.f32 0.0, %v3409
      %v3411 = vpop.f32.mrf.mxu0
      %v3412 = vadd.f32 0.0, %v3411
      %3413 = vmatmul.bf16.gmra.mxu0 %v2371
      %v3414 = vpop.f32.mrf.mxu0
      %v3415 = vadd.f32 0.0, %v3414
      %v3416 = vpop.f32.mrf.mxu0
      %v3417 = vadd.f32 0.0, %v3416
      %3418 = vmatmul.bf16.gmra.mxu0 %v2374
      %v3419 = vpop.f32.mrf.mxu0
      %v3420 = vadd.f32 0.0, %v3419
      %v3421 = vpop.f32.mrf.mxu0
      %v3422 = vadd.f32 0.0, %v3421
      %3423 = vmatmul.bf16.gmra.mxu0 %v2377
      %v3424 = vpop.f32.mrf.mxu0
      %v3425 = vadd.f32 0.0, %v3424
      %v3426 = vpop.f32.mrf.mxu0
      %v3427 = vadd.f32 0.0, %v3426
      %3428 = vmatmul.bf16.gmra.mxu0 %v2380
      %v3429 = vpop.f32.mrf.mxu0
      %v3430 = vadd.f32 0.0, %v3429
      %v3431 = vpop.f32.mrf.mxu0
      %v3432 = vadd.f32 0.0, %v3431
      %3433 = vmatmul.bf16.gmra.mxu0 %v2383
      %v3434 = vpop.f32.mrf.mxu0
      %v3435 = vadd.f32 0.0, %v3434
      %v3436 = vpop.f32.mrf.mxu0
      %v3437 = vadd.f32 0.0, %v3436
      %3438 = vmatmul.bf16.gmra.mxu0 %v2386
      %v3439 = vpop.f32.mrf.mxu0
      %v3440 = vadd.f32 0.0, %v3439
      %v3441 = vpop.f32.mrf.mxu0
      %v3442 = vadd.f32 0.0, %v3441
      %3443 = vmatmul.bf16.gmra.mxu0 %v2389
      %v3444 = vpop.f32.mrf.mxu0
      %v3445 = vadd.f32 0.0, %v3444
      %v3446 = vpop.f32.mrf.mxu0
      %v3447 = vadd.f32 0.0, %v3446
      %3448 = vmatmul.bf16.gmra.mxu0 %v2392
      %v3449 = vpop.f32.mrf.mxu0
      %v3450 = vadd.f32 0.0, %v3449
      %v3451 = vpop.f32.mrf.mxu0
      %v3452 = vadd.f32 0.0, %v3451
      %3453 = vmatmul.bf16.gmra.mxu0 %v2395
      %v3454 = vpop.f32.mrf.mxu0
      %v3455 = vadd.f32 0.0, %v3454
      %v3456 = vpop.f32.mrf.mxu0
      %v3457 = vadd.f32 0.0, %v3456
      %3458 = vmatmul.bf16.gmra.mxu0 %v2398
      %v3459 = vpop.f32.mrf.mxu0
      %v3460 = vadd.f32 0.0, %v3459
      %v3461 = vpop.f32.mrf.mxu0
      %v3462 = vadd.f32 0.0, %v3461
      %3463 = vmatmul.bf16.gmra.mxu0 %v2401
      %v3464 = vpop.f32.mrf.mxu0
      %v3465 = vadd.f32 0.0, %v3464
      %v3466 = vpop.f32.mrf.mxu0
      %v3467 = vadd.f32 0.0, %v3466
      %3468 = vmatmul.bf16.gmra.mxu0 %v2404
      %v3469 = vpop.f32.mrf.mxu0
      %v3470 = vadd.f32 0.0, %v3469
      %v3471 = vpop.f32.mrf.mxu0
      %v3472 = vadd.f32 0.0, %v3471
      %3473 = vmatmul.bf16.gmra.mxu0 %v2407
      %v3474 = vpop.f32.mrf.mxu0
      %v3475 = vadd.f32 0.0, %v3474
      %v3476 = vpop.f32.mrf.mxu0
      %v3477 = vadd.f32 0.0, %v3476
      %3478 = vmatmul.bf16.gmra.mxu0 %v2410
      %v3479 = vpop.f32.mrf.mxu0
      %v3480 = vadd.f32 0.0, %v3479
      %v3481 = vpop.f32.mrf.mxu0
      %v3482 = vadd.f32 0.0, %v3481
      %3483 = vmatmul.bf16.gmra.mxu0 %v2413
      %v3484 = vpop.f32.mrf.mxu0
      %v3485 = vadd.f32 0.0, %v3484
      %v3486 = vpop.f32.mrf.mxu0
      %v3487 = vadd.f32 0.0, %v3486
      %3488 = vmatmul.bf16.gmra.mxu0 %v2416
      %v3489 = vpop.f32.mrf.mxu0
      %v3490 = vadd.f32 0.0, %v3489
      %v3491 = vpop.f32.mrf.mxu0
      %v3492 = vadd.f32 0.0, %v3491
      %3493 = vmatmul.bf16.gmra.mxu0 %v2419
      %v3494 = vpop.f32.mrf.mxu0
      %v3495 = vadd.f32 0.0, %v3494
      %v3496 = vpop.f32.mrf.mxu0
      %v3497 = vadd.f32 0.0, %v3496
      %3498 = vmatmul.bf16.gmra.mxu0 %v2422
      %v3499 = vpop.f32.mrf.mxu0
      %v3500 = vadd.f32 0.0, %v3499
      %v3501 = vpop.f32.mrf.mxu0
      %v3502 = vadd.f32 0.0, %v3501
      %3503 = vmatmul.bf16.gmra.mxu0 %v2425
      %v3504 = vpop.f32.mrf.mxu0
      %v3505 = vadd.f32 0.0, %v3504
      %v3506 = vpop.f32.mrf.mxu0
      %v3507 = vadd.f32 0.0, %v3506
      %3508 = vmatmul.bf16.gmra.mxu0 %v2428
      %v3509 = vpop.f32.mrf.mxu0
      %v3510 = vadd.f32 0.0, %v3509
      %v3511 = vpop.f32.mrf.mxu0
      %v3512 = vadd.f32 0.0, %v3511
      %3513 = vmatmul.bf16.gmra.mxu0 %v2431
      %v3514 = vpop.f32.mrf.mxu0
      %v3515 = vadd.f32 0.0, %v3514
      %v3516 = vpop.f32.mrf.mxu0
      %v3517 = vadd.f32 0.0, %v3516
      %3518 = vmatmul.bf16.gmra.mxu0 %v2434
      %v3519 = vpop.f32.mrf.mxu0
      %v3520 = vadd.f32 0.0, %v3519
      %v3521 = vpop.f32.mrf.mxu0
      %v3522 = vadd.f32 0.0, %v3521
      %3523 = vmatmul.bf16.gmra.mxu0 %v2437
      %v3524 = vpop.f32.mrf.mxu0
      %v3525 = vadd.f32 0.0, %v3524
      %v3526 = vpop.f32.mrf.mxu0
      %v3527 = vadd.f32 0.0, %v3526
      %3528 = vmatmul.bf16.gmra.mxu0 %v2440
      %v3529 = vpop.f32.mrf.mxu0
      %v3530 = vadd.f32 0.0, %v3529
      %v3531 = vpop.f32.mrf.mxu0
      %v3532 = vadd.f32 0.0, %v3531
      %3533 = vmatmul.bf16.gmra.mxu0 %v2443
      %v3534 = vpop.f32.mrf.mxu0
      %v3535 = vadd.f32 0.0, %v3534
      %v3536 = vpop.f32.mrf.mxu0
      %v3537 = vadd.f32 0.0, %v3536
      %3538 = vmatmul.bf16.gmra.mxu0 %v2446
      %v3539 = vpop.f32.mrf.mxu0
      %v3540 = vadd.f32 0.0, %v3539
      %v3541 = vpop.f32.mrf.mxu0
      %v3542 = vadd.f32 0.0, %v3541
      %3543 = vmatmul.bf16.gmra.mxu0 %v2449
      %v3544 = vpop.f32.mrf.mxu0
      %v3545 = vadd.f32 0.0, %v3544
      %v3546 = vpop.f32.mrf.mxu0
      %v3547 = vadd.f32 0.0, %v3546
      %3548 = vmatmul.bf16.gmra.mxu0 %v2452
      %v3549 = vpop.f32.mrf.mxu0
      %v3550 = vadd.f32 0.0, %v3549
      %v3551 = vpop.f32.mrf.mxu0
      %v3552 = vadd.f32 0.0, %v3551
      %3553 = vmatmul.bf16.gmra.mxu0 %v2455
      %v3554 = vpop.f32.mrf.mxu0
      %v3555 = vadd.f32 0.0, %v3554
      %v3556 = vpop.f32.mrf.mxu0
      %v3557 = vadd.f32 0.0, %v3556
      %3558 = vmatmul.bf16.gmra.mxu0 %v2458
      %v3559 = vpop.f32.mrf.mxu0
      %v3560 = vadd.f32 0.0, %v3559
      %v3561 = vpop.f32.mrf.mxu0
      %v3562 = vadd.f32 0.0, %v3561
      %3563 = vmatmul.bf16.gmra.mxu0 %v2461
      %v3564 = vpop.f32.mrf.mxu0
      %v3565 = vadd.f32 0.0, %v3564
      %v3566 = vpop.f32.mrf.mxu0
      %v3567 = vadd.f32 0.0, %v3566
      %3568 = vmatmul.bf16.gmra.mxu0 %v2464
      %v3569 = vpop.f32.mrf.mxu0
      %v3570 = vadd.f32 0.0, %v3569
      %v3571 = vpop.f32.mrf.mxu0
      %v3572 = vadd.f32 0.0, %v3571
      %3573 = vmatmul.bf16.gmra.mxu0 %v2467
      %v3574 = vpop.f32.mrf.mxu0
      %v3575 = vadd.f32 0.0, %v3574
      %v3576 = vpop.f32.mrf.mxu0
      %v3577 = vadd.f32 0.0, %v3576
      %3578 = vmatmul.bf16.gmra.mxu0 %v2470
      %v3579 = vpop.f32.mrf.mxu0
      %v3580 = vadd.f32 0.0, %v3579
      %v3581 = vpop.f32.mrf.mxu0
      %v3582 = vadd.f32 0.0, %v3581
      %3583 = vmatmul.bf16.gmra.mxu0 %v2473
      %v3584 = vpop.f32.mrf.mxu0
      %v3585 = vadd.f32 0.0, %v3584
      %v3586 = vpop.f32.mrf.mxu0
      %v3587 = vadd.f32 0.0, %v3586
      %3588 = vmatmul.bf16.gmra.mxu0 %v2476
      %v3589 = vpop.f32.mrf.mxu0
      %v3590 = vadd.f32 0.0, %v3589
      %v3591 = vpop.f32.mrf.mxu0
      %v3592 = vadd.f32 0.0, %v3591
      %3593 = vmatmul.bf16.gmra.mxu0 %v2479
      %v3594 = vpop.f32.mrf.mxu0
      %v3595 = vadd.f32 0.0, %v3594
      %v3596 = vpop.f32.mrf.mxu0
      %v3597 = vadd.f32 0.0, %v3596
      %3598 = vmatmul.bf16.gmra.mxu0 %v2482
      %v3599 = vpop.f32.mrf.mxu0
      %v3600 = vadd.f32 0.0, %v3599
      %v3601 = vpop.f32.mrf.mxu0
      %v3602 = vadd.f32 0.0, %v3601
      %3603 = vmatmul.bf16.gmra.mxu0 %v2485
      %v3604 = vpop.f32.mrf.mxu0
      %v3605 = vadd.f32 0.0, %v3604
      %v3606 = vpop.f32.mrf.mxu0
      %v3607 = vadd.f32 0.0, %v3606
      %3608 = vmatmul.bf16.gmra.mxu0 %v2488
      %v3609 = vpop.f32.mrf.mxu0
      %v3610 = vadd.f32 0.0, %v3609
      %v3611 = vpop.f32.mrf.mxu0
      %v3612 = vadd.f32 0.0, %v3611
      %3613 = vmatmul.bf16.gmra.mxu0 %v2491
      %v3614 = vpop.f32.mrf.mxu0
      %v3615 = vadd.f32 0.0, %v3614
      %v3616 = vpop.f32.mrf.mxu0
      %v3617 = vadd.f32 0.0, %v3616
      %3618 = vmatmul.bf16.gmra.mxu0 %v2494
      %v3619 = vpop.f32.mrf.mxu0
      %v3620 = vadd.f32 0.0, %v3619
      %v3621 = vpop.f32.mrf.mxu0
      %v3622 = vadd.f32 0.0, %v3621
      %3623 = vmatmul.bf16.gmra.mxu0 %v2497
      %v3624 = vpop.f32.mrf.mxu0
      %v3625 = vadd.f32 0.0, %v3624
      %v3626 = vpop.f32.mrf.mxu0
      %v3627 = vadd.f32 0.0, %v3626
      %3628 = vmatmul.bf16.gmra.mxu0 %v2500
      %v3629 = vpop.f32.mrf.mxu0
      %v3630 = vadd.f32 0.0, %v3629
      %v3631 = vpop.f32.mrf.mxu0
      %v3632 = vadd.f32 0.0, %v3631
      %3633 = vmatmul.bf16.gmra.mxu0 %v2503
      %v3634 = vpop.f32.mrf.mxu0
      %v3635 = vadd.f32 0.0, %v3634
      %v3636 = vpop.f32.mrf.mxu0
      %v3637 = vadd.f32 0.0, %v3636
      %3638 = vmatmul.bf16.gmra.mxu0 %v2506
      %v3639 = vpop.f32.mrf.mxu0
      %v3640 = vadd.f32 0.0, %v3639
      %v3641 = vpop.f32.mrf.mxu0
      %v3642 = vadd.f32 0.0, %v3641
      %3643 = vmatmul.bf16.gmra.mxu0 %v2509
      %v3644 = vpop.f32.mrf.mxu0
      %v3645 = vadd.f32 0.0, %v3644
      %v3646 = vpop.f32.mrf.mxu0
      %v3647 = vadd.f32 0.0, %v3646
      %3648 = vmatmul.bf16.gmra.mxu0 %v2512
      %v3649 = vpop.f32.mrf.mxu0
      %v3650 = vadd.f32 0.0, %v3649
      %v3651 = vpop.f32.mrf.mxu0
      %v3652 = vadd.f32 0.0, %v3651
      %3653 = vmatmul.bf16.gmra.mxu0 %v2515
      %v3654 = vpop.f32.mrf.mxu0
      %v3655 = vadd.f32 0.0, %v3654
      %v3656 = vpop.f32.mrf.mxu0
      %v3657 = vadd.f32 0.0, %v3656
      %3658 = vmatmul.bf16.gmra.mxu0 %v2518
      %v3659 = vpop.f32.mrf.mxu0
      %v3660 = vadd.f32 0.0, %v3659
      %v3661 = vpop.f32.mrf.mxu0
      %v3662 = vadd.f32 0.0, %v3661
      %3663 = vmatmul.bf16.gmra.mxu0 %v2521
      %v3664 = vpop.f32.mrf.mxu0
      %v3665 = vadd.f32 0.0, %v3664
      %v3666 = vpop.f32.mrf.mxu0
      %v3667 = vadd.f32 0.0, %v3666
      %3668 = vmatmul.bf16.gmra.mxu0 %v2524
      %v3669 = vpop.f32.mrf.mxu0
      %v3670 = vadd.f32 0.0, %v3669
      %v3671 = vpop.f32.mrf.mxu0
      %v3672 = vadd.f32 0.0, %v3671
      %3673 = vmatmul.bf16.gmra.mxu0 %v2527
      %v3674 = vpop.f32.mrf.mxu0
      %v3675 = vadd.f32 0.0, %v3674
      %v3676 = vpop.f32.mrf.mxu0
      %v3677 = vadd.f32 0.0, %v3676
      %3678 = vmatmul.bf16.gmra.mxu0 %v2530
      %v3679 = vpop.f32.mrf.mxu0
      %v3680 = vadd.f32 0.0, %v3679
      %v3681 = vpop.f32.mrf.mxu0
      %v3682 = vadd.f32 0.0, %v3681
      %3683 = vmatmul.bf16.gmra.mxu0 %v2533
      %v3684 = vpop.f32.mrf.mxu0
      %v3685 = vadd.f32 0.0, %v3684
      %v3686 = vpop.f32.mrf.mxu0
      %v3687 = vadd.f32 0.0, %v3686
      %3688 = vmatmul.bf16.gmra.mxu0 %v2536
      %v3689 = vpop.f32.mrf.mxu0
      %v3690 = vadd.f32 0.0, %v3689
      %v3691 = vpop.f32.mrf.mxu0
      %v3692 = vadd.f32 0.0, %v3691
      %3693 = vmatmul.bf16.gmra.mxu0 %v2539
      %v3694 = vpop.f32.mrf.mxu0
      %v3695 = vadd.f32 0.0, %v3694
      %v3696 = vpop.f32.mrf.mxu0
      %v3697 = vadd.f32 0.0, %v3696
      %3698 = vmatmul.bf16.gmra.mxu0 %v2542
      %v3699 = vpop.f32.mrf.mxu0
      %v3700 = vadd.f32 0.0, %v3699
      %v3701 = vpop.f32.mrf.mxu0
      %v3702 = vadd.f32 0.0, %v3701
      %3703 = vmatmul.bf16.gmra.mxu0 %v2545
      %v3704 = vpop.f32.mrf.mxu0
      %v3705 = vadd.f32 0.0, %v3704
      %v3706 = vpop.f32.mrf.mxu0
      %v3707 = vadd.f32 0.0, %v3706
      %3708 = vmatmul.bf16.gmra.mxu0 %v2548
      %v3709 = vpop.f32.mrf.mxu0
      %v3710 = vadd.f32 0.0, %v3709
      %v3711 = vpop.f32.mrf.mxu0
      %v3712 = vadd.f32 0.0, %v3711
      %3713 = vmatmul.bf16.gmra.mxu0 %v2551
      %v3714 = vpop.f32.mrf.mxu0
      %v3715 = vadd.f32 0.0, %v3714
      %v3716 = vpop.f32.mrf.mxu0
      %v3717 = vadd.f32 0.0, %v3716
      %3718 = vmatmul.bf16.gmra.mxu0 %v2554
      %v3719 = vpop.f32.mrf.mxu0
      %v3720 = vadd.f32 0.0, %v3719
      %v3721 = vpop.f32.mrf.mxu0
      %v3722 = vadd.f32 0.0, %v3721
      %3723 = vmatmul.bf16.gmra.mxu0 %v2557
      %v3724 = vpop.f32.mrf.mxu0
      %v3725 = vadd.f32 0.0, %v3724
      %v3726 = vpop.f32.mrf.mxu0
      %v3727 = vadd.f32 0.0, %v3726
      %3728 = vmatmul.bf16.gmra.mxu0 %v2560
      %v3729 = vpop.f32.mrf.mxu0
      %v3730 = vadd.f32 0.0, %v3729
      %v3731 = vpop.f32.mrf.mxu0
      %v3732 = vadd.f32 0.0, %v3731
      %3733 = vmatmul.bf16.gmra.mxu0 %v2563
      %v3734 = vpop.f32.mrf.mxu0
      %v3735 = vadd.f32 0.0, %v3734
      %v3736 = vpop.f32.mrf.mxu0
      %v3737 = vadd.f32 0.0, %v3736
      %3738 = vmatmul.bf16.gmra.mxu0 %v2566
      %v3739 = vpop.f32.mrf.mxu0
      %v3740 = vadd.f32 0.0, %v3739
      %v3741 = vpop.f32.mrf.mxu0
      %v3742 = vadd.f32 0.0, %v3741
      %3743 = vmatmul.bf16.gmra.mxu0 %v2569
      %v3744 = vpop.f32.mrf.mxu0
      %v3745 = vadd.f32 0.0, %v3744
      %v3746 = vpop.f32.mrf.mxu0
      %v3747 = vadd.f32 0.0, %v3746
      %3748 = vmatmul.bf16.gmra.mxu0 %v2572
      %v3749 = vpop.f32.mrf.mxu0
      %v3750 = vadd.f32 0.0, %v3749
      %v3751 = vpop.f32.mrf.mxu0
      %v3752 = vadd.f32 0.0, %v3751
      %3753 = vmatmul.bf16.gmra.mxu0 %v2575
      %v3754 = vpop.f32.mrf.mxu0
      %v3755 = vadd.f32 0.0, %v3754
      %v3756 = vpop.f32.mrf.mxu0
      %v3757 = vadd.f32 0.0, %v3756
      %3758 = vmatmul.bf16.gmra.mxu0 %v2578
      %v3759 = vpop.f32.mrf.mxu0
      %v3760 = vadd.f32 0.0, %v3759
      %v3761 = vpop.f32.mrf.mxu0
      %v3762 = vadd.f32 0.0, %v3761
      %3763 = vmatmul.bf16.gmra.mxu0 %v2581
      %v3764 = vpop.f32.mrf.mxu0
      %v3765 = vadd.f32 0.0, %v3764
      %v3766 = vpop.f32.mrf.mxu0
      %v3767 = vadd.f32 0.0, %v3766
      %3768 = vmatmul.bf16.gmra.mxu0 %v2584
      %v3769 = vpop.f32.mrf.mxu0
      %v3770 = vadd.f32 0.0, %v3769
      %v3771 = vpop.f32.mrf.mxu0
      %v3772 = vadd.f32 0.0, %v3771
      %3773 = vmatmul.bf16.gmra.mxu0 %v2587
      %v3774 = vpop.f32.mrf.mxu0
      %v3775 = vadd.f32 0.0, %v3774
      %v3776 = vpop.f32.mrf.mxu0
      %v3777 = vadd.f32 0.0, %v3776
      %3778 = vmatmul.bf16.gmra.mxu0 %v2590
      %v3779 = vpop.f32.mrf.mxu0
      %v3780 = vadd.f32 0.0, %v3779
      %v3781 = vpop.f32.mrf.mxu0
      %v3782 = vadd.f32 0.0, %v3781
      %3783 = vmatmul.bf16.gmra.mxu0 %v2593
      %v3784 = vpop.f32.mrf.mxu0
      %v3785 = vadd.f32 0.0, %v3784
      %v3786 = vpop.f32.mrf.mxu0
      %v3787 = vadd.f32 0.0, %v3786
      %3788 = vmatmul.bf16.gmra.mxu0 %v2596
      %v3789 = vpop.f32.mrf.mxu0
      %v3790 = vadd.f32 0.0, %v3789
      %v3791 = vpop.f32.mrf.mxu0
      %v3792 = vadd.f32 0.0, %v3791
      %3793 = vmatmul.bf16.gmra.mxu0 %v2599
      %v3794 = vpop.f32.mrf.mxu0
      %v3795 = vadd.f32 0.0, %v3794
      %v3796 = vpop.f32.mrf.mxu0
      %v3797 = vadd.f32 0.0, %v3796
      %3798 = vmatmul.bf16.gmra.mxu0 %v2602
      %v3799 = vpop.f32.mrf.mxu0
      %v3800 = vadd.f32 0.0, %v3799
      %v3801 = vpop.f32.mrf.mxu0
      %v3802 = vadd.f32 0.0, %v3801
      %3803 = vmatmul.bf16.gmra.mxu0 %v2605
      %v3804 = vpop.f32.mrf.mxu0
      %v3805 = vadd.f32 0.0, %v3804
      %v3806 = vpop.f32.mrf.mxu0
      %v3807 = vadd.f32 0.0, %v3806
      %3808 = vmatmul.bf16.gmra.mxu0 %v2608
      %v3809 = vpop.f32.mrf.mxu0
      %v3810 = vadd.f32 0.0, %v3809
      %v3811 = vpop.f32.mrf.mxu0
      %v3812 = vadd.f32 0.0, %v3811
      %3813 = vmatmul.bf16.gmra.mxu0 %v2611
      %v3814 = vpop.f32.mrf.mxu0
      %v3815 = vadd.f32 0.0, %v3814
      %v3816 = vpop.f32.mrf.mxu0
      %v3817 = vadd.f32 0.0, %v3816
      %3818 = vmatmul.bf16.gmra.mxu0 %v2614
      %v3819 = vpop.f32.mrf.mxu0
      %v3820 = vadd.f32 0.0, %v3819
      %v3821 = vpop.f32.mrf.mxu0
      %v3822 = vadd.f32 0.0, %v3821
      %3823 = vmatmul.bf16.gmra.mxu0 %v2617
      %v3824 = vpop.f32.mrf.mxu0
      %v3825 = vadd.f32 0.0, %v3824
      %v3826 = vpop.f32.mrf.mxu0
      %v3827 = vadd.f32 0.0, %v3826
      %3828 = vmatmul.bf16.gmra.mxu0 %v2620
      %v3829 = vpop.f32.mrf.mxu0
      %v3830 = vadd.f32 0.0, %v3829
      %v3831 = vpop.f32.mrf.mxu0
      %v3832 = vadd.f32 0.0, %v3831
      %3833 = vmatmul.bf16.gmra.mxu0 %v2623
      %v3834 = vpop.f32.mrf.mxu0
      %v3835 = vadd.f32 0.0, %v3834
      %v3836 = vpop.f32.mrf.mxu0
      %v3837 = vadd.f32 0.0, %v3836
      %3838 = vmatmul.bf16.gmra.mxu0 %v2626
      %v3839 = vpop.f32.mrf.mxu0
      %v3840 = vadd.f32 0.0, %v3839
      %v3841 = vpop.f32.mrf.mxu0
      %v3842 = vadd.f32 0.0, %v3841
      %3843 = vmatmul.bf16.gmra.mxu0 %v2629
      %v3844 = vpop.f32.mrf.mxu0
      %v3845 = vadd.f32 0.0, %v3844
      %v3846 = vpop.f32.mrf.mxu0
      %v3847 = vadd.f32 0.0, %v3846
      %3848 = vmatmul.bf16.gmra.mxu0 %v2632
      %v3849 = vpop.f32.mrf.mxu0
      %v3850 = vadd.f32 0.0, %v3849
      %v3851 = vpop.f32.mrf.mxu0
      %v3852 = vadd.f32 0.0, %v3851
      %3853 = vmatmul.bf16.gmra.mxu0 %v2635
      %v3854 = vpop.f32.mrf.mxu0
      %v3855 = vadd.f32 0.0, %v3854
      %v3856 = vpop.f32.mrf.mxu0
      %v3857 = vadd.f32 0.0, %v3856
      %3858 = vmatmul.bf16.gmra.mxu0 %v2638
      %v3859 = vpop.f32.mrf.mxu0
      %v3860 = vadd.f32 0.0, %v3859
      %v3861 = vpop.f32.mrf.mxu0
      %v3862 = vadd.f32 0.0, %v3861
      %3863 = vmatmul.bf16.gmra.mxu0 %v2641
      %v3864 = vpop.f32.mrf.mxu0
      %v3865 = vadd.f32 0.0, %v3864
      %v3866 = vpop.f32.mrf.mxu0
      %v3867 = vadd.f32 0.0, %v3866
      %3868 = vmatmul.bf16.gmra.mxu0 %v2644
      %v3869 = vpop.f32.mrf.mxu0
      %v3870 = vadd.f32 0.0, %v3869
      %v3871 = vpop.f32.mrf.mxu0
      %v3872 = vadd.f32 0.0, %v3871
      %3873 = vmatmul.bf16.gmra.mxu0 %v2647
      %v3874 = vpop.f32.mrf.mxu0
      %v3875 = vadd.f32 0.0, %v3874
      %v3876 = vpop.f32.mrf.mxu0
      %v3877 = vadd.f32 0.0, %v3876
      %3878 = vmatmul.bf16.gmra.mxu0 %v2650
      %v3879 = vpop.f32.mrf.mxu0
      %v3880 = vadd.f32 0.0, %v3879
      %v3881 = vpop.f32.mrf.mxu0
      %v3882 = vadd.f32 0.0, %v3881
      %3883 = vmatmul.bf16.gmra.mxu0 %v2653
      %v3884 = vpop.f32.mrf.mxu0
      %v3885 = vadd.f32 0.0, %v3884
      %v3886 = vpop.f32.mrf.mxu0
      %v3887 = vadd.f32 0.0, %v3886
      %3888 = vmatmul.bf16.gmra.mxu0 %v2656
      %v3889 = vpop.f32.mrf.mxu0
      %v3890 = vadd.f32 0.0, %v3889
      %v3891 = vpop.f32.mrf.mxu0
      %v3892 = vadd.f32 0.0, %v3891
      %3893 = vmatmul.bf16.gmra.mxu0 %v2659
      %v3894 = vpop.f32.mrf.mxu0
      %v3895 = vadd.f32 0.0, %v3894
      %v3896 = vpop.f32.mrf.mxu0
      %v3897 = vadd.f32 0.0, %v3896
      %3898 = vmatmul.bf16.gmra.mxu0 %v2662
      %v3899 = vpop.f32.mrf.mxu0
      %v3900 = vadd.f32 0.0, %v3899
      %v3901 = vpop.f32.mrf.mxu0
      %v3902 = vadd.f32 0.0, %v3901
      %3903 = vmatmul.bf16.gmra.mxu0 %v2665
      %v3904 = vpop.f32.mrf.mxu0
      %v3905 = vadd.f32 0.0, %v3904
      %v3906 = vpop.f32.mrf.mxu0
      %v3907 = vadd.f32 0.0, %v3906
      %3908 = vmatmul.bf16.gmra.mxu0 %v2668
      %v3909 = vpop.f32.mrf.mxu0
      %v3910 = vadd.f32 0.0, %v3909
      %v3911 = vpop.f32.mrf.mxu0
      %v3912 = vadd.f32 0.0, %v3911
      %3913 = vmatmul.bf16.gmra.mxu0 %v2671
      %v3914 = vpop.f32.mrf.mxu0
      %v3915 = vadd.f32 0.0, %v3914
      %v3916 = vpop.f32.mrf.mxu0
      %v3917 = vadd.f32 0.0, %v3916
      %3918 = vmatmul.bf16.gmra.mxu0 %v2674
      %v3919 = vpop.f32.mrf.mxu0
      %v3920 = vadd.f32 0.0, %v3919
      %v3921 = vpop.f32.mrf.mxu0
      %v3922 = vadd.f32 0.0, %v3921
      %3923 = vmatmul.bf16.gmra.mxu0 %v2677
      %v3924 = vpop.f32.mrf.mxu0
      %v3925 = vadd.f32 0.0, %v3924
      %v3926 = vpop.f32.mrf.mxu0
      %v3927 = vadd.f32 0.0, %v3926
      %3928 = vmatmul.bf16.gmra.mxu0 %v2680
      %v3929 = vpop.f32.mrf.mxu0
      %v3930 = vadd.f32 0.0, %v3929
      %v3931 = vpop.f32.mrf.mxu0
      %v3932 = vadd.f32 0.0, %v3931
      %3933 = vmatmul.bf16.gmra.mxu0 %v2683
      %v3934 = vpop.f32.mrf.mxu0
      %v3935 = vadd.f32 0.0, %v3934
      %v3936 = vpop.f32.mrf.mxu0
      %v3937 = vadd.f32 0.0, %v3936
      %3938 = vmatmul.bf16.gmra.mxu0 %v2686
      %v3939 = vpop.f32.mrf.mxu0
      %v3940 = vadd.f32 0.0, %v3939
      %v3941 = vpop.f32.mrf.mxu0
      %v3942 = vadd.f32 0.0, %v3941
      %3943 = vmatmul.bf16.gmra.mxu0 %v2689
      %v3944 = vpop.f32.mrf.mxu0
      %v3945 = vadd.f32 0.0, %v3944
      %v3946 = vpop.f32.mrf.mxu0
      %v3947 = vadd.f32 0.0, %v3946
      %3948 = vmatmul.bf16.gmra.mxu0 %v2692
      %v3949 = vpop.f32.mrf.mxu0
      %v3950 = vadd.f32 0.0, %v3949
      %v3951 = vpop.f32.mrf.mxu0
      %v3952 = vadd.f32 0.0, %v3951
      %3953 = vmatmul.bf16.gmra.mxu0 %v2695
      %v3954 = vpop.f32.mrf.mxu0
      %v3955 = vadd.f32 0.0, %v3954
      %v3956 = vpop.f32.mrf.mxu0
      %v3957 = vadd.f32 0.0, %v3956
      %3958 = vmatmul.bf16.gmra.mxu0 %v2698
      %v3959 = vpop.f32.mrf.mxu0
      %v3960 = vadd.f32 0.0, %v3959
      %v3961 = vpop.f32.mrf.mxu0
      %v3962 = vadd.f32 0.0, %v3961
      %3963 = vmatmul.bf16.gmra.mxu0 %v2701
      %v3964 = vpop.f32.mrf.mxu0
      %v3965 = vadd.f32 0.0, %v3964
      %v3966 = vpop.f32.mrf.mxu0
      %v3967 = vadd.f32 0.0, %v3966
      %3968 = vmatmul.bf16.gmra.mxu0 %v2704
      %v3969 = vpop.f32.mrf.mxu0
      %v3970 = vadd.f32 0.0, %v3969
      %v3971 = vpop.f32.mrf.mxu0
      %v3972 = vadd.f32 0.0, %v3971
      %3973 = vmatmul.bf16.gmra.mxu0 %v2707
      %v3974 = vpop.f32.mrf.mxu0
      %v3975 = vadd.f32 0.0, %v3974
      %v3976 = vpop.f32.mrf.mxu0
      %v3977 = vadd.f32 0.0, %v3976
      %3978 = vmatmul.bf16.gmra.mxu0 %v2710
      %v3979 = vpop.f32.mrf.mxu0
      %v3980 = vadd.f32 0.0, %v3979
      %v3981 = vpop.f32.mrf.mxu0
      %v3982 = vadd.f32 0.0, %v3981
      %3983 = vmatmul.bf16.gmra.mxu0 %v2713
      %v3984 = vpop.f32.mrf.mxu0
      %v3985 = vadd.f32 0.0, %v3984
      %v3986 = vpop.f32.mrf.mxu0
      %v3987 = vadd.f32 0.0, %v3986
      %3988 = vmatmul.bf16.gmra.mxu0 %v2716
      %v3989 = vpop.f32.mrf.mxu0
      %v3990 = vadd.f32 0.0, %v3989
      %v3991 = vpop.f32.mrf.mxu0
      %v3992 = vadd.f32 0.0, %v3991
      %3993 = vmatmul.bf16.gmra.mxu0 %v2719
      %v3994 = vpop.f32.mrf.mxu0
      %v3995 = vadd.f32 0.0, %v3994
      %v3996 = vpop.f32.mrf.mxu0
      %v3997 = vadd.f32 0.0, %v3996
      %3998 = vmatmul.bf16.gmra.mxu0 %v2722
      %v3999 = vpop.f32.mrf.mxu0
      %v4000 = vadd.f32 0.0, %v3999
      %v4001 = vpop.f32.mrf.mxu0
      %v4002 = vadd.f32 0.0, %v4001
      %4003 = vmatmul.bf16.gmra.mxu0 %v2725
      %v4004 = vpop.f32.mrf.mxu0
      %v4005 = vadd.f32 0.0, %v4004
      %v4006 = vpop.f32.mrf.mxu0
      %v4007 = vadd.f32 0.0, %v4006
      %4008 = vmatmul.bf16.gmra.mxu0 %v2728
      %v4009 = vpop.f32.mrf.mxu0
      %v4010 = vadd.f32 0.0, %v4009
      %v4011 = vpop.f32.mrf.mxu0
      %v4012 = vadd.f32 0.0, %v4011
      %4013 = vmatmul.bf16.gmra.mxu0 %v2731
      %v4014 = vpop.f32.mrf.mxu0
      %v4015 = vadd.f32 0.0, %v4014
      %v4016 = vpop.f32.mrf.mxu0
      %v4017 = vadd.f32 0.0, %v4016
      %4018 = vmatmul.bf16.gmra.mxu0 %v2734
      %v4019 = vpop.f32.mrf.mxu0
      %v4020 = vadd.f32 0.0, %v4019
      %v4021 = vpop.f32.mrf.mxu0
      %v4022 = vadd.f32 0.0, %v4021
      %4023 = vmatmul.bf16.gmra.mxu0 %v2737
      %v4024 = vpop.f32.mrf.mxu0
      %v4025 = vadd.f32 0.0, %v4024
      %v4026 = vpop.f32.mrf.mxu0
      %v4027 = vadd.f32 0.0, %v4026
      %4028 = vmatmul.bf16.gmra.mxu0 %v2740
      %v4029 = vpop.f32.mrf.mxu0
      %v4030 = vadd.f32 0.0, %v4029
      %v4031 = vpop.f32.mrf.mxu0
      %v4032 = vadd.f32 0.0, %v4031
      %4033 = vmatmul.bf16.gmra.mxu0 %v2743
      %v4034 = vpop.f32.mrf.mxu0
      %v4035 = vadd.f32 0.0, %v4034
      %v4036 = vpop.f32.mrf.mxu0
      %v4037 = vadd.f32 0.0, %v4036
      %4038 = vmatmul.bf16.gmra.mxu0 %v2746
      %v4039 = vpop.f32.mrf.mxu0
      %v4040 = vadd.f32 0.0, %v4039
      %v4041 = vpop.f32.mrf.mxu0
      %v4042 = vadd.f32 0.0, %v4041
      %4043 = vdwg.mxu0
      %v4044 = vmax.f32 %v2765, %v3085
      %v4045 = vmax.f32 %v2767, %v3087
      %v4046 = vmax.f32 %v2770, %v3090
      %v4047 = vmax.f32 %v2772, %v3092
      %v4048 = vmax.f32 %v2775, %v3095
      %v4049 = vmax.f32 %v2777, %v3097
      %v4050 = vmax.f32 %v2780, %v3100
      %v4051 = vmax.f32 %v2782, %v3102
      %v4052 = vmax.f32 %v2785, %v3105
      %v4053 = vmax.f32 %v2787, %v3107
      %v4054 = vmax.f32 %v2790, %v3110
      %v4055 = vmax.f32 %v2792, %v3112
      %v4056 = vmax.f32 %v2795, %v3115
      %v4057 = vmax.f32 %v2797, %v3117
      %v4058 = vmax.f32 %v2800, %v3120
      %v4059 = vmax.f32 %v2802, %v3122
      %v4060 = vmax.f32 %v2805, %v3125
      %v4061 = vmax.f32 %v2807, %v3127
      %v4062 = vmax.f32 %v2810, %v3130
      %v4063 = vmax.f32 %v2812, %v3132
      %v4064 = vmax.f32 %v2815, %v3135
      %v4065 = vmax.f32 %v2817, %v3137
      %v4066 = vmax.f32 %v2820, %v3140
      %v4067 = vmax.f32 %v2822, %v3142
      %v4068 = vmax.f32 %v2825, %v3145
      %v4069 = vmax.f32 %v2827, %v3147
      %v4070 = vmax.f32 %v2830, %v3150
      %v4071 = vmax.f32 %v2832, %v3152
      %v4072 = vmax.f32 %v2835, %v3155
      %v4073 = vmax.f32 %v2837, %v3157
      %v4074 = vmax.f32 %v2840, %v3160
      %v4075 = vmax.f32 %v2842, %v3162
      %v4076 = vmax.f32 %v2845, %v3165
      %v4077 = vmax.f32 %v2847, %v3167
      %v4078 = vmax.f32 %v2850, %v3170
      %v4079 = vmax.f32 %v2852, %v3172
      %v4080 = vmax.f32 %v2855, %v3175
      %v4081 = vmax.f32 %v2857, %v3177
      %v4082 = vmax.f32 %v2860, %v3180
      %v4083 = vmax.f32 %v2862, %v3182
      %v4084 = vmax.f32 %v2865, %v3185
      %v4085 = vmax.f32 %v2867, %v3187
      %v4086 = vmax.f32 %v2870, %v3190
      %v4087 = vmax.f32 %v2872, %v3192
      %v4088 = vmax.f32 %v2875, %v3195
      %v4089 = vmax.f32 %v2877, %v3197
      %v4090 = vmax.f32 %v2880, %v3200
      %v4091 = vmax.f32 %v2882, %v3202
      %v4092 = vmax.f32 %v2885, %v3205
      %v4093 = vmax.f32 %v2887, %v3207
      %v4094 = vmax.f32 %v2890, %v3210
      %v4095 = vmax.f32 %v2892, %v3212
      %v4096 = vmax.f32 %v2895, %v3215
      %v4097 = vmax.f32 %v2897, %v3217
      %v4098 = vmax.f32 %v2900, %v3220
      %v4099 = vmax.f32 %v2902, %v3222
      %v4100 = vmax.f32 %v2905, %v3225
      %v4101 = vmax.f32 %v2907, %v3227
      %v4102 = vmax.f32 %v2910, %v3230
      %v4103 = vmax.f32 %v2912, %v3232
      %v4104 = vmax.f32 %v2915, %v3235
      %v4105 = vmax.f32 %v2917, %v3237
      %v4106 = vmax.f32 %v2920, %v3240
      %v4107 = vmax.f32 %v2922, %v3242
      %v4108 = vmax.f32 %v2925, %v3245
      %v4109 = vmax.f32 %v2927, %v3247
      %v4110 = vmax.f32 %v2930, %v3250
      %v4111 = vmax.f32 %v2932, %v3252
      %v4112 = vmax.f32 %v2935, %v3255
      %v4113 = vmax.f32 %v2937, %v3257
      %v4114 = vmax.f32 %v2940, %v3260
      %v4115 = vmax.f32 %v2942, %v3262
      %v4116 = vmax.f32 %v2945, %v3265
      %v4117 = vmax.f32 %v2947, %v3267
      %v4118 = vmax.f32 %v2950, %v3270
      %v4119 = vmax.f32 %v2952, %v3272
      %v4120 = vmax.f32 %v2955, %v3275
      %v4121 = vmax.f32 %v2957, %v3277
      %v4122 = vmax.f32 %v2960, %v3280
      %v4123 = vmax.f32 %v2962, %v3282
      %v4124 = vmax.f32 %v2965, %v3285
      %v4125 = vmax.f32 %v2967, %v3287
      %v4126 = vmax.f32 %v2970, %v3290
      %v4127 = vmax.f32 %v2972, %v3292
      %v4128 = vmax.f32 %v2975, %v3295
      %v4129 = vmax.f32 %v2977, %v3297
      %v4130 = vmax.f32 %v2980, %v3300
      %v4131 = vmax.f32 %v2982, %v3302
      %v4132 = vmax.f32 %v2985, %v3305
      %v4133 = vmax.f32 %v2987, %v3307
      %v4134 = vmax.f32 %v2990, %v3310
      %v4135 = vmax.f32 %v2992, %v3312
      %v4136 = vmax.f32 %v2995, %v3315
      %v4137 = vmax.f32 %v2997, %v3317
      %v4138 = vmax.f32 %v3000, %v3320
      %v4139 = vmax.f32 %v3002, %v3322
      %v4140 = vmax.f32 %v3005, %v3325
      %v4141 = vmax.f32 %v3007, %v3327
      %v4142 = vmax.f32 %v3010, %v3330
      %v4143 = vmax.f32 %v3012, %v3332
      %v4144 = vmax.f32 %v3015, %v3335
      %v4145 = vmax.f32 %v3017, %v3337
      %v4146 = vmax.f32 %v3020, %v3340
      %v4147 = vmax.f32 %v3022, %v3342
      %v4148 = vmax.f32 %v3025, %v3345
      %v4149 = vmax.f32 %v3027, %v3347
      %v4150 = vmax.f32 %v3030, %v3350
      %v4151 = vmax.f32 %v3032, %v3352
      %v4152 = vmax.f32 %v3035, %v3355
      %v4153 = vmax.f32 %v3037, %v3357
      %v4154 = vmax.f32 %v3040, %v3360
      %v4155 = vmax.f32 %v3042, %v3362
      %v4156 = vmax.f32 %v3045, %v3365
      %v4157 = vmax.f32 %v3047, %v3367
      %v4158 = vmax.f32 %v3050, %v3370
      %v4159 = vmax.f32 %v3052, %v3372
      %v4160 = vmax.f32 %v3055, %v3375
      %v4161 = vmax.f32 %v3057, %v3377
      %v4162 = vmax.f32 %v3060, %v3380
      %v4163 = vmax.f32 %v3062, %v3382
      %v4164 = vmax.f32 %v3065, %v3385
      %v4165 = vmax.f32 %v3067, %v3387
      %v4166 = vmax.f32 %v3070, %v3390
      %v4167 = vmax.f32 %v3072, %v3392
      %v4168 = vmax.f32 %v3075, %v3395
      %v4169 = vmax.f32 %v3077, %v3397
      %v4170 = vmax.f32 %v3080, %v3400
      %v4171 = vmax.f32 %v3082, %v3402
      %v4172 = vmax.f32 %v3405, %v3725
      %v4173 = vmax.f32 %v3407, %v3727
      %v4174 = vmax.f32 %v3410, %v3730
      %v4175 = vmax.f32 %v3412, %v3732
      %v4176 = vmax.f32 %v3415, %v3735
      %v4177 = vmax.f32 %v3417, %v3737
      %v4178 = vmax.f32 %v3420, %v3740
      %v4179 = vmax.f32 %v3422, %v3742
      %v4180 = vmax.f32 %v3425, %v3745
      %v4181 = vmax.f32 %v3427, %v3747
      %v4182 = vmax.f32 %v3430, %v3750
      %v4183 = vmax.f32 %v3432, %v3752
      %v4184 = vmax.f32 %v3435, %v3755
      %v4185 = vmax.f32 %v3437, %v3757
      %v4186 = vmax.f32 %v3440, %v3760
      %v4187 = vmax.f32 %v3442, %v3762
      %v4188 = vmax.f32 %v3445, %v3765
      %v4189 = vmax.f32 %v3447, %v3767
      %v4190 = vmax.f32 %v3450, %v3770
      %v4191 = vmax.f32 %v3452, %v3772
      %v4192 = vmax.f32 %v3455, %v3775
      %v4193 = vmax.f32 %v3457, %v3777
      %v4194 = vmax.f32 %v3460, %v3780
      %v4195 = vmax.f32 %v3462, %v3782
      %v4196 = vmax.f32 %v3465, %v3785
      %v4197 = vmax.f32 %v3467, %v3787
      %v4198 = vmax.f32 %v3470, %v3790
      %v4199 = vmax.f32 %v3472, %v3792
      %v4200 = vmax.f32 %v3475, %v3795
      %v4201 = vmax.f32 %v3477, %v3797
      %v4202 = vmax.f32 %v3480, %v3800
      %v4203 = vmax.f32 %v3482, %v3802
      %v4204 = vmax.f32 %v3485, %v3805
      %v4205 = vmax.f32 %v3487, %v3807
      %v4206 = vmax.f32 %v3490, %v3810
      %v4207 = vmax.f32 %v3492, %v3812
      %v4208 = vmax.f32 %v3495, %v3815
      %v4209 = vmax.f32 %v3497, %v3817
      %v4210 = vmax.f32 %v3500, %v3820
      %v4211 = vmax.f32 %v3502, %v3822
      %v4212 = vmax.f32 %v3505, %v3825
      %v4213 = vmax.f32 %v3507, %v3827
      %v4214 = vmax.f32 %v3510, %v3830
      %v4215 = vmax.f32 %v3512, %v3832
      %v4216 = vmax.f32 %v3515, %v3835
      %v4217 = vmax.f32 %v3517, %v3837
      %v4218 = vmax.f32 %v3520, %v3840
      %v4219 = vmax.f32 %v3522, %v3842
      %v4220 = vmax.f32 %v3525, %v3845
      %v4221 = vmax.f32 %v3527, %v3847
      %v4222 = vmax.f32 %v3530, %v3850
      %v4223 = vmax.f32 %v3532, %v3852
      %v4224 = vmax.f32 %v3535, %v3855
      %v4225 = vmax.f32 %v3537, %v3857
      %v4226 = vmax.f32 %v3540, %v3860
      %v4227 = vmax.f32 %v3542, %v3862
      %v4228 = vmax.f32 %v3545, %v3865
      %v4229 = vmax.f32 %v3547, %v3867
      %v4230 = vmax.f32 %v3550, %v3870
      %v4231 = vmax.f32 %v3552, %v3872
      %v4232 = vmax.f32 %v3555, %v3875
      %v4233 = vmax.f32 %v3557, %v3877
      %v4234 = vmax.f32 %v3560, %v3880
      %v4235 = vmax.f32 %v3562, %v3882
      %v4236 = vmax.f32 %v3565, %v3885
      %v4237 = vmax.f32 %v3567, %v3887
      %v4238 = vmax.f32 %v3570, %v3890
      %v4239 = vmax.f32 %v3572, %v3892
      %v4240 = vmax.f32 %v3575, %v3895
      %v4241 = vmax.f32 %v3577, %v3897
      %v4242 = vmax.f32 %v3580, %v3900
      %v4243 = vmax.f32 %v3582, %v3902
      %v4244 = vmax.f32 %v3585, %v3905
      %v4245 = vmax.f32 %v3587, %v3907
      %v4246 = vmax.f32 %v3590, %v3910
      %v4247 = vmax.f32 %v3592, %v3912
      %v4248 = vmax.f32 %v3595, %v3915
      %v4249 = vmax.f32 %v3597, %v3917
      %v4250 = vmax.f32 %v3600, %v3920
      %v4251 = vmax.f32 %v3602, %v3922
      %v4252 = vmax.f32 %v3605, %v3925
      %v4253 = vmax.f32 %v3607, %v3927
      %v4254 = vmax.f32 %v3610, %v3930
      %v4255 = vmax.f32 %v3612, %v3932
      %v4256 = vmax.f32 %v3615, %v3935
      %v4257 = vmax.f32 %v3617, %v3937
      %v4258 = vmax.f32 %v3620, %v3940
      %v4259 = vmax.f32 %v3622, %v3942
      %v4260 = vmax.f32 %v3625, %v3945
      %v4261 = vmax.f32 %v3627, %v3947
      %v4262 = vmax.f32 %v3630, %v3950
      %v4263 = vmax.f32 %v3632, %v3952
      %v4264 = vmax.f32 %v3635, %v3955
      %v4265 = vmax.f32 %v3637, %v3957
      %v4266 = vmax.f32 %v3640, %v3960
      %v4267 = vmax.f32 %v3642, %v3962
      %v4268 = vmax.f32 %v3645, %v3965
      %v4269 = vmax.f32 %v3647, %v3967
      %v4270 = vmax.f32 %v3650, %v3970
      %v4271 = vmax.f32 %v3652, %v3972
      %v4272 = vmax.f32 %v3655, %v3975
      %v4273 = vmax.f32 %v3657, %v3977
      %v4274 = vmax.f32 %v3660, %v3980
      %v4275 = vmax.f32 %v3662, %v3982
      %v4276 = vmax.f32 %v3665, %v3985
      %v4277 = vmax.f32 %v3667, %v3987
      %v4278 = vmax.f32 %v3670, %v3990
      %v4279 = vmax.f32 %v3672, %v3992
      %v4280 = vmax.f32 %v3675, %v3995
      %v4281 = vmax.f32 %v3677, %v3997
      %v4282 = vmax.f32 %v3680, %v4000
      %v4283 = vmax.f32 %v3682, %v4002
      %v4284 = vmax.f32 %v3685, %v4005
      %v4285 = vmax.f32 %v3687, %v4007
      %v4286 = vmax.f32 %v3690, %v4010
      %v4287 = vmax.f32 %v3692, %v4012
      %v4288 = vmax.f32 %v3695, %v4015
      %v4289 = vmax.f32 %v3697, %v4017
      %v4290 = vmax.f32 %v3700, %v4020
      %v4291 = vmax.f32 %v3702, %v4022
      %v4292 = vmax.f32 %v3705, %v4025
      %v4293 = vmax.f32 %v3707, %v4027
      %v4294 = vmax.f32 %v3710, %v4030
      %v4295 = vmax.f32 %v3712, %v4032
      %v4296 = vmax.f32 %v3715, %v4035
      %v4297 = vmax.f32 %v3717, %v4037
      %v4298 = vmax.f32 %v3720, %v4040
      %v4299 = vmax.f32 %v3722, %v4042
      %v4300 = vmax.f32 %v4044, %v4172
      %v4301 = vmax.f32 %v4045, %v4173
      %v4302 = vmax.f32 %v4046, %v4174
      %v4303 = vmax.f32 %v4047, %v4175
      %v4304 = vmax.f32 %v4048, %v4176
      %v4305 = vmax.f32 %v4049, %v4177
      %v4306 = vmax.f32 %v4050, %v4178
      %v4307 = vmax.f32 %v4051, %v4179
      %v4308 = vmax.f32 %v4052, %v4180
      %v4309 = vmax.f32 %v4053, %v4181
      %v4310 = vmax.f32 %v4054, %v4182
      %v4311 = vmax.f32 %v4055, %v4183
      %v4312 = vmax.f32 %v4056, %v4184
      %v4313 = vmax.f32 %v4057, %v4185
      %v4314 = vmax.f32 %v4058, %v4186
      %v4315 = vmax.f32 %v4059, %v4187
      %v4316 = vmax.f32 %v4060, %v4188
      %v4317 = vmax.f32 %v4061, %v4189
      %v4318 = vmax.f32 %v4062, %v4190
      %v4319 = vmax.f32 %v4063, %v4191
      %v4320 = vmax.f32 %v4064, %v4192
      %v4321 = vmax.f32 %v4065, %v4193
      %v4322 = vmax.f32 %v4066, %v4194
      %v4323 = vmax.f32 %v4067, %v4195
      %v4324 = vmax.f32 %v4068, %v4196
      %v4325 = vmax.f32 %v4069, %v4197
      %v4326 = vmax.f32 %v4070, %v4198
      %v4327 = vmax.f32 %v4071, %v4199
      %v4328 = vmax.f32 %v4072, %v4200
      %v4329 = vmax.f32 %v4073, %v4201
      %v4330 = vmax.f32 %v4074, %v4202
      %v4331 = vmax.f32 %v4075, %v4203
      %v4332 = vmax.f32 %v4076, %v4204
      %v4333 = vmax.f32 %v4077, %v4205
      %v4334 = vmax.f32 %v4078, %v4206
      %v4335 = vmax.f32 %v4079, %v4207
      %v4336 = vmax.f32 %v4080, %v4208
      %v4337 = vmax.f32 %v4081, %v4209
      %v4338 = vmax.f32 %v4082, %v4210
      %v4339 = vmax.f32 %v4083, %v4211
      %v4340 = vmax.f32 %v4084, %v4212
      %v4341 = vmax.f32 %v4085, %v4213
      %v4342 = vmax.f32 %v4086, %v4214
      %v4343 = vmax.f32 %v4087, %v4215
      %v4344 = vmax.f32 %v4088, %v4216
      %v4345 = vmax.f32 %v4089, %v4217
      %v4346 = vmax.f32 %v4090, %v4218
      %v4347 = vmax.f32 %v4091, %v4219
      %v4348 = vmax.f32 %v4092, %v4220
      %v4349 = vmax.f32 %v4093, %v4221
      %v4350 = vmax.f32 %v4094, %v4222
      %v4351 = vmax.f32 %v4095, %v4223
      %v4352 = vmax.f32 %v4096, %v4224
      %v4353 = vmax.f32 %v4097, %v4225
      %v4354 = vmax.f32 %v4098, %v4226
      %v4355 = vmax.f32 %v4099, %v4227
      %v4356 = vmax.f32 %v4100, %v4228
      %v4357 = vmax.f32 %v4101, %v4229
      %v4358 = vmax.f32 %v4102, %v4230
      %v4359 = vmax.f32 %v4103, %v4231
      %v4360 = vmax.f32 %v4104, %v4232
      %v4361 = vmax.f32 %v4105, %v4233
      %v4362 = vmax.f32 %v4106, %v4234
      %v4363 = vmax.f32 %v4107, %v4235
      %v4364 = vmax.f32 %v4108, %v4236
      %v4365 = vmax.f32 %v4109, %v4237
      %v4366 = vmax.f32 %v4110, %v4238
      %v4367 = vmax.f32 %v4111, %v4239
      %v4368 = vmax.f32 %v4112, %v4240
      %v4369 = vmax.f32 %v4113, %v4241
      %v4370 = vmax.f32 %v4114, %v4242
      %v4371 = vmax.f32 %v4115, %v4243
      %v4372 = vmax.f32 %v4116, %v4244
      %v4373 = vmax.f32 %v4117, %v4245
      %v4374 = vmax.f32 %v4118, %v4246
      %v4375 = vmax.f32 %v4119, %v4247
      %v4376 = vmax.f32 %v4120, %v4248
      %v4377 = vmax.f32 %v4121, %v4249
      %v4378 = vmax.f32 %v4122, %v4250
      %v4379 = vmax.f32 %v4123, %v4251
      %v4380 = vmax.f32 %v4124, %v4252
      %v4381 = vmax.f32 %v4125, %v4253
      %v4382 = vmax.f32 %v4126, %v4254
      %v4383 = vmax.f32 %v4127, %v4255
      %v4384 = vmax.f32 %v4128, %v4256
      %v4385 = vmax.f32 %v4129, %v4257
      %v4386 = vmax.f32 %v4130, %v4258
      %v4387 = vmax.f32 %v4131, %v4259
      %v4388 = vmax.f32 %v4132, %v4260
      %v4389 = vmax.f32 %v4133, %v4261
      %v4390 = vmax.f32 %v4134, %v4262
      %v4391 = vmax.f32 %v4135, %v4263
      %v4392 = vmax.f32 %v4136, %v4264
      %v4393 = vmax.f32 %v4137, %v4265
      %v4394 = vmax.f32 %v4138, %v4266
      %v4395 = vmax.f32 %v4139, %v4267
      %v4396 = vmax.f32 %v4140, %v4268
      %v4397 = vmax.f32 %v4141, %v4269
      %v4398 = vmax.f32 %v4142, %v4270
      %v4399 = vmax.f32 %v4143, %v4271
      %v4400 = vmax.f32 %v4144, %v4272
      %v4401 = vmax.f32 %v4145, %v4273
      %v4402 = vmax.f32 %v4146, %v4274
      %v4403 = vmax.f32 %v4147, %v4275
      %v4404 = vmax.f32 %v4148, %v4276
      %v4405 = vmax.f32 %v4149, %v4277
      %v4406 = vmax.f32 %v4150, %v4278
      %v4407 = vmax.f32 %v4151, %v4279
      %v4408 = vmax.f32 %v4152, %v4280
      %v4409 = vmax.f32 %v4153, %v4281
      %v4410 = vmax.f32 %v4154, %v4282
      %v4411 = vmax.f32 %v4155, %v4283
      %v4412 = vmax.f32 %v4156, %v4284
      %v4413 = vmax.f32 %v4157, %v4285
      %v4414 = vmax.f32 %v4158, %v4286
      %v4415 = vmax.f32 %v4159, %v4287
      %v4416 = vmax.f32 %v4160, %v4288
      %v4417 = vmax.f32 %v4161, %v4289
      %v4418 = vmax.f32 %v4162, %v4290
      %v4419 = vmax.f32 %v4163, %v4291
      %v4420 = vmax.f32 %v4164, %v4292
      %v4421 = vmax.f32 %v4165, %v4293
      %v4422 = vmax.f32 %v4166, %v4294
      %v4423 = vmax.f32 %v4167, %v4295
      %v4424 = vmax.f32 %v4168, %v4296
      %v4425 = vmax.f32 %v4169, %v4297
      %v4426 = vmax.f32 %v4170, %v4298
      %v4427 = vmax.f32 %v4171, %v4299
      %v4428 = vld [vmem:[%s2] sm:$0x1]
      %v4430 = vperm.slane %v4428, 0
      %v4432 = vadd.f32 %v4300, %v4430
      %v4433 = vadd.f32 %v4301, %v4430
      %v4434 = vadd.f32 %v4302, %v4430
      %v4435 = vadd.f32 %v4303, %v4430
      %v4436 = vadd.f32 %v4304, %v4430
      %v4437 = vadd.f32 %v4305, %v4430
      %v4438 = vadd.f32 %v4306, %v4430
      %v4439 = vadd.f32 %v4307, %v4430
      %v4440 = vadd.f32 %v4308, %v4430
      %v4441 = vadd.f32 %v4309, %v4430
      %v4442 = vadd.f32 %v4310, %v4430
      %v4443 = vadd.f32 %v4311, %v4430
      %v4444 = vadd.f32 %v4312, %v4430
      %v4445 = vadd.f32 %v4313, %v4430
      %v4446 = vadd.f32 %v4314, %v4430
      %v4447 = vadd.f32 %v4315, %v4430
      %v4448 = vadd.f32 %v4316, %v4430
      %v4449 = vadd.f32 %v4317, %v4430
      %v4450 = vadd.f32 %v4318, %v4430
      %v4451 = vadd.f32 %v4319, %v4430
      %v4452 = vadd.f32 %v4320, %v4430
      %v4453 = vadd.f32 %v4321, %v4430
      %v4454 = vadd.f32 %v4322, %v4430
      %v4455 = vadd.f32 %v4323, %v4430
      %v4456 = vadd.f32 %v4324, %v4430
      %v4457 = vadd.f32 %v4325, %v4430
      %v4458 = vadd.f32 %v4326, %v4430
      %v4459 = vadd.f32 %v4327, %v4430
      %v4460 = vadd.f32 %v4328, %v4430
      %v4461 = vadd.f32 %v4329, %v4430
      %v4462 = vadd.f32 %v4330, %v4430
      %v4463 = vadd.f32 %v4331, %v4430
      %v4464 = vadd.f32 %v4332, %v4430
      %v4465 = vadd.f32 %v4333, %v4430
      %v4466 = vadd.f32 %v4334, %v4430
      %v4467 = vadd.f32 %v4335, %v4430
      %v4468 = vadd.f32 %v4336, %v4430
      %v4469 = vadd.f32 %v4337, %v4430
      %v4470 = vadd.f32 %v4338, %v4430
      %v4471 = vadd.f32 %v4339, %v4430
      %v4472 = vadd.f32 %v4340, %v4430
      %v4473 = vadd.f32 %v4341, %v4430
      %v4474 = vadd.f32 %v4342, %v4430
      %v4475 = vadd.f32 %v4343, %v4430
      %v4476 = vadd.f32 %v4344, %v4430
      %v4477 = vadd.f32 %v4345, %v4430
      %v4478 = vadd.f32 %v4346, %v4430
      %v4479 = vadd.f32 %v4347, %v4430
      %v4480 = vadd.f32 %v4348, %v4430
      %v4481 = vadd.f32 %v4349, %v4430
      %v4482 = vadd.f32 %v4350, %v4430
      %v4483 = vadd.f32 %v4351, %v4430
      %v4484 = vadd.f32 %v4352, %v4430
      %v4485 = vadd.f32 %v4353, %v4430
      %v4486 = vadd.f32 %v4354, %v4430
      %v4487 = vadd.f32 %v4355, %v4430
      %v4488 = vadd.f32 %v4356, %v4430
      %v4489 = vadd.f32 %v4357, %v4430
      %v4490 = vadd.f32 %v4358, %v4430
      %v4491 = vadd.f32 %v4359, %v4430
      %v4492 = vadd.f32 %v4360, %v4430
      %v4493 = vadd.f32 %v4361, %v4430
      %v4494 = vadd.f32 %v4362, %v4430
      %v4495 = vadd.f32 %v4363, %v4430
      %v4496 = vadd.f32 %v4364, %v4430
      %v4497 = vadd.f32 %v4365, %v4430
      %v4498 = vadd.f32 %v4366, %v4430
      %v4499 = vadd.f32 %v4367, %v4430
      %v4500 = vadd.f32 %v4368, %v4430
      %v4501 = vadd.f32 %v4369, %v4430
      %v4502 = vadd.f32 %v4370, %v4430
      %v4503 = vadd.f32 %v4371, %v4430
      %v4504 = vadd.f32 %v4372, %v4430
      %v4505 = vadd.f32 %v4373, %v4430
      %v4506 = vadd.f32 %v4374, %v4430
      %v4507 = vadd.f32 %v4375, %v4430
      %v4508 = vadd.f32 %v4376, %v4430
      %v4509 = vadd.f32 %v4377, %v4430
      %v4510 = vadd.f32 %v4378, %v4430
      %v4511 = vadd.f32 %v4379, %v4430
      %v4512 = vadd.f32 %v4380, %v4430
      %v4513 = vadd.f32 %v4381, %v4430
      %v4514 = vadd.f32 %v4382, %v4430
      %v4515 = vadd.f32 %v4383, %v4430
      %v4516 = vadd.f32 %v4384, %v4430
      %v4517 = vadd.f32 %v4385, %v4430
      %v4518 = vadd.f32 %v4386, %v4430
      %v4519 = vadd.f32 %v4387, %v4430
      %v4520 = vadd.f32 %v4388, %v4430
      %v4521 = vadd.f32 %v4389, %v4430
      %v4522 = vadd.f32 %v4390, %v4430
      %v4523 = vadd.f32 %v4391, %v4430
      %v4524 = vadd.f32 %v4392, %v4430
      %v4525 = vadd.f32 %v4393, %v4430
      %v4526 = vadd.f32 %v4394, %v4430
      %v4527 = vadd.f32 %v4395, %v4430
      %v4528 = vadd.f32 %v4396, %v4430
      %v4529 = vadd.f32 %v4397, %v4430
      %v4530 = vadd.f32 %v4398, %v4430
      %v4531 = vadd.f32 %v4399, %v4430
      %v4532 = vadd.f32 %v4400, %v4430
      %v4533 = vadd.f32 %v4401, %v4430
      %v4534 = vadd.f32 %v4402, %v4430
      %v4535 = vadd.f32 %v4403, %v4430
      %v4536 = vadd.f32 %v4404, %v4430
      %v4537 = vadd.f32 %v4405, %v4430
      %v4538 = vadd.f32 %v4406, %v4430
      %v4539 = vadd.f32 %v4407, %v4430
      %v4540 = vadd.f32 %v4408, %v4430
      %v4541 = vadd.f32 %v4409, %v4430
      %v4542 = vadd.f32 %v4410, %v4430
      %v4543 = vadd.f32 %v4411, %v4430
      %v4544 = vadd.f32 %v4412, %v4430
      %v4545 = vadd.f32 %v4413, %v4430
      %v4546 = vadd.f32 %v4414, %v4430
      %v4547 = vadd.f32 %v4415, %v4430
      %v4548 = vadd.f32 %v4416, %v4430
      %v4549 = vadd.f32 %v4417, %v4430
      %v4550 = vadd.f32 %v4418, %v4430
      %v4551 = vadd.f32 %v4419, %v4430
      %v4552 = vadd.f32 %v4420, %v4430
      %v4553 = vadd.f32 %v4421, %v4430
      %v4554 = vadd.f32 %v4422, %v4430
      %v4555 = vadd.f32 %v4423, %v4430
      %v4556 = vadd.f32 %v4424, %v4430
      %v4557 = vadd.f32 %v4425, %v4430
      %v4558 = vadd.f32 %v4426, %v4430
      %v4559 = vadd.f32 %v4427, %v4430
      %v4560 = vmax.f32 %v4432, 0.0
      %v4561 = vmax.f32 %v4433, 0.0
      %v4562 = vmax.f32 %v4434, 0.0
      %v4563 = vmax.f32 %v4435, 0.0
      %v4564 = vmax.f32 %v4436, 0.0
      %v4565 = vmax.f32 %v4437, 0.0
      %v4566 = vmax.f32 %v4438, 0.0
      %v4567 = vmax.f32 %v4439, 0.0
      %v4568 = vmax.f32 %v4440, 0.0
      %v4569 = vmax.f32 %v4441, 0.0
      %v4570 = vmax.f32 %v4442, 0.0
      %v4571 = vmax.f32 %v4443, 0.0
      %v4572 = vmax.f32 %v4444, 0.0
      %v4573 = vmax.f32 %v4445, 0.0
      %v4574 = vmax.f32 %v4446, 0.0
      %v4575 = vmax.f32 %v4447, 0.0
      %v4576 = vmax.f32 %v4448, 0.0
      %v4577 = vmax.f32 %v4449, 0.0
      %v4578 = vmax.f32 %v4450, 0.0
      %v4579 = vmax.f32 %v4451, 0.0
      %v4580 = vmax.f32 %v4452, 0.0
      %v4581 = vmax.f32 %v4453, 0.0
      %v4582 = vmax.f32 %v4454, 0.0
      %v4583 = vmax.f32 %v4455, 0.0
      %v4584 = vmax.f32 %v4456, 0.0
      %v4585 = vmax.f32 %v4457, 0.0
      %v4586 = vmax.f32 %v4458, 0.0
      %v4587 = vmax.f32 %v4459, 0.0
      %v4588 = vmax.f32 %v4460, 0.0
      %v4589 = vmax.f32 %v4461, 0.0
      %v4590 = vmax.f32 %v4462, 0.0
      %v4591 = vmax.f32 %v4463, 0.0
      %v4592 = vmax.f32 %v4464, 0.0
      %v4593 = vmax.f32 %v4465, 0.0
      %v4594 = vmax.f32 %v4466, 0.0
      %v4595 = vmax.f32 %v4467, 0.0
      %v4596 = vmax.f32 %v4468, 0.0
      %v4597 = vmax.f32 %v4469, 0.0
      %v4598 = vmax.f32 %v4470, 0.0
      %v4599 = vmax.f32 %v4471, 0.0
      %v4600 = vmax.f32 %v4472, 0.0
      %v4601 = vmax.f32 %v4473, 0.0
      %v4602 = vmax.f32 %v4474, 0.0
      %v4603 = vmax.f32 %v4475, 0.0
      %v4604 = vmax.f32 %v4476, 0.0
      %v4605 = vmax.f32 %v4477, 0.0
      %v4606 = vmax.f32 %v4478, 0.0
      %v4607 = vmax.f32 %v4479, 0.0
      %v4608 = vmax.f32 %v4480, 0.0
      %v4609 = vmax.f32 %v4481, 0.0
      %v4610 = vmax.f32 %v4482, 0.0
      %v4611 = vmax.f32 %v4483, 0.0
      %v4612 = vmax.f32 %v4484, 0.0
      %v4613 = vmax.f32 %v4485, 0.0
      %v4614 = vmax.f32 %v4486, 0.0
      %v4615 = vmax.f32 %v4487, 0.0
      %v4616 = vmax.f32 %v4488, 0.0
      %v4617 = vmax.f32 %v4489, 0.0
      %v4618 = vmax.f32 %v4490, 0.0
      %v4619 = vmax.f32 %v4491, 0.0
      %v4620 = vmax.f32 %v4492, 0.0
      %v4621 = vmax.f32 %v4493, 0.0
      %v4622 = vmax.f32 %v4494, 0.0
      %v4623 = vmax.f32 %v4495, 0.0
      %v4624 = vmax.f32 %v4496, 0.0
      %v4625 = vmax.f32 %v4497, 0.0
      %v4626 = vmax.f32 %v4498, 0.0
      %v4627 = vmax.f32 %v4499, 0.0
      %v4628 = vmax.f32 %v4500, 0.0
      %v4629 = vmax.f32 %v4501, 0.0
      %v4630 = vmax.f32 %v4502, 0.0
      %v4631 = vmax.f32 %v4503, 0.0
      %v4632 = vmax.f32 %v4504, 0.0
      %v4633 = vmax.f32 %v4505, 0.0
      %v4634 = vmax.f32 %v4506, 0.0
      %v4635 = vmax.f32 %v4507, 0.0
      %v4636 = vmax.f32 %v4508, 0.0
      %v4637 = vmax.f32 %v4509, 0.0
      %v4638 = vmax.f32 %v4510, 0.0
      %v4639 = vmax.f32 %v4511, 0.0
      %v4640 = vmax.f32 %v4512, 0.0
      %v4641 = vmax.f32 %v4513, 0.0
      %v4642 = vmax.f32 %v4514, 0.0
      %v4643 = vmax.f32 %v4515, 0.0
      %v4644 = vmax.f32 %v4516, 0.0
      %v4645 = vmax.f32 %v4517, 0.0
      %v4646 = vmax.f32 %v4518, 0.0
      %v4647 = vmax.f32 %v4519, 0.0
      %v4648 = vmax.f32 %v4520, 0.0
      %v4649 = vmax.f32 %v4521, 0.0
      %v4650 = vmax.f32 %v4522, 0.0
      %v4651 = vmax.f32 %v4523, 0.0
      %v4652 = vmax.f32 %v4524, 0.0
      %v4653 = vmax.f32 %v4525, 0.0
      %v4654 = vmax.f32 %v4526, 0.0
      %v4655 = vmax.f32 %v4527, 0.0
      %v4656 = vmax.f32 %v4528, 0.0
      %v4657 = vmax.f32 %v4529, 0.0
      %v4658 = vmax.f32 %v4530, 0.0
      %v4659 = vmax.f32 %v4531, 0.0
      %v4660 = vmax.f32 %v4532, 0.0
      %v4661 = vmax.f32 %v4533, 0.0
      %v4662 = vmax.f32 %v4534, 0.0
      %v4663 = vmax.f32 %v4535, 0.0
      %v4664 = vmax.f32 %v4536, 0.0
      %v4665 = vmax.f32 %v4537, 0.0
      %v4666 = vmax.f32 %v4538, 0.0
      %v4667 = vmax.f32 %v4539, 0.0
      %v4668 = vmax.f32 %v4540, 0.0
      %v4669 = vmax.f32 %v4541, 0.0
      %v4670 = vmax.f32 %v4542, 0.0
      %v4671 = vmax.f32 %v4543, 0.0
      %v4672 = vmax.f32 %v4544, 0.0
      %v4673 = vmax.f32 %v4545, 0.0
      %v4674 = vmax.f32 %v4546, 0.0
      %v4675 = vmax.f32 %v4547, 0.0
      %v4676 = vmax.f32 %v4548, 0.0
      %v4677 = vmax.f32 %v4549, 0.0
      %v4678 = vmax.f32 %v4550, 0.0
      %v4679 = vmax.f32 %v4551, 0.0
      %v4680 = vmax.f32 %v4552, 0.0
      %v4681 = vmax.f32 %v4553, 0.0
      %v4682 = vmax.f32 %v4554, 0.0
      %v4683 = vmax.f32 %v4555, 0.0
      %v4684 = vmax.f32 %v4556, 0.0
      %v4685 = vmax.f32 %v4557, 0.0
      %v4686 = vmax.f32 %v4558, 0.0
      %v4687 = vmax.f32 %v4559, 0.0
      %vm4688 = vcmask 130048
      %4689 = vst.msk [vmem:[%s170] sm:$0xff] %vm4688, %v4560
      %4690 = vst.msk [vmem:[%s170 + $0x8] sm:$0xff] %vm4688, %v4561
      %4691 = vst.msk [vmem:[%s170 + $0x10] sm:$0xff] %vm4688, %v4562
      %4692 = vst.msk [vmem:[%s170 + $0x18] sm:$0xff] %vm4688, %v4563
      %4693 = vst.msk [vmem:[%s170 + $0x20] sm:$0xff] %vm4688, %v4564
      %4694 = vst.msk [vmem:[%s170 + $0x28] sm:$0xff] %vm4688, %v4565
      %4695 = vst.msk [vmem:[%s170 + $0x30] sm:$0xff] %vm4688, %v4566
      %4696 = vst.msk [vmem:[%s170 + $0x38] sm:$0xff] %vm4688, %v4567
      %4697 = vst.msk [vmem:[%s170 + $0x40] sm:$0xff] %vm4688, %v4568
      %4698 = vst.msk [vmem:[%s170 + $0x48] sm:$0xff] %vm4688, %v4569
      %4699 = vst.msk [vmem:[%s170 + $0x50] sm:$0xff] %vm4688, %v4570
      %4700 = vst.msk [vmem:[%s170 + $0x58] sm:$0xff] %vm4688, %v4571
      %4701 = vst.msk [vmem:[%s170 + $0x60] sm:$0xff] %vm4688, %v4572
      %4702 = vst.msk [vmem:[%s170 + $0x68] sm:$0xff] %vm4688, %v4573
      %4703 = vst.msk [vmem:[%s170 + $0x70] sm:$0xff] %vm4688, %v4574
      %4704 = vst.msk [vmem:[%s170 + $0x78] sm:$0xff] %vm4688, %v4575
      %4705 = vst.msk [vmem:[%s170 + $0x80] sm:$0xff] %vm4688, %v4576
      %4706 = vst.msk [vmem:[%s170 + $0x88] sm:$0xff] %vm4688, %v4577
      %4707 = vst.msk [vmem:[%s170 + $0x90] sm:$0xff] %vm4688, %v4578
      %4708 = vst.msk [vmem:[%s170 + $0x98] sm:$0xff] %vm4688, %v4579
      %4709 = vst.msk [vmem:[%s170 + $0xa0] sm:$0xff] %vm4688, %v4580
      %4710 = vst.msk [vmem:[%s170 + $0xa8] sm:$0xff] %vm4688, %v4581
      %4711 = vst.msk [vmem:[%s170 + $0xb0] sm:$0xff] %vm4688, %v4582
      %4712 = vst.msk [vmem:[%s170 + $0xb8] sm:$0xff] %vm4688, %v4583
      %4713 = vst.msk [vmem:[%s170 + $0xc0] sm:$0xff] %vm4688, %v4584
      %4714 = vst.msk [vmem:[%s170 + $0xc8] sm:$0xff] %vm4688, %v4585
      %4715 = vst.msk [vmem:[%s170 + $0xd0] sm:$0xff] %vm4688, %v4586
      %4716 = vst.msk [vmem:[%s170 + $0xd8] sm:$0xff] %vm4688, %v4587
      %4717 = vst.msk [vmem:[%s170 + $0xe0] sm:$0xff] %vm4688, %v4588
      %4718 = vst.msk [vmem:[%s170 + $0xe8] sm:$0xff] %vm4688, %v4589
      %4719 = vst.msk [vmem:[%s170 + $0xf0] sm:$0xff] %vm4688, %v4590
      %4720 = vst.msk [vmem:[%s170 + $0xf8] sm:$0xff] %vm4688, %v4591
      %4721 = vst.msk [vmem:[%s170 + $0x100] sm:$0xff] %vm4688, %v4592
      %4722 = vst.msk [vmem:[%s170 + $0x108] sm:$0xff] %vm4688, %v4593
      %4723 = vst.msk [vmem:[%s170 + $0x110] sm:$0xff] %vm4688, %v4594
      %4724 = vst.msk [vmem:[%s170 + $0x118] sm:$0xff] %vm4688, %v4595
      %4725 = vst.msk [vmem:[%s170 + $0x120] sm:$0xff] %vm4688, %v4596
      %4726 = vst.msk [vmem:[%s170 + $0x128] sm:$0xff] %vm4688, %v4597
      %4727 = vst.msk [vmem:[%s170 + $0x130] sm:$0xff] %vm4688, %v4598
      %4728 = vst.msk [vmem:[%s170 + $0x138] sm:$0xff] %vm4688, %v4599
      %4729 = vst.msk [vmem:[%s170 + $0x140] sm:$0xff] %vm4688, %v4600
      %4730 = vst.msk [vmem:[%s170 + $0x148] sm:$0xff] %vm4688, %v4601
      %4731 = vst.msk [vmem:[%s170 + $0x150] sm:$0xff] %vm4688, %v4602
      %4732 = vst.msk [vmem:[%s170 + $0x158] sm:$0xff] %vm4688, %v4603
      %4733 = vst.msk [vmem:[%s170 + $0x160] sm:$0xff] %vm4688, %v4604
      %4734 = vst.msk [vmem:[%s170 + $0x168] sm:$0xff] %vm4688, %v4605
      %4735 = vst.msk [vmem:[%s170 + $0x170] sm:$0xff] %vm4688, %v4606
      %4736 = vst.msk [vmem:[%s170 + $0x178] sm:$0xff] %vm4688, %v4607
      %4737 = vst.msk [vmem:[%s170 + $0x180] sm:$0xff] %vm4688, %v4608
      %4738 = vst.msk [vmem:[%s170 + $0x188] sm:$0xff] %vm4688, %v4609
      %4739 = vst.msk [vmem:[%s170 + $0x190] sm:$0xff] %vm4688, %v4610
      %4740 = vst.msk [vmem:[%s170 + $0x198] sm:$0xff] %vm4688, %v4611
      %4741 = vst.msk [vmem:[%s170 + $0x1a0] sm:$0xff] %vm4688, %v4612
      %4742 = vst.msk [vmem:[%s170 + $0x1a8] sm:$0xff] %vm4688, %v4613
      %4743 = vst.msk [vmem:[%s170 + $0x1b0] sm:$0xff] %vm4688, %v4614
      %4744 = vst.msk [vmem:[%s170 + $0x1b8] sm:$0xff] %vm4688, %v4615
      %4745 = vst.msk [vmem:[%s170 + $0x1c0] sm:$0xff] %vm4688, %v4616
      %4746 = vst.msk [vmem:[%s170 + $0x1c8] sm:$0xff] %vm4688, %v4617
      %4747 = vst.msk [vmem:[%s170 + $0x1d0] sm:$0xff] %vm4688, %v4618
      %4748 = vst.msk [vmem:[%s170 + $0x1d8] sm:$0xff] %vm4688, %v4619
      %4749 = vst.msk [vmem:[%s170 + $0x1e0] sm:$0xff] %vm4688, %v4620
      %4750 = vst.msk [vmem:[%s170 + $0x1e8] sm:$0xff] %vm4688, %v4621
      %4751 = vst.msk [vmem:[%s170 + $0x1f0] sm:$0xff] %vm4688, %v4622
      %4752 = vst.msk [vmem:[%s170 + $0x1f8] sm:$0xff] %vm4688, %v4623
      %4753 = vst.msk [vmem:[%s170 + $0x200] sm:$0xff] %vm4688, %v4624
      %4754 = vst.msk [vmem:[%s170 + $0x208] sm:$0xff] %vm4688, %v4625
      %4755 = vst.msk [vmem:[%s170 + $0x210] sm:$0xff] %vm4688, %v4626
      %4756 = vst.msk [vmem:[%s170 + $0x218] sm:$0xff] %vm4688, %v4627
      %4757 = vst.msk [vmem:[%s170 + $0x220] sm:$0xff] %vm4688, %v4628
      %4758 = vst.msk [vmem:[%s170 + $0x228] sm:$0xff] %vm4688, %v4629
      %4759 = vst.msk [vmem:[%s170 + $0x230] sm:$0xff] %vm4688, %v4630
      %4760 = vst.msk [vmem:[%s170 + $0x238] sm:$0xff] %vm4688, %v4631
      %4761 = vst.msk [vmem:[%s170 + $0x240] sm:$0xff] %vm4688, %v4632
      %4762 = vst.msk [vmem:[%s170 + $0x248] sm:$0xff] %vm4688, %v4633
      %4763 = vst.msk [vmem:[%s170 + $0x250] sm:$0xff] %vm4688, %v4634
      %4764 = vst.msk [vmem:[%s170 + $0x258] sm:$0xff] %vm4688, %v4635
      %4765 = vst.msk [vmem:[%s170 + $0x260] sm:$0xff] %vm4688, %v4636
      %4766 = vst.msk [vmem:[%s170 + $0x268] sm:$0xff] %vm4688, %v4637
      %4767 = vst.msk [vmem:[%s170 + $0x270] sm:$0xff] %vm4688, %v4638
      %4768 = vst.msk [vmem:[%s170 + $0x278] sm:$0xff] %vm4688, %v4639
      %4769 = vst.msk [vmem:[%s170 + $0x280] sm:$0xff] %vm4688, %v4640
      %4770 = vst.msk [vmem:[%s170 + $0x288] sm:$0xff] %vm4688, %v4641
      %4771 = vst.msk [vmem:[%s170 + $0x290] sm:$0xff] %vm4688, %v4642
      %4772 = vst.msk [vmem:[%s170 + $0x298] sm:$0xff] %vm4688, %v4643
      %4773 = vst.msk [vmem:[%s170 + $0x2a0] sm:$0xff] %vm4688, %v4644
      %4774 = vst.msk [vmem:[%s170 + $0x2a8] sm:$0xff] %vm4688, %v4645
      %4775 = vst.msk [vmem:[%s170 + $0x2b0] sm:$0xff] %vm4688, %v4646
      %4776 = vst.msk [vmem:[%s170 + $0x2b8] sm:$0xff] %vm4688, %v4647
      %4777 = vst.msk [vmem:[%s170 + $0x2c0] sm:$0xff] %vm4688, %v4648
      %4778 = vst.msk [vmem:[%s170 + $0x2c8] sm:$0xff] %vm4688, %v4649
      %4779 = vst.msk [vmem:[%s170 + $0x2d0] sm:$0xff] %vm4688, %v4650
      %4780 = vst.msk [vmem:[%s170 + $0x2d8] sm:$0xff] %vm4688, %v4651
      %4781 = vst.msk [vmem:[%s170 + $0x2e0] sm:$0xff] %vm4688, %v4652
      %4782 = vst.msk [vmem:[%s170 + $0x2e8] sm:$0xff] %vm4688, %v4653
      %4783 = vst.msk [vmem:[%s170 + $0x2f0] sm:$0xff] %vm4688, %v4654
      %4784 = vst.msk [vmem:[%s170 + $0x2f8] sm:$0xff] %vm4688, %v4655
      %4785 = vst.msk [vmem:[%s170 + $0x300] sm:$0xff] %vm4688, %v4656
      %4786 = vst.msk [vmem:[%s170 + $0x308] sm:$0xff] %vm4688, %v4657
      %4787 = vst.msk [vmem:[%s170 + $0x310] sm:$0xff] %vm4688, %v4658
      %4788 = vst.msk [vmem:[%s170 + $0x318] sm:$0xff] %vm4688, %v4659
      %4789 = vst.msk [vmem:[%s170 + $0x320] sm:$0xff] %vm4688, %v4660
      %4790 = vst.msk [vmem:[%s170 + $0x328] sm:$0xff] %vm4688, %v4661
      %4791 = vst.msk [vmem:[%s170 + $0x330] sm:$0xff] %vm4688, %v4662
      %4792 = vst.msk [vmem:[%s170 + $0x338] sm:$0xff] %vm4688, %v4663
      %4793 = vst.msk [vmem:[%s170 + $0x340] sm:$0xff] %vm4688, %v4664
      %4794 = vst.msk [vmem:[%s170 + $0x348] sm:$0xff] %vm4688, %v4665
      %4795 = vst.msk [vmem:[%s170 + $0x350] sm:$0xff] %vm4688, %v4666
      %4796 = vst.msk [vmem:[%s170 + $0x358] sm:$0xff] %vm4688, %v4667
      %4797 = vst.msk [vmem:[%s170 + $0x360] sm:$0xff] %vm4688, %v4668
      %4798 = vst.msk [vmem:[%s170 + $0x368] sm:$0xff] %vm4688, %v4669
      %4799 = vst.msk [vmem:[%s170 + $0x370] sm:$0xff] %vm4688, %v4670
      %4800 = vst.msk [vmem:[%s170 + $0x378] sm:$0xff] %vm4688, %v4671
      %4801 = vst.msk [vmem:[%s170 + $0x380] sm:$0xff] %vm4688, %v4672
      %4802 = vst.msk [vmem:[%s170 + $0x388] sm:$0xff] %vm4688, %v4673
      %4803 = vst.msk [vmem:[%s170 + $0x390] sm:$0xff] %vm4688, %v4674
      %4804 = vst.msk [vmem:[%s170 + $0x398] sm:$0xff] %vm4688, %v4675
      %4805 = vst.msk [vmem:[%s170 + $0x3a0] sm:$0xff] %vm4688, %v4676
      %4806 = vst.msk [vmem:[%s170 + $0x3a8] sm:$0xff] %vm4688, %v4677
      %4807 = vst.msk [vmem:[%s170 + $0x3b0] sm:$0xff] %vm4688, %v4678
      %4808 = vst.msk [vmem:[%s170 + $0x3b8] sm:$0xff] %vm4688, %v4679
      %4809 = vst.msk [vmem:[%s170 + $0x3c0] sm:$0xff] %vm4688, %v4680
      %4810 = vst.msk [vmem:[%s170 + $0x3c8] sm:$0xff] %vm4688, %v4681
      %4811 = vst.msk [vmem:[%s170 + $0x3d0] sm:$0xff] %vm4688, %v4682
      %4812 = vst.msk [vmem:[%s170 + $0x3d8] sm:$0xff] %vm4688, %v4683
      %4813 = vst.msk [vmem:[%s170 + $0x3e0] sm:$0xff] %vm4688, %v4684
      %4814 = vst.msk [vmem:[%s170 + $0x3e8] sm:$0xff] %vm4688, %v4685
      %4815 = vst.msk [vmem:[%s170 + $0x3f0] sm:$0xff] %vm4688, %v4686
      %4816 = vst.msk [vmem:[%s170 + $0x3f8] sm:$0xff] %vm4688, %v4687
      %p4817 = scmp.lt.s32.totalorder %s14, 1
      %s4818 = scalar_select %p4817, %s14, 1
      %s4819 = smul.addr %s4818, 128
      %s4820 = smul.addr %s4819, 8
      %s4821 = scalar_lea.vmem %s3, %s4820
      // Predicated region
      $region33: #{simple_cnn_forward.3} parent=31 // pred_check
        %p4822 = pneg %p100
      $region34: #{simple_cnn_forward.3} parent=31 // pred_check_branch
        %4824 = sbr.rel (%p4822) target = $region36
      $region35: #{simple_cnn_forward.3} parent=31 // pred_region
        _
      $region36: #{simple_cnn_forward.3} parent=31 // pred_fallthru
        _
    $region32: #{simple_cnn_forward.3} parent=5 // pred_fallthru
      _
    %p4825 = scmp.le.s32.totalorder 2, %s9
    // Predicated region
    $region37: #{simple_cnn_forward.3} parent=5 // pred_check
      %p4826 = pneg %p4825
    $region38: #{simple_cnn_forward.3} parent=5 // pred_check_branch
      %4828 = sbr.rel (%p4826) target = $region40
    $region39: #{simple_cnn_forward.3} parent=5 // pred_region
      %s4829 = ssub.s32 %s9, 2
      // Predicated region
      $region41: #{simple_cnn_forward.3} parent=39 // pred_check
        %p4830 = pneg %p106
      $region42: #{simple_cnn_forward.3} parent=39 // pred_check_branch
        %4832 = sbr.rel (%p4830) target = $region44
      $region43: #{simple_cnn_forward.3} parent=39 // pred_region
        %p4833 = scmp.lt.s32.totalorder %s15, 1
        %s4834 = scalar_select %p4833, %s15, 1
        %s4835 = smul.addr %s4834, 128
        %s4836 = smul.addr %s4835, 8
        %s4837 = scalar_lea.vmem %s3, %s4836
      $region44: #{simple_cnn_forward.3} parent=39 // pred_fallthru
        _
    $region40: #{simple_cnn_forward.3} parent=5 // pred_fallthru
      _
  $region6: #{simple_cnn_forward.3} parent=0 // loop_footer
    %s13 = sadd.s32 1, %s9
  $region7: #{simple_cnn_forward.3} parent=0 // loop_footer_branch
    %8 = sbr.rel target = $region3
  $region8: #{simple_cnn_forward.3} parent=0 // loop_exit
    _

// kernel: simple_cnn_forward.4
$region0: #{simple_cnn_forward.4}
  #allocation0 [shape = 'u32[]', space=smem, size = 0x4, offset = 0x4, fixed_abs, tag = 'smem constant byte address 0x4 - core index']
  #allocation1 [shape = 'u32[72,128]{1,0:T(1,128)}', space=vmem, size = 0x9000, scoped, tag = 'internal scratch']
  %s0 = inlined_call_operand.vmem [shape: bf16[2,1024,144], index: 0, kind: input, shape index: {}]
  %s1 = inlined_call_operand.vmem [shape: bf16[144,32], index: 1, kind: input, shape index: {}]
  %s2 = inlined_call_operand.vmem [shape: f32[1,32], index: 2, kind: input, shape index: {}]
  %s3 = inlined_call_operand.vmem [shape: f32[2,256,32], index: 3, kind: output, shape index: {}]
  %s4 = sld [smem:[#allocation0]]
  $region45: #{simple_cnn_forward.4} parent=0
    _
  %s6 = ssub.s32 1, %s4
  %s7 = scalar_select 0, %s6, %s4
  loop: start=0, step=1, limit=4
  $region2: #{simple_cnn_forward.4} parent=0 // loop_pre_header
    _
  $region3: #{simple_cnn_forward.4} parent=0 // loop_header
    %s9 = sphi 0, %s13
    %p10 = scmp.ge.s32.totalorder %s9, 4
    %s19 = sphi 0, %s21
    %s22 = sphi 0, %s19
    %s23 = sphi 0, %s22
    %s39 = sphi 0, %s23
    %s43 = sphi 0, %s43
    %s45 = sphi 0, %s43
    %s46 = sphi 0, %s45
    %s60 = sphi 0, %s46
    %s64 = sphi 0, %s64
    %s66 = sphi 0, %s64
    %s67 = sphi 0, %s66
    %s81 = sphi 0, %s67
    %s87 = sphi 0, %s89
    %s90 = sphi 0, %s87
    %s91 = sphi 0, %s90
    %s107 = sphi 0, %s91
  $region4: #{simple_cnn_forward.4} parent=0 // loop_header_branch
    %12 = sbr.rel (%p10) target = $region8
  $region5: #{simple_cnn_forward.4} parent=0 // loop_body
    %s14 = ssub.s32 %s9, 1
    %s15 = ssub.s32 %s9, 2
    %s16 = sadd.s32 %s9, 1
    %s17 = ssub.s32 %s9, %s16
    %p18 = scmp.eq.s32.totalorder %s17, 0
    %s20 = sadd.s32 %s19, 1
    %s21 = scalar_select %p18, %s19, %s20
    %p24 = pneg %p18
    %p25 = scmp.eq.s32.totalorder %s9, 1
    %p26 = por %p24, %p25
    %p27 = scmp.ne.s32.totalorder %s19, %s22
    %p28 = scmp.eq.s32.totalorder %s9, 0
    %p29 = por %p27, %p28
    %p30 = scmp.ne.s32.totalorder %s19, %s22
    %p31 = scmp.eq.s32.totalorder %s14, 1
    %p32 = por %p30, %p31
    %p33 = scmp.ne.s32.totalorder %s22, %s23
    %p34 = scmp.eq.s32.totalorder %s14, 0
    %p35 = por %p33, %p34
    %p36 = scmp.ne.s32.totalorder %s22, %s23
    %p37 = scmp.eq.s32.totalorder %s15, 1
    %p38 = por %p36, %p37
    %p40 = scmp.ne.s32.totalorder %s23, %s39
    %p41 = scmp.eq.s32.totalorder %s15, 0
    %p42 = por %p40, %p41
    %s44 = sadd.s32 %s43, 1
    %p47 = scmp.eq.s32.totalorder %s9, 1
    %p48 = scmp.ne.s32.totalorder %s43, %s45
    %p49 = scmp.eq.s32.totalorder %s9, 0
    %p50 = por %p48, %p49
    %p51 = scmp.ne.s32.totalorder %s43, %s45
    %p52 = scmp.eq.s32.totalorder %s14, 1
    %p53 = por %p51, %p52
    %p54 = scmp.ne.s32.totalorder %s45, %s46
    %p55 = scmp.eq.s32.totalorder %s14, 0
    %p56 = por %p54, %p55
    %p57 = scmp.ne.s32.totalorder %s45, %s46
    %p58 = scmp.eq.s32.totalorder %s15, 1
    %p59 = por %p57, %p58
    %p61 = scmp.ne.s32.totalorder %s46, %s60
    %p62 = scmp.eq.s32.totalorder %s15, 0
    %p63 = por %p61, %p62
    %s65 = sadd.s32 %s64, 1
    %p68 = scmp.eq.s32.totalorder %s9, 1
    %p69 = scmp.ne.s32.totalorder %s64, %s66
    %p70 = scmp.eq.s32.totalorder %s9, 0
    %p71 = por %p69, %p70
    %p72 = scmp.ne.s32.totalorder %s64, %s66
    %p73 = scmp.eq.s32.totalorder %s14, 1
    %p74 = por %p72, %p73
    %p75 = scmp.ne.s32.totalorder %s66, %s67
    %p76 = scmp.eq.s32.totalorder %s14, 0
    %p77 = por %p75, %p76
    %p78 = scmp.ne.s32.totalorder %s66, %s67
    %p79 = scmp.eq.s32.totalorder %s15, 1
    %p80 = por %p78, %p79
    %p82 = scmp.ne.s32.totalorder %s67, %s81
    %p83 = scmp.eq.s32.totalorder %s15, 0
    %p84 = por %p82, %p83
    %s85 = ssub.s32 %s9, %s16
    %p86 = scmp.eq.s32.totalorder %s85, 0
    %s88 = sadd.s32 %s87, 1
    %s89 = scalar_select %p86, %s87, %s88
    %p92 = pneg %p86
    %p93 = scmp.eq.s32.totalorder %s9, 1
    %p94 = por %p92, %p93
    %p95 = scmp.ne.s32.totalorder %s87, %s90
    %p96 = scmp.eq.s32.totalorder %s9, 0
    %p97 = por %p95, %p96
    %p98 = scmp.ne.s32.totalorder %s87, %s90
    %p99 = scmp.eq.s32.totalorder %s14, 1
    %p100 = por %p98, %p99
    %p101 = scmp.ne.s32.totalorder %s90, %s91
    %p102 = scmp.eq.s32.totalorder %s14, 0
    %p103 = por %p101, %p102
    %p104 = scmp.ne.s32.totalorder %s90, %s91
    %p105 = scmp.eq.s32.totalorder %s15, 1
    %p106 = por %p104, %p105
    %p108 = scmp.ne.s32.totalorder %s91, %s107
    %p109 = scmp.eq.s32.totalorder %s15, 0
    %p110 = por %p108, %p109
    %p111 = scmp.le.s32.totalorder 1, %s9
    %p112 = scmp.lt.s32.totalorder %s9, 3
    %p113 = pnand %p111, %p112
    %p114 = pneg %p113
    // Predicated region
    $region9: #{simple_cnn_forward.4} parent=5 // pred_check
      _
    $region10: #{simple_cnn_forward.4} parent=5 // pred_check_branch
      %116 = sbr.rel (%p113) target = $region12
    $region11: #{simple_cnn_forward.4} parent=5 // pred_region
      %s117 = ssub.s32 %s9, 1
      // Predicated region
      $region13: #{simple_cnn_forward.4} parent=11 // pred_check
        %p118 = pneg %p56
      $region14: #{simple_cnn_forward.4} parent=11 // pred_check_branch
        %120 = sbr.rel (%p118) target = $region16
      $region15: #{simple_cnn_forward.4} parent=11 // pred_region
        _
      $region16: #{simple_cnn_forward.4} parent=11 // pred_fallthru
        _
      // Predicated region
      $region17: #{simple_cnn_forward.4} parent=11 // pred_check
        %p121 = pneg %p77
      $region18: #{simple_cnn_forward.4} parent=11 // pred_check_branch
        %123 = sbr.rel (%p121) target = $region20
      $region19: #{simple_cnn_forward.4} parent=11 // pred_region
        _
      $region20: #{simple_cnn_forward.4} parent=11 // pred_fallthru
        _
    $region12: #{simple_cnn_forward.4} parent=5 // pred_fallthru
      _
    %p124 = scmp.lt.s32.totalorder %s9, 2
    // Predicated region
    $region21: #{simple_cnn_forward.4} parent=5 // pred_check
      %p125 = pneg %p124
    $region22: #{simple_cnn_forward.4} parent=5 // pred_check_branch
      %127 = sbr.rel (%p125) target = $region24
    $region23: #{simple_cnn_forward.4} parent=5 // pred_region
      // Predicated region
      $region25: #{simple_cnn_forward.4} parent=23 // pred_check
        %p128 = pneg %p29
      $region26: #{simple_cnn_forward.4} parent=23 // pred_check_branch
        %130 = sbr.rel (%p128) target = $region28
      $region27: #{simple_cnn_forward.4} parent=23 // pred_region
        %p131 = scmp.lt.s32.totalorder %s9, 1
        %s132 = scalar_select %p131, %s9, 1
        %s133 = smul.addr %s132, 256
        %s134 = smul.addr %s133, 4
        %s135 = scalar_lea.vmem %s0, %s134
      $region28: #{simple_cnn_forward.4} parent=23 // pred_fallthru
        _
    $region24: #{simple_cnn_forward.4} parent=5 // pred_fallthru
      _
    %p136 = scmp.le.s32.totalorder 1, %s9
    %p137 = scmp.lt.s32.totalorder %s9, 3
    %p138 = pnand %p136, %p137
    %p139 = pneg %p138
    // Predicated region
    $region29: #{simple_cnn_forward.4} parent=5 // pred_check
      _
    $region30: #{simple_cnn_forward.4} parent=5 // pred_check_branch
      %141 = sbr.rel (%p138) target = $region32
    $region31: #{simple_cnn_forward.4} parent=5 // pred_region
      %s142 = ssub.s32 %s9, 1
      %p143 = scmp.lt.s32.totalorder %s14, 1
      %s144 = scalar_select %p143, %s14, 1
      %s145 = smul.addr %s144, 256
      %s146 = smul.addr %s145, 4
      %s147 = scalar_lea.vmem %s0, %s146
      %p148 = pneg %p35
      %p149 = pneg %p32
      %p150 = pneg %p56
      %p151 = pneg %p53
      %p152 = pneg %p77
      %p153 = pneg %p74
      %p154 = pneg %p103
      %p155 = pneg %p100
      %p156 = scmp.lt.s32.totalorder %s14, 1
      %s157 = scalar_select %p156, %s14, 1
      %s158 = smul.addr %s157, 32
      %s159 = smul.addr %s158, 8
      %s160 = scalar_lea.vmem %s3, %s159
      %p161 = scmp.lt.s32.totalorder %s14, 1
      %s162 = scalar_select %p161, %s14, 1
      %s163 = smul.addr %s162, 256
      %s164 = smul.addr %s163, 4
      %s165 = scalar_lea.vmem %s0, %s164
      %p166 = scmp.lt.s32.totalorder %s14, 1
      %s167 = scalar_select %p166, %s14, 1
      %s168 = smul.addr %s167, 32
      %s169 = smul.addr %s168, 8
      %s170 = scalar_lea.vmem %s3, %s169
      %v172 = vld [vmem:[%s165] sm:$0xff]
      %v173 = vld [vmem:[%s165 + $0x8] sm:$0xff]
      %v174 = vld [vmem:[%s165 + $0x10] sm:$0xff]
      %v175 = vld [vmem:[%s165 + $0x18] sm:$0xff]
      %v176 = vld [vmem:[%s165 + $0x20] sm:$0xff]
      %v177 = vld [vmem:[%s165 + $0x28] sm:$0xff]
      %v178 = vld [vmem:[%s165 + $0x30] sm:$0xff]
      %v179 = vld [vmem:[%s165 + $0x38] sm:$0xff]
      %v180 = vld [vmem:[%s165 + $0x40] sm:$0xff]
      %v181 = vld [vmem:[%s165 + $0x48] sm:$0xff]
      %v182 = vld [vmem:[%s165 + $0x50] sm:$0xff]
      %v183 = vld [vmem:[%s165 + $0x58] sm:$0xff]
      %v184 = vld [vmem:[%s165 + $0x60] sm:$0xff]
      %v185 = vld [vmem:[%s165 + $0x68] sm:$0xff]
      %v186 = vld [vmem:[%s165 + $0x70] sm:$0xff]
      %v187 = vld [vmem:[%s165 + $0x78] sm:$0xff]
      %v188 = vld [vmem:[%s165 + $0x80] sm:$0xff]
      %v189 = vld [vmem:[%s165 + $0x88] sm:$0xff]
      %v190 = vld [vmem:[%s165 + $0x90] sm:$0xff]
      %v191 = vld [vmem:[%s165 + $0x98] sm:$0xff]
      %v192 = vld [vmem:[%s165 + $0xa0] sm:$0xff]
      %v193 = vld [vmem:[%s165 + $0xa8] sm:$0xff]
      %v194 = vld [vmem:[%s165 + $0xb0] sm:$0xff]
      %v195 = vld [vmem:[%s165 + $0xb8] sm:$0xff]
      %v196 = vld [vmem:[%s165 + $0xc0] sm:$0xff]
      %v197 = vld [vmem:[%s165 + $0xc8] sm:$0xff]
      %v198 = vld [vmem:[%s165 + $0xd0] sm:$0xff]
      %v199 = vld [vmem:[%s165 + $0xd8] sm:$0xff]
      %v200 = vld [vmem:[%s165 + $0xe0] sm:$0xff]
      %v201 = vld [vmem:[%s165 + $0xe8] sm:$0xff]
      %v202 = vld [vmem:[%s165 + $0xf0] sm:$0xff]
      %v203 = vld [vmem:[%s165 + $0xf8] sm:$0xff]
      %v204 = vld [vmem:[%s165 + $0x100] sm:$0xff]
      %v205 = vld [vmem:[%s165 + $0x108] sm:$0xff]
      %v206 = vld [vmem:[%s165 + $0x110] sm:$0xff]
      %v207 = vld [vmem:[%s165 + $0x118] sm:$0xff]
      %v208 = vld [vmem:[%s165 + $0x120] sm:$0xff]
      %v209 = vld [vmem:[%s165 + $0x128] sm:$0xff]
      %v210 = vld [vmem:[%s165 + $0x130] sm:$0xff]
      %v211 = vld [vmem:[%s165 + $0x138] sm:$0xff]
      %v212 = vld [vmem:[%s165 + $0x140] sm:$0xff]
      %v213 = vld [vmem:[%s165 + $0x148] sm:$0xff]
      %v214 = vld [vmem:[%s165 + $0x150] sm:$0xff]
      %v215 = vld [vmem:[%s165 + $0x158] sm:$0xff]
      %v216 = vld [vmem:[%s165 + $0x160] sm:$0xff]
      %v217 = vld [vmem:[%s165 + $0x168] sm:$0xff]
      %v218 = vld [vmem:[%s165 + $0x170] sm:$0xff]
      %v219 = vld [vmem:[%s165 + $0x178] sm:$0xff]
      %v220 = vld [vmem:[%s165 + $0x180] sm:$0xff]
      %v221 = vld [vmem:[%s165 + $0x188] sm:$0xff]
      %v222 = vld [vmem:[%s165 + $0x190] sm:$0xff]
      %v223 = vld [vmem:[%s165 + $0x198] sm:$0xff]
      %v224 = vld [vmem:[%s165 + $0x1a0] sm:$0xff]
      %v225 = vld [vmem:[%s165 + $0x1a8] sm:$0xff]
      %v226 = vld [vmem:[%s165 + $0x1b0] sm:$0xff]
      %v227 = vld [vmem:[%s165 + $0x1b8] sm:$0xff]
      %v228 = vld [vmem:[%s165 + $0x1c0] sm:$0xff]
      %v229 = vld [vmem:[%s165 + $0x1c8] sm:$0xff]
      %v230 = vld [vmem:[%s165 + $0x1d0] sm:$0xff]
      %v231 = vld [vmem:[%s165 + $0x1d8] sm:$0xff]
      %v232 = vld [vmem:[%s165 + $0x1e0] sm:$0xff]
      %v233 = vld [vmem:[%s165 + $0x1e8] sm:$0xff]
      %v234 = vld [vmem:[%s165 + $0x1f0] sm:$0xff]
      %v235 = vld [vmem:[%s165 + $0x1f8] sm:$0xff]
      %v236 = vld [vmem:[%s165 + $0x200] sm:$0xff]
      %v237 = vld [vmem:[%s165 + $0x208] sm:$0xff]
      %v238 = vld [vmem:[%s165 + $0x210] sm:$0xff]
      %v239 = vld [vmem:[%s165 + $0x218] sm:$0xff]
      %v240 = vld [vmem:[%s165 + $0x220] sm:$0xff]
      %v241 = vld [vmem:[%s165 + $0x228] sm:$0xff]
      %v242 = vld [vmem:[%s165 + $0x230] sm:$0xff]
      %v243 = vld [vmem:[%s165 + $0x238] sm:$0xff]
      %v244 = vld [vmem:[%s165 + $0x240] sm:$0xff]
      %v245 = vld [vmem:[%s165 + $0x248] sm:$0xff]
      %v246 = vld [vmem:[%s165 + $0x250] sm:$0xff]
      %v247 = vld [vmem:[%s165 + $0x258] sm:$0xff]
      %v248 = vld [vmem:[%s165 + $0x260] sm:$0xff]
      %v249 = vld [vmem:[%s165 + $0x268] sm:$0xff]
      %v250 = vld [vmem:[%s165 + $0x270] sm:$0xff]
      %v251 = vld [vmem:[%s165 + $0x278] sm:$0xff]
      %v252 = vld [vmem:[%s165 + $0x280] sm:$0xff]
      %v253 = vld [vmem:[%s165 + $0x288] sm:$0xff]
      %v254 = vld [vmem:[%s165 + $0x290] sm:$0xff]
      %v255 = vld [vmem:[%s165 + $0x298] sm:$0xff]
      %v256 = vld [vmem:[%s165 + $0x2a0] sm:$0xff]
      %v257 = vld [vmem:[%s165 + $0x2a8] sm:$0xff]
      %v258 = vld [vmem:[%s165 + $0x2b0] sm:$0xff]
      %v259 = vld [vmem:[%s165 + $0x2b8] sm:$0xff]
      %v260 = vld [vmem:[%s165 + $0x2c0] sm:$0xff]
      %v261 = vld [vmem:[%s165 + $0x2c8] sm:$0xff]
      %v262 = vld [vmem:[%s165 + $0x2d0] sm:$0xff]
      %v263 = vld [vmem:[%s165 + $0x2d8] sm:$0xff]
      %v264 = vld [vmem:[%s165 + $0x2e0] sm:$0xff]
      %v265 = vld [vmem:[%s165 + $0x2e8] sm:$0xff]
      %v266 = vld [vmem:[%s165 + $0x2f0] sm:$0xff]
      %v267 = vld [vmem:[%s165 + $0x2f8] sm:$0xff]
      %v268 = vld [vmem:[%s165 + $0x300] sm:$0xff]
      %v269 = vld [vmem:[%s165 + $0x308] sm:$0xff]
      %v270 = vld [vmem:[%s165 + $0x310] sm:$0xff]
      %v271 = vld [vmem:[%s165 + $0x318] sm:$0xff]
      %v272 = vld [vmem:[%s165 + $0x320] sm:$0xff]
      %v273 = vld [vmem:[%s165 + $0x328] sm:$0xff]
      %v274 = vld [vmem:[%s165 + $0x330] sm:$0xff]
      %v275 = vld [vmem:[%s165 + $0x338] sm:$0xff]
      %v276 = vld [vmem:[%s165 + $0x340] sm:$0xff]
      %v277 = vld [vmem:[%s165 + $0x348] sm:$0xff]
      %v278 = vld [vmem:[%s165 + $0x350] sm:$0xff]
      %v279 = vld [vmem:[%s165 + $0x358] sm:$0xff]
      %v280 = vld [vmem:[%s165 + $0x360] sm:$0xff]
      %v281 = vld [vmem:[%s165 + $0x368] sm:$0xff]
      %v282 = vld [vmem:[%s165 + $0x370] sm:$0xff]
      %v283 = vld [vmem:[%s165 + $0x378] sm:$0xff]
      %v284 = vld [vmem:[%s165 + $0x380] sm:$0xff]
      %v285 = vld [vmem:[%s165 + $0x388] sm:$0xff]
      %v286 = vld [vmem:[%s165 + $0x390] sm:$0xff]
      %v287 = vld [vmem:[%s165 + $0x398] sm:$0xff]
      %v288 = vld [vmem:[%s165 + $0x3a0] sm:$0xff]
      %v289 = vld [vmem:[%s165 + $0x3a8] sm:$0xff]
      %v290 = vld [vmem:[%s165 + $0x3b0] sm:$0xff]
      %v291 = vld [vmem:[%s165 + $0x3b8] sm:$0xff]
      %v292 = vld [vmem:[%s165 + $0x3c0] sm:$0xff]
      %v293 = vld [vmem:[%s165 + $0x3c8] sm:$0xff]
      %v294 = vld [vmem:[%s165 + $0x3d0] sm:$0xff]
      %v295 = vld [vmem:[%s165 + $0x3d8] sm:$0xff]
      %v296 = vld [vmem:[%s165 + $0x3e0] sm:$0xff]
      %v297 = vld [vmem:[%s165 + $0x3e8] sm:$0xff]
      %v298 = vld [vmem:[%s165 + $0x3f0] sm:$0xff]
      %v299 = vld [vmem:[%s165 + $0x3f8] sm:$0xff]
      %v300 = vld [vmem:[%s1] sm:$0xf]
      %v301 = vld [vmem:[%s1 + $0x4] sm:$0xf]
      %v302 = vld [vmem:[%s1 + $0x8] sm:$0xf]
      %v303 = vld [vmem:[%s1 + $0xc] sm:$0xf]
      %v304 = vld [vmem:[%s1 + $0x10] sm:$0xf]
      %v305 = vld [vmem:[%s1 + $0x14] sm:$0xf]
      %v306 = vld [vmem:[%s1 + $0x18] sm:$0xf]
      %v307 = vld [vmem:[%s1 + $0x1c] sm:$0xf]
      %v308 = vld [vmem:[%s1 + $0x20] sm:$0xf]
      %v309 = vld [vmem:[%s1 + $0x24] sm:$0xf]
      %v310 = vld [vmem:[%s1 + $0x28] sm:$0xf]
      %v311 = vld [vmem:[%s1 + $0x2c] sm:$0xf]
      %v312 = vld [vmem:[%s1 + $0x30] sm:$0xf]
      %v313 = vld [vmem:[%s1 + $0x34] sm:$0xf]
      %v314 = vld [vmem:[%s1 + $0x38] sm:$0xf]
      %v315 = vld [vmem:[%s1 + $0x3c] sm:$0xf]
      %v316 = vld [vmem:[%s1 + $0x40] sm:$0xf]
      %v317 = vld [vmem:[%s1 + $0x44] sm:$0xf]
      %v446 = vunpack.c.l.b16 %v172
      %v447 = vunpack.c.h.b16 %v172
      %v448 = vunpack.c.l.b16 %v173
      %v449 = vunpack.c.h.b16 %v173
      %v450 = vunpack.c.l.b16 %v174
      %v451 = vunpack.c.h.b16 %v174
      %v452 = vunpack.c.l.b16 %v175
      %v453 = vunpack.c.h.b16 %v175
      %v454 = vunpack.c.l.b16 %v176
      %v455 = vunpack.c.h.b16 %v176
      %v456 = vunpack.c.l.b16 %v177
      %v457 = vunpack.c.h.b16 %v177
      %v458 = vunpack.c.l.b16 %v178
      %v459 = vunpack.c.h.b16 %v178
      %v460 = vunpack.c.l.b16 %v179
      %v461 = vunpack.c.h.b16 %v179
      %v462 = vunpack.c.l.b16 %v180
      %v463 = vunpack.c.h.b16 %v180
      %v464 = vunpack.c.l.b16 %v181
      %v465 = vunpack.c.h.b16 %v181
      %v466 = vunpack.c.l.b16 %v182
      %v467 = vunpack.c.h.b16 %v182
      %v468 = vunpack.c.l.b16 %v183
      %v469 = vunpack.c.h.b16 %v183
      %v470 = vunpack.c.l.b16 %v184
      %v471 = vunpack.c.h.b16 %v184
      %v472 = vunpack.c.l.b16 %v185
      %v473 = vunpack.c.h.b16 %v185
      %v474 = vunpack.c.l.b16 %v186
      %v475 = vunpack.c.h.b16 %v186
      %v476 = vunpack.c.l.b16 %v187
      %v477 = vunpack.c.h.b16 %v187
      %v478 = vunpack.c.l.b16 %v188
      %v479 = vunpack.c.h.b16 %v188
      %v480 = vunpack.c.l.b16 %v189
      %v481 = vunpack.c.h.b16 %v189
      %v482 = vunpack.c.l.b16 %v190
      %v483 = vunpack.c.h.b16 %v190
      %v484 = vunpack.c.l.b16 %v191
      %v485 = vunpack.c.h.b16 %v191
      %v486 = vunpack.c.l.b16 %v192
      %v487 = vunpack.c.h.b16 %v192
      %v488 = vunpack.c.l.b16 %v193
      %v489 = vunpack.c.h.b16 %v193
      %v490 = vunpack.c.l.b16 %v194
      %v491 = vunpack.c.h.b16 %v194
      %v492 = vunpack.c.l.b16 %v195
      %v493 = vunpack.c.h.b16 %v195
      %v494 = vunpack.c.l.b16 %v196
      %v495 = vunpack.c.h.b16 %v196
      %v496 = vunpack.c.l.b16 %v197
      %v497 = vunpack.c.h.b16 %v197
      %v498 = vunpack.c.l.b16 %v198
      %v499 = vunpack.c.h.b16 %v198
      %v500 = vunpack.c.l.b16 %v199
      %v501 = vunpack.c.h.b16 %v199
      %v502 = vunpack.c.l.b16 %v200
      %v503 = vunpack.c.h.b16 %v200
      %v504 = vunpack.c.l.b16 %v201
      %v505 = vunpack.c.h.b16 %v201
      %v506 = vunpack.c.l.b16 %v202
      %v507 = vunpack.c.h.b16 %v202
      %v508 = vunpack.c.l.b16 %v203
      %v509 = vunpack.c.h.b16 %v203
      %v510 = vunpack.c.l.b16 %v204
      %v511 = vunpack.c.h.b16 %v204
      %v512 = vunpack.c.l.b16 %v205
      %v513 = vunpack.c.h.b16 %v205
      %v514 = vunpack.c.l.b16 %v206
      %v515 = vunpack.c.h.b16 %v206
      %v516 = vunpack.c.l.b16 %v207
      %v517 = vunpack.c.h.b16 %v207
      %v518 = vunpack.c.l.b16 %v208
      %v519 = vunpack.c.h.b16 %v208
      %v520 = vunpack.c.l.b16 %v209
      %v521 = vunpack.c.h.b16 %v209
      %v522 = vunpack.c.l.b16 %v210
      %v523 = vunpack.c.h.b16 %v210
      %v524 = vunpack.c.l.b16 %v211
      %v525 = vunpack.c.h.b16 %v211
      %v526 = vunpack.c.l.b16 %v212
      %v527 = vunpack.c.h.b16 %v212
      %v528 = vunpack.c.l.b16 %v213
      %v529 = vunpack.c.h.b16 %v213
      %v530 = vunpack.c.l.b16 %v214
      %v531 = vunpack.c.h.b16 %v214
      %v532 = vunpack.c.l.b16 %v215
      %v533 = vunpack.c.h.b16 %v215
      %v534 = vunpack.c.l.b16 %v216
      %v535 = vunpack.c.h.b16 %v216
      %v536 = vunpack.c.l.b16 %v217
      %v537 = vunpack.c.h.b16 %v217
      %v538 = vunpack.c.l.b16 %v218
      %v539 = vunpack.c.h.b16 %v218
      %v540 = vunpack.c.l.b16 %v219
      %v541 = vunpack.c.h.b16 %v219
      %v542 = vunpack.c.l.b16 %v220
      %v543 = vunpack.c.h.b16 %v220
      %v544 = vunpack.c.l.b16 %v221
      %v545 = vunpack.c.h.b16 %v221
      %v546 = vunpack.c.l.b16 %v222
      %v547 = vunpack.c.h.b16 %v222
      %v548 = vunpack.c.l.b16 %v223
      %v549 = vunpack.c.h.b16 %v223
      %v550 = vunpack.c.l.b16 %v224
      %v551 = vunpack.c.h.b16 %v224
      %v552 = vunpack.c.l.b16 %v225
      %v553 = vunpack.c.h.b16 %v225
      %v554 = vunpack.c.l.b16 %v226
      %v555 = vunpack.c.h.b16 %v226
      %v556 = vunpack.c.l.b16 %v227
      %v557 = vunpack.c.h.b16 %v227
      %v558 = vunpack.c.l.b16 %v228
      %v559 = vunpack.c.h.b16 %v228
      %v560 = vunpack.c.l.b16 %v229
      %v561 = vunpack.c.h.b16 %v229
      %v562 = vunpack.c.l.b16 %v230
      %v563 = vunpack.c.h.b16 %v230
      %v564 = vunpack.c.l.b16 %v231
      %v565 = vunpack.c.h.b16 %v231
      %v566 = vunpack.c.l.b16 %v232
      %v567 = vunpack.c.h.b16 %v232
      %v568 = vunpack.c.l.b16 %v233
      %v569 = vunpack.c.h.b16 %v233
      %v570 = vunpack.c.l.b16 %v234
      %v571 = vunpack.c.h.b16 %v234
      %v572 = vunpack.c.l.b16 %v235
      %v573 = vunpack.c.h.b16 %v235
      %v574 = vunpack.c.l.b16 %v236
      %v575 = vunpack.c.h.b16 %v236
      %v576 = vunpack.c.l.b16 %v237
      %v577 = vunpack.c.h.b16 %v237
      %v578 = vunpack.c.l.b16 %v238
      %v579 = vunpack.c.h.b16 %v238
      %v580 = vunpack.c.l.b16 %v239
      %v581 = vunpack.c.h.b16 %v239
      %v582 = vunpack.c.l.b16 %v240
      %v583 = vunpack.c.h.b16 %v240
      %v584 = vunpack.c.l.b16 %v241
      %v585 = vunpack.c.h.b16 %v241
      %v586 = vunpack.c.l.b16 %v242
      %v587 = vunpack.c.h.b16 %v242
      %v588 = vunpack.c.l.b16 %v243
      %v589 = vunpack.c.h.b16 %v243
      %v590 = vunpack.c.l.b16 %v244
      %v591 = vunpack.c.h.b16 %v244
      %v592 = vunpack.c.l.b16 %v245
      %v593 = vunpack.c.h.b16 %v245
      %v594 = vunpack.c.l.b16 %v246
      %v595 = vunpack.c.h.b16 %v246
      %v596 = vunpack.c.l.b16 %v247
      %v597 = vunpack.c.h.b16 %v247
      %v598 = vunpack.c.l.b16 %v248
      %v599 = vunpack.c.h.b16 %v248
      %v600 = vunpack.c.l.b16 %v249
      %v601 = vunpack.c.h.b16 %v249
      %v602 = vunpack.c.l.b16 %v250
      %v603 = vunpack.c.h.b16 %v250
      %v604 = vunpack.c.l.b16 %v251
      %v605 = vunpack.c.h.b16 %v251
      %v606 = vunpack.c.l.b16 %v252
      %v607 = vunpack.c.h.b16 %v252
      %v608 = vunpack.c.l.b16 %v253
      %v609 = vunpack.c.h.b16 %v253
      %v610 = vunpack.c.l.b16 %v254
      %v611 = vunpack.c.h.b16 %v254
      %v612 = vunpack.c.l.b16 %v255
      %v613 = vunpack.c.h.b16 %v255
      %v614 = vunpack.c.l.b16 %v256
      %v615 = vunpack.c.h.b16 %v256
      %v616 = vunpack.c.l.b16 %v257
      %v617 = vunpack.c.h.b16 %v257
      %v618 = vunpack.c.l.b16 %v258
      %v619 = vunpack.c.h.b16 %v258
      %v620 = vunpack.c.l.b16 %v259
      %v621 = vunpack.c.h.b16 %v259
      %v622 = vunpack.c.l.b16 %v260
      %v623 = vunpack.c.h.b16 %v260
      %v624 = vunpack.c.l.b16 %v261
      %v625 = vunpack.c.h.b16 %v261
      %v626 = vunpack.c.l.b16 %v262
      %v627 = vunpack.c.h.b16 %v262
      %v628 = vunpack.c.l.b16 %v263
      %v629 = vunpack.c.h.b16 %v263
      %v630 = vunpack.c.l.b16 %v264
      %v631 = vunpack.c.h.b16 %v264
      %v632 = vunpack.c.l.b16 %v265
      %v633 = vunpack.c.h.b16 %v265
      %v634 = vunpack.c.l.b16 %v266
      %v635 = vunpack.c.h.b16 %v266
      %v636 = vunpack.c.l.b16 %v267
      %v637 = vunpack.c.h.b16 %v267
      %v638 = vunpack.c.l.b16 %v268
      %v639 = vunpack.c.h.b16 %v268
      %v640 = vunpack.c.l.b16 %v269
      %v641 = vunpack.c.h.b16 %v269
      %v642 = vunpack.c.l.b16 %v270
      %v643 = vunpack.c.h.b16 %v270
      %v644 = vunpack.c.l.b16 %v271
      %v645 = vunpack.c.h.b16 %v271
      %v646 = vunpack.c.l.b16 %v272
      %v647 = vunpack.c.h.b16 %v272
      %v648 = vunpack.c.l.b16 %v273
      %v649 = vunpack.c.h.b16 %v273
      %v650 = vunpack.c.l.b16 %v274
      %v651 = vunpack.c.h.b16 %v274
      %v652 = vunpack.c.l.b16 %v275
      %v653 = vunpack.c.h.b16 %v275
      %v654 = vunpack.c.l.b16 %v276
      %v655 = vunpack.c.h.b16 %v276
      %v656 = vunpack.c.l.b16 %v277
      %v657 = vunpack.c.h.b16 %v277
      %v658 = vunpack.c.l.b16 %v278
      %v659 = vunpack.c.h.b16 %v278
      %v660 = vunpack.c.l.b16 %v279
      %v661 = vunpack.c.h.b16 %v279
      %v662 = vunpack.c.l.b16 %v280
      %v663 = vunpack.c.h.b16 %v280
      %v664 = vunpack.c.l.b16 %v281
      %v665 = vunpack.c.h.b16 %v281
      %v666 = vunpack.c.l.b16 %v282
      %v667 = vunpack.c.h.b16 %v282
      %v668 = vunpack.c.l.b16 %v283
      %v669 = vunpack.c.h.b16 %v283
      %v670 = vunpack.c.l.b16 %v284
      %v671 = vunpack.c.h.b16 %v284
      %v672 = vunpack.c.l.b16 %v285
      %v673 = vunpack.c.h.b16 %v285
      %v674 = vunpack.c.l.b16 %v286
      %v675 = vunpack.c.h.b16 %v286
      %v676 = vunpack.c.l.b16 %v287
      %v677 = vunpack.c.h.b16 %v287
      %v678 = vunpack.c.l.b16 %v288
      %v679 = vunpack.c.h.b16 %v288
      %v680 = vunpack.c.l.b16 %v289
      %v681 = vunpack.c.h.b16 %v289
      %v682 = vunpack.c.l.b16 %v290
      %v683 = vunpack.c.h.b16 %v290
      %v684 = vunpack.c.l.b16 %v291
      %v685 = vunpack.c.h.b16 %v291
      %v686 = vunpack.c.l.b16 %v292
      %v687 = vunpack.c.h.b16 %v292
      %v688 = vunpack.c.l.b16 %v293
      %v689 = vunpack.c.h.b16 %v293
      %v690 = vunpack.c.l.b16 %v294
      %v691 = vunpack.c.h.b16 %v294
      %v692 = vunpack.c.l.b16 %v295
      %v693 = vunpack.c.h.b16 %v295
      %v694 = vunpack.c.l.b16 %v296
      %v695 = vunpack.c.h.b16 %v296
      %v696 = vunpack.c.l.b16 %v297
      %v697 = vunpack.c.h.b16 %v297
      %v698 = vunpack.c.l.b16 %v298
      %v699 = vunpack.c.h.b16 %v298
      %v700 = vunpack.c.l.b16 %v299
      %v701 = vunpack.c.h.b16 %v299
      %v702 = vpack.c.b16 %v448, %v446
      %v703 = vpack.c.b16 %v449, %v447
      %v704 = vpack.c.b16 %v452, %v450
      %v705 = vpack.c.b16 %v453, %v451
      %v706 = vpack.c.b16 %v456, %v454
      %v707 = vpack.c.b16 %v457, %v455
      %v708 = vpack.c.b16 %v460, %v458
      %v709 = vpack.c.b16 %v461, %v459
      %v710 = vpack.c.b16 %v464, %v462
      %v711 = vpack.c.b16 %v465, %v463
      %v712 = vpack.c.b16 %v468, %v466
      %v713 = vpack.c.b16 %v469, %v467
      %v714 = vpack.c.b16 %v472, %v470
      %v715 = vpack.c.b16 %v473, %v471
      %v716 = vpack.c.b16 %v476, %v474
      %v717 = vpack.c.b16 %v477, %v475
      %v718 = vpack.c.b16 %v480, %v478
      %v719 = vpack.c.b16 %v481, %v479
      %v720 = vpack.c.b16 %v484, %v482
      %v721 = vpack.c.b16 %v485, %v483
      %v722 = vpack.c.b16 %v488, %v486
      %v723 = vpack.c.b16 %v489, %v487
      %v724 = vpack.c.b16 %v492, %v490
      %v725 = vpack.c.b16 %v493, %v491
      %v726 = vpack.c.b16 %v496, %v494
      %v727 = vpack.c.b16 %v497, %v495
      %v728 = vpack.c.b16 %v500, %v498
      %v729 = vpack.c.b16 %v501, %v499
      %v730 = vpack.c.b16 %v504, %v502
      %v731 = vpack.c.b16 %v505, %v503
      %v732 = vpack.c.b16 %v508, %v506
      %v733 = vpack.c.b16 %v509, %v507
      %v734 = vpack.c.b16 %v512, %v510
      %v735 = vpack.c.b16 %v513, %v511
      %v736 = vpack.c.b16 %v516, %v514
      %v737 = vpack.c.b16 %v517, %v515
      %v738 = vpack.c.b16 %v520, %v518
      %v739 = vpack.c.b16 %v521, %v519
      %v740 = vpack.c.b16 %v524, %v522
      %v741 = vpack.c.b16 %v525, %v523
      %v742 = vpack.c.b16 %v528, %v526
      %v743 = vpack.c.b16 %v529, %v527
      %v744 = vpack.c.b16 %v532, %v530
      %v745 = vpack.c.b16 %v533, %v531
      %v746 = vpack.c.b16 %v536, %v534
      %v747 = vpack.c.b16 %v537, %v535
      %v748 = vpack.c.b16 %v540, %v538
      %v749 = vpack.c.b16 %v541, %v539
      %v750 = vpack.c.b16 %v544, %v542
      %v751 = vpack.c.b16 %v545, %v543
      %v752 = vpack.c.b16 %v548, %v546
      %v753 = vpack.c.b16 %v549, %v547
      %v754 = vpack.c.b16 %v552, %v550
      %v755 = vpack.c.b16 %v553, %v551
      %v756 = vpack.c.b16 %v556, %v554
      %v757 = vpack.c.b16 %v557, %v555
      %v758 = vpack.c.b16 %v560, %v558
      %v759 = vpack.c.b16 %v561, %v559
      %v760 = vpack.c.b16 %v564, %v562
      %v761 = vpack.c.b16 %v565, %v563
      %v762 = vpack.c.b16 %v568, %v566
      %v763 = vpack.c.b16 %v569, %v567
      %v764 = vpack.c.b16 %v572, %v570
      %v765 = vpack.c.b16 %v573, %v571
      %v766 = vpack.c.b16 %v576, %v574
      %v767 = vpack.c.b16 %v577, %v575
      %v768 = vpack.c.b16 %v580, %v578
      %v769 = vpack.c.b16 %v581, %v579
      %v770 = vpack.c.b16 %v584, %v582
      %v771 = vpack.c.b16 %v585, %v583
      %v772 = vpack.c.b16 %v588, %v586
      %v773 = vpack.c.b16 %v589, %v587
      %v774 = vpack.c.b16 %v592, %v590
      %v775 = vpack.c.b16 %v593, %v591
      %v776 = vpack.c.b16 %v596, %v594
      %v777 = vpack.c.b16 %v597, %v595
      %v778 = vpack.c.b16 %v600, %v598
      %v779 = vpack.c.b16 %v601, %v599
      %v780 = vpack.c.b16 %v604, %v602
      %v781 = vpack.c.b16 %v605, %v603
      %v782 = vpack.c.b16 %v608, %v606
      %v783 = vpack.c.b16 %v609, %v607
      %v784 = vpack.c.b16 %v612, %v610
      %v785 = vpack.c.b16 %v613, %v611
      %v786 = vpack.c.b16 %v616, %v614
      %v787 = vpack.c.b16 %v617, %v615
      %v788 = vpack.c.b16 %v620, %v618
      %v789 = vpack.c.b16 %v621, %v619
      %v790 = vpack.c.b16 %v624, %v622
      %v791 = vpack.c.b16 %v625, %v623
      %v792 = vpack.c.b16 %v628, %v626
      %v793 = vpack.c.b16 %v629, %v627
      %v794 = vpack.c.b16 %v632, %v630
      %v795 = vpack.c.b16 %v633, %v631
      %v796 = vpack.c.b16 %v636, %v634
      %v797 = vpack.c.b16 %v637, %v635
      %v798 = vpack.c.b16 %v640, %v638
      %v799 = vpack.c.b16 %v641, %v639
      %v800 = vpack.c.b16 %v644, %v642
      %v801 = vpack.c.b16 %v645, %v643
      %v802 = vpack.c.b16 %v648, %v646
      %v803 = vpack.c.b16 %v649, %v647
      %v804 = vpack.c.b16 %v652, %v650
      %v805 = vpack.c.b16 %v653, %v651
      %v806 = vpack.c.b16 %v656, %v654
      %v807 = vpack.c.b16 %v657, %v655
      %v808 = vpack.c.b16 %v660, %v658
      %v809 = vpack.c.b16 %v661, %v659
      %v810 = vpack.c.b16 %v664, %v662
      %v811 = vpack.c.b16 %v665, %v663
      %v812 = vpack.c.b16 %v668, %v666
      %v813 = vpack.c.b16 %v669, %v667
      %v814 = vpack.c.b16 %v672, %v670
      %v815 = vpack.c.b16 %v673, %v671
      %v816 = vpack.c.b16 %v676, %v674
      %v817 = vpack.c.b16 %v677, %v675
      %v818 = vpack.c.b16 %v680, %v678
      %v819 = vpack.c.b16 %v681, %v679
      %v820 = vpack.c.b16 %v684, %v682
      %v821 = vpack.c.b16 %v685, %v683
      %v822 = vpack.c.b16 %v688, %v686
      %v823 = vpack.c.b16 %v689, %v687
      %v824 = vpack.c.b16 %v692, %v690
      %v825 = vpack.c.b16 %v693, %v691
      %v826 = vpack.c.b16 %v696, %v694
      %v827 = vpack.c.b16 %v697, %v695
      %v828 = vpack.c.b16 %v700, %v698
      %v829 = vpack.c.b16 %v701, %v699
      %v912 = vunpack.c.l.b16 %v300
      %v913 = vunpack.c.l.b16 %v301
      %v914 = vunpack.c.l.b16 %v302
      %v915 = vunpack.c.l.b16 %v303
      %v916 = vunpack.c.l.b16 %v304
      %v917 = vunpack.c.l.b16 %v305
      %v918 = vunpack.c.l.b16 %v306
      %v919 = vunpack.c.l.b16 %v307
      %v920 = vunpack.c.l.b16 %v308
      %v921 = vunpack.c.l.b16 %v309
      %v922 = vunpack.c.l.b16 %v310
      %v923 = vunpack.c.l.b16 %v311
      %v924 = vunpack.c.l.b16 %v312
      %v925 = vunpack.c.l.b16 %v313
      %v926 = vunpack.c.l.b16 %v314
      %v927 = vunpack.c.l.b16 %v315
      %v928 = vunpack.c.l.b16 %v316
      %v929 = vunpack.c.l.b16 %v317
      %v930 = vpack.c.b16 %v913, %v912
      %v931 = vpack.c.b16 %v915, %v914
      %v932 = vpack.c.b16 %v917, %v916
      %v933 = vpack.c.b16 %v919, %v918
      %v934 = vpack.c.b16 %v921, %v920
      %v935 = vpack.c.b16 %v923, %v922
      %v936 = vpack.c.b16 %v925, %v924
      %v937 = vpack.c.b16 %v927, %v926
      %v938 = vpack.c.b16 %v929, %v928
      %vm948 = vcmask 130048
      %v950 = vsel %vm948, %v703, 0
      %v953 = vsel %vm948, %v705, 0
      %v956 = vsel %vm948, %v707, 0
      %v959 = vsel %vm948, %v709, 0
      %v962 = vsel %vm948, %v711, 0
      %v965 = vsel %vm948, %v713, 0
      %v968 = vsel %vm948, %v715, 0
      %v971 = vsel %vm948, %v717, 0
      %v974 = vsel %vm948, %v719, 0
      %v977 = vsel %vm948, %v721, 0
      %v980 = vsel %vm948, %v723, 0
      %v983 = vsel %vm948, %v725, 0
      %v986 = vsel %vm948, %v727, 0
      %v989 = vsel %vm948, %v729, 0
      %v992 = vsel %vm948, %v731, 0
      %v995 = vsel %vm948, %v733, 0
      %v998 = vsel %vm948, %v735, 0
      %v1001 = vsel %vm948, %v737, 0
      %v1004 = vsel %vm948, %v739, 0
      %v1007 = vsel %vm948, %v741, 0
      %v1010 = vsel %vm948, %v743, 0
      %v1013 = vsel %vm948, %v745, 0
      %v1016 = vsel %vm948, %v747, 0
      %v1019 = vsel %vm948, %v749, 0
      %v1022 = vsel %vm948, %v751, 0
      %v1025 = vsel %vm948, %v753, 0
      %v1028 = vsel %vm948, %v755, 0
      %v1031 = vsel %vm948, %v757, 0
      %v1034 = vsel %vm948, %v759, 0
      %v1037 = vsel %vm948, %v761, 0
      %v1040 = vsel %vm948, %v763, 0
      %v1043 = vsel %vm948, %v765, 0
      %v1046 = vsel %vm948, %v767, 0
      %v1049 = vsel %vm948, %v769, 0
      %v1052 = vsel %vm948, %v771, 0
      %v1055 = vsel %vm948, %v773, 0
      %v1058 = vsel %vm948, %v775, 0
      %v1061 = vsel %vm948, %v777, 0
      %v1064 = vsel %vm948, %v779, 0
      %v1067 = vsel %vm948, %v781, 0
      %v1070 = vsel %vm948, %v783, 0
      %v1073 = vsel %vm948, %v785, 0
      %v1076 = vsel %vm948, %v787, 0
      %v1079 = vsel %vm948, %v789, 0
      %v1082 = vsel %vm948, %v791, 0
      %v1085 = vsel %vm948, %v793, 0
      %v1088 = vsel %vm948, %v795, 0
      %v1091 = vsel %vm948, %v797, 0
      %v1094 = vsel %vm948, %v799, 0
      %v1097 = vsel %vm948, %v801, 0
      %v1100 = vsel %vm948, %v803, 0
      %v1103 = vsel %vm948, %v805, 0
      %v1106 = vsel %vm948, %v807, 0
      %v1109 = vsel %vm948, %v809, 0
      %v1112 = vsel %vm948, %v811, 0
      %v1115 = vsel %vm948, %v813, 0
      %v1118 = vsel %vm948, %v815, 0
      %v1121 = vsel %vm948, %v817, 0
      %v1124 = vsel %vm948, %v819, 0
      %v1127 = vsel %vm948, %v821, 0
      %v1130 = vsel %vm948, %v823, 0
      %v1133 = vsel %vm948, %v825, 0
      %v1136 = vsel %vm948, %v827, 0
      %v1139 = vsel %vm948, %v829, 0
      %1141 = vmatpush.bf16.msra.mxu0 %v937
      %1142 = vmatpush.bf16.msra.mxu0 %v936
      %1143 = vmatpush.bf16.msra.mxu0 %v935
      %1144 = vmatpush.bf16.msra.mxu0 %v934
      %1145 = vmatpush.bf16.msra.mxu0 %v933
      %1146 = vmatpush.bf16.msra.mxu0 %v932
      %1147 = vmatpush.bf16.msra.mxu0 %v931
      %1148 = vmatpush.bf16.msra.mxu0 %v930
      %1149 = vmatmul.bf16.gmra.mxu0 %v702
      %v1150 = vpop.f32.mrf.mxu0
      %v1151 = vadd.f32 0.0, %v1150
      %v1152 = vpop.f32.mrf.mxu0
      %v1153 = vadd.f32 0.0, %v1152
      %1154 = vmatmul.bf16.gmra.mxu0 %v704
      %v1155 = vpop.f32.mrf.mxu0
      %v1156 = vadd.f32 0.0, %v1155
      %v1157 = vpop.f32.mrf.mxu0
      %v1158 = vadd.f32 0.0, %v1157
      %1159 = vmatmul.bf16.gmra.mxu0 %v706
      %v1160 = vpop.f32.mrf.mxu0
      %v1161 = vadd.f32 0.0, %v1160
      %v1162 = vpop.f32.mrf.mxu0
      %v1163 = vadd.f32 0.0, %v1162
      %1164 = vmatmul.bf16.gmra.mxu0 %v708
      %v1165 = vpop.f32.mrf.mxu0
      %v1166 = vadd.f32 0.0, %v1165
      %v1167 = vpop.f32.mrf.mxu0
      %v1168 = vadd.f32 0.0, %v1167
      %1169 = vmatmul.bf16.gmra.mxu0 %v710
      %v1170 = vpop.f32.mrf.mxu0
      %v1171 = vadd.f32 0.0, %v1170
      %v1172 = vpop.f32.mrf.mxu0
      %v1173 = vadd.f32 0.0, %v1172
      %1174 = vmatmul.bf16.gmra.mxu0 %v712
      %v1175 = vpop.f32.mrf.mxu0
      %v1176 = vadd.f32 0.0, %v1175
      %v1177 = vpop.f32.mrf.mxu0
      %v1178 = vadd.f32 0.0, %v1177
      %1179 = vmatmul.bf16.gmra.mxu0 %v714
      %v1180 = vpop.f32.mrf.mxu0
      %v1181 = vadd.f32 0.0, %v1180
      %v1182 = vpop.f32.mrf.mxu0
      %v1183 = vadd.f32 0.0, %v1182
      %1184 = vmatmul.bf16.gmra.mxu0 %v716
      %v1185 = vpop.f32.mrf.mxu0
      %v1186 = vadd.f32 0.0, %v1185
      %v1187 = vpop.f32.mrf.mxu0
      %v1188 = vadd.f32 0.0, %v1187
      %1189 = vmatmul.bf16.gmra.mxu0 %v718
      %v1190 = vpop.f32.mrf.mxu0
      %v1191 = vadd.f32 0.0, %v1190
      %v1192 = vpop.f32.mrf.mxu0
      %v1193 = vadd.f32 0.0, %v1192
      %1194 = vmatmul.bf16.gmra.mxu0 %v720
      %v1195 = vpop.f32.mrf.mxu0
      %v1196 = vadd.f32 0.0, %v1195
      %v1197 = vpop.f32.mrf.mxu0
      %v1198 = vadd.f32 0.0, %v1197
      %1199 = vmatmul.bf16.gmra.mxu0 %v722
      %v1200 = vpop.f32.mrf.mxu0
      %v1201 = vadd.f32 0.0, %v1200
      %v1202 = vpop.f32.mrf.mxu0
      %v1203 = vadd.f32 0.0, %v1202
      %1204 = vmatmul.bf16.gmra.mxu0 %v724
      %v1205 = vpop.f32.mrf.mxu0
      %v1206 = vadd.f32 0.0, %v1205
      %v1207 = vpop.f32.mrf.mxu0
      %v1208 = vadd.f32 0.0, %v1207
      %1209 = vmatmul.bf16.gmra.mxu0 %v726
      %v1210 = vpop.f32.mrf.mxu0
      %v1211 = vadd.f32 0.0, %v1210
      %v1212 = vpop.f32.mrf.mxu0
      %v1213 = vadd.f32 0.0, %v1212
      %1214 = vmatmul.bf16.gmra.mxu0 %v728
      %v1215 = vpop.f32.mrf.mxu0
      %v1216 = vadd.f32 0.0, %v1215
      %v1217 = vpop.f32.mrf.mxu0
      %v1218 = vadd.f32 0.0, %v1217
      %1219 = vmatmul.bf16.gmra.mxu0 %v730
      %v1220 = vpop.f32.mrf.mxu0
      %v1221 = vadd.f32 0.0, %v1220
      %v1222 = vpop.f32.mrf.mxu0
      %v1223 = vadd.f32 0.0, %v1222
      %1224 = vmatmul.bf16.gmra.mxu0 %v732
      %v1225 = vpop.f32.mrf.mxu0
      %v1226 = vadd.f32 0.0, %v1225
      %v1227 = vpop.f32.mrf.mxu0
      %v1228 = vadd.f32 0.0, %v1227
      %1229 = vmatmul.bf16.gmra.mxu0 %v734
      %v1230 = vpop.f32.mrf.mxu0
      %v1231 = vadd.f32 0.0, %v1230
      %v1232 = vpop.f32.mrf.mxu0
      %v1233 = vadd.f32 0.0, %v1232
      %1234 = vmatmul.bf16.gmra.mxu0 %v736
      %v1235 = vpop.f32.mrf.mxu0
      %v1236 = vadd.f32 0.0, %v1235
      %v1237 = vpop.f32.mrf.mxu0
      %v1238 = vadd.f32 0.0, %v1237
      %1239 = vmatmul.bf16.gmra.mxu0 %v738
      %v1240 = vpop.f32.mrf.mxu0
      %v1241 = vadd.f32 0.0, %v1240
      %v1242 = vpop.f32.mrf.mxu0
      %v1243 = vadd.f32 0.0, %v1242
      %1244 = vmatmul.bf16.gmra.mxu0 %v740
      %v1245 = vpop.f32.mrf.mxu0
      %v1246 = vadd.f32 0.0, %v1245
      %v1247 = vpop.f32.mrf.mxu0
      %v1248 = vadd.f32 0.0, %v1247
      %1249 = vmatmul.bf16.gmra.mxu0 %v742
      %v1250 = vpop.f32.mrf.mxu0
      %v1251 = vadd.f32 0.0, %v1250
      %v1252 = vpop.f32.mrf.mxu0
      %v1253 = vadd.f32 0.0, %v1252
      %1254 = vmatmul.bf16.gmra.mxu0 %v744
      %v1255 = vpop.f32.mrf.mxu0
      %v1256 = vadd.f32 0.0, %v1255
      %v1257 = vpop.f32.mrf.mxu0
      %v1258 = vadd.f32 0.0, %v1257
      %1259 = vmatmul.bf16.gmra.mxu0 %v746
      %v1260 = vpop.f32.mrf.mxu0
      %v1261 = vadd.f32 0.0, %v1260
      %v1262 = vpop.f32.mrf.mxu0
      %v1263 = vadd.f32 0.0, %v1262
      %1264 = vmatmul.bf16.gmra.mxu0 %v748
      %v1265 = vpop.f32.mrf.mxu0
      %v1266 = vadd.f32 0.0, %v1265
      %v1267 = vpop.f32.mrf.mxu0
      %v1268 = vadd.f32 0.0, %v1267
      %1269 = vmatmul.bf16.gmra.mxu0 %v750
      %v1270 = vpop.f32.mrf.mxu0
      %v1271 = vadd.f32 0.0, %v1270
      %v1272 = vpop.f32.mrf.mxu0
      %v1273 = vadd.f32 0.0, %v1272
      %1274 = vmatmul.bf16.gmra.mxu0 %v752
      %v1275 = vpop.f32.mrf.mxu0
      %v1276 = vadd.f32 0.0, %v1275
      %v1277 = vpop.f32.mrf.mxu0
      %v1278 = vadd.f32 0.0, %v1277
      %1279 = vmatmul.bf16.gmra.mxu0 %v754
      %v1280 = vpop.f32.mrf.mxu0
      %v1281 = vadd.f32 0.0, %v1280
      %v1282 = vpop.f32.mrf.mxu0
      %v1283 = vadd.f32 0.0, %v1282
      %1284 = vmatmul.bf16.gmra.mxu0 %v756
      %v1285 = vpop.f32.mrf.mxu0
      %v1286 = vadd.f32 0.0, %v1285
      %v1287 = vpop.f32.mrf.mxu0
      %v1288 = vadd.f32 0.0, %v1287
      %1289 = vmatmul.bf16.gmra.mxu0 %v758
      %v1290 = vpop.f32.mrf.mxu0
      %v1291 = vadd.f32 0.0, %v1290
      %v1292 = vpop.f32.mrf.mxu0
      %v1293 = vadd.f32 0.0, %v1292
      %1294 = vmatmul.bf16.gmra.mxu0 %v760
      %v1295 = vpop.f32.mrf.mxu0
      %v1296 = vadd.f32 0.0, %v1295
      %v1297 = vpop.f32.mrf.mxu0
      %v1298 = vadd.f32 0.0, %v1297
      %1299 = vmatmul.bf16.gmra.mxu0 %v762
      %v1300 = vpop.f32.mrf.mxu0
      %v1301 = vadd.f32 0.0, %v1300
      %v1302 = vpop.f32.mrf.mxu0
      %v1303 = vadd.f32 0.0, %v1302
      %1304 = vmatmul.bf16.gmra.mxu0 %v764
      %v1305 = vpop.f32.mrf.mxu0
      %v1306 = vadd.f32 0.0, %v1305
      %v1307 = vpop.f32.mrf.mxu0
      %v1308 = vadd.f32 0.0, %v1307
      %1309 = vmatmul.bf16.gmra.mxu0 %v766
      %v1310 = vpop.f32.mrf.mxu0
      %v1311 = vadd.f32 0.0, %v1310
      %v1312 = vpop.f32.mrf.mxu0
      %v1313 = vadd.f32 0.0, %v1312
      %1314 = vmatmul.bf16.gmra.mxu0 %v768
      %v1315 = vpop.f32.mrf.mxu0
      %v1316 = vadd.f32 0.0, %v1315
      %v1317 = vpop.f32.mrf.mxu0
      %v1318 = vadd.f32 0.0, %v1317
      %1319 = vmatmul.bf16.gmra.mxu0 %v770
      %v1320 = vpop.f32.mrf.mxu0
      %v1321 = vadd.f32 0.0, %v1320
      %v1322 = vpop.f32.mrf.mxu0
      %v1323 = vadd.f32 0.0, %v1322
      %1324 = vmatmul.bf16.gmra.mxu0 %v772
      %v1325 = vpop.f32.mrf.mxu0
      %v1326 = vadd.f32 0.0, %v1325
      %v1327 = vpop.f32.mrf.mxu0
      %v1328 = vadd.f32 0.0, %v1327
      %1329 = vmatmul.bf16.gmra.mxu0 %v774
      %v1330 = vpop.f32.mrf.mxu0
      %v1331 = vadd.f32 0.0, %v1330
      %v1332 = vpop.f32.mrf.mxu0
      %v1333 = vadd.f32 0.0, %v1332
      %1334 = vmatmul.bf16.gmra.mxu0 %v776
      %v1335 = vpop.f32.mrf.mxu0
      %v1336 = vadd.f32 0.0, %v1335
      %v1337 = vpop.f32.mrf.mxu0
      %v1338 = vadd.f32 0.0, %v1337
      %1339 = vmatmul.bf16.gmra.mxu0 %v778
      %v1340 = vpop.f32.mrf.mxu0
      %v1341 = vadd.f32 0.0, %v1340
      %v1342 = vpop.f32.mrf.mxu0
      %v1343 = vadd.f32 0.0, %v1342
      %1344 = vmatmul.bf16.gmra.mxu0 %v780
      %v1345 = vpop.f32.mrf.mxu0
      %v1346 = vadd.f32 0.0, %v1345
      %v1347 = vpop.f32.mrf.mxu0
      %v1348 = vadd.f32 0.0, %v1347
      %1349 = vmatmul.bf16.gmra.mxu0 %v782
      %v1350 = vpop.f32.mrf.mxu0
      %v1351 = vadd.f32 0.0, %v1350
      %v1352 = vpop.f32.mrf.mxu0
      %v1353 = vadd.f32 0.0, %v1352
      %1354 = vmatmul.bf16.gmra.mxu0 %v784
      %v1355 = vpop.f32.mrf.mxu0
      %v1356 = vadd.f32 0.0, %v1355
      %v1357 = vpop.f32.mrf.mxu0
      %v1358 = vadd.f32 0.0, %v1357
      %1359 = vmatmul.bf16.gmra.mxu0 %v786
      %v1360 = vpop.f32.mrf.mxu0
      %v1361 = vadd.f32 0.0, %v1360
      %v1362 = vpop.f32.mrf.mxu0
      %v1363 = vadd.f32 0.0, %v1362
      %1364 = vmatmul.bf16.gmra.mxu0 %v788
      %v1365 = vpop.f32.mrf.mxu0
      %v1366 = vadd.f32 0.0, %v1365
      %v1367 = vpop.f32.mrf.mxu0
      %v1368 = vadd.f32 0.0, %v1367
      %1369 = vmatmul.bf16.gmra.mxu0 %v790
      %v1370 = vpop.f32.mrf.mxu0
      %v1371 = vadd.f32 0.0, %v1370
      %v1372 = vpop.f32.mrf.mxu0
      %v1373 = vadd.f32 0.0, %v1372
      %1374 = vmatmul.bf16.gmra.mxu0 %v792
      %v1375 = vpop.f32.mrf.mxu0
      %v1376 = vadd.f32 0.0, %v1375
      %v1377 = vpop.f32.mrf.mxu0
      %v1378 = vadd.f32 0.0, %v1377
      %1379 = vmatmul.bf16.gmra.mxu0 %v794
      %v1380 = vpop.f32.mrf.mxu0
      %v1381 = vadd.f32 0.0, %v1380
      %v1382 = vpop.f32.mrf.mxu0
      %v1383 = vadd.f32 0.0, %v1382
      %1384 = vmatmul.bf16.gmra.mxu0 %v796
      %v1385 = vpop.f32.mrf.mxu0
      %v1386 = vadd.f32 0.0, %v1385
      %v1387 = vpop.f32.mrf.mxu0
      %v1388 = vadd.f32 0.0, %v1387
      %1389 = vmatmul.bf16.gmra.mxu0 %v798
      %v1390 = vpop.f32.mrf.mxu0
      %v1391 = vadd.f32 0.0, %v1390
      %v1392 = vpop.f32.mrf.mxu0
      %v1393 = vadd.f32 0.0, %v1392
      %1394 = vmatmul.bf16.gmra.mxu0 %v800
      %v1395 = vpop.f32.mrf.mxu0
      %v1396 = vadd.f32 0.0, %v1395
      %v1397 = vpop.f32.mrf.mxu0
      %v1398 = vadd.f32 0.0, %v1397
      %1399 = vmatmul.bf16.gmra.mxu0 %v802
      %v1400 = vpop.f32.mrf.mxu0
      %v1401 = vadd.f32 0.0, %v1400
      %v1402 = vpop.f32.mrf.mxu0
      %v1403 = vadd.f32 0.0, %v1402
      %1404 = vmatmul.bf16.gmra.mxu0 %v804
      %v1405 = vpop.f32.mrf.mxu0
      %v1406 = vadd.f32 0.0, %v1405
      %v1407 = vpop.f32.mrf.mxu0
      %v1408 = vadd.f32 0.0, %v1407
      %1409 = vmatmul.bf16.gmra.mxu0 %v806
      %v1410 = vpop.f32.mrf.mxu0
      %v1411 = vadd.f32 0.0, %v1410
      %v1412 = vpop.f32.mrf.mxu0
      %v1413 = vadd.f32 0.0, %v1412
      %1414 = vmatmul.bf16.gmra.mxu0 %v808
      %v1415 = vpop.f32.mrf.mxu0
      %v1416 = vadd.f32 0.0, %v1415
      %v1417 = vpop.f32.mrf.mxu0
      %v1418 = vadd.f32 0.0, %v1417
      %1419 = vmatmul.bf16.gmra.mxu0 %v810
      %v1420 = vpop.f32.mrf.mxu0
      %v1421 = vadd.f32 0.0, %v1420
      %v1422 = vpop.f32.mrf.mxu0
      %v1423 = vadd.f32 0.0, %v1422
      %1424 = vmatmul.bf16.gmra.mxu0 %v812
      %v1425 = vpop.f32.mrf.mxu0
      %v1426 = vadd.f32 0.0, %v1425
      %v1427 = vpop.f32.mrf.mxu0
      %v1428 = vadd.f32 0.0, %v1427
      %1429 = vmatmul.bf16.gmra.mxu0 %v814
      %v1430 = vpop.f32.mrf.mxu0
      %v1431 = vadd.f32 0.0, %v1430
      %v1432 = vpop.f32.mrf.mxu0
      %v1433 = vadd.f32 0.0, %v1432
      %1434 = vmatmul.bf16.gmra.mxu0 %v816
      %v1435 = vpop.f32.mrf.mxu0
      %v1436 = vadd.f32 0.0, %v1435
      %v1437 = vpop.f32.mrf.mxu0
      %v1438 = vadd.f32 0.0, %v1437
      %1439 = vmatmul.bf16.gmra.mxu0 %v818
      %v1440 = vpop.f32.mrf.mxu0
      %v1441 = vadd.f32 0.0, %v1440
      %v1442 = vpop.f32.mrf.mxu0
      %v1443 = vadd.f32 0.0, %v1442
      %1444 = vmatmul.bf16.gmra.mxu0 %v820
      %v1445 = vpop.f32.mrf.mxu0
      %v1446 = vadd.f32 0.0, %v1445
      %v1447 = vpop.f32.mrf.mxu0
      %v1448 = vadd.f32 0.0, %v1447
      %1449 = vmatmul.bf16.gmra.mxu0 %v822
      %v1450 = vpop.f32.mrf.mxu0
      %v1451 = vadd.f32 0.0, %v1450
      %v1452 = vpop.f32.mrf.mxu0
      %v1453 = vadd.f32 0.0, %v1452
      %1454 = vmatmul.bf16.gmra.mxu0 %v824
      %v1455 = vpop.f32.mrf.mxu0
      %v1456 = vadd.f32 0.0, %v1455
      %v1457 = vpop.f32.mrf.mxu0
      %v1458 = vadd.f32 0.0, %v1457
      %1459 = vmatmul.bf16.gmra.mxu0 %v826
      %v1460 = vpop.f32.mrf.mxu0
      %v1461 = vadd.f32 0.0, %v1460
      %v1462 = vpop.f32.mrf.mxu0
      %v1463 = vadd.f32 0.0, %v1462
      %1464 = vmatmul.bf16.gmra.mxu0 %v828
      %v1465 = vpop.f32.mrf.mxu0
      %v1466 = vadd.f32 0.0, %v1465
      %v1467 = vpop.f32.mrf.mxu0
      %v1468 = vadd.f32 0.0, %v1467
      %1469 = vdwg.mxu0
      %1470 = vmatpush.bf16.msra.mxu0 0
      %1471 = vmatpush.bf16.msra.mxu0 0
      %1472 = vmatpush.bf16.msra.mxu0 0
      %1473 = vmatpush.bf16.msra.mxu0 0
      %1474 = vmatpush.bf16.msra.mxu0 0
      %1475 = vmatpush.bf16.msra.mxu0 0
      %1476 = vmatpush.bf16.msra.mxu0 0
      %1477 = vmatpush.bf16.msra.mxu0 %v938
      %1478 = vmatmul.bf16.gmra.mxu0 %v950
      %v1479 = vpop.f32.mrf.mxu0
      %v1480 = vadd.f32 %v1151, %v1479
      %v1481 = vpop.f32.mrf.mxu0
      %v1482 = vadd.f32 %v1153, %v1481
      %1483 = vmatmul.bf16.gmra.mxu0 %v953
      %v1484 = vpop.f32.mrf.mxu0
      %v1485 = vadd.f32 %v1156, %v1484
      %v1486 = vpop.f32.mrf.mxu0
      %v1487 = vadd.f32 %v1158, %v1486
      %1488 = vmatmul.bf16.gmra.mxu0 %v956
      %v1489 = vpop.f32.mrf.mxu0
      %v1490 = vadd.f32 %v1161, %v1489
      %v1491 = vpop.f32.mrf.mxu0
      %v1492 = vadd.f32 %v1163, %v1491
      %1493 = vmatmul.bf16.gmra.mxu0 %v959
      %v1494 = vpop.f32.mrf.mxu0
      %v1495 = vadd.f32 %v1166, %v1494
      %v1496 = vpop.f32.mrf.mxu0
      %v1497 = vadd.f32 %v1168, %v1496
      %1498 = vmatmul.bf16.gmra.mxu0 %v962
      %v1499 = vpop.f32.mrf.mxu0
      %v1500 = vadd.f32 %v1171, %v1499
      %v1501 = vpop.f32.mrf.mxu0
      %v1502 = vadd.f32 %v1173, %v1501
      %1503 = vmatmul.bf16.gmra.mxu0 %v965
      %v1504 = vpop.f32.mrf.mxu0
      %v1505 = vadd.f32 %v1176, %v1504
      %v1506 = vpop.f32.mrf.mxu0
      %v1507 = vadd.f32 %v1178, %v1506
      %1508 = vmatmul.bf16.gmra.mxu0 %v968
      %v1509 = vpop.f32.mrf.mxu0
      %v1510 = vadd.f32 %v1181, %v1509
      %v1511 = vpop.f32.mrf.mxu0
      %v1512 = vadd.f32 %v1183, %v1511
      %1513 = vmatmul.bf16.gmra.mxu0 %v971
      %v1514 = vpop.f32.mrf.mxu0
      %v1515 = vadd.f32 %v1186, %v1514
      %v1516 = vpop.f32.mrf.mxu0
      %v1517 = vadd.f32 %v1188, %v1516
      %1518 = vmatmul.bf16.gmra.mxu0 %v974
      %v1519 = vpop.f32.mrf.mxu0
      %v1520 = vadd.f32 %v1191, %v1519
      %v1521 = vpop.f32.mrf.mxu0
      %v1522 = vadd.f32 %v1193, %v1521
      %1523 = vmatmul.bf16.gmra.mxu0 %v977
      %v1524 = vpop.f32.mrf.mxu0
      %v1525 = vadd.f32 %v1196, %v1524
      %v1526 = vpop.f32.mrf.mxu0
      %v1527 = vadd.f32 %v1198, %v1526
      %1528 = vmatmul.bf16.gmra.mxu0 %v980
      %v1529 = vpop.f32.mrf.mxu0
      %v1530 = vadd.f32 %v1201, %v1529
      %v1531 = vpop.f32.mrf.mxu0
      %v1532 = vadd.f32 %v1203, %v1531
      %1533 = vmatmul.bf16.gmra.mxu0 %v983
      %v1534 = vpop.f32.mrf.mxu0
      %v1535 = vadd.f32 %v1206, %v1534
      %v1536 = vpop.f32.mrf.mxu0
      %v1537 = vadd.f32 %v1208, %v1536
      %1538 = vmatmul.bf16.gmra.mxu0 %v986
      %v1539 = vpop.f32.mrf.mxu0
      %v1540 = vadd.f32 %v1211, %v1539
      %v1541 = vpop.f32.mrf.mxu0
      %v1542 = vadd.f32 %v1213, %v1541
      %1543 = vmatmul.bf16.gmra.mxu0 %v989
      %v1544 = vpop.f32.mrf.mxu0
      %v1545 = vadd.f32 %v1216, %v1544
      %v1546 = vpop.f32.mrf.mxu0
      %v1547 = vadd.f32 %v1218, %v1546
      %1548 = vmatmul.bf16.gmra.mxu0 %v992
      %v1549 = vpop.f32.mrf.mxu0
      %v1550 = vadd.f32 %v1221, %v1549
      %v1551 = vpop.f32.mrf.mxu0
      %v1552 = vadd.f32 %v1223, %v1551
      %1553 = vmatmul.bf16.gmra.mxu0 %v995
      %v1554 = vpop.f32.mrf.mxu0
      %v1555 = vadd.f32 %v1226, %v1554
      %v1556 = vpop.f32.mrf.mxu0
      %v1557 = vadd.f32 %v1228, %v1556
      %1558 = vmatmul.bf16.gmra.mxu0 %v998
      %v1559 = vpop.f32.mrf.mxu0
      %v1560 = vadd.f32 %v1231, %v1559
      %v1561 = vpop.f32.mrf.mxu0
      %v1562 = vadd.f32 %v1233, %v1561
      %1563 = vmatmul.bf16.gmra.mxu0 %v1001
      %v1564 = vpop.f32.mrf.mxu0
      %v1565 = vadd.f32 %v1236, %v1564
      %v1566 = vpop.f32.mrf.mxu0
      %v1567 = vadd.f32 %v1238, %v1566
      %1568 = vmatmul.bf16.gmra.mxu0 %v1004
      %v1569 = vpop.f32.mrf.mxu0
      %v1570 = vadd.f32 %v1241, %v1569
      %v1571 = vpop.f32.mrf.mxu0
      %v1572 = vadd.f32 %v1243, %v1571
      %1573 = vmatmul.bf16.gmra.mxu0 %v1007
      %v1574 = vpop.f32.mrf.mxu0
      %v1575 = vadd.f32 %v1246, %v1574
      %v1576 = vpop.f32.mrf.mxu0
      %v1577 = vadd.f32 %v1248, %v1576
      %1578 = vmatmul.bf16.gmra.mxu0 %v1010
      %v1579 = vpop.f32.mrf.mxu0
      %v1580 = vadd.f32 %v1251, %v1579
      %v1581 = vpop.f32.mrf.mxu0
      %v1582 = vadd.f32 %v1253, %v1581
      %1583 = vmatmul.bf16.gmra.mxu0 %v1013
      %v1584 = vpop.f32.mrf.mxu0
      %v1585 = vadd.f32 %v1256, %v1584
      %v1586 = vpop.f32.mrf.mxu0
      %v1587 = vadd.f32 %v1258, %v1586
      %1588 = vmatmul.bf16.gmra.mxu0 %v1016
      %v1589 = vpop.f32.mrf.mxu0
      %v1590 = vadd.f32 %v1261, %v1589
      %v1591 = vpop.f32.mrf.mxu0
      %v1592 = vadd.f32 %v1263, %v1591
      %1593 = vmatmul.bf16.gmra.mxu0 %v1019
      %v1594 = vpop.f32.mrf.mxu0
      %v1595 = vadd.f32 %v1266, %v1594
      %v1596 = vpop.f32.mrf.mxu0
      %v1597 = vadd.f32 %v1268, %v1596
      %1598 = vmatmul.bf16.gmra.mxu0 %v1022
      %v1599 = vpop.f32.mrf.mxu0
      %v1600 = vadd.f32 %v1271, %v1599
      %v1601 = vpop.f32.mrf.mxu0
      %v1602 = vadd.f32 %v1273, %v1601
      %1603 = vmatmul.bf16.gmra.mxu0 %v1025
      %v1604 = vpop.f32.mrf.mxu0
      %v1605 = vadd.f32 %v1276, %v1604
      %v1606 = vpop.f32.mrf.mxu0
      %v1607 = vadd.f32 %v1278, %v1606
      %1608 = vmatmul.bf16.gmra.mxu0 %v1028
      %v1609 = vpop.f32.mrf.mxu0
      %v1610 = vadd.f32 %v1281, %v1609
      %v1611 = vpop.f32.mrf.mxu0
      %v1612 = vadd.f32 %v1283, %v1611
      %1613 = vmatmul.bf16.gmra.mxu0 %v1031
      %v1614 = vpop.f32.mrf.mxu0
      %v1615 = vadd.f32 %v1286, %v1614
      %v1616 = vpop.f32.mrf.mxu0
      %v1617 = vadd.f32 %v1288, %v1616
      %1618 = vmatmul.bf16.gmra.mxu0 %v1034
      %v1619 = vpop.f32.mrf.mxu0
      %v1620 = vadd.f32 %v1291, %v1619
      %v1621 = vpop.f32.mrf.mxu0
      %v1622 = vadd.f32 %v1293, %v1621
      %1623 = vmatmul.bf16.gmra.mxu0 %v1037
      %v1624 = vpop.f32.mrf.mxu0
      %v1625 = vadd.f32 %v1296, %v1624
      %v1626 = vpop.f32.mrf.mxu0
      %v1627 = vadd.f32 %v1298, %v1626
      %1628 = vmatmul.bf16.gmra.mxu0 %v1040
      %v1629 = vpop.f32.mrf.mxu0
      %v1630 = vadd.f32 %v1301, %v1629
      %v1631 = vpop.f32.mrf.mxu0
      %v1632 = vadd.f32 %v1303, %v1631
      %1633 = vmatmul.bf16.gmra.mxu0 %v1043
      %v1634 = vpop.f32.mrf.mxu0
      %v1635 = vadd.f32 %v1306, %v1634
      %v1636 = vpop.f32.mrf.mxu0
      %v1637 = vadd.f32 %v1308, %v1636
      %1638 = vmatmul.bf16.gmra.mxu0 %v1046
      %v1639 = vpop.f32.mrf.mxu0
      %v1640 = vadd.f32 %v1311, %v1639
      %v1641 = vpop.f32.mrf.mxu0
      %v1642 = vadd.f32 %v1313, %v1641
      %1643 = vmatmul.bf16.gmra.mxu0 %v1049
      %v1644 = vpop.f32.mrf.mxu0
      %v1645 = vadd.f32 %v1316, %v1644
      %v1646 = vpop.f32.mrf.mxu0
      %v1647 = vadd.f32 %v1318, %v1646
      %1648 = vmatmul.bf16.gmra.mxu0 %v1052
      %v1649 = vpop.f32.mrf.mxu0
      %v1650 = vadd.f32 %v1321, %v1649
      %v1651 = vpop.f32.mrf.mxu0
      %v1652 = vadd.f32 %v1323, %v1651
      %1653 = vmatmul.bf16.gmra.mxu0 %v1055
      %v1654 = vpop.f32.mrf.mxu0
      %v1655 = vadd.f32 %v1326, %v1654
      %v1656 = vpop.f32.mrf.mxu0
      %v1657 = vadd.f32 %v1328, %v1656
      %1658 = vmatmul.bf16.gmra.mxu0 %v1058
      %v1659 = vpop.f32.mrf.mxu0
      %v1660 = vadd.f32 %v1331, %v1659
      %v1661 = vpop.f32.mrf.mxu0
      %v1662 = vadd.f32 %v1333, %v1661
      %1663 = vmatmul.bf16.gmra.mxu0 %v1061
      %v1664 = vpop.f32.mrf.mxu0
      %v1665 = vadd.f32 %v1336, %v1664
      %v1666 = vpop.f32.mrf.mxu0
      %v1667 = vadd.f32 %v1338, %v1666
      %1668 = vmatmul.bf16.gmra.mxu0 %v1064
      %v1669 = vpop.f32.mrf.mxu0
      %v1670 = vadd.f32 %v1341, %v1669
      %v1671 = vpop.f32.mrf.mxu0
      %v1672 = vadd.f32 %v1343, %v1671
      %1673 = vmatmul.bf16.gmra.mxu0 %v1067
      %v1674 = vpop.f32.mrf.mxu0
      %v1675 = vadd.f32 %v1346, %v1674
      %v1676 = vpop.f32.mrf.mxu0
      %v1677 = vadd.f32 %v1348, %v1676
      %1678 = vmatmul.bf16.gmra.mxu0 %v1070
      %v1679 = vpop.f32.mrf.mxu0
      %v1680 = vadd.f32 %v1351, %v1679
      %v1681 = vpop.f32.mrf.mxu0
      %v1682 = vadd.f32 %v1353, %v1681
      %1683 = vmatmul.bf16.gmra.mxu0 %v1073
      %v1684 = vpop.f32.mrf.mxu0
      %v1685 = vadd.f32 %v1356, %v1684
      %v1686 = vpop.f32.mrf.mxu0
      %v1687 = vadd.f32 %v1358, %v1686
      %1688 = vmatmul.bf16.gmra.mxu0 %v1076
      %v1689 = vpop.f32.mrf.mxu0
      %v1690 = vadd.f32 %v1361, %v1689
      %v1691 = vpop.f32.mrf.mxu0
      %v1692 = vadd.f32 %v1363, %v1691
      %1693 = vmatmul.bf16.gmra.mxu0 %v1079
      %v1694 = vpop.f32.mrf.mxu0
      %v1695 = vadd.f32 %v1366, %v1694
      %v1696 = vpop.f32.mrf.mxu0
      %v1697 = vadd.f32 %v1368, %v1696
      %1698 = vmatmul.bf16.gmra.mxu0 %v1082
      %v1699 = vpop.f32.mrf.mxu0
      %v1700 = vadd.f32 %v1371, %v1699
      %v1701 = vpop.f32.mrf.mxu0
      %v1702 = vadd.f32 %v1373, %v1701
      %1703 = vmatmul.bf16.gmra.mxu0 %v1085
      %v1704 = vpop.f32.mrf.mxu0
      %v1705 = vadd.f32 %v1376, %v1704
      %v1706 = vpop.f32.mrf.mxu0
      %v1707 = vadd.f32 %v1378, %v1706
      %1708 = vmatmul.bf16.gmra.mxu0 %v1088
      %v1709 = vpop.f32.mrf.mxu0
      %v1710 = vadd.f32 %v1381, %v1709
      %v1711 = vpop.f32.mrf.mxu0
      %v1712 = vadd.f32 %v1383, %v1711
      %1713 = vmatmul.bf16.gmra.mxu0 %v1091
      %v1714 = vpop.f32.mrf.mxu0
      %v1715 = vadd.f32 %v1386, %v1714
      %v1716 = vpop.f32.mrf.mxu0
      %v1717 = vadd.f32 %v1388, %v1716
      %1718 = vmatmul.bf16.gmra.mxu0 %v1094
      %v1719 = vpop.f32.mrf.mxu0
      %v1720 = vadd.f32 %v1391, %v1719
      %v1721 = vpop.f32.mrf.mxu0
      %v1722 = vadd.f32 %v1393, %v1721
      %1723 = vmatmul.bf16.gmra.mxu0 %v1097
      %v1724 = vpop.f32.mrf.mxu0
      %v1725 = vadd.f32 %v1396, %v1724
      %v1726 = vpop.f32.mrf.mxu0
      %v1727 = vadd.f32 %v1398, %v1726
      %1728 = vmatmul.bf16.gmra.mxu0 %v1100
      %v1729 = vpop.f32.mrf.mxu0
      %v1730 = vadd.f32 %v1401, %v1729
      %v1731 = vpop.f32.mrf.mxu0
      %v1732 = vadd.f32 %v1403, %v1731
      %1733 = vmatmul.bf16.gmra.mxu0 %v1103
      %v1734 = vpop.f32.mrf.mxu0
      %v1735 = vadd.f32 %v1406, %v1734
      %v1736 = vpop.f32.mrf.mxu0
      %v1737 = vadd.f32 %v1408, %v1736
      %1738 = vmatmul.bf16.gmra.mxu0 %v1106
      %v1739 = vpop.f32.mrf.mxu0
      %v1740 = vadd.f32 %v1411, %v1739
      %v1741 = vpop.f32.mrf.mxu0
      %v1742 = vadd.f32 %v1413, %v1741
      %1743 = vmatmul.bf16.gmra.mxu0 %v1109
      %v1744 = vpop.f32.mrf.mxu0
      %v1745 = vadd.f32 %v1416, %v1744
      %v1746 = vpop.f32.mrf.mxu0
      %v1747 = vadd.f32 %v1418, %v1746
      %1748 = vmatmul.bf16.gmra.mxu0 %v1112
      %v1749 = vpop.f32.mrf.mxu0
      %v1750 = vadd.f32 %v1421, %v1749
      %v1751 = vpop.f32.mrf.mxu0
      %v1752 = vadd.f32 %v1423, %v1751
      %1753 = vmatmul.bf16.gmra.mxu0 %v1115
      %v1754 = vpop.f32.mrf.mxu0
      %v1755 = vadd.f32 %v1426, %v1754
      %v1756 = vpop.f32.mrf.mxu0
      %v1757 = vadd.f32 %v1428, %v1756
      %1758 = vmatmul.bf16.gmra.mxu0 %v1118
      %v1759 = vpop.f32.mrf.mxu0
      %v1760 = vadd.f32 %v1431, %v1759
      %v1761 = vpop.f32.mrf.mxu0
      %v1762 = vadd.f32 %v1433, %v1761
      %1763 = vmatmul.bf16.gmra.mxu0 %v1121
      %v1764 = vpop.f32.mrf.mxu0
      %v1765 = vadd.f32 %v1436, %v1764
      %v1766 = vpop.f32.mrf.mxu0
      %v1767 = vadd.f32 %v1438, %v1766
      %1768 = vmatmul.bf16.gmra.mxu0 %v1124
      %v1769 = vpop.f32.mrf.mxu0
      %v1770 = vadd.f32 %v1441, %v1769
      %v1771 = vpop.f32.mrf.mxu0
      %v1772 = vadd.f32 %v1443, %v1771
      %1773 = vmatmul.bf16.gmra.mxu0 %v1127
      %v1774 = vpop.f32.mrf.mxu0
      %v1775 = vadd.f32 %v1446, %v1774
      %v1776 = vpop.f32.mrf.mxu0
      %v1777 = vadd.f32 %v1448, %v1776
      %1778 = vmatmul.bf16.gmra.mxu0 %v1130
      %v1779 = vpop.f32.mrf.mxu0
      %v1780 = vadd.f32 %v1451, %v1779
      %v1781 = vpop.f32.mrf.mxu0
      %v1782 = vadd.f32 %v1453, %v1781
      %1783 = vmatmul.bf16.gmra.mxu0 %v1133
      %v1784 = vpop.f32.mrf.mxu0
      %v1785 = vadd.f32 %v1456, %v1784
      %v1786 = vpop.f32.mrf.mxu0
      %v1787 = vadd.f32 %v1458, %v1786
      %1788 = vmatmul.bf16.gmra.mxu0 %v1136
      %v1789 = vpop.f32.mrf.mxu0
      %v1790 = vadd.f32 %v1461, %v1789
      %v1791 = vpop.f32.mrf.mxu0
      %v1792 = vadd.f32 %v1463, %v1791
      %1793 = vmatmul.bf16.gmra.mxu0 %v1139
      %v1794 = vpop.f32.mrf.mxu0
      %v1795 = vadd.f32 %v1466, %v1794
      %v1796 = vpop.f32.mrf.mxu0
      %v1797 = vadd.f32 %v1468, %v1796
      %1798 = vdwg.mxu0
      %v1799 = vmax.f32 %v1480, %v1560
      %v1800 = vmax.f32 %v1482, %v1562
      %v1801 = vmax.f32 %v1485, %v1565
      %v1802 = vmax.f32 %v1487, %v1567
      %v1803 = vmax.f32 %v1490, %v1570
      %v1804 = vmax.f32 %v1492, %v1572
      %v1805 = vmax.f32 %v1495, %v1575
      %v1806 = vmax.f32 %v1497, %v1577
      %v1807 = vmax.f32 %v1500, %v1580
      %v1808 = vmax.f32 %v1502, %v1582
      %v1809 = vmax.f32 %v1505, %v1585
      %v1810 = vmax.f32 %v1507, %v1587
      %v1811 = vmax.f32 %v1510, %v1590
      %v1812 = vmax.f32 %v1512, %v1592
      %v1813 = vmax.f32 %v1515, %v1595
      %v1814 = vmax.f32 %v1517, %v1597
      %v1815 = vmax.f32 %v1520, %v1600
      %v1816 = vmax.f32 %v1522, %v1602
      %v1817 = vmax.f32 %v1525, %v1605
      %v1818 = vmax.f32 %v1527, %v1607
      %v1819 = vmax.f32 %v1530, %v1610
      %v1820 = vmax.f32 %v1532, %v1612
      %v1821 = vmax.f32 %v1535, %v1615
      %v1822 = vmax.f32 %v1537, %v1617
      %v1823 = vmax.f32 %v1540, %v1620
      %v1824 = vmax.f32 %v1542, %v1622
      %v1825 = vmax.f32 %v1545, %v1625
      %v1826 = vmax.f32 %v1547, %v1627
      %v1827 = vmax.f32 %v1550, %v1630
      %v1828 = vmax.f32 %v1552, %v1632
      %v1829 = vmax.f32 %v1555, %v1635
      %v1830 = vmax.f32 %v1557, %v1637
      %v1831 = vmax.f32 %v1640, %v1720
      %v1832 = vmax.f32 %v1642, %v1722
      %v1833 = vmax.f32 %v1645, %v1725
      %v1834 = vmax.f32 %v1647, %v1727
      %v1835 = vmax.f32 %v1650, %v1730
      %v1836 = vmax.f32 %v1652, %v1732
      %v1837 = vmax.f32 %v1655, %v1735
      %v1838 = vmax.f32 %v1657, %v1737
      %v1839 = vmax.f32 %v1660, %v1740
      %v1840 = vmax.f32 %v1662, %v1742
      %v1841 = vmax.f32 %v1665, %v1745
      %v1842 = vmax.f32 %v1667, %v1747
      %v1843 = vmax.f32 %v1670, %v1750
      %v1844 = vmax.f32 %v1672, %v1752
      %v1845 = vmax.f32 %v1675, %v1755
      %v1846 = vmax.f32 %v1677, %v1757
      %v1847 = vmax.f32 %v1680, %v1760
      %v1848 = vmax.f32 %v1682, %v1762
      %v1849 = vmax.f32 %v1685, %v1765
      %v1850 = vmax.f32 %v1687, %v1767
      %v1851 = vmax.f32 %v1690, %v1770
      %v1852 = vmax.f32 %v1692, %v1772
      %v1853 = vmax.f32 %v1695, %v1775
      %v1854 = vmax.f32 %v1697, %v1777
      %v1855 = vmax.f32 %v1700, %v1780
      %v1856 = vmax.f32 %v1702, %v1782
      %v1857 = vmax.f32 %v1705, %v1785
      %v1858 = vmax.f32 %v1707, %v1787
      %v1859 = vmax.f32 %v1710, %v1790
      %v1860 = vmax.f32 %v1712, %v1792
      %v1861 = vmax.f32 %v1715, %v1795
      %v1862 = vmax.f32 %v1717, %v1797
      %v1863 = vmax.f32 %v1799, %v1831
      %v1864 = vmax.f32 %v1800, %v1832
      %v1865 = vmax.f32 %v1801, %v1833
      %v1866 = vmax.f32 %v1802, %v1834
      %v1867 = vmax.f32 %v1803, %v1835
      %v1868 = vmax.f32 %v1804, %v1836
      %v1869 = vmax.f32 %v1805, %v1837
      %v1870 = vmax.f32 %v1806, %v1838
      %v1871 = vmax.f32 %v1807, %v1839
      %v1872 = vmax.f32 %v1808, %v1840
      %v1873 = vmax.f32 %v1809, %v1841
      %v1874 = vmax.f32 %v1810, %v1842
      %v1875 = vmax.f32 %v1811, %v1843
      %v1876 = vmax.f32 %v1812, %v1844
      %v1877 = vmax.f32 %v1813, %v1845
      %v1878 = vmax.f32 %v1814, %v1846
      %v1879 = vmax.f32 %v1815, %v1847
      %v1880 = vmax.f32 %v1816, %v1848
      %v1881 = vmax.f32 %v1817, %v1849
      %v1882 = vmax.f32 %v1818, %v1850
      %v1883 = vmax.f32 %v1819, %v1851
      %v1884 = vmax.f32 %v1820, %v1852
      %v1885 = vmax.f32 %v1821, %v1853
      %v1886 = vmax.f32 %v1822, %v1854
      %v1887 = vmax.f32 %v1823, %v1855
      %v1888 = vmax.f32 %v1824, %v1856
      %v1889 = vmax.f32 %v1825, %v1857
      %v1890 = vmax.f32 %v1826, %v1858
      %v1891 = vmax.f32 %v1827, %v1859
      %v1892 = vmax.f32 %v1828, %v1860
      %v1893 = vmax.f32 %v1829, %v1861
      %v1894 = vmax.f32 %v1830, %v1862
      %v1895 = vld [vmem:[%s2] sm:$0x1]
      %v1897 = vperm.slane %v1895, 0
      %v1899 = vadd.f32 %v1863, %v1897
      %v1900 = vadd.f32 %v1864, %v1897
      %v1901 = vadd.f32 %v1865, %v1897
      %v1902 = vadd.f32 %v1866, %v1897
      %v1903 = vadd.f32 %v1867, %v1897
      %v1904 = vadd.f32 %v1868, %v1897
      %v1905 = vadd.f32 %v1869, %v1897
      %v1906 = vadd.f32 %v1870, %v1897
      %v1907 = vadd.f32 %v1871, %v1897
      %v1908 = vadd.f32 %v1872, %v1897
      %v1909 = vadd.f32 %v1873, %v1897
      %v1910 = vadd.f32 %v1874, %v1897
      %v1911 = vadd.f32 %v1875, %v1897
      %v1912 = vadd.f32 %v1876, %v1897
      %v1913 = vadd.f32 %v1877, %v1897
      %v1914 = vadd.f32 %v1878, %v1897
      %v1915 = vadd.f32 %v1879, %v1897
      %v1916 = vadd.f32 %v1880, %v1897
      %v1917 = vadd.f32 %v1881, %v1897
      %v1918 = vadd.f32 %v1882, %v1897
      %v1919 = vadd.f32 %v1883, %v1897
      %v1920 = vadd.f32 %v1884, %v1897
      %v1921 = vadd.f32 %v1885, %v1897
      %v1922 = vadd.f32 %v1886, %v1897
      %v1923 = vadd.f32 %v1887, %v1897
      %v1924 = vadd.f32 %v1888, %v1897
      %v1925 = vadd.f32 %v1889, %v1897
      %v1926 = vadd.f32 %v1890, %v1897
      %v1927 = vadd.f32 %v1891, %v1897
      %v1928 = vadd.f32 %v1892, %v1897
      %v1929 = vadd.f32 %v1893, %v1897
      %v1930 = vadd.f32 %v1894, %v1897
      %v1931 = vmax.f32 %v1899, 0.0
      %v1932 = vmax.f32 %v1900, 0.0
      %v1933 = vmax.f32 %v1901, 0.0
      %v1934 = vmax.f32 %v1902, 0.0
      %v1935 = vmax.f32 %v1903, 0.0
      %v1936 = vmax.f32 %v1904, 0.0
      %v1937 = vmax.f32 %v1905, 0.0
      %v1938 = vmax.f32 %v1906, 0.0
      %v1939 = vmax.f32 %v1907, 0.0
      %v1940 = vmax.f32 %v1908, 0.0
      %v1941 = vmax.f32 %v1909, 0.0
      %v1942 = vmax.f32 %v1910, 0.0
      %v1943 = vmax.f32 %v1911, 0.0
      %v1944 = vmax.f32 %v1912, 0.0
      %v1945 = vmax.f32 %v1913, 0.0
      %v1946 = vmax.f32 %v1914, 0.0
      %v1947 = vmax.f32 %v1915, 0.0
      %v1948 = vmax.f32 %v1916, 0.0
      %v1949 = vmax.f32 %v1917, 0.0
      %v1950 = vmax.f32 %v1918, 0.0
      %v1951 = vmax.f32 %v1919, 0.0
      %v1952 = vmax.f32 %v1920, 0.0
      %v1953 = vmax.f32 %v1921, 0.0
      %v1954 = vmax.f32 %v1922, 0.0
      %v1955 = vmax.f32 %v1923, 0.0
      %v1956 = vmax.f32 %v1924, 0.0
      %v1957 = vmax.f32 %v1925, 0.0
      %v1958 = vmax.f32 %v1926, 0.0
      %v1959 = vmax.f32 %v1927, 0.0
      %v1960 = vmax.f32 %v1928, 0.0
      %v1961 = vmax.f32 %v1929, 0.0
      %v1962 = vmax.f32 %v1930, 0.0
      %vm1963 = vcmask 261120
      %1964 = vst.msk [vmem:[%s170] sm:$0xff] %vm1963, %v1931
      %1965 = vst.msk [vmem:[%s170 + $0x8] sm:$0xff] %vm1963, %v1932
      %1966 = vst.msk [vmem:[%s170 + $0x10] sm:$0xff] %vm1963, %v1933
      %1967 = vst.msk [vmem:[%s170 + $0x18] sm:$0xff] %vm1963, %v1934
      %1968 = vst.msk [vmem:[%s170 + $0x20] sm:$0xff] %vm1963, %v1935
      %1969 = vst.msk [vmem:[%s170 + $0x28] sm:$0xff] %vm1963, %v1936
      %1970 = vst.msk [vmem:[%s170 + $0x30] sm:$0xff] %vm1963, %v1937
      %1971 = vst.msk [vmem:[%s170 + $0x38] sm:$0xff] %vm1963, %v1938
      %1972 = vst.msk [vmem:[%s170 + $0x40] sm:$0xff] %vm1963, %v1939
      %1973 = vst.msk [vmem:[%s170 + $0x48] sm:$0xff] %vm1963, %v1940
      %1974 = vst.msk [vmem:[%s170 + $0x50] sm:$0xff] %vm1963, %v1941
      %1975 = vst.msk [vmem:[%s170 + $0x58] sm:$0xff] %vm1963, %v1942
      %1976 = vst.msk [vmem:[%s170 + $0x60] sm:$0xff] %vm1963, %v1943
      %1977 = vst.msk [vmem:[%s170 + $0x68] sm:$0xff] %vm1963, %v1944
      %1978 = vst.msk [vmem:[%s170 + $0x70] sm:$0xff] %vm1963, %v1945
      %1979 = vst.msk [vmem:[%s170 + $0x78] sm:$0xff] %vm1963, %v1946
      %1980 = vst.msk [vmem:[%s170 + $0x80] sm:$0xff] %vm1963, %v1947
      %1981 = vst.msk [vmem:[%s170 + $0x88] sm:$0xff] %vm1963, %v1948
      %1982 = vst.msk [vmem:[%s170 + $0x90] sm:$0xff] %vm1963, %v1949
      %1983 = vst.msk [vmem:[%s170 + $0x98] sm:$0xff] %vm1963, %v1950
      %1984 = vst.msk [vmem:[%s170 + $0xa0] sm:$0xff] %vm1963, %v1951
      %1985 = vst.msk [vmem:[%s170 + $0xa8] sm:$0xff] %vm1963, %v1952
      %1986 = vst.msk [vmem:[%s170 + $0xb0] sm:$0xff] %vm1963, %v1953
      %1987 = vst.msk [vmem:[%s170 + $0xb8] sm:$0xff] %vm1963, %v1954
      %1988 = vst.msk [vmem:[%s170 + $0xc0] sm:$0xff] %vm1963, %v1955
      %1989 = vst.msk [vmem:[%s170 + $0xc8] sm:$0xff] %vm1963, %v1956
      %1990 = vst.msk [vmem:[%s170 + $0xd0] sm:$0xff] %vm1963, %v1957
      %1991 = vst.msk [vmem:[%s170 + $0xd8] sm:$0xff] %vm1963, %v1958
      %1992 = vst.msk [vmem:[%s170 + $0xe0] sm:$0xff] %vm1963, %v1959
      %1993 = vst.msk [vmem:[%s170 + $0xe8] sm:$0xff] %vm1963, %v1960
      %1994 = vst.msk [vmem:[%s170 + $0xf0] sm:$0xff] %vm1963, %v1961
      %1995 = vst.msk [vmem:[%s170 + $0xf8] sm:$0xff] %vm1963, %v1962
      %p1996 = scmp.lt.s32.totalorder %s14, 1
      %s1997 = scalar_select %p1996, %s14, 1
      %s1998 = smul.addr %s1997, 32
      %s1999 = smul.addr %s1998, 8
      %s2000 = scalar_lea.vmem %s3, %s1999
      // Predicated region
      $region33: #{simple_cnn_forward.4} parent=31 // pred_check
        %p2001 = pneg %p100
      $region34: #{simple_cnn_forward.4} parent=31 // pred_check_branch
        %2003 = sbr.rel (%p2001) target = $region36
      $region35: #{simple_cnn_forward.4} parent=31 // pred_region
        _
      $region36: #{simple_cnn_forward.4} parent=31 // pred_fallthru
        _
    $region32: #{simple_cnn_forward.4} parent=5 // pred_fallthru
      _
    %p2004 = scmp.le.s32.totalorder 2, %s9
    // Predicated region
    $region37: #{simple_cnn_forward.4} parent=5 // pred_check
      %p2005 = pneg %p2004
    $region38: #{simple_cnn_forward.4} parent=5 // pred_check_branch
      %2007 = sbr.rel (%p2005) target = $region40
    $region39: #{simple_cnn_forward.4} parent=5 // pred_region
      %s2008 = ssub.s32 %s9, 2
      // Predicated region
      $region41: #{simple_cnn_forward.4} parent=39 // pred_check
        %p2009 = pneg %p106
      $region42: #{simple_cnn_forward.4} parent=39 // pred_check_branch
        %2011 = sbr.rel (%p2009) target = $region44
      $region43: #{simple_cnn_forward.4} parent=39 // pred_region
        %p2012 = scmp.lt.s32.totalorder %s15, 1
        %s2013 = scalar_select %p2012, %s15, 1
        %s2014 = smul.addr %s2013, 32
        %s2015 = smul.addr %s2014, 8
        %s2016 = scalar_lea.vmem %s3, %s2015
      $region44: #{simple_cnn_forward.4} parent=39 // pred_fallthru
        _
    $region40: #{simple_cnn_forward.4} parent=5 // pred_fallthru
      _
  $region6: #{simple_cnn_forward.4} parent=0 // loop_footer
    %s13 = sadd.s32 1, %s9
  $region7: #{simple_cnn_forward.4} parent=0 // loop_footer_branch
    %8 = sbr.rel target = $region3
  $region8: #{simple_cnn_forward.4} parent=0 // loop_exit
    _

// kernel: simple_cnn_forward.5
$region0: #{simple_cnn_forward.5}
  #allocation0 [shape = 'u32[]', space=smem, size = 0x4, offset = 0x4, fixed_abs, tag = 'smem constant byte address 0x4 - core index']
  #allocation1 [shape = 'u32[72,128]{1,0:T(1,128)}', space=vmem, size = 0x9000, scoped, tag = 'internal scratch']
  %s0 = inlined_call_operand.vmem [shape: bf16[2,8192], index: 0, kind: input, shape index: {}]
  %s1 = inlined_call_operand.vmem [shape: bf16[8192,128], index: 1, kind: input, shape index: {}]
  %s2 = inlined_call_operand.vmem [shape: f32[1,128], index: 2, kind: input, shape index: {}]
  %s3 = inlined_call_operand.vmem [shape: bf16[128,128], index: 3, kind: input, shape index: {}]
  %s4 = inlined_call_operand.vmem [shape: f32[1,128], index: 4, kind: input, shape index: {}]
  %s5 = inlined_call_operand.hbm [shape: f32[2,128], index: 5, kind: output, shape index: {}]
  %s6 = sld [smem:[#allocation0]]
  $region30: #{simple_cnn_forward.5} parent=0
    _
  %s8 = ssub.s32 1, %s6
  %s9 = scalar_select 0, %s8, %s6
  $region1: #{simple_cnn_forward.5} parent=0
    #allocation2 [shape = 'u8[1024]{0}', space=vmem, size = 0x400, scoped, tag = 'output window, operand 0, single buffered']
    #allocation3 [shape = 's32[1]{0}', space=sflag, size = 0x4, scoped, tag = 'scoped memory for simple_cnn_forward.5']
    %10 = vsyncpa [#allocation3], 0
    // Predicated region
    $region2: #{simple_cnn_forward.5} parent=1 // pred_check
      _
    $region3: #{simple_cnn_forward.5} parent=1 // pred_check_branch
      %12 = sbr.rel (0) target = $region5
    $region4: #{simple_cnn_forward.5} parent=1 // pred_region
      _
    $region5: #{simple_cnn_forward.5} parent=1 // pred_fallthru
      _
    // Predicated region
    $region6: #{simple_cnn_forward.5} parent=1 // pred_check
      _
    $region7: #{simple_cnn_forward.5} parent=1 // pred_check_branch
      %14 = sbr.rel (0) target = $region9
    $region8: #{simple_cnn_forward.5} parent=1 // pred_region
      _
    $region9: #{simple_cnn_forward.5} parent=1 // pred_fallthru
      _
    // Predicated region
    $region10: #{simple_cnn_forward.5} parent=1 // pred_check
      _
    $region11: #{simple_cnn_forward.5} parent=1 // pred_check_branch
      %16 = sbr.rel (0) target = $region13
    $region12: #{simple_cnn_forward.5} parent=1 // pred_region
      _
    $region13: #{simple_cnn_forward.5} parent=1 // pred_fallthru
      _
    // Predicated region
    $region14: #{simple_cnn_forward.5} parent=1 // pred_check
      _
    $region15: #{simple_cnn_forward.5} parent=1 // pred_check_branch
      %18 = sbr.rel (0) target = $region17
    $region16: #{simple_cnn_forward.5} parent=1 // pred_region
      _
    $region17: #{simple_cnn_forward.5} parent=1 // pred_fallthru
      _
    // Predicated region
    $region18: #{simple_cnn_forward.5} parent=1 // pred_check
      _
    $region19: #{simple_cnn_forward.5} parent=1 // pred_check_branch
      %20 = sbr.rel (0) target = $region21
    $region20: #{simple_cnn_forward.5} parent=1 // pred_region
      _
    $region21: #{simple_cnn_forward.5} parent=1 // pred_fallthru
      _
    %v21 = vld [vmem:[%s0] sm:$0xff]
    %v22 = vld [vmem:[%s0 + $0x8] sm:$0xff]
    %v23 = vld [vmem:[%s0 + $0x10] sm:$0xff]
    %v24 = vld [vmem:[%s0 + $0x18] sm:$0xff]
    %v25 = vld [vmem:[%s0 + $0x20] sm:$0xff]
    %v26 = vld [vmem:[%s0 + $0x28] sm:$0xff]
    %v27 = vld [vmem:[%s0 + $0x30] sm:$0xff]
    %v28 = vld [vmem:[%s0 + $0x38] sm:$0xff]
    %v29 = vld [vmem:[%s1] sm:$0xf]
    %v30 = vld [vmem:[%s1 + $0x4] sm:$0xf]
    %v31 = vld [vmem:[%s1 + $0x8] sm:$0xf]
    %v32 = vld [vmem:[%s1 + $0xc] sm:$0xf]
    %v33 = vld [vmem:[%s1 + $0x10] sm:$0xf]
    %v34 = vld [vmem:[%s1 + $0x14] sm:$0xf]
    %v35 = vld [vmem:[%s1 + $0x18] sm:$0xf]
    %v36 = vld [vmem:[%s1 + $0x1c] sm:$0xf]
    %v37 = vld [vmem:[%s1 + $0x20] sm:$0xf]
    %v38 = vld [vmem:[%s1 + $0x24] sm:$0xf]
    %v39 = vld [vmem:[%s1 + $0x28] sm:$0xf]
    %v40 = vld [vmem:[%s1 + $0x2c] sm:$0xf]
    %v41 = vld [vmem:[%s1 + $0x30] sm:$0xf]
    %v42 = vld [vmem:[%s1 + $0x34] sm:$0xf]
    %v43 = vld [vmem:[%s1 + $0x38] sm:$0xf]
    %v44 = vld [vmem:[%s1 + $0x3c] sm:$0xf]
    %v45 = vld [vmem:[%s1 + $0x40] sm:$0xf]
    %v46 = vld [vmem:[%s1 + $0x44] sm:$0xf]
    %v47 = vld [vmem:[%s1 + $0x48] sm:$0xf]
    %v48 = vld [vmem:[%s1 + $0x4c] sm:$0xf]
    %v49 = vld [vmem:[%s1 + $0x50] sm:$0xf]
    %v50 = vld [vmem:[%s1 + $0x54] sm:$0xf]
    %v51 = vld [vmem:[%s1 + $0x58] sm:$0xf]
    %v52 = vld [vmem:[%s1 + $0x5c] sm:$0xf]
    %v53 = vld [vmem:[%s1 + $0x60] sm:$0xf]
    %v54 = vld [vmem:[%s1 + $0x64] sm:$0xf]
    %v55 = vld [vmem:[%s1 + $0x68] sm:$0xf]
    %v56 = vld [vmem:[%s1 + $0x6c] sm:$0xf]
    %v57 = vld [vmem:[%s1 + $0x70] sm:$0xf]
    %v58 = vld [vmem:[%s1 + $0x74] sm:$0xf]
    %v59 = vld [vmem:[%s1 + $0x78] sm:$0xf]
    %v60 = vld [vmem:[%s1 + $0x7c] sm:$0xf]
    %v61 = vld [vmem:[%s1 + $0x80] sm:$0xf]
    %v62 = vld [vmem:[%s1 + $0x84] sm:$0xf]
    %v63 = vld [vmem:[%s1 + $0x88] sm:$0xf]
    %v64 = vld [vmem:[%s1 + $0x8c] sm:$0xf]
    %v65 = vld [vmem:[%s1 + $0x90] sm:$0xf]
    %v66 = vld [vmem:[%s1 + $0x94] sm:$0xf]
    %v67 = vld [vmem:[%s1 + $0x98] sm:$0xf]
    %v68 = vld [vmem:[%s1 + $0x9c] sm:$0xf]
    %v69 = vld [vmem:[%s1 + $0xa0] sm:$0xf]
    %v70 = vld [vmem:[%s1 + $0xa4] sm:$0xf]
    %v71 = vld [vmem:[%s1 + $0xa8] sm:$0xf]
    %v72 = vld [vmem:[%s1 + $0xac] sm:$0xf]
    %v73 = vld [vmem:[%s1 + $0xb0] sm:$0xf]
    %v74 = vld [vmem:[%s1 + $0xb4] sm:$0xf]
    %v75 = vld [vmem:[%s1 + $0xb8] sm:$0xf]
    %v76 = vld [vmem:[%s1 + $0xbc] sm:$0xf]
    %v77 = vld [vmem:[%s1 + $0xc0] sm:$0xf]
    %v78 = vld [vmem:[%s1 + $0xc4] sm:$0xf]
    %v79 = vld [vmem:[%s1 + $0xc8] sm:$0xf]
    %v80 = vld [vmem:[%s1 + $0xcc] sm:$0xf]
    %v81 = vld [vmem:[%s1 + $0xd0] sm:$0xf]
    %v82 = vld [vmem:[%s1 + $0xd4] sm:$0xf]
    %v83 = vld [vmem:[%s1 + $0xd8] sm:$0xf]
    %v84 = vld [vmem:[%s1 + $0xdc] sm:$0xf]
    %v85 = vld [vmem:[%s1 + $0xe0] sm:$0xf]
    %v86 = vld [vmem:[%s1 + $0xe4] sm:$0xf]
    %v87 = vld [vmem:[%s1 + $0xe8] sm:$0xf]
    %v88 = vld [vmem:[%s1 + $0xec] sm:$0xf]
    %v89 = vld [vmem:[%s1 + $0xf0] sm:$0xf]
    %v90 = vld [vmem:[%s1 + $0xf4] sm:$0xf]
    %v91 = vld [vmem:[%s1 + $0xf8] sm:$0xf]
    %v92 = vld [vmem:[%s1 + $0xfc] sm:$0xf]
    %v93 = vld [vmem:[%s1 + $0x100] sm:$0xf]
    %v94 = vld [vmem:[%s1 + $0x104] sm:$0xf]
    %v95 = vld [vmem:[%s1 + $0x108] sm:$0xf]
    %v96 = vld [vmem:[%s1 + $0x10c] sm:$0xf]
    %v97 = vld [vmem:[%s1 + $0x110] sm:$0xf]
    %v98 = vld [vmem:[%s1 + $0x114] sm:$0xf]
    %v99 = vld [vmem:[%s1 + $0x118] sm:$0xf]
    %v100 = vld [vmem:[%s1 + $0x11c] sm:$0xf]
    %v101 = vld [vmem:[%s1 + $0x120] sm:$0xf]
    %v102 = vld [vmem:[%s1 + $0x124] sm:$0xf]
    %v103 = vld [vmem:[%s1 + $0x128] sm:$0xf]
    %v104 = vld [vmem:[%s1 + $0x12c] sm:$0xf]
    %v105 = vld [vmem:[%s1 + $0x130] sm:$0xf]
    %v106 = vld [vmem:[%s1 + $0x134] sm:$0xf]
    %v107 = vld [vmem:[%s1 + $0x138] sm:$0xf]
    %v108 = vld [vmem:[%s1 + $0x13c] sm:$0xf]
    %v109 = vld [vmem:[%s1 + $0x140] sm:$0xf]
    %v110 = vld [vmem:[%s1 + $0x144] sm:$0xf]
    %v111 = vld [vmem:[%s1 + $0x148] sm:$0xf]
    %v112 = vld [vmem:[%s1 + $0x14c] sm:$0xf]
    %v113 = vld [vmem:[%s1 + $0x150] sm:$0xf]
    %v114 = vld [vmem:[%s1 + $0x154] sm:$0xf]
    %v115 = vld [vmem:[%s1 + $0x158] sm:$0xf]
    %v116 = vld [vmem:[%s1 + $0x15c] sm:$0xf]
    %v117 = vld [vmem:[%s1 + $0x160] sm:$0xf]
    %v118 = vld [vmem:[%s1 + $0x164] sm:$0xf]
    %v119 = vld [vmem:[%s1 + $0x168] sm:$0xf]
    %v120 = vld [vmem:[%s1 + $0x16c] sm:$0xf]
    %v121 = vld [vmem:[%s1 + $0x170] sm:$0xf]
    %v122 = vld [vmem:[%s1 + $0x174] sm:$0xf]
    %v123 = vld [vmem:[%s1 + $0x178] sm:$0xf]
    %v124 = vld [vmem:[%s1 + $0x17c] sm:$0xf]
    %v125 = vld [vmem:[%s1 + $0x180] sm:$0xf]
    %v126 = vld [vmem:[%s1 + $0x184] sm:$0xf]
    %v127 = vld [vmem:[%s1 + $0x188] sm:$0xf]
    %v128 = vld [vmem:[%s1 + $0x18c] sm:$0xf]
    %v129 = vld [vmem:[%s1 + $0x190] sm:$0xf]
    %v130 = vld [vmem:[%s1 + $0x194] sm:$0xf]
    %v131 = vld [vmem:[%s1 + $0x198] sm:$0xf]
    %v132 = vld [vmem:[%s1 + $0x19c] sm:$0xf]
    %v133 = vld [vmem:[%s1 + $0x1a0] sm:$0xf]
    %v134 = vld [vmem:[%s1 + $0x1a4] sm:$0xf]
    %v135 = vld [vmem:[%s1 + $0x1a8] sm:$0xf]
    %v136 = vld [vmem:[%s1 + $0x1ac] sm:$0xf]
    %v137 = vld [vmem:[%s1 + $0x1b0] sm:$0xf]
    %v138 = vld [vmem:[%s1 + $0x1b4] sm:$0xf]
    %v139 = vld [vmem:[%s1 + $0x1b8] sm:$0xf]
    %v140 = vld [vmem:[%s1 + $0x1bc] sm:$0xf]
    %v141 = vld [vmem:[%s1 + $0x1c0] sm:$0xf]
    %v142 = vld [vmem:[%s1 + $0x1c4] sm:$0xf]
    %v143 = vld [vmem:[%s1 + $0x1c8] sm:$0xf]
    %v144 = vld [vmem:[%s1 + $0x1cc] sm:$0xf]
    %v145 = vld [vmem:[%s1 + $0x1d0] sm:$0xf]
    %v146 = vld [vmem:[%s1 + $0x1d4] sm:$0xf]
    %v147 = vld [vmem:[%s1 + $0x1d8] sm:$0xf]
    %v148 = vld [vmem:[%s1 + $0x1dc] sm:$0xf]
    %v149 = vld [vmem:[%s1 + $0x1e0] sm:$0xf]
    %v150 = vld [vmem:[%s1 + $0x1e4] sm:$0xf]
    %v151 = vld [vmem:[%s1 + $0x1e8] sm:$0xf]
    %v152 = vld [vmem:[%s1 + $0x1ec] sm:$0xf]
    %v153 = vld [vmem:[%s1 + $0x1f0] sm:$0xf]
    %v154 = vld [vmem:[%s1 + $0x1f4] sm:$0xf]
    %v155 = vld [vmem:[%s1 + $0x1f8] sm:$0xf]
    %v156 = vld [vmem:[%s1 + $0x1fc] sm:$0xf]
    %v157 = vld [vmem:[%s1 + $0x200] sm:$0xf]
    %v158 = vld [vmem:[%s1 + $0x204] sm:$0xf]
    %v159 = vld [vmem:[%s1 + $0x208] sm:$0xf]
    %v160 = vld [vmem:[%s1 + $0x20c] sm:$0xf]
    %v161 = vld [vmem:[%s1 + $0x210] sm:$0xf]
    %v162 = vld [vmem:[%s1 + $0x214] sm:$0xf]
    %v163 = vld [vmem:[%s1 + $0x218] sm:$0xf]
    %v164 = vld [vmem:[%s1 + $0x21c] sm:$0xf]
    %v165 = vld [vmem:[%s1 + $0x220] sm:$0xf]
    %v166 = vld [vmem:[%s1 + $0x224] sm:$0xf]
    %v167 = vld [vmem:[%s1 + $0x228] sm:$0xf]
    %v168 = vld [vmem:[%s1 + $0x22c] sm:$0xf]
    %v169 = vld [vmem:[%s1 + $0x230] sm:$0xf]
    %v170 = vld [vmem:[%s1 + $0x234] sm:$0xf]
    %v171 = vld [vmem:[%s1 + $0x238] sm:$0xf]
    %v172 = vld [vmem:[%s1 + $0x23c] sm:$0xf]
    %v173 = vld [vmem:[%s1 + $0x240] sm:$0xf]
    %v174 = vld [vmem:[%s1 + $0x244] sm:$0xf]
    %v175 = vld [vmem:[%s1 + $0x248] sm:$0xf]
    %v176 = vld [vmem:[%s1 + $0x24c] sm:$0xf]
    %v177 = vld [vmem:[%s1 + $0x250] sm:$0xf]
    %v178 = vld [vmem:[%s1 + $0x254] sm:$0xf]
    %v179 = vld [vmem:[%s1 + $0x258] sm:$0xf]
    %v180 = vld [vmem:[%s1 + $0x25c] sm:$0xf]
    %v181 = vld [vmem:[%s1 + $0x260] sm:$0xf]
    %v182 = vld [vmem:[%s1 + $0x264] sm:$0xf]
    %v183 = vld [vmem:[%s1 + $0x268] sm:$0xf]
    %v184 = vld [vmem:[%s1 + $0x26c] sm:$0xf]
    %v185 = vld [vmem:[%s1 + $0x270] sm:$0xf]
    %v186 = vld [vmem:[%s1 + $0x274] sm:$0xf]
    %v187 = vld [vmem:[%s1 + $0x278] sm:$0xf]
    %v188 = vld [vmem:[%s1 + $0x27c] sm:$0xf]
    %v189 = vld [vmem:[%s1 + $0x280] sm:$0xf]
    %v190 = vld [vmem:[%s1 + $0x284] sm:$0xf]
    %v191 = vld [vmem:[%s1 + $0x288] sm:$0xf]
    %v192 = vld [vmem:[%s1 + $0x28c] sm:$0xf]
    %v193 = vld [vmem:[%s1 + $0x290] sm:$0xf]
    %v194 = vld [vmem:[%s1 + $0x294] sm:$0xf]
    %v195 = vld [vmem:[%s1 + $0x298] sm:$0xf]
    %v196 = vld [vmem:[%s1 + $0x29c] sm:$0xf]
    %v197 = vld [vmem:[%s1 + $0x2a0] sm:$0xf]
    %v198 = vld [vmem:[%s1 + $0x2a4] sm:$0xf]
    %v199 = vld [vmem:[%s1 + $0x2a8] sm:$0xf]
    %v200 = vld [vmem:[%s1 + $0x2ac] sm:$0xf]
    %v201 = vld [vmem:[%s1 + $0x2b0] sm:$0xf]
    %v202 = vld [vmem:[%s1 + $0x2b4] sm:$0xf]
    %v203 = vld [vmem:[%s1 + $0x2b8] sm:$0xf]
    %v204 = vld [vmem:[%s1 + $0x2bc] sm:$0xf]
    %v205 = vld [vmem:[%s1 + $0x2c0] sm:$0xf]
    %v206 = vld [vmem:[%s1 + $0x2c4] sm:$0xf]
    %v207 = vld [vmem:[%s1 + $0x2c8] sm:$0xf]
    %v208 = vld [vmem:[%s1 + $0x2cc] sm:$0xf]
    %v209 = vld [vmem:[%s1 + $0x2d0] sm:$0xf]
    %v210 = vld [vmem:[%s1 + $0x2d4] sm:$0xf]
    %v211 = vld [vmem:[%s1 + $0x2d8] sm:$0xf]
    %v212 = vld [vmem:[%s1 + $0x2dc] sm:$0xf]
    %v213 = vld [vmem:[%s1 + $0x2e0] sm:$0xf]
    %v214 = vld [vmem:[%s1 + $0x2e4] sm:$0xf]
    %v215 = vld [vmem:[%s1 + $0x2e8] sm:$0xf]
    %v216 = vld [vmem:[%s1 + $0x2ec] sm:$0xf]
    %v217 = vld [vmem:[%s1 + $0x2f0] sm:$0xf]
    %v218 = vld [vmem:[%s1 + $0x2f4] sm:$0xf]
    %v219 = vld [vmem:[%s1 + $0x2f8] sm:$0xf]
    %v220 = vld [vmem:[%s1 + $0x2fc] sm:$0xf]
    %v221 = vld [vmem:[%s1 + $0x300] sm:$0xf]
    %v222 = vld [vmem:[%s1 + $0x304] sm:$0xf]
    %v223 = vld [vmem:[%s1 + $0x308] sm:$0xf]
    %v224 = vld [vmem:[%s1 + $0x30c] sm:$0xf]
    %v225 = vld [vmem:[%s1 + $0x310] sm:$0xf]
    %v226 = vld [vmem:[%s1 + $0x314] sm:$0xf]
    %v227 = vld [vmem:[%s1 + $0x318] sm:$0xf]
    %v228 = vld [vmem:[%s1 + $0x31c] sm:$0xf]
    %v229 = vld [vmem:[%s1 + $0x320] sm:$0xf]
    %v230 = vld [vmem:[%s1 + $0x324] sm:$0xf]
    %v231 = vld [vmem:[%s1 + $0x328] sm:$0xf]
    %v232 = vld [vmem:[%s1 + $0x32c] sm:$0xf]
    %v233 = vld [vmem:[%s1 + $0x330] sm:$0xf]
    %v234 = vld [vmem:[%s1 + $0x334] sm:$0xf]
    %v235 = vld [vmem:[%s1 + $0x338] sm:$0xf]
    %v236 = vld [vmem:[%s1 + $0x33c] sm:$0xf]
    %v237 = vld [vmem:[%s1 + $0x340] sm:$0xf]
    %v238 = vld [vmem:[%s1 + $0x344] sm:$0xf]
    %v239 = vld [vmem:[%s1 + $0x348] sm:$0xf]
    %v240 = vld [vmem:[%s1 + $0x34c] sm:$0xf]
    %v241 = vld [vmem:[%s1 + $0x350] sm:$0xf]
    %v242 = vld [vmem:[%s1 + $0x354] sm:$0xf]
    %v243 = vld [vmem:[%s1 + $0x358] sm:$0xf]
    %v244 = vld [vmem:[%s1 + $0x35c] sm:$0xf]
    %v245 = vld [vmem:[%s1 + $0x360] sm:$0xf]
    %v246 = vld [vmem:[%s1 + $0x364] sm:$0xf]
    %v247 = vld [vmem:[%s1 + $0x368] sm:$0xf]
    %v248 = vld [vmem:[%s1 + $0x36c] sm:$0xf]
    %v249 = vld [vmem:[%s1 + $0x370] sm:$0xf]
    %v250 = vld [vmem:[%s1 + $0x374] sm:$0xf]
    %v251 = vld [vmem:[%s1 + $0x378] sm:$0xf]
    %v252 = vld [vmem:[%s1 + $0x37c] sm:$0xf]
    %v253 = vld [vmem:[%s1 + $0x380] sm:$0xf]
    %v254 = vld [vmem:[%s1 + $0x384] sm:$0xf]
    %v255 = vld [vmem:[%s1 + $0x388] sm:$0xf]
    %v256 = vld [vmem:[%s1 + $0x38c] sm:$0xf]
    %v257 = vld [vmem:[%s1 + $0x390] sm:$0xf]
    %v258 = vld [vmem:[%s1 + $0x394] sm:$0xf]
    %v259 = vld [vmem:[%s1 + $0x398] sm:$0xf]
    %v260 = vld [vmem:[%s1 + $0x39c] sm:$0xf]
    %v261 = vld [vmem:[%s1 + $0x3a0] sm:$0xf]
    %v262 = vld [vmem:[%s1 + $0x3a4] sm:$0xf]
    %v263 = vld [vmem:[%s1 + $0x3a8] sm:$0xf]
    %v264 = vld [vmem:[%s1 + $0x3ac] sm:$0xf]
    %v265 = vld [vmem:[%s1 + $0x3b0] sm:$0xf]
    %v266 = vld [vmem:[%s1 + $0x3b4] sm:$0xf]
    %v267 = vld [vmem:[%s1 + $0x3b8] sm:$0xf]
    %v268 = vld [vmem:[%s1 + $0x3bc] sm:$0xf]
    %v269 = vld [vmem:[%s1 + $0x3c0] sm:$0xf]
    %v270 = vld [vmem:[%s1 + $0x3c4] sm:$0xf]
    %v271 = vld [vmem:[%s1 + $0x3c8] sm:$0xf]
    %v272 = vld [vmem:[%s1 + $0x3cc] sm:$0xf]
    %v273 = vld [vmem:[%s1 + $0x3d0] sm:$0xf]
    %v274 = vld [vmem:[%s1 + $0x3d4] sm:$0xf]
    %v275 = vld [vmem:[%s1 + $0x3d8] sm:$0xf]
    %v276 = vld [vmem:[%s1 + $0x3dc] sm:$0xf]
    %v277 = vld [vmem:[%s1 + $0x3e0] sm:$0xf]
    %v278 = vld [vmem:[%s1 + $0x3e4] sm:$0xf]
    %v279 = vld [vmem:[%s1 + $0x3e8] sm:$0xf]
    %v280 = vld [vmem:[%s1 + $0x3ec] sm:$0xf]
    %v281 = vld [vmem:[%s1 + $0x3f0] sm:$0xf]
    %v282 = vld [vmem:[%s1 + $0x3f4] sm:$0xf]
    %v283 = vld [vmem:[%s1 + $0x3f8] sm:$0xf]
    %v284 = vld [vmem:[%s1 + $0x3fc] sm:$0xf]
    %v285 = vld [vmem:[%s1 + $0x400] sm:$0xf]
    %v286 = vld [vmem:[%s1 + $0x404] sm:$0xf]
    %v287 = vld [vmem:[%s1 + $0x408] sm:$0xf]
    %v288 = vld [vmem:[%s1 + $0x40c] sm:$0xf]
    %v289 = vld [vmem:[%s1 + $0x410] sm:$0xf]
    %v290 = vld [vmem:[%s1 + $0x414] sm:$0xf]
    %v291 = vld [vmem:[%s1 + $0x418] sm:$0xf]
    %v292 = vld [vmem:[%s1 + $0x41c] sm:$0xf]
    %v293 = vld [vmem:[%s1 + $0x420] sm:$0xf]
    %v294 = vld [vmem:[%s1 + $0x424] sm:$0xf]
    %v295 = vld [vmem:[%s1 + $0x428] sm:$0xf]
    %v296 = vld [vmem:[%s1 + $0x42c] sm:$0xf]
    %v297 = vld [vmem:[%s1 + $0x430] sm:$0xf]
    %v298 = vld [vmem:[%s1 + $0x434] sm:$0xf]
    %v299 = vld [vmem:[%s1 + $0x438] sm:$0xf]
    %v300 = vld [vmem:[%s1 + $0x43c] sm:$0xf]
    %v301 = vld [vmem:[%s1 + $0x440] sm:$0xf]
    %v302 = vld [vmem:[%s1 + $0x444] sm:$0xf]
    %v303 = vld [vmem:[%s1 + $0x448] sm:$0xf]
    %v304 = vld [vmem:[%s1 + $0x44c] sm:$0xf]
    %v305 = vld [vmem:[%s1 + $0x450] sm:$0xf]
    %v306 = vld [vmem:[%s1 + $0x454] sm:$0xf]
    %v307 = vld [vmem:[%s1 + $0x458] sm:$0xf]
    %v308 = vld [vmem:[%s1 + $0x45c] sm:$0xf]
    %v309 = vld [vmem:[%s1 + $0x460] sm:$0xf]
    %v310 = vld [vmem:[%s1 + $0x464] sm:$0xf]
    %v311 = vld [vmem:[%s1 + $0x468] sm:$0xf]
    %v312 = vld [vmem:[%s1 + $0x46c] sm:$0xf]
    %v313 = vld [vmem:[%s1 + $0x470] sm:$0xf]
    %v314 = vld [vmem:[%s1 + $0x474] sm:$0xf]
    %v315 = vld [vmem:[%s1 + $0x478] sm:$0xf]
    %v316 = vld [vmem:[%s1 + $0x47c] sm:$0xf]
    %v317 = vld [vmem:[%s1 + $0x480] sm:$0xf]
    %v318 = vld [vmem:[%s1 + $0x484] sm:$0xf]
    %v319 = vld [vmem:[%s1 + $0x488] sm:$0xf]
    %v320 = vld [vmem:[%s1 + $0x48c] sm:$0xf]
    %v321 = vld [vmem:[%s1 + $0x490] sm:$0xf]
    %v322 = vld [vmem:[%s1 + $0x494] sm:$0xf]
    %v323 = vld [vmem:[%s1 + $0x498] sm:$0xf]
    %v324 = vld [vmem:[%s1 + $0x49c] sm:$0xf]
    %v325 = vld [vmem:[%s1 + $0x4a0] sm:$0xf]
    %v326 = vld [vmem:[%s1 + $0x4a4] sm:$0xf]
    %v327 = vld [vmem:[%s1 + $0x4a8] sm:$0xf]
    %v328 = vld [vmem:[%s1 + $0x4ac] sm:$0xf]
    %v329 = vld [vmem:[%s1 + $0x4b0] sm:$0xf]
    %v330 = vld [vmem:[%s1 + $0x4b4] sm:$0xf]
    %v331 = vld [vmem:[%s1 + $0x4b8] sm:$0xf]
    %v332 = vld [vmem:[%s1 + $0x4bc] sm:$0xf]
    %v333 = vld [vmem:[%s1 + $0x4c0] sm:$0xf]
    %v334 = vld [vmem:[%s1 + $0x4c4] sm:$0xf]
    %v335 = vld [vmem:[%s1 + $0x4c8] sm:$0xf]
    %v336 = vld [vmem:[%s1 + $0x4cc] sm:$0xf]
    %v337 = vld [vmem:[%s1 + $0x4d0] sm:$0xf]
    %v338 = vld [vmem:[%s1 + $0x4d4] sm:$0xf]
    %v339 = vld [vmem:[%s1 + $0x4d8] sm:$0xf]
    %v340 = vld [vmem:[%s1 + $0x4dc] sm:$0xf]
    %v341 = vld [vmem:[%s1 + $0x4e0] sm:$0xf]
    %v342 = vld [vmem:[%s1 + $0x4e4] sm:$0xf]
    %v343 = vld [vmem:[%s1 + $0x4e8] sm:$0xf]
    %v344 = vld [vmem:[%s1 + $0x4ec] sm:$0xf]
    %v345 = vld [vmem:[%s1 + $0x4f0] sm:$0xf]
    %v346 = vld [vmem:[%s1 + $0x4f4] sm:$0xf]
    %v347 = vld [vmem:[%s1 + $0x4f8] sm:$0xf]
    %v348 = vld [vmem:[%s1 + $0x4fc] sm:$0xf]
    %v349 = vld [vmem:[%s1 + $0x500] sm:$0xf]
    %v350 = vld [vmem:[%s1 + $0x504] sm:$0xf]
    %v351 = vld [vmem:[%s1 + $0x508] sm:$0xf]
    %v352 = vld [vmem:[%s1 + $0x50c] sm:$0xf]
    %v353 = vld [vmem:[%s1 + $0x510] sm:$0xf]
    %v354 = vld [vmem:[%s1 + $0x514] sm:$0xf]
    %v355 = vld [vmem:[%s1 + $0x518] sm:$0xf]
    %v356 = vld [vmem:[%s1 + $0x51c] sm:$0xf]
    %v357 = vld [vmem:[%s1 + $0x520] sm:$0xf]
    %v358 = vld [vmem:[%s1 + $0x524] sm:$0xf]
    %v359 = vld [vmem:[%s1 + $0x528] sm:$0xf]
    %v360 = vld [vmem:[%s1 + $0x52c] sm:$0xf]
    %v361 = vld [vmem:[%s1 + $0x530] sm:$0xf]
    %v362 = vld [vmem:[%s1 + $0x534] sm:$0xf]
    %v363 = vld [vmem:[%s1 + $0x538] sm:$0xf]
    %v364 = vld [vmem:[%s1 + $0x53c] sm:$0xf]
    %v365 = vld [vmem:[%s1 + $0x540] sm:$0xf]
    %v366 = vld [vmem:[%s1 + $0x544] sm:$0xf]
    %v367 = vld [vmem:[%s1 + $0x548] sm:$0xf]
    %v368 = vld [vmem:[%s1 + $0x54c] sm:$0xf]
    %v369 = vld [vmem:[%s1 + $0x550] sm:$0xf]
    %v370 = vld [vmem:[%s1 + $0x554] sm:$0xf]
    %v371 = vld [vmem:[%s1 + $0x558] sm:$0xf]
    %v372 = vld [vmem:[%s1 + $0x55c] sm:$0xf]
    %v373 = vld [vmem:[%s1 + $0x560] sm:$0xf]
    %v374 = vld [vmem:[%s1 + $0x564] sm:$0xf]
    %v375 = vld [vmem:[%s1 + $0x568] sm:$0xf]
    %v376 = vld [vmem:[%s1 + $0x56c] sm:$0xf]
    %v377 = vld [vmem:[%s1 + $0x570] sm:$0xf]
    %v378 = vld [vmem:[%s1 + $0x574] sm:$0xf]
    %v379 = vld [vmem:[%s1 + $0x578] sm:$0xf]
    %v380 = vld [vmem:[%s1 + $0x57c] sm:$0xf]
    %v381 = vld [vmem:[%s1 + $0x580] sm:$0xf]
    %v382 = vld [vmem:[%s1 + $0x584] sm:$0xf]
    %v383 = vld [vmem:[%s1 + $0x588] sm:$0xf]
    %v384 = vld [vmem:[%s1 + $0x58c] sm:$0xf]
    %v385 = vld [vmem:[%s1 + $0x590] sm:$0xf]
    %v386 = vld [vmem:[%s1 + $0x594] sm:$0xf]
    %v387 = vld [vmem:[%s1 + $0x598] sm:$0xf]
    %v388 = vld [vmem:[%s1 + $0x59c] sm:$0xf]
    %v389 = vld [vmem:[%s1 + $0x5a0] sm:$0xf]
    %v390 = vld [vmem:[%s1 + $0x5a4] sm:$0xf]
    %v391 = vld [vmem:[%s1 + $0x5a8] sm:$0xf]
    %v392 = vld [vmem:[%s1 + $0x5ac] sm:$0xf]
    %v393 = vld [vmem:[%s1 + $0x5b0] sm:$0xf]
    %v394 = vld [vmem:[%s1 + $0x5b4] sm:$0xf]
    %v395 = vld [vmem:[%s1 + $0x5b8] sm:$0xf]
    %v396 = vld [vmem:[%s1 + $0x5bc] sm:$0xf]
    %v397 = vld [vmem:[%s1 + $0x5c0] sm:$0xf]
    %v398 = vld [vmem:[%s1 + $0x5c4] sm:$0xf]
    %v399 = vld [vmem:[%s1 + $0x5c8] sm:$0xf]
    %v400 = vld [vmem:[%s1 + $0x5cc] sm:$0xf]
    %v401 = vld [vmem:[%s1 + $0x5d0] sm:$0xf]
    %v402 = vld [vmem:[%s1 + $0x5d4] sm:$0xf]
    %v403 = vld [vmem:[%s1 + $0x5d8] sm:$0xf]
    %v404 = vld [vmem:[%s1 + $0x5dc] sm:$0xf]
    %v405 = vld [vmem:[%s1 + $0x5e0] sm:$0xf]
    %v406 = vld [vmem:[%s1 + $0x5e4] sm:$0xf]
    %v407 = vld [vmem:[%s1 + $0x5e8] sm:$0xf]
    %v408 = vld [vmem:[%s1 + $0x5ec] sm:$0xf]
    %v409 = vld [vmem:[%s1 + $0x5f0] sm:$0xf]
    %v410 = vld [vmem:[%s1 + $0x5f4] sm:$0xf]
    %v411 = vld [vmem:[%s1 + $0x5f8] sm:$0xf]
    %v412 = vld [vmem:[%s1 + $0x5fc] sm:$0xf]
    %v413 = vld [vmem:[%s1 + $0x600] sm:$0xf]
    %v414 = vld [vmem:[%s1 + $0x604] sm:$0xf]
    %v415 = vld [vmem:[%s1 + $0x608] sm:$0xf]
    %v416 = vld [vmem:[%s1 + $0x60c] sm:$0xf]
    %v417 = vld [vmem:[%s1 + $0x610] sm:$0xf]
    %v418 = vld [vmem:[%s1 + $0x614] sm:$0xf]
    %v419 = vld [vmem:[%s1 + $0x618] sm:$0xf]
    %v420 = vld [vmem:[%s1 + $0x61c] sm:$0xf]
    %v421 = vld [vmem:[%s1 + $0x620] sm:$0xf]
    %v422 = vld [vmem:[%s1 + $0x624] sm:$0xf]
    %v423 = vld [vmem:[%s1 + $0x628] sm:$0xf]
    %v424 = vld [vmem:[%s1 + $0x62c] sm:$0xf]
    %v425 = vld [vmem:[%s1 + $0x630] sm:$0xf]
    %v426 = vld [vmem:[%s1 + $0x634] sm:$0xf]
    %v427 = vld [vmem:[%s1 + $0x638] sm:$0xf]
    %v428 = vld [vmem:[%s1 + $0x63c] sm:$0xf]
    %v429 = vld [vmem:[%s1 + $0x640] sm:$0xf]
    %v430 = vld [vmem:[%s1 + $0x644] sm:$0xf]
    %v431 = vld [vmem:[%s1 + $0x648] sm:$0xf]
    %v432 = vld [vmem:[%s1 + $0x64c] sm:$0xf]
    %v433 = vld [vmem:[%s1 + $0x650] sm:$0xf]
    %v434 = vld [vmem:[%s1 + $0x654] sm:$0xf]
    %v435 = vld [vmem:[%s1 + $0x658] sm:$0xf]
    %v436 = vld [vmem:[%s1 + $0x65c] sm:$0xf]
    %v437 = vld [vmem:[%s1 + $0x660] sm:$0xf]
    %v438 = vld [vmem:[%s1 + $0x664] sm:$0xf]
    %v439 = vld [vmem:[%s1 + $0x668] sm:$0xf]
    %v440 = vld [vmem:[%s1 + $0x66c] sm:$0xf]
    %v441 = vld [vmem:[%s1 + $0x670] sm:$0xf]
    %v442 = vld [vmem:[%s1 + $0x674] sm:$0xf]
    %v443 = vld [vmem:[%s1 + $0x678] sm:$0xf]
    %v444 = vld [vmem:[%s1 + $0x67c] sm:$0xf]
    %v445 = vld [vmem:[%s1 + $0x680] sm:$0xf]
    %v446 = vld [vmem:[%s1 + $0x684] sm:$0xf]
    %v447 = vld [vmem:[%s1 + $0x688] sm:$0xf]
    %v448 = vld [vmem:[%s1 + $0x68c] sm:$0xf]
    %v449 = vld [vmem:[%s1 + $0x690] sm:$0xf]
    %v450 = vld [vmem:[%s1 + $0x694] sm:$0xf]
    %v451 = vld [vmem:[%s1 + $0x698] sm:$0xf]
    %v452 = vld [vmem:[%s1 + $0x69c] sm:$0xf]
    %v453 = vld [vmem:[%s1 + $0x6a0] sm:$0xf]
    %v454 = vld [vmem:[%s1 + $0x6a4] sm:$0xf]
    %v455 = vld [vmem:[%s1 + $0x6a8] sm:$0xf]
    %v456 = vld [vmem:[%s1 + $0x6ac] sm:$0xf]
    %v457 = vld [vmem:[%s1 + $0x6b0] sm:$0xf]
    %v458 = vld [vmem:[%s1 + $0x6b4] sm:$0xf]
    %v459 = vld [vmem:[%s1 + $0x6b8] sm:$0xf]
    %v460 = vld [vmem:[%s1 + $0x6bc] sm:$0xf]
    %v461 = vld [vmem:[%s1 + $0x6c0] sm:$0xf]
    %v462 = vld [vmem:[%s1 + $0x6c4] sm:$0xf]
    %v463 = vld [vmem:[%s1 + $0x6c8] sm:$0xf]
    %v464 = vld [vmem:[%s1 + $0x6cc] sm:$0xf]
    %v465 = vld [vmem:[%s1 + $0x6d0] sm:$0xf]
    %v466 = vld [vmem:[%s1 + $0x6d4] sm:$0xf]
    %v467 = vld [vmem:[%s1 + $0x6d8] sm:$0xf]
    %v468 = vld [vmem:[%s1 + $0x6dc] sm:$0xf]
    %v469 = vld [vmem:[%s1 + $0x6e0] sm:$0xf]
    %v470 = vld [vmem:[%s1 + $0x6e4] sm:$0xf]
    %v471 = vld [vmem:[%s1 + $0x6e8] sm:$0xf]
    %v472 = vld [vmem:[%s1 + $0x6ec] sm:$0xf]
    %v473 = vld [vmem:[%s1 + $0x6f0] sm:$0xf]
    %v474 = vld [vmem:[%s1 + $0x6f4] sm:$0xf]
    %v475 = vld [vmem:[%s1 + $0x6f8] sm:$0xf]
    %v476 = vld [vmem:[%s1 + $0x6fc] sm:$0xf]
    %v477 = vld [vmem:[%s1 + $0x700] sm:$0xf]
    %v478 = vld [vmem:[%s1 + $0x704] sm:$0xf]
    %v479 = vld [vmem:[%s1 + $0x708] sm:$0xf]
    %v480 = vld [vmem:[%s1 + $0x70c] sm:$0xf]
    %v481 = vld [vmem:[%s1 + $0x710] sm:$0xf]
    %v482 = vld [vmem:[%s1 + $0x714] sm:$0xf]
    %v483 = vld [vmem:[%s1 + $0x718] sm:$0xf]
    %v484 = vld [vmem:[%s1 + $0x71c] sm:$0xf]
    %v485 = vld [vmem:[%s1 + $0x720] sm:$0xf]
    %v486 = vld [vmem:[%s1 + $0x724] sm:$0xf]
    %v487 = vld [vmem:[%s1 + $0x728] sm:$0xf]
    %v488 = vld [vmem:[%s1 + $0x72c] sm:$0xf]
    %v489 = vld [vmem:[%s1 + $0x730] sm:$0xf]
    %v490 = vld [vmem:[%s1 + $0x734] sm:$0xf]
    %v491 = vld [vmem:[%s1 + $0x738] sm:$0xf]
    %v492 = vld [vmem:[%s1 + $0x73c] sm:$0xf]
    %v493 = vld [vmem:[%s1 + $0x740] sm:$0xf]
    %v494 = vld [vmem:[%s1 + $0x744] sm:$0xf]
    %v495 = vld [vmem:[%s1 + $0x748] sm:$0xf]
    %v496 = vld [vmem:[%s1 + $0x74c] sm:$0xf]
    %v497 = vld [vmem:[%s1 + $0x750] sm:$0xf]
    %v498 = vld [vmem:[%s1 + $0x754] sm:$0xf]
    %v499 = vld [vmem:[%s1 + $0x758] sm:$0xf]
    %v500 = vld [vmem:[%s1 + $0x75c] sm:$0xf]
    %v501 = vld [vmem:[%s1 + $0x760] sm:$0xf]
    %v502 = vld [vmem:[%s1 + $0x764] sm:$0xf]
    %v503 = vld [vmem:[%s1 + $0x768] sm:$0xf]
    %v504 = vld [vmem:[%s1 + $0x76c] sm:$0xf]
    %v505 = vld [vmem:[%s1 + $0x770] sm:$0xf]
    %v506 = vld [vmem:[%s1 + $0x774] sm:$0xf]
    %v507 = vld [vmem:[%s1 + $0x778] sm:$0xf]
    %v508 = vld [vmem:[%s1 + $0x77c] sm:$0xf]
    %v509 = vld [vmem:[%s1 + $0x780] sm:$0xf]
    %v510 = vld [vmem:[%s1 + $0x784] sm:$0xf]
    %v511 = vld [vmem:[%s1 + $0x788] sm:$0xf]
    %v512 = vld [vmem:[%s1 + $0x78c] sm:$0xf]
    %v513 = vld [vmem:[%s1 + $0x790] sm:$0xf]
    %v514 = vld [vmem:[%s1 + $0x794] sm:$0xf]
    %v515 = vld [vmem:[%s1 + $0x798] sm:$0xf]
    %v516 = vld [vmem:[%s1 + $0x79c] sm:$0xf]
    %v517 = vld [vmem:[%s1 + $0x7a0] sm:$0xf]
    %v518 = vld [vmem:[%s1 + $0x7a4] sm:$0xf]
    %v519 = vld [vmem:[%s1 + $0x7a8] sm:$0xf]
    %v520 = vld [vmem:[%s1 + $0x7ac] sm:$0xf]
    %v521 = vld [vmem:[%s1 + $0x7b0] sm:$0xf]
    %v522 = vld [vmem:[%s1 + $0x7b4] sm:$0xf]
    %v523 = vld [vmem:[%s1 + $0x7b8] sm:$0xf]
    %v524 = vld [vmem:[%s1 + $0x7bc] sm:$0xf]
    %v525 = vld [vmem:[%s1 + $0x7c0] sm:$0xf]
    %v526 = vld [vmem:[%s1 + $0x7c4] sm:$0xf]
    %v527 = vld [vmem:[%s1 + $0x7c8] sm:$0xf]
    %v528 = vld [vmem:[%s1 + $0x7cc] sm:$0xf]
    %v529 = vld [vmem:[%s1 + $0x7d0] sm:$0xf]
    %v530 = vld [vmem:[%s1 + $0x7d4] sm:$0xf]
    %v531 = vld [vmem:[%s1 + $0x7d8] sm:$0xf]
    %v532 = vld [vmem:[%s1 + $0x7dc] sm:$0xf]
    %v533 = vld [vmem:[%s1 + $0x7e0] sm:$0xf]
    %v534 = vld [vmem:[%s1 + $0x7e4] sm:$0xf]
    %v535 = vld [vmem:[%s1 + $0x7e8] sm:$0xf]
    %v536 = vld [vmem:[%s1 + $0x7ec] sm:$0xf]
    %v537 = vld [vmem:[%s1 + $0x7f0] sm:$0xf]
    %v538 = vld [vmem:[%s1 + $0x7f4] sm:$0xf]
    %v539 = vld [vmem:[%s1 + $0x7f8] sm:$0xf]
    %v540 = vld [vmem:[%s1 + $0x7fc] sm:$0xf]
    %v541 = vld [vmem:[%s1 + $0x800] sm:$0xf]
    %v542 = vld [vmem:[%s1 + $0x804] sm:$0xf]
    %v543 = vld [vmem:[%s1 + $0x808] sm:$0xf]
    %v544 = vld [vmem:[%s1 + $0x80c] sm:$0xf]
    %v545 = vld [vmem:[%s1 + $0x810] sm:$0xf]
    %v546 = vld [vmem:[%s1 + $0x814] sm:$0xf]
    %v547 = vld [vmem:[%s1 + $0x818] sm:$0xf]
    %v548 = vld [vmem:[%s1 + $0x81c] sm:$0xf]
    %v549 = vld [vmem:[%s1 + $0x820] sm:$0xf]
    %v550 = vld [vmem:[%s1 + $0x824] sm:$0xf]
    %v551 = vld [vmem:[%s1 + $0x828] sm:$0xf]
    %v552 = vld [vmem:[%s1 + $0x82c] sm:$0xf]
    %v553 = vld [vmem:[%s1 + $0x830] sm:$0xf]
    %v554 = vld [vmem:[%s1 + $0x834] sm:$0xf]
    %v555 = vld [vmem:[%s1 + $0x838] sm:$0xf]
    %v556 = vld [vmem:[%s1 + $0x83c] sm:$0xf]
    %v557 = vld [vmem:[%s1 + $0x840] sm:$0xf]
    %v558 = vld [vmem:[%s1 + $0x844] sm:$0xf]
    %v559 = vld [vmem:[%s1 + $0x848] sm:$0xf]
    %v560 = vld [vmem:[%s1 + $0x84c] sm:$0xf]
    %v561 = vld [vmem:[%s1 + $0x850] sm:$0xf]
    %v562 = vld [vmem:[%s1 + $0x854] sm:$0xf]
    %v563 = vld [vmem:[%s1 + $0x858] sm:$0xf]
    %v564 = vld [vmem:[%s1 + $0x85c] sm:$0xf]
    %v565 = vld [vmem:[%s1 + $0x860] sm:$0xf]
    %v566 = vld [vmem:[%s1 + $0x864] sm:$0xf]
    %v567 = vld [vmem:[%s1 + $0x868] sm:$0xf]
    %v568 = vld [vmem:[%s1 + $0x86c] sm:$0xf]
    %v569 = vld [vmem:[%s1 + $0x870] sm:$0xf]
    %v570 = vld [vmem:[%s1 + $0x874] sm:$0xf]
    %v571 = vld [vmem:[%s1 + $0x878] sm:$0xf]
    %v572 = vld [vmem:[%s1 + $0x87c] sm:$0xf]
    %v573 = vld [vmem:[%s1 + $0x880] sm:$0xf]
    %v574 = vld [vmem:[%s1 + $0x884] sm:$0xf]
    %v575 = vld [vmem:[%s1 + $0x888] sm:$0xf]
    %v576 = vld [vmem:[%s1 + $0x88c] sm:$0xf]
    %v577 = vld [vmem:[%s1 + $0x890] sm:$0xf]
    %v578 = vld [vmem:[%s1 + $0x894] sm:$0xf]
    %v579 = vld [vmem:[%s1 + $0x898] sm:$0xf]
    %v580 = vld [vmem:[%s1 + $0x89c] sm:$0xf]
    %v581 = vld [vmem:[%s1 + $0x8a0] sm:$0xf]
    %v582 = vld [vmem:[%s1 + $0x8a4] sm:$0xf]
    %v583 = vld [vmem:[%s1 + $0x8a8] sm:$0xf]
    %v584 = vld [vmem:[%s1 + $0x8ac] sm:$0xf]
    %v585 = vld [vmem:[%s1 + $0x8b0] sm:$0xf]
    %v586 = vld [vmem:[%s1 + $0x8b4] sm:$0xf]
    %v587 = vld [vmem:[%s1 + $0x8b8] sm:$0xf]
    %v588 = vld [vmem:[%s1 + $0x8bc] sm:$0xf]
    %v589 = vld [vmem:[%s1 + $0x8c0] sm:$0xf]
    %v590 = vld [vmem:[%s1 + $0x8c4] sm:$0xf]
    %v591 = vld [vmem:[%s1 + $0x8c8] sm:$0xf]
    %v592 = vld [vmem:[%s1 + $0x8cc] sm:$0xf]
    %v593 = vld [vmem:[%s1 + $0x8d0] sm:$0xf]
    %v594 = vld [vmem:[%s1 + $0x8d4] sm:$0xf]
    %v595 = vld [vmem:[%s1 + $0x8d8] sm:$0xf]
    %v596 = vld [vmem:[%s1 + $0x8dc] sm:$0xf]
    %v597 = vld [vmem:[%s1 + $0x8e0] sm:$0xf]
    %v598 = vld [vmem:[%s1 + $0x8e4] sm:$0xf]
    %v599 = vld [vmem:[%s1 + $0x8e8] sm:$0xf]
    %v600 = vld [vmem:[%s1 + $0x8ec] sm:$0xf]
    %v601 = vld [vmem:[%s1 + $0x8f0] sm:$0xf]
    %v602 = vld [vmem:[%s1 + $0x8f4] sm:$0xf]
    %v603 = vld [vmem:[%s1 + $0x8f8] sm:$0xf]
    %v604 = vld [vmem:[%s1 + $0x8fc] sm:$0xf]
    %v605 = vld [vmem:[%s1 + $0x900] sm:$0xf]
    %v606 = vld [vmem:[%s1 + $0x904] sm:$0xf]
    %v607 = vld [vmem:[%s1 + $0x908] sm:$0xf]
    %v608 = vld [vmem:[%s1 + $0x90c] sm:$0xf]
    %v609 = vld [vmem:[%s1 + $0x910] sm:$0xf]
    %v610 = vld [vmem:[%s1 + $0x914] sm:$0xf]
    %v611 = vld [vmem:[%s1 + $0x918] sm:$0xf]
    %v612 = vld [vmem:[%s1 + $0x91c] sm:$0xf]
    %v613 = vld [vmem:[%s1 + $0x920] sm:$0xf]
    %v614 = vld [vmem:[%s1 + $0x924] sm:$0xf]
    %v615 = vld [vmem:[%s1 + $0x928] sm:$0xf]
    %v616 = vld [vmem:[%s1 + $0x92c] sm:$0xf]
    %v617 = vld [vmem:[%s1 + $0x930] sm:$0xf]
    %v618 = vld [vmem:[%s1 + $0x934] sm:$0xf]
    %v619 = vld [vmem:[%s1 + $0x938] sm:$0xf]
    %v620 = vld [vmem:[%s1 + $0x93c] sm:$0xf]
    %v621 = vld [vmem:[%s1 + $0x940] sm:$0xf]
    %v622 = vld [vmem:[%s1 + $0x944] sm:$0xf]
    %v623 = vld [vmem:[%s1 + $0x948] sm:$0xf]
    %v624 = vld [vmem:[%s1 + $0x94c] sm:$0xf]
    %v625 = vld [vmem:[%s1 + $0x950] sm:$0xf]
    %v626 = vld [vmem:[%s1 + $0x954] sm:$0xf]
    %v627 = vld [vmem:[%s1 + $0x958] sm:$0xf]
    %v628 = vld [vmem:[%s1 + $0x95c] sm:$0xf]
    %v629 = vld [vmem:[%s1 + $0x960] sm:$0xf]
    %v630 = vld [vmem:[%s1 + $0x964] sm:$0xf]
    %v631 = vld [vmem:[%s1 + $0x968] sm:$0xf]
    %v632 = vld [vmem:[%s1 + $0x96c] sm:$0xf]
    %v633 = vld [vmem:[%s1 + $0x970] sm:$0xf]
    %v634 = vld [vmem:[%s1 + $0x974] sm:$0xf]
    %v635 = vld [vmem:[%s1 + $0x978] sm:$0xf]
    %v636 = vld [vmem:[%s1 + $0x97c] sm:$0xf]
    %v637 = vld [vmem:[%s1 + $0x980] sm:$0xf]
    %v638 = vld [vmem:[%s1 + $0x984] sm:$0xf]
    %v639 = vld [vmem:[%s1 + $0x988] sm:$0xf]
    %v640 = vld [vmem:[%s1 + $0x98c] sm:$0xf]
    %v641 = vld [vmem:[%s1 + $0x990] sm:$0xf]
    %v642 = vld [vmem:[%s1 + $0x994] sm:$0xf]
    %v643 = vld [vmem:[%s1 + $0x998] sm:$0xf]
    %v644 = vld [vmem:[%s1 + $0x99c] sm:$0xf]
    %v645 = vld [vmem:[%s1 + $0x9a0] sm:$0xf]
    %v646 = vld [vmem:[%s1 + $0x9a4] sm:$0xf]
    %v647 = vld [vmem:[%s1 + $0x9a8] sm:$0xf]
    %v648 = vld [vmem:[%s1 + $0x9ac] sm:$0xf]
    %v649 = vld [vmem:[%s1 + $0x9b0] sm:$0xf]
    %v650 = vld [vmem:[%s1 + $0x9b4] sm:$0xf]
    %v651 = vld [vmem:[%s1 + $0x9b8] sm:$0xf]
    %v652 = vld [vmem:[%s1 + $0x9bc] sm:$0xf]
    %v653 = vld [vmem:[%s1 + $0x9c0] sm:$0xf]
    %v654 = vld [vmem:[%s1 + $0x9c4] sm:$0xf]
    %v655 = vld [vmem:[%s1 + $0x9c8] sm:$0xf]
    %v656 = vld [vmem:[%s1 + $0x9cc] sm:$0xf]
    %v657 = vld [vmem:[%s1 + $0x9d0] sm:$0xf]
    %v658 = vld [vmem:[%s1 + $0x9d4] sm:$0xf]
    %v659 = vld [vmem:[%s1 + $0x9d8] sm:$0xf]
    %v660 = vld [vmem:[%s1 + $0x9dc] sm:$0xf]
    %v661 = vld [vmem:[%s1 + $0x9e0] sm:$0xf]
    %v662 = vld [vmem:[%s1 + $0x9e4] sm:$0xf]
    %v663 = vld [vmem:[%s1 + $0x9e8] sm:$0xf]
    %v664 = vld [vmem:[%s1 + $0x9ec] sm:$0xf]
    %v665 = vld [vmem:[%s1 + $0x9f0] sm:$0xf]
    %v666 = vld [vmem:[%s1 + $0x9f4] sm:$0xf]
    %v667 = vld [vmem:[%s1 + $0x9f8] sm:$0xf]
    %v668 = vld [vmem:[%s1 + $0x9fc] sm:$0xf]
    %v669 = vld [vmem:[%s1 + $0xa00] sm:$0xf]
    %v670 = vld [vmem:[%s1 + $0xa04] sm:$0xf]
    %v671 = vld [vmem:[%s1 + $0xa08] sm:$0xf]
    %v672 = vld [vmem:[%s1 + $0xa0c] sm:$0xf]
    %v673 = vld [vmem:[%s1 + $0xa10] sm:$0xf]
    %v674 = vld [vmem:[%s1 + $0xa14] sm:$0xf]
    %v675 = vld [vmem:[%s1 + $0xa18] sm:$0xf]
    %v676 = vld [vmem:[%s1 + $0xa1c] sm:$0xf]
    %v677 = vld [vmem:[%s1 + $0xa20] sm:$0xf]
    %v678 = vld [vmem:[%s1 + $0xa24] sm:$0xf]
    %v679 = vld [vmem:[%s1 + $0xa28] sm:$0xf]
    %v680 = vld [vmem:[%s1 + $0xa2c] sm:$0xf]
    %v681 = vld [vmem:[%s1 + $0xa30] sm:$0xf]
    %v682 = vld [vmem:[%s1 + $0xa34] sm:$0xf]
    %v683 = vld [vmem:[%s1 + $0xa38] sm:$0xf]
    %v684 = vld [vmem:[%s1 + $0xa3c] sm:$0xf]
    %v685 = vld [vmem:[%s1 + $0xa40] sm:$0xf]
    %v686 = vld [vmem:[%s1 + $0xa44] sm:$0xf]
    %v687 = vld [vmem:[%s1 + $0xa48] sm:$0xf]
    %v688 = vld [vmem:[%s1 + $0xa4c] sm:$0xf]
    %v689 = vld [vmem:[%s1 + $0xa50] sm:$0xf]
    %v690 = vld [vmem:[%s1 + $0xa54] sm:$0xf]
    %v691 = vld [vmem:[%s1 + $0xa58] sm:$0xf]
    %v692 = vld [vmem:[%s1 + $0xa5c] sm:$0xf]
    %v693 = vld [vmem:[%s1 + $0xa60] sm:$0xf]
    %v694 = vld [vmem:[%s1 + $0xa64] sm:$0xf]
    %v695 = vld [vmem:[%s1 + $0xa68] sm:$0xf]
    %v696 = vld [vmem:[%s1 + $0xa6c] sm:$0xf]
    %v697 = vld [vmem:[%s1 + $0xa70] sm:$0xf]
    %v698 = vld [vmem:[%s1 + $0xa74] sm:$0xf]
    %v699 = vld [vmem:[%s1 + $0xa78] sm:$0xf]
    %v700 = vld [vmem:[%s1 + $0xa7c] sm:$0xf]
    %v701 = vld [vmem:[%s1 + $0xa80] sm:$0xf]
    %v702 = vld [vmem:[%s1 + $0xa84] sm:$0xf]
    %v703 = vld [vmem:[%s1 + $0xa88] sm:$0xf]
    %v704 = vld [vmem:[%s1 + $0xa8c] sm:$0xf]
    %v705 = vld [vmem:[%s1 + $0xa90] sm:$0xf]
    %v706 = vld [vmem:[%s1 + $0xa94] sm:$0xf]
    %v707 = vld [vmem:[%s1 + $0xa98] sm:$0xf]
    %v708 = vld [vmem:[%s1 + $0xa9c] sm:$0xf]
    %v709 = vld [vmem:[%s1 + $0xaa0] sm:$0xf]
    %v710 = vld [vmem:[%s1 + $0xaa4] sm:$0xf]
    %v711 = vld [vmem:[%s1 + $0xaa8] sm:$0xf]
    %v712 = vld [vmem:[%s1 + $0xaac] sm:$0xf]
    %v713 = vld [vmem:[%s1 + $0xab0] sm:$0xf]
    %v714 = vld [vmem:[%s1 + $0xab4] sm:$0xf]
    %v715 = vld [vmem:[%s1 + $0xab8] sm:$0xf]
    %v716 = vld [vmem:[%s1 + $0xabc] sm:$0xf]
    %v717 = vld [vmem:[%s1 + $0xac0] sm:$0xf]
    %v718 = vld [vmem:[%s1 + $0xac4] sm:$0xf]
    %v719 = vld [vmem:[%s1 + $0xac8] sm:$0xf]
    %v720 = vld [vmem:[%s1 + $0xacc] sm:$0xf]
    %v721 = vld [vmem:[%s1 + $0xad0] sm:$0xf]
    %v722 = vld [vmem:[%s1 + $0xad4] sm:$0xf]
    %v723 = vld [vmem:[%s1 + $0xad8] sm:$0xf]
    %v724 = vld [vmem:[%s1 + $0xadc] sm:$0xf]
    %v725 = vld [vmem:[%s1 + $0xae0] sm:$0xf]
    %v726 = vld [vmem:[%s1 + $0xae4] sm:$0xf]
    %v727 = vld [vmem:[%s1 + $0xae8] sm:$0xf]
    %v728 = vld [vmem:[%s1 + $0xaec] sm:$0xf]
    %v729 = vld [vmem:[%s1 + $0xaf0] sm:$0xf]
    %v730 = vld [vmem:[%s1 + $0xaf4] sm:$0xf]
    %v731 = vld [vmem:[%s1 + $0xaf8] sm:$0xf]
    %v732 = vld [vmem:[%s1 + $0xafc] sm:$0xf]
    %v733 = vld [vmem:[%s1 + $0xb00] sm:$0xf]
    %v734 = vld [vmem:[%s1 + $0xb04] sm:$0xf]
    %v735 = vld [vmem:[%s1 + $0xb08] sm:$0xf]
    %v736 = vld [vmem:[%s1 + $0xb0c] sm:$0xf]
    %v737 = vld [vmem:[%s1 + $0xb10] sm:$0xf]
    %v738 = vld [vmem:[%s1 + $0xb14] sm:$0xf]
    %v739 = vld [vmem:[%s1 + $0xb18] sm:$0xf]
    %v740 = vld [vmem:[%s1 + $0xb1c] sm:$0xf]
    %v741 = vld [vmem:[%s1 + $0xb20] sm:$0xf]
    %v742 = vld [vmem:[%s1 + $0xb24] sm:$0xf]
    %v743 = vld [vmem:[%s1 + $0xb28] sm:$0xf]
    %v744 = vld [vmem:[%s1 + $0xb2c] sm:$0xf]
    %v745 = vld [vmem:[%s1 + $0xb30] sm:$0xf]
    %v746 = vld [vmem:[%s1 + $0xb34] sm:$0xf]
    %v747 = vld [vmem:[%s1 + $0xb38] sm:$0xf]
    %v748 = vld [vmem:[%s1 + $0xb3c] sm:$0xf]
    %v749 = vld [vmem:[%s1 + $0xb40] sm:$0xf]
    %v750 = vld [vmem:[%s1 + $0xb44] sm:$0xf]
    %v751 = vld [vmem:[%s1 + $0xb48] sm:$0xf]
    %v752 = vld [vmem:[%s1 + $0xb4c] sm:$0xf]
    %v753 = vld [vmem:[%s1 + $0xb50] sm:$0xf]
    %v754 = vld [vmem:[%s1 + $0xb54] sm:$0xf]
    %v755 = vld [vmem:[%s1 + $0xb58] sm:$0xf]
    %v756 = vld [vmem:[%s1 + $0xb5c] sm:$0xf]
    %v757 = vld [vmem:[%s1 + $0xb60] sm:$0xf]
    %v758 = vld [vmem:[%s1 + $0xb64] sm:$0xf]
    %v759 = vld [vmem:[%s1 + $0xb68] sm:$0xf]
    %v760 = vld [vmem:[%s1 + $0xb6c] sm:$0xf]
    %v761 = vld [vmem:[%s1 + $0xb70] sm:$0xf]
    %v762 = vld [vmem:[%s1 + $0xb74] sm:$0xf]
    %v763 = vld [vmem:[%s1 + $0xb78] sm:$0xf]
    %v764 = vld [vmem:[%s1 + $0xb7c] sm:$0xf]
    %v765 = vld [vmem:[%s1 + $0xb80] sm:$0xf]
    %v766 = vld [vmem:[%s1 + $0xb84] sm:$0xf]
    %v767 = vld [vmem:[%s1 + $0xb88] sm:$0xf]
    %v768 = vld [vmem:[%s1 + $0xb8c] sm:$0xf]
    %v769 = vld [vmem:[%s1 + $0xb90] sm:$0xf]
    %v770 = vld [vmem:[%s1 + $0xb94] sm:$0xf]
    %v771 = vld [vmem:[%s1 + $0xb98] sm:$0xf]
    %v772 = vld [vmem:[%s1 + $0xb9c] sm:$0xf]
    %v773 = vld [vmem:[%s1 + $0xba0] sm:$0xf]
    %v774 = vld [vmem:[%s1 + $0xba4] sm:$0xf]
    %v775 = vld [vmem:[%s1 + $0xba8] sm:$0xf]
    %v776 = vld [vmem:[%s1 + $0xbac] sm:$0xf]
    %v777 = vld [vmem:[%s1 + $0xbb0] sm:$0xf]
    %v778 = vld [vmem:[%s1 + $0xbb4] sm:$0xf]
    %v779 = vld [vmem:[%s1 + $0xbb8] sm:$0xf]
    %v780 = vld [vmem:[%s1 + $0xbbc] sm:$0xf]
    %v781 = vld [vmem:[%s1 + $0xbc0] sm:$0xf]
    %v782 = vld [vmem:[%s1 + $0xbc4] sm:$0xf]
    %v783 = vld [vmem:[%s1 + $0xbc8] sm:$0xf]
    %v784 = vld [vmem:[%s1 + $0xbcc] sm:$0xf]
    %v785 = vld [vmem:[%s1 + $0xbd0] sm:$0xf]
    %v786 = vld [vmem:[%s1 + $0xbd4] sm:$0xf]
    %v787 = vld [vmem:[%s1 + $0xbd8] sm:$0xf]
    %v788 = vld [vmem:[%s1 + $0xbdc] sm:$0xf]
    %v789 = vld [vmem:[%s1 + $0xbe0] sm:$0xf]
    %v790 = vld [vmem:[%s1 + $0xbe4] sm:$0xf]
    %v791 = vld [vmem:[%s1 + $0xbe8] sm:$0xf]
    %v792 = vld [vmem:[%s1 + $0xbec] sm:$0xf]
    %v793 = vld [vmem:[%s1 + $0xbf0] sm:$0xf]
    %v794 = vld [vmem:[%s1 + $0xbf4] sm:$0xf]
    %v795 = vld [vmem:[%s1 + $0xbf8] sm:$0xf]
    %v796 = vld [vmem:[%s1 + $0xbfc] sm:$0xf]
    %v797 = vld [vmem:[%s1 + $0xc00] sm:$0xf]
    %v798 = vld [vmem:[%s1 + $0xc04] sm:$0xf]
    %v799 = vld [vmem:[%s1 + $0xc08] sm:$0xf]
    %v800 = vld [vmem:[%s1 + $0xc0c] sm:$0xf]
    %v801 = vld [vmem:[%s1 + $0xc10] sm:$0xf]
    %v802 = vld [vmem:[%s1 + $0xc14] sm:$0xf]
    %v803 = vld [vmem:[%s1 + $0xc18] sm:$0xf]
    %v804 = vld [vmem:[%s1 + $0xc1c] sm:$0xf]
    %v805 = vld [vmem:[%s1 + $0xc20] sm:$0xf]
    %v806 = vld [vmem:[%s1 + $0xc24] sm:$0xf]
    %v807 = vld [vmem:[%s1 + $0xc28] sm:$0xf]
    %v808 = vld [vmem:[%s1 + $0xc2c] sm:$0xf]
    %v809 = vld [vmem:[%s1 + $0xc30] sm:$0xf]
    %v810 = vld [vmem:[%s1 + $0xc34] sm:$0xf]
    %v811 = vld [vmem:[%s1 + $0xc38] sm:$0xf]
    %v812 = vld [vmem:[%s1 + $0xc3c] sm:$0xf]
    %v813 = vld [vmem:[%s1 + $0xc40] sm:$0xf]
    %v814 = vld [vmem:[%s1 + $0xc44] sm:$0xf]
    %v815 = vld [vmem:[%s1 + $0xc48] sm:$0xf]
    %v816 = vld [vmem:[%s1 + $0xc4c] sm:$0xf]
    %v817 = vld [vmem:[%s1 + $0xc50] sm:$0xf]
    %v818 = vld [vmem:[%s1 + $0xc54] sm:$0xf]
    %v819 = vld [vmem:[%s1 + $0xc58] sm:$0xf]
    %v820 = vld [vmem:[%s1 + $0xc5c] sm:$0xf]
    %v821 = vld [vmem:[%s1 + $0xc60] sm:$0xf]
    %v822 = vld [vmem:[%s1 + $0xc64] sm:$0xf]
    %v823 = vld [vmem:[%s1 + $0xc68] sm:$0xf]
    %v824 = vld [vmem:[%s1 + $0xc6c] sm:$0xf]
    %v825 = vld [vmem:[%s1 + $0xc70] sm:$0xf]
    %v826 = vld [vmem:[%s1 + $0xc74] sm:$0xf]
    %v827 = vld [vmem:[%s1 + $0xc78] sm:$0xf]
    %v828 = vld [vmem:[%s1 + $0xc7c] sm:$0xf]
    %v829 = vld [vmem:[%s1 + $0xc80] sm:$0xf]
    %v830 = vld [vmem:[%s1 + $0xc84] sm:$0xf]
    %v831 = vld [vmem:[%s1 + $0xc88] sm:$0xf]
    %v832 = vld [vmem:[%s1 + $0xc8c] sm:$0xf]
    %v833 = vld [vmem:[%s1 + $0xc90] sm:$0xf]
    %v834 = vld [vmem:[%s1 + $0xc94] sm:$0xf]
    %v835 = vld [vmem:[%s1 + $0xc98] sm:$0xf]
    %v836 = vld [vmem:[%s1 + $0xc9c] sm:$0xf]
    %v837 = vld [vmem:[%s1 + $0xca0] sm:$0xf]
    %v838 = vld [vmem:[%s1 + $0xca4] sm:$0xf]
    %v839 = vld [vmem:[%s1 + $0xca8] sm:$0xf]
    %v840 = vld [vmem:[%s1 + $0xcac] sm:$0xf]
    %v841 = vld [vmem:[%s1 + $0xcb0] sm:$0xf]
    %v842 = vld [vmem:[%s1 + $0xcb4] sm:$0xf]
    %v843 = vld [vmem:[%s1 + $0xcb8] sm:$0xf]
    %v844 = vld [vmem:[%s1 + $0xcbc] sm:$0xf]
    %v845 = vld [vmem:[%s1 + $0xcc0] sm:$0xf]
    %v846 = vld [vmem:[%s1 + $0xcc4] sm:$0xf]
    %v847 = vld [vmem:[%s1 + $0xcc8] sm:$0xf]
    %v848 = vld [vmem:[%s1 + $0xccc] sm:$0xf]
    %v849 = vld [vmem:[%s1 + $0xcd0] sm:$0xf]
    %v850 = vld [vmem:[%s1 + $0xcd4] sm:$0xf]
    %v851 = vld [vmem:[%s1 + $0xcd8] sm:$0xf]
    %v852 = vld [vmem:[%s1 + $0xcdc] sm:$0xf]
    %v853 = vld [vmem:[%s1 + $0xce0] sm:$0xf]
    %v854 = vld [vmem:[%s1 + $0xce4] sm:$0xf]
    %v855 = vld [vmem:[%s1 + $0xce8] sm:$0xf]
    %v856 = vld [vmem:[%s1 + $0xcec] sm:$0xf]
    %v857 = vld [vmem:[%s1 + $0xcf0] sm:$0xf]
    %v858 = vld [vmem:[%s1 + $0xcf4] sm:$0xf]
    %v859 = vld [vmem:[%s1 + $0xcf8] sm:$0xf]
    %v860 = vld [vmem:[%s1 + $0xcfc] sm:$0xf]
    %v861 = vld [vmem:[%s1 + $0xd00] sm:$0xf]
    %v862 = vld [vmem:[%s1 + $0xd04] sm:$0xf]
    %v863 = vld [vmem:[%s1 + $0xd08] sm:$0xf]
    %v864 = vld [vmem:[%s1 + $0xd0c] sm:$0xf]
    %v865 = vld [vmem:[%s1 + $0xd10] sm:$0xf]
    %v866 = vld [vmem:[%s1 + $0xd14] sm:$0xf]
    %v867 = vld [vmem:[%s1 + $0xd18] sm:$0xf]
    %v868 = vld [vmem:[%s1 + $0xd1c] sm:$0xf]
    %v869 = vld [vmem:[%s1 + $0xd20] sm:$0xf]
    %v870 = vld [vmem:[%s1 + $0xd24] sm:$0xf]
    %v871 = vld [vmem:[%s1 + $0xd28] sm:$0xf]
    %v872 = vld [vmem:[%s1 + $0xd2c] sm:$0xf]
    %v873 = vld [vmem:[%s1 + $0xd30] sm:$0xf]
    %v874 = vld [vmem:[%s1 + $0xd34] sm:$0xf]
    %v875 = vld [vmem:[%s1 + $0xd38] sm:$0xf]
    %v876 = vld [vmem:[%s1 + $0xd3c] sm:$0xf]
    %v877 = vld [vmem:[%s1 + $0xd40] sm:$0xf]
    %v878 = vld [vmem:[%s1 + $0xd44] sm:$0xf]
    %v879 = vld [vmem:[%s1 + $0xd48] sm:$0xf]
    %v880 = vld [vmem:[%s1 + $0xd4c] sm:$0xf]
    %v881 = vld [vmem:[%s1 + $0xd50] sm:$0xf]
    %v882 = vld [vmem:[%s1 + $0xd54] sm:$0xf]
    %v883 = vld [vmem:[%s1 + $0xd58] sm:$0xf]
    %v884 = vld [vmem:[%s1 + $0xd5c] sm:$0xf]
    %v885 = vld [vmem:[%s1 + $0xd60] sm:$0xf]
    %v886 = vld [vmem:[%s1 + $0xd64] sm:$0xf]
    %v887 = vld [vmem:[%s1 + $0xd68] sm:$0xf]
    %v888 = vld [vmem:[%s1 + $0xd6c] sm:$0xf]
    %v889 = vld [vmem:[%s1 + $0xd70] sm:$0xf]
    %v890 = vld [vmem:[%s1 + $0xd74] sm:$0xf]
    %v891 = vld [vmem:[%s1 + $0xd78] sm:$0xf]
    %v892 = vld [vmem:[%s1 + $0xd7c] sm:$0xf]
    %v893 = vld [vmem:[%s1 + $0xd80] sm:$0xf]
    %v894 = vld [vmem:[%s1 + $0xd84] sm:$0xf]
    %v895 = vld [vmem:[%s1 + $0xd88] sm:$0xf]
    %v896 = vld [vmem:[%s1 + $0xd8c] sm:$0xf]
    %v897 = vld [vmem:[%s1 + $0xd90] sm:$0xf]
    %v898 = vld [vmem:[%s1 + $0xd94] sm:$0xf]
    %v899 = vld [vmem:[%s1 + $0xd98] sm:$0xf]
    %v900 = vld [vmem:[%s1 + $0xd9c] sm:$0xf]
    %v901 = vld [vmem:[%s1 + $0xda0] sm:$0xf]
    %v902 = vld [vmem:[%s1 + $0xda4] sm:$0xf]
    %v903 = vld [vmem:[%s1 + $0xda8] sm:$0xf]
    %v904 = vld [vmem:[%s1 + $0xdac] sm:$0xf]
    %v905 = vld [vmem:[%s1 + $0xdb0] sm:$0xf]
    %v906 = vld [vmem:[%s1 + $0xdb4] sm:$0xf]
    %v907 = vld [vmem:[%s1 + $0xdb8] sm:$0xf]
    %v908 = vld [vmem:[%s1 + $0xdbc] sm:$0xf]
    %v909 = vld [vmem:[%s1 + $0xdc0] sm:$0xf]
    %v910 = vld [vmem:[%s1 + $0xdc4] sm:$0xf]
    %v911 = vld [vmem:[%s1 + $0xdc8] sm:$0xf]
    %v912 = vld [vmem:[%s1 + $0xdcc] sm:$0xf]
    %v913 = vld [vmem:[%s1 + $0xdd0] sm:$0xf]
    %v914 = vld [vmem:[%s1 + $0xdd4] sm:$0xf]
    %v915 = vld [vmem:[%s1 + $0xdd8] sm:$0xf]
    %v916 = vld [vmem:[%s1 + $0xddc] sm:$0xf]
    %v917 = vld [vmem:[%s1 + $0xde0] sm:$0xf]
    %v918 = vld [vmem:[%s1 + $0xde4] sm:$0xf]
    %v919 = vld [vmem:[%s1 + $0xde8] sm:$0xf]
    %v920 = vld [vmem:[%s1 + $0xdec] sm:$0xf]
    %v921 = vld [vmem:[%s1 + $0xdf0] sm:$0xf]
    %v922 = vld [vmem:[%s1 + $0xdf4] sm:$0xf]
    %v923 = vld [vmem:[%s1 + $0xdf8] sm:$0xf]
    %v924 = vld [vmem:[%s1 + $0xdfc] sm:$0xf]
    %v925 = vld [vmem:[%s1 + $0xe00] sm:$0xf]
    %v926 = vld [vmem:[%s1 + $0xe04] sm:$0xf]
    %v927 = vld [vmem:[%s1 + $0xe08] sm:$0xf]
    %v928 = vld [vmem:[%s1 + $0xe0c] sm:$0xf]
    %v929 = vld [vmem:[%s1 + $0xe10] sm:$0xf]
    %v930 = vld [vmem:[%s1 + $0xe14] sm:$0xf]
    %v931 = vld [vmem:[%s1 + $0xe18] sm:$0xf]
    %v932 = vld [vmem:[%s1 + $0xe1c] sm:$0xf]
    %v933 = vld [vmem:[%s1 + $0xe20] sm:$0xf]
    %v934 = vld [vmem:[%s1 + $0xe24] sm:$0xf]
    %v935 = vld [vmem:[%s1 + $0xe28] sm:$0xf]
    %v936 = vld [vmem:[%s1 + $0xe2c] sm:$0xf]
    %v937 = vld [vmem:[%s1 + $0xe30] sm:$0xf]
    %v938 = vld [vmem:[%s1 + $0xe34] sm:$0xf]
    %v939 = vld [vmem:[%s1 + $0xe38] sm:$0xf]
    %v940 = vld [vmem:[%s1 + $0xe3c] sm:$0xf]
    %v941 = vld [vmem:[%s1 + $0xe40] sm:$0xf]
    %v942 = vld [vmem:[%s1 + $0xe44] sm:$0xf]
    %v943 = vld [vmem:[%s1 + $0xe48] sm:$0xf]
    %v944 = vld [vmem:[%s1 + $0xe4c] sm:$0xf]
    %v945 = vld [vmem:[%s1 + $0xe50] sm:$0xf]
    %v946 = vld [vmem:[%s1 + $0xe54] sm:$0xf]
    %v947 = vld [vmem:[%s1 + $0xe58] sm:$0xf]
    %v948 = vld [vmem:[%s1 + $0xe5c] sm:$0xf]
    %v949 = vld [vmem:[%s1 + $0xe60] sm:$0xf]
    %v950 = vld [vmem:[%s1 + $0xe64] sm:$0xf]
    %v951 = vld [vmem:[%s1 + $0xe68] sm:$0xf]
    %v952 = vld [vmem:[%s1 + $0xe6c] sm:$0xf]
    %v953 = vld [vmem:[%s1 + $0xe70] sm:$0xf]
    %v954 = vld [vmem:[%s1 + $0xe74] sm:$0xf]
    %v955 = vld [vmem:[%s1 + $0xe78] sm:$0xf]
    %v956 = vld [vmem:[%s1 + $0xe7c] sm:$0xf]
    %v957 = vld [vmem:[%s1 + $0xe80] sm:$0xf]
    %v958 = vld [vmem:[%s1 + $0xe84] sm:$0xf]
    %v959 = vld [vmem:[%s1 + $0xe88] sm:$0xf]
    %v960 = vld [vmem:[%s1 + $0xe8c] sm:$0xf]
    %v961 = vld [vmem:[%s1 + $0xe90] sm:$0xf]
    %v962 = vld [vmem:[%s1 + $0xe94] sm:$0xf]
    %v963 = vld [vmem:[%s1 + $0xe98] sm:$0xf]
    %v964 = vld [vmem:[%s1 + $0xe9c] sm:$0xf]
    %v965 = vld [vmem:[%s1 + $0xea0] sm:$0xf]
    %v966 = vld [vmem:[%s1 + $0xea4] sm:$0xf]
    %v967 = vld [vmem:[%s1 + $0xea8] sm:$0xf]
    %v968 = vld [vmem:[%s1 + $0xeac] sm:$0xf]
    %v969 = vld [vmem:[%s1 + $0xeb0] sm:$0xf]
    %v970 = vld [vmem:[%s1 + $0xeb4] sm:$0xf]
    %v971 = vld [vmem:[%s1 + $0xeb8] sm:$0xf]
    %v972 = vld [vmem:[%s1 + $0xebc] sm:$0xf]
    %v973 = vld [vmem:[%s1 + $0xec0] sm:$0xf]
    %v974 = vld [vmem:[%s1 + $0xec4] sm:$0xf]
    %v975 = vld [vmem:[%s1 + $0xec8] sm:$0xf]
    %v976 = vld [vmem:[%s1 + $0xecc] sm:$0xf]
    %v977 = vld [vmem:[%s1 + $0xed0] sm:$0xf]
    %v978 = vld [vmem:[%s1 + $0xed4] sm:$0xf]
    %v979 = vld [vmem:[%s1 + $0xed8] sm:$0xf]
    %v980 = vld [vmem:[%s1 + $0xedc] sm:$0xf]
    %v981 = vld [vmem:[%s1 + $0xee0] sm:$0xf]
    %v982 = vld [vmem:[%s1 + $0xee4] sm:$0xf]
    %v983 = vld [vmem:[%s1 + $0xee8] sm:$0xf]
    %v984 = vld [vmem:[%s1 + $0xeec] sm:$0xf]
    %v985 = vld [vmem:[%s1 + $0xef0] sm:$0xf]
    %v986 = vld [vmem:[%s1 + $0xef4] sm:$0xf]
    %v987 = vld [vmem:[%s1 + $0xef8] sm:$0xf]
    %v988 = vld [vmem:[%s1 + $0xefc] sm:$0xf]
    %v989 = vld [vmem:[%s1 + $0xf00] sm:$0xf]
    %v990 = vld [vmem:[%s1 + $0xf04] sm:$0xf]
    %v991 = vld [vmem:[%s1 + $0xf08] sm:$0xf]
    %v992 = vld [vmem:[%s1 + $0xf0c] sm:$0xf]
    %v993 = vld [vmem:[%s1 + $0xf10] sm:$0xf]
    %v994 = vld [vmem:[%s1 + $0xf14] sm:$0xf]
    %v995 = vld [vmem:[%s1 + $0xf18] sm:$0xf]
    %v996 = vld [vmem:[%s1 + $0xf1c] sm:$0xf]
    %v997 = vld [vmem:[%s1 + $0xf20] sm:$0xf]
    %v998 = vld [vmem:[%s1 + $0xf24] sm:$0xf]
    %v999 = vld [vmem:[%s1 + $0xf28] sm:$0xf]
    %v1000 = vld [vmem:[%s1 + $0xf2c] sm:$0xf]
    %v1001 = vld [vmem:[%s1 + $0xf30] sm:$0xf]
    %v1002 = vld [vmem:[%s1 + $0xf34] sm:$0xf]
    %v1003 = vld [vmem:[%s1 + $0xf38] sm:$0xf]
    %v1004 = vld [vmem:[%s1 + $0xf3c] sm:$0xf]
    %v1005 = vld [vmem:[%s1 + $0xf40] sm:$0xf]
    %v1006 = vld [vmem:[%s1 + $0xf44] sm:$0xf]
    %v1007 = vld [vmem:[%s1 + $0xf48] sm:$0xf]
    %v1008 = vld [vmem:[%s1 + $0xf4c] sm:$0xf]
    %v1009 = vld [vmem:[%s1 + $0xf50] sm:$0xf]
    %v1010 = vld [vmem:[%s1 + $0xf54] sm:$0xf]
    %v1011 = vld [vmem:[%s1 + $0xf58] sm:$0xf]
    %v1012 = vld [vmem:[%s1 + $0xf5c] sm:$0xf]
    %v1013 = vld [vmem:[%s1 + $0xf60] sm:$0xf]
    %v1014 = vld [vmem:[%s1 + $0xf64] sm:$0xf]
    %v1015 = vld [vmem:[%s1 + $0xf68] sm:$0xf]
    %v1016 = vld [vmem:[%s1 + $0xf6c] sm:$0xf]
    %v1017 = vld [vmem:[%s1 + $0xf70] sm:$0xf]
    %v1018 = vld [vmem:[%s1 + $0xf74] sm:$0xf]
    %v1019 = vld [vmem:[%s1 + $0xf78] sm:$0xf]
    %v1020 = vld [vmem:[%s1 + $0xf7c] sm:$0xf]
    %v1021 = vld [vmem:[%s1 + $0xf80] sm:$0xf]
    %v1022 = vld [vmem:[%s1 + $0xf84] sm:$0xf]
    %v1023 = vld [vmem:[%s1 + $0xf88] sm:$0xf]
    %v1024 = vld [vmem:[%s1 + $0xf8c] sm:$0xf]
    %v1025 = vld [vmem:[%s1 + $0xf90] sm:$0xf]
    %v1026 = vld [vmem:[%s1 + $0xf94] sm:$0xf]
    %v1027 = vld [vmem:[%s1 + $0xf98] sm:$0xf]
    %v1028 = vld [vmem:[%s1 + $0xf9c] sm:$0xf]
    %v1029 = vld [vmem:[%s1 + $0xfa0] sm:$0xf]
    %v1030 = vld [vmem:[%s1 + $0xfa4] sm:$0xf]
    %v1031 = vld [vmem:[%s1 + $0xfa8] sm:$0xf]
    %v1032 = vld [vmem:[%s1 + $0xfac] sm:$0xf]
    %v1033 = vld [vmem:[%s1 + $0xfb0] sm:$0xf]
    %v1034 = vld [vmem:[%s1 + $0xfb4] sm:$0xf]
    %v1035 = vld [vmem:[%s1 + $0xfb8] sm:$0xf]
    %v1036 = vld [vmem:[%s1 + $0xfbc] sm:$0xf]
    %v1037 = vld [vmem:[%s1 + $0xfc0] sm:$0xf]
    %v1038 = vld [vmem:[%s1 + $0xfc4] sm:$0xf]
    %v1039 = vld [vmem:[%s1 + $0xfc8] sm:$0xf]
    %v1040 = vld [vmem:[%s1 + $0xfcc] sm:$0xf]
    %v1041 = vld [vmem:[%s1 + $0xfd0] sm:$0xf]
    %v1042 = vld [vmem:[%s1 + $0xfd4] sm:$0xf]
    %v1043 = vld [vmem:[%s1 + $0xfd8] sm:$0xf]
    %v1044 = vld [vmem:[%s1 + $0xfdc] sm:$0xf]
    %v1045 = vld [vmem:[%s1 + $0xfe0] sm:$0xf]
    %v1046 = vld [vmem:[%s1 + $0xfe4] sm:$0xf]
    %v1047 = vld [vmem:[%s1 + $0xfe8] sm:$0xf]
    %v1048 = vld [vmem:[%s1 + $0xfec] sm:$0xf]
    %v1049 = vld [vmem:[%s1 + $0xff0] sm:$0xf]
    %v1050 = vld [vmem:[%s1 + $0xff4] sm:$0xf]
    %v1051 = vld [vmem:[%s1 + $0xff8] sm:$0xf]
    %v1052 = vld [vmem:[%s1 + $0xffc] sm:$0xf]
    %v1053 = vld [vmem:[%s2] sm:$0x1]
    %v1055 = vperm.slane %v1053, 0
    %1058 = vst [vmem:[#allocation1] ss:$9 sm:$0xff] %v21
    %v1059 = vld [vmem:[#allocation1] sm:$0xff]
    %v1060 = vld [vmem:[#allocation1 + $0x9] sm:$0xff]
    %v1061 = vld [vmem:[#allocation1 + $0x12] sm:$0xff]
    %v1062 = vld [vmem:[#allocation1 + $0x1b] sm:$0xff]
    %v1063 = vld [vmem:[#allocation1 + $0x24] sm:$0xff]
    %v1064 = vld [vmem:[#allocation1 + $0x2d] sm:$0xff]
    %v1065 = vld [vmem:[#allocation1 + $0x36] sm:$0xff]
    %v1066 = vld [vmem:[#allocation1 + $0x3f] sm:$0xff]
    %1068 = vst [vmem:[#allocation1] ss:$9 sm:$0xff] %v22
    %v1069 = vld [vmem:[#allocation1] sm:$0xff]
    %v1070 = vld [vmem:[#allocation1 + $0x9] sm:$0xff]
    %v1071 = vld [vmem:[#allocation1 + $0x12] sm:$0xff]
    %v1072 = vld [vmem:[#allocation1 + $0x1b] sm:$0xff]
    %v1073 = vld [vmem:[#allocation1 + $0x24] sm:$0xff]
    %v1074 = vld [vmem:[#allocation1 + $0x2d] sm:$0xff]
    %v1075 = vld [vmem:[#allocation1 + $0x36] sm:$0xff]
    %v1076 = vld [vmem:[#allocation1 + $0x3f] sm:$0xff]
    %1078 = vst [vmem:[#allocation1] ss:$9 sm:$0xff] %v23
    %v1079 = vld [vmem:[#allocation1] sm:$0xff]
    %v1080 = vld [vmem:[#allocation1 + $0x9] sm:$0xff]
    %v1081 = vld [vmem:[#allocation1 + $0x12] sm:$0xff]
    %v1082 = vld [vmem:[#allocation1 + $0x1b] sm:$0xff]
    %v1083 = vld [vmem:[#allocation1 + $0x24] sm:$0xff]
    %v1084 = vld [vmem:[#allocation1 + $0x2d] sm:$0xff]
    %v1085 = vld [vmem:[#allocation1 + $0x36] sm:$0xff]
    %v1086 = vld [vmem:[#allocation1 + $0x3f] sm:$0xff]
    %1088 = vst [vmem:[#allocation1] ss:$9 sm:$0xff] %v24
    %v1089 = vld [vmem:[#allocation1] sm:$0xff]
    %v1090 = vld [vmem:[#allocation1 + $0x9] sm:$0xff]
    %v1091 = vld [vmem:[#allocation1 + $0x12] sm:$0xff]
    %v1092 = vld [vmem:[#allocation1 + $0x1b] sm:$0xff]
    %v1093 = vld [vmem:[#allocation1 + $0x24] sm:$0xff]
    %v1094 = vld [vmem:[#allocation1 + $0x2d] sm:$0xff]
    %v1095 = vld [vmem:[#allocation1 + $0x36] sm:$0xff]
    %v1096 = vld [vmem:[#allocation1 + $0x3f] sm:$0xff]
    %1098 = vst [vmem:[#allocation1] ss:$9 sm:$0xff] %v25
    %v1099 = vld [vmem:[#allocation1] sm:$0xff]
    %v1100 = vld [vmem:[#allocation1 + $0x9] sm:$0xff]
    %v1101 = vld [vmem:[#allocation1 + $0x12] sm:$0xff]
    %v1102 = vld [vmem:[#allocation1 + $0x1b] sm:$0xff]
    %v1103 = vld [vmem:[#allocation1 + $0x24] sm:$0xff]
    %v1104 = vld [vmem:[#allocation1 + $0x2d] sm:$0xff]
    %v1105 = vld [vmem:[#allocation1 + $0x36] sm:$0xff]
    %v1106 = vld [vmem:[#allocation1 + $0x3f] sm:$0xff]
    %1108 = vst [vmem:[#allocation1] ss:$9 sm:$0xff] %v26
    %v1109 = vld [vmem:[#allocation1] sm:$0xff]
    %v1110 = vld [vmem:[#allocation1 + $0x9] sm:$0xff]
    %v1111 = vld [vmem:[#allocation1 + $0x12] sm:$0xff]
    %v1112 = vld [vmem:[#allocation1 + $0x1b] sm:$0xff]
    %v1113 = vld [vmem:[#allocation1 + $0x24] sm:$0xff]
    %v1114 = vld [vmem:[#allocation1 + $0x2d] sm:$0xff]
    %v1115 = vld [vmem:[#allocation1 + $0x36] sm:$0xff]
    %v1116 = vld [vmem:[#allocation1 + $0x3f] sm:$0xff]
    %1118 = vst [vmem:[#allocation1] ss:$9 sm:$0xff] %v27
    %v1119 = vld [vmem:[#allocation1] sm:$0xff]
    %v1120 = vld [vmem:[#allocation1 + $0x9] sm:$0xff]
    %v1121 = vld [vmem:[#allocation1 + $0x12] sm:$0xff]
    %v1122 = vld [vmem:[#allocation1 + $0x1b] sm:$0xff]
    %v1123 = vld [vmem:[#allocation1 + $0x24] sm:$0xff]
    %v1124 = vld [vmem:[#allocation1 + $0x2d] sm:$0xff]
    %v1125 = vld [vmem:[#allocation1 + $0x36] sm:$0xff]
    %v1126 = vld [vmem:[#allocation1 + $0x3f] sm:$0xff]
    %1128 = vst [vmem:[#allocation1] ss:$9 sm:$0xff] %v28
    %v1129 = vld [vmem:[#allocation1] sm:$0xff]
    %v1130 = vld [vmem:[#allocation1 + $0x9] sm:$0xff]
    %v1131 = vld [vmem:[#allocation1 + $0x12] sm:$0xff]
    %v1132 = vld [vmem:[#allocation1 + $0x1b] sm:$0xff]
    %v1133 = vld [vmem:[#allocation1 + $0x24] sm:$0xff]
    %v1134 = vld [vmem:[#allocation1 + $0x2d] sm:$0xff]
    %v1135 = vld [vmem:[#allocation1 + $0x36] sm:$0xff]
    %v1136 = vld [vmem:[#allocation1 + $0x3f] sm:$0xff]
    %v2225 = vunpack.c.l.b16 %v29
    %v2226 = vunpack.c.l.b16 %v30
    %v2227 = vunpack.c.l.b16 %v31
    %v2228 = vunpack.c.l.b16 %v32
    %v2229 = vunpack.c.l.b16 %v33
    %v2230 = vunpack.c.l.b16 %v34
    %v2231 = vunpack.c.l.b16 %v35
    %v2232 = vunpack.c.l.b16 %v36
    %v2233 = vunpack.c.l.b16 %v37
    %v2234 = vunpack.c.l.b16 %v38
    %v2235 = vunpack.c.l.b16 %v39
    %v2236 = vunpack.c.l.b16 %v40
    %v2237 = vunpack.c.l.b16 %v41
    %v2238 = vunpack.c.l.b16 %v42
    %v2239 = vunpack.c.l.b16 %v43
    %v2240 = vunpack.c.l.b16 %v44
    %v2241 = vunpack.c.l.b16 %v45
    %v2242 = vunpack.c.l.b16 %v46
    %v2243 = vunpack.c.l.b16 %v47
    %v2244 = vunpack.c.l.b16 %v48
    %v2245 = vunpack.c.l.b16 %v49
    %v2246 = vunpack.c.l.b16 %v50
    %v2247 = vunpack.c.l.b16 %v51
    %v2248 = vunpack.c.l.b16 %v52
    %v2249 = vunpack.c.l.b16 %v53
    %v2250 = vunpack.c.l.b16 %v54
    %v2251 = vunpack.c.l.b16 %v55
    %v2252 = vunpack.c.l.b16 %v56
    %v2253 = vunpack.c.l.b16 %v57
    %v2254 = vunpack.c.l.b16 %v58
    %v2255 = vunpack.c.l.b16 %v59
    %v2256 = vunpack.c.l.b16 %v60
    %v2257 = vunpack.c.l.b16 %v61
    %v2258 = vunpack.c.l.b16 %v62
    %v2259 = vunpack.c.l.b16 %v63
    %v2260 = vunpack.c.l.b16 %v64
    %v2261 = vunpack.c.l.b16 %v65
    %v2262 = vunpack.c.l.b16 %v66
    %v2263 = vunpack.c.l.b16 %v67
    %v2264 = vunpack.c.l.b16 %v68
    %v2265 = vunpack.c.l.b16 %v69
    %v2266 = vunpack.c.l.b16 %v70
    %v2267 = vunpack.c.l.b16 %v71
    %v2268 = vunpack.c.l.b16 %v72
    %v2269 = vunpack.c.l.b16 %v73
    %v2270 = vunpack.c.l.b16 %v74
    %v2271 = vunpack.c.l.b16 %v75
    %v2272 = vunpack.c.l.b16 %v76
    %v2273 = vunpack.c.l.b16 %v77
    %v2274 = vunpack.c.l.b16 %v78
    %v2275 = vunpack.c.l.b16 %v79
    %v2276 = vunpack.c.l.b16 %v80
    %v2277 = vunpack.c.l.b16 %v81
    %v2278 = vunpack.c.l.b16 %v82
    %v2279 = vunpack.c.l.b16 %v83
    %v2280 = vunpack.c.l.b16 %v84
    %v2281 = vunpack.c.l.b16 %v85
    %v2282 = vunpack.c.l.b16 %v86
    %v2283 = vunpack.c.l.b16 %v87
    %v2284 = vunpack.c.l.b16 %v88
    %v2285 = vunpack.c.l.b16 %v89
    %v2286 = vunpack.c.l.b16 %v90
    %v2287 = vunpack.c.l.b16 %v91
    %v2288 = vunpack.c.l.b16 %v92
    %v2289 = vunpack.c.l.b16 %v93
    %v2290 = vunpack.c.l.b16 %v94
    %v2291 = vunpack.c.l.b16 %v95
    %v2292 = vunpack.c.l.b16 %v96
    %v2293 = vunpack.c.l.b16 %v97
    %v2294 = vunpack.c.l.b16 %v98
    %v2295 = vunpack.c.l.b16 %v99
    %v2296 = vunpack.c.l.b16 %v100
    %v2297 = vunpack.c.l.b16 %v101
    %v2298 = vunpack.c.l.b16 %v102
    %v2299 = vunpack.c.l.b16 %v103
    %v2300 = vunpack.c.l.b16 %v104
    %v2301 = vunpack.c.l.b16 %v105
    %v2302 = vunpack.c.l.b16 %v106
    %v2303 = vunpack.c.l.b16 %v107
    %v2304 = vunpack.c.l.b16 %v108
    %v2305 = vunpack.c.l.b16 %v109
    %v2306 = vunpack.c.l.b16 %v110
    %v2307 = vunpack.c.l.b16 %v111
    %v2308 = vunpack.c.l.b16 %v112
    %v2309 = vunpack.c.l.b16 %v113
    %v2310 = vunpack.c.l.b16 %v114
    %v2311 = vunpack.c.l.b16 %v115
    %v2312 = vunpack.c.l.b16 %v116
    %v2313 = vunpack.c.l.b16 %v117
    %v2314 = vunpack.c.l.b16 %v118
    %v2315 = vunpack.c.l.b16 %v119
    %v2316 = vunpack.c.l.b16 %v120
    %v2317 = vunpack.c.l.b16 %v121
    %v2318 = vunpack.c.l.b16 %v122
    %v2319 = vunpack.c.l.b16 %v123
    %v2320 = vunpack.c.l.b16 %v124
    %v2321 = vunpack.c.l.b16 %v125
    %v2322 = vunpack.c.l.b16 %v126
    %v2323 = vunpack.c.l.b16 %v127
    %v2324 = vunpack.c.l.b16 %v128
    %v2325 = vunpack.c.l.b16 %v129
    %v2326 = vunpack.c.l.b16 %v130
    %v2327 = vunpack.c.l.b16 %v131
    %v2328 = vunpack.c.l.b16 %v132
    %v2329 = vunpack.c.l.b16 %v133
    %v2330 = vunpack.c.l.b16 %v134
    %v2331 = vunpack.c.l.b16 %v135
    %v2332 = vunpack.c.l.b16 %v136
    %v2333 = vunpack.c.l.b16 %v137
    %v2334 = vunpack.c.l.b16 %v138
    %v2335 = vunpack.c.l.b16 %v139
    %v2336 = vunpack.c.l.b16 %v140
    %v2337 = vunpack.c.l.b16 %v141
    %v2338 = vunpack.c.l.b16 %v142
    %v2339 = vunpack.c.l.b16 %v143
    %v2340 = vunpack.c.l.b16 %v144
    %v2341 = vunpack.c.l.b16 %v145
    %v2342 = vunpack.c.l.b16 %v146
    %v2343 = vunpack.c.l.b16 %v147
    %v2344 = vunpack.c.l.b16 %v148
    %v2345 = vunpack.c.l.b16 %v149
    %v2346 = vunpack.c.l.b16 %v150
    %v2347 = vunpack.c.l.b16 %v151
    %v2348 = vunpack.c.l.b16 %v152
    %v2349 = vunpack.c.l.b16 %v153
    %v2350 = vunpack.c.l.b16 %v154
    %v2351 = vunpack.c.l.b16 %v155
    %v2352 = vunpack.c.l.b16 %v156
    %v2353 = vunpack.c.l.b16 %v157
    %v2354 = vunpack.c.l.b16 %v158
    %v2355 = vunpack.c.l.b16 %v159
    %v2356 = vunpack.c.l.b16 %v160
    %v2357 = vunpack.c.l.b16 %v161
    %v2358 = vunpack.c.l.b16 %v162
    %v2359 = vunpack.c.l.b16 %v163
    %v2360 = vunpack.c.l.b16 %v164
    %v2361 = vunpack.c.l.b16 %v165
    %v2362 = vunpack.c.l.b16 %v166
    %v2363 = vunpack.c.l.b16 %v167
    %v2364 = vunpack.c.l.b16 %v168
    %v2365 = vunpack.c.l.b16 %v169
    %v2366 = vunpack.c.l.b16 %v170
    %v2367 = vunpack.c.l.b16 %v171
    %v2368 = vunpack.c.l.b16 %v172
    %v2369 = vunpack.c.l.b16 %v173
    %v2370 = vunpack.c.l.b16 %v174
    %v2371 = vunpack.c.l.b16 %v175
    %v2372 = vunpack.c.l.b16 %v176
    %v2373 = vunpack.c.l.b16 %v177
    %v2374 = vunpack.c.l.b16 %v178
    %v2375 = vunpack.c.l.b16 %v179
    %v2376 = vunpack.c.l.b16 %v180
    %v2377 = vunpack.c.l.b16 %v181
    %v2378 = vunpack.c.l.b16 %v182
    %v2379 = vunpack.c.l.b16 %v183
    %v2380 = vunpack.c.l.b16 %v184
    %v2381 = vunpack.c.l.b16 %v185
    %v2382 = vunpack.c.l.b16 %v186
    %v2383 = vunpack.c.l.b16 %v187
    %v2384 = vunpack.c.l.b16 %v188
    %v2385 = vunpack.c.l.b16 %v189
    %v2386 = vunpack.c.l.b16 %v190
    %v2387 = vunpack.c.l.b16 %v191
    %v2388 = vunpack.c.l.b16 %v192
    %v2389 = vunpack.c.l.b16 %v193
    %v2390 = vunpack.c.l.b16 %v194
    %v2391 = vunpack.c.l.b16 %v195
    %v2392 = vunpack.c.l.b16 %v196
    %v2393 = vunpack.c.l.b16 %v197
    %v2394 = vunpack.c.l.b16 %v198
    %v2395 = vunpack.c.l.b16 %v199
    %v2396 = vunpack.c.l.b16 %v200
    %v2397 = vunpack.c.l.b16 %v201
    %v2398 = vunpack.c.l.b16 %v202
    %v2399 = vunpack.c.l.b16 %v203
    %v2400 = vunpack.c.l.b16 %v204
    %v2401 = vunpack.c.l.b16 %v205
    %v2402 = vunpack.c.l.b16 %v206
    %v2403 = vunpack.c.l.b16 %v207
    %v2404 = vunpack.c.l.b16 %v208
    %v2405 = vunpack.c.l.b16 %v209
    %v2406 = vunpack.c.l.b16 %v210
    %v2407 = vunpack.c.l.b16 %v211
    %v2408 = vunpack.c.l.b16 %v212
    %v2409 = vunpack.c.l.b16 %v213
    %v2410 = vunpack.c.l.b16 %v214
    %v2411 = vunpack.c.l.b16 %v215
    %v2412 = vunpack.c.l.b16 %v216
    %v2413 = vunpack.c.l.b16 %v217
    %v2414 = vunpack.c.l.b16 %v218
    %v2415 = vunpack.c.l.b16 %v219
    %v2416 = vunpack.c.l.b16 %v220
    %v2417 = vunpack.c.l.b16 %v221
    %v2418 = vunpack.c.l.b16 %v222
    %v2419 = vunpack.c.l.b16 %v223
    %v2420 = vunpack.c.l.b16 %v224
    %v2421 = vunpack.c.l.b16 %v225
    %v2422 = vunpack.c.l.b16 %v226
    %v2423 = vunpack.c.l.b16 %v227
    %v2424 = vunpack.c.l.b16 %v228
    %v2425 = vunpack.c.l.b16 %v229
    %v2426 = vunpack.c.l.b16 %v230
    %v2427 = vunpack.c.l.b16 %v231
    %v2428 = vunpack.c.l.b16 %v232
    %v2429 = vunpack.c.l.b16 %v233
    %v2430 = vunpack.c.l.b16 %v234
    %v2431 = vunpack.c.l.b16 %v235
    %v2432 = vunpack.c.l.b16 %v236
    %v2433 = vunpack.c.l.b16 %v237
    %v2434 = vunpack.c.l.b16 %v238
    %v2435 = vunpack.c.l.b16 %v239
    %v2436 = vunpack.c.l.b16 %v240
    %v2437 = vunpack.c.l.b16 %v241
    %v2438 = vunpack.c.l.b16 %v242
    %v2439 = vunpack.c.l.b16 %v243
    %v2440 = vunpack.c.l.b16 %v244
    %v2441 = vunpack.c.l.b16 %v245
    %v2442 = vunpack.c.l.b16 %v246
    %v2443 = vunpack.c.l.b16 %v247
    %v2444 = vunpack.c.l.b16 %v248
    %v2445 = vunpack.c.l.b16 %v249
    %v2446 = vunpack.c.l.b16 %v250
    %v2447 = vunpack.c.l.b16 %v251
    %v2448 = vunpack.c.l.b16 %v252
    %v2449 = vunpack.c.l.b16 %v253
    %v2450 = vunpack.c.l.b16 %v254
    %v2451 = vunpack.c.l.b16 %v255
    %v2452 = vunpack.c.l.b16 %v256
    %v2453 = vunpack.c.l.b16 %v257
    %v2454 = vunpack.c.l.b16 %v258
    %v2455 = vunpack.c.l.b16 %v259
    %v2456 = vunpack.c.l.b16 %v260
    %v2457 = vunpack.c.l.b16 %v261
    %v2458 = vunpack.c.l.b16 %v262
    %v2459 = vunpack.c.l.b16 %v263
    %v2460 = vunpack.c.l.b16 %v264
    %v2461 = vunpack.c.l.b16 %v265
    %v2462 = vunpack.c.l.b16 %v266
    %v2463 = vunpack.c.l.b16 %v267
    %v2464 = vunpack.c.l.b16 %v268
    %v2465 = vunpack.c.l.b16 %v269
    %v2466 = vunpack.c.l.b16 %v270
    %v2467 = vunpack.c.l.b16 %v271
    %v2468 = vunpack.c.l.b16 %v272
    %v2469 = vunpack.c.l.b16 %v273
    %v2470 = vunpack.c.l.b16 %v274
    %v2471 = vunpack.c.l.b16 %v275
    %v2472 = vunpack.c.l.b16 %v276
    %v2473 = vunpack.c.l.b16 %v277
    %v2474 = vunpack.c.l.b16 %v278
    %v2475 = vunpack.c.l.b16 %v279
    %v2476 = vunpack.c.l.b16 %v280
    %v2477 = vunpack.c.l.b16 %v281
    %v2478 = vunpack.c.l.b16 %v282
    %v2479 = vunpack.c.l.b16 %v283
    %v2480 = vunpack.c.l.b16 %v284
    %v2481 = vunpack.c.l.b16 %v285
    %v2482 = vunpack.c.l.b16 %v286
    %v2483 = vunpack.c.l.b16 %v287
    %v2484 = vunpack.c.l.b16 %v288
    %v2485 = vunpack.c.l.b16 %v289
    %v2486 = vunpack.c.l.b16 %v290
    %v2487 = vunpack.c.l.b16 %v291
    %v2488 = vunpack.c.l.b16 %v292
    %v2489 = vunpack.c.l.b16 %v293
    %v2490 = vunpack.c.l.b16 %v294
    %v2491 = vunpack.c.l.b16 %v295
    %v2492 = vunpack.c.l.b16 %v296
    %v2493 = vunpack.c.l.b16 %v297
    %v2494 = vunpack.c.l.b16 %v298
    %v2495 = vunpack.c.l.b16 %v299
    %v2496 = vunpack.c.l.b16 %v300
    %v2497 = vunpack.c.l.b16 %v301
    %v2498 = vunpack.c.l.b16 %v302
    %v2499 = vunpack.c.l.b16 %v303
    %v2500 = vunpack.c.l.b16 %v304
    %v2501 = vunpack.c.l.b16 %v305
    %v2502 = vunpack.c.l.b16 %v306
    %v2503 = vunpack.c.l.b16 %v307
    %v2504 = vunpack.c.l.b16 %v308
    %v2505 = vunpack.c.l.b16 %v309
    %v2506 = vunpack.c.l.b16 %v310
    %v2507 = vunpack.c.l.b16 %v311
    %v2508 = vunpack.c.l.b16 %v312
    %v2509 = vunpack.c.l.b16 %v313
    %v2510 = vunpack.c.l.b16 %v314
    %v2511 = vunpack.c.l.b16 %v315
    %v2512 = vunpack.c.l.b16 %v316
    %v2513 = vunpack.c.l.b16 %v317
    %v2514 = vunpack.c.l.b16 %v318
    %v2515 = vunpack.c.l.b16 %v319
    %v2516 = vunpack.c.l.b16 %v320
    %v2517 = vunpack.c.l.b16 %v321
    %v2518 = vunpack.c.l.b16 %v322
    %v2519 = vunpack.c.l.b16 %v323
    %v2520 = vunpack.c.l.b16 %v324
    %v2521 = vunpack.c.l.b16 %v325
    %v2522 = vunpack.c.l.b16 %v326
    %v2523 = vunpack.c.l.b16 %v327
    %v2524 = vunpack.c.l.b16 %v328
    %v2525 = vunpack.c.l.b16 %v329
    %v2526 = vunpack.c.l.b16 %v330
    %v2527 = vunpack.c.l.b16 %v331
    %v2528 = vunpack.c.l.b16 %v332
    %v2529 = vunpack.c.l.b16 %v333
    %v2530 = vunpack.c.l.b16 %v334
    %v2531 = vunpack.c.l.b16 %v335
    %v2532 = vunpack.c.l.b16 %v336
    %v2533 = vunpack.c.l.b16 %v337
    %v2534 = vunpack.c.l.b16 %v338
    %v2535 = vunpack.c.l.b16 %v339
    %v2536 = vunpack.c.l.b16 %v340
    %v2537 = vunpack.c.l.b16 %v341
    %v2538 = vunpack.c.l.b16 %v342
    %v2539 = vunpack.c.l.b16 %v343
    %v2540 = vunpack.c.l.b16 %v344
    %v2541 = vunpack.c.l.b16 %v345
    %v2542 = vunpack.c.l.b16 %v346
    %v2543 = vunpack.c.l.b16 %v347
    %v2544 = vunpack.c.l.b16 %v348
    %v2545 = vunpack.c.l.b16 %v349
    %v2546 = vunpack.c.l.b16 %v350
    %v2547 = vunpack.c.l.b16 %v351
    %v2548 = vunpack.c.l.b16 %v352
    %v2549 = vunpack.c.l.b16 %v353
    %v2550 = vunpack.c.l.b16 %v354
    %v2551 = vunpack.c.l.b16 %v355
    %v2552 = vunpack.c.l.b16 %v356
    %v2553 = vunpack.c.l.b16 %v357
    %v2554 = vunpack.c.l.b16 %v358
    %v2555 = vunpack.c.l.b16 %v359
    %v2556 = vunpack.c.l.b16 %v360
    %v2557 = vunpack.c.l.b16 %v361
    %v2558 = vunpack.c.l.b16 %v362
    %v2559 = vunpack.c.l.b16 %v363
    %v2560 = vunpack.c.l.b16 %v364
    %v2561 = vunpack.c.l.b16 %v365
    %v2562 = vunpack.c.l.b16 %v366
    %v2563 = vunpack.c.l.b16 %v367
    %v2564 = vunpack.c.l.b16 %v368
    %v2565 = vunpack.c.l.b16 %v369
    %v2566 = vunpack.c.l.b16 %v370
    %v2567 = vunpack.c.l.b16 %v371
    %v2568 = vunpack.c.l.b16 %v372
    %v2569 = vunpack.c.l.b16 %v373
    %v2570 = vunpack.c.l.b16 %v374
    %v2571 = vunpack.c.l.b16 %v375
    %v2572 = vunpack.c.l.b16 %v376
    %v2573 = vunpack.c.l.b16 %v377
    %v2574 = vunpack.c.l.b16 %v378
    %v2575 = vunpack.c.l.b16 %v379
    %v2576 = vunpack.c.l.b16 %v380
    %v2577 = vunpack.c.l.b16 %v381
    %v2578 = vunpack.c.l.b16 %v382
    %v2579 = vunpack.c.l.b16 %v383
    %v2580 = vunpack.c.l.b16 %v384
    %v2581 = vunpack.c.l.b16 %v385
    %v2582 = vunpack.c.l.b16 %v386
    %v2583 = vunpack.c.l.b16 %v387
    %v2584 = vunpack.c.l.b16 %v388
    %v2585 = vunpack.c.l.b16 %v389
    %v2586 = vunpack.c.l.b16 %v390
    %v2587 = vunpack.c.l.b16 %v391
    %v2588 = vunpack.c.l.b16 %v392
    %v2589 = vunpack.c.l.b16 %v393
    %v2590 = vunpack.c.l.b16 %v394
    %v2591 = vunpack.c.l.b16 %v395
    %v2592 = vunpack.c.l.b16 %v396
    %v2593 = vunpack.c.l.b16 %v397
    %v2594 = vunpack.c.l.b16 %v398
    %v2595 = vunpack.c.l.b16 %v399
    %v2596 = vunpack.c.l.b16 %v400
    %v2597 = vunpack.c.l.b16 %v401
    %v2598 = vunpack.c.l.b16 %v402
    %v2599 = vunpack.c.l.b16 %v403
    %v2600 = vunpack.c.l.b16 %v404
    %v2601 = vunpack.c.l.b16 %v405
    %v2602 = vunpack.c.l.b16 %v406
    %v2603 = vunpack.c.l.b16 %v407
    %v2604 = vunpack.c.l.b16 %v408
    %v2605 = vunpack.c.l.b16 %v409
    %v2606 = vunpack.c.l.b16 %v410
    %v2607 = vunpack.c.l.b16 %v411
    %v2608 = vunpack.c.l.b16 %v412
    %v2609 = vunpack.c.l.b16 %v413
    %v2610 = vunpack.c.l.b16 %v414
    %v2611 = vunpack.c.l.b16 %v415
    %v2612 = vunpack.c.l.b16 %v416
    %v2613 = vunpack.c.l.b16 %v417
    %v2614 = vunpack.c.l.b16 %v418
    %v2615 = vunpack.c.l.b16 %v419
    %v2616 = vunpack.c.l.b16 %v420
    %v2617 = vunpack.c.l.b16 %v421
    %v2618 = vunpack.c.l.b16 %v422
    %v2619 = vunpack.c.l.b16 %v423
    %v2620 = vunpack.c.l.b16 %v424
    %v2621 = vunpack.c.l.b16 %v425
    %v2622 = vunpack.c.l.b16 %v426
    %v2623 = vunpack.c.l.b16 %v427
    %v2624 = vunpack.c.l.b16 %v428
    %v2625 = vunpack.c.l.b16 %v429
    %v2626 = vunpack.c.l.b16 %v430
    %v2627 = vunpack.c.l.b16 %v431
    %v2628 = vunpack.c.l.b16 %v432
    %v2629 = vunpack.c.l.b16 %v433
    %v2630 = vunpack.c.l.b16 %v434
    %v2631 = vunpack.c.l.b16 %v435
    %v2632 = vunpack.c.l.b16 %v436
    %v2633 = vunpack.c.l.b16 %v437
    %v2634 = vunpack.c.l.b16 %v438
    %v2635 = vunpack.c.l.b16 %v439
    %v2636 = vunpack.c.l.b16 %v440
    %v2637 = vunpack.c.l.b16 %v441
    %v2638 = vunpack.c.l.b16 %v442
    %v2639 = vunpack.c.l.b16 %v443
    %v2640 = vunpack.c.l.b16 %v444
    %v2641 = vunpack.c.l.b16 %v445
    %v2642 = vunpack.c.l.b16 %v446
    %v2643 = vunpack.c.l.b16 %v447
    %v2644 = vunpack.c.l.b16 %v448
    %v2645 = vunpack.c.l.b16 %v449
    %v2646 = vunpack.c.l.b16 %v450
    %v2647 = vunpack.c.l.b16 %v451
    %v2648 = vunpack.c.l.b16 %v452
    %v2649 = vunpack.c.l.b16 %v453
    %v2650 = vunpack.c.l.b16 %v454
    %v2651 = vunpack.c.l.b16 %v455
    %v2652 = vunpack.c.l.b16 %v456
    %v2653 = vunpack.c.l.b16 %v457
    %v2654 = vunpack.c.l.b16 %v458
    %v2655 = vunpack.c.l.b16 %v459
    %v2656 = vunpack.c.l.b16 %v460
    %v2657 = vunpack.c.l.b16 %v461
    %v2658 = vunpack.c.l.b16 %v462
    %v2659 = vunpack.c.l.b16 %v463
    %v2660 = vunpack.c.l.b16 %v464
    %v2661 = vunpack.c.l.b16 %v465
    %v2662 = vunpack.c.l.b16 %v466
    %v2663 = vunpack.c.l.b16 %v467
    %v2664 = vunpack.c.l.b16 %v468
    %v2665 = vunpack.c.l.b16 %v469
    %v2666 = vunpack.c.l.b16 %v470
    %v2667 = vunpack.c.l.b16 %v471
    %v2668 = vunpack.c.l.b16 %v472
    %v2669 = vunpack.c.l.b16 %v473
    %v2670 = vunpack.c.l.b16 %v474
    %v2671 = vunpack.c.l.b16 %v475
    %v2672 = vunpack.c.l.b16 %v476
    %v2673 = vunpack.c.l.b16 %v477
    %v2674 = vunpack.c.l.b16 %v478
    %v2675 = vunpack.c.l.b16 %v479
    %v2676 = vunpack.c.l.b16 %v480
    %v2677 = vunpack.c.l.b16 %v481
    %v2678 = vunpack.c.l.b16 %v482
    %v2679 = vunpack.c.l.b16 %v483
    %v2680 = vunpack.c.l.b16 %v484
    %v2681 = vunpack.c.l.b16 %v485
    %v2682 = vunpack.c.l.b16 %v486
    %v2683 = vunpack.c.l.b16 %v487
    %v2684 = vunpack.c.l.b16 %v488
    %v2685 = vunpack.c.l.b16 %v489
    %v2686 = vunpack.c.l.b16 %v490
    %v2687 = vunpack.c.l.b16 %v491
    %v2688 = vunpack.c.l.b16 %v492
    %v2689 = vunpack.c.l.b16 %v493
    %v2690 = vunpack.c.l.b16 %v494
    %v2691 = vunpack.c.l.b16 %v495
    %v2692 = vunpack.c.l.b16 %v496
    %v2693 = vunpack.c.l.b16 %v497
    %v2694 = vunpack.c.l.b16 %v498
    %v2695 = vunpack.c.l.b16 %v499
    %v2696 = vunpack.c.l.b16 %v500
    %v2697 = vunpack.c.l.b16 %v501
    %v2698 = vunpack.c.l.b16 %v502
    %v2699 = vunpack.c.l.b16 %v503
    %v2700 = vunpack.c.l.b16 %v504
    %v2701 = vunpack.c.l.b16 %v505
    %v2702 = vunpack.c.l.b16 %v506
    %v2703 = vunpack.c.l.b16 %v507
    %v2704 = vunpack.c.l.b16 %v508
    %v2705 = vunpack.c.l.b16 %v509
    %v2706 = vunpack.c.l.b16 %v510
    %v2707 = vunpack.c.l.b16 %v511
    %v2708 = vunpack.c.l.b16 %v512
    %v2709 = vunpack.c.l.b16 %v513
    %v2710 = vunpack.c.l.b16 %v514
    %v2711 = vunpack.c.l.b16 %v515
    %v2712 = vunpack.c.l.b16 %v516
    %v2713 = vunpack.c.l.b16 %v517
    %v2714 = vunpack.c.l.b16 %v518
    %v2715 = vunpack.c.l.b16 %v519
    %v2716 = vunpack.c.l.b16 %v520
    %v2717 = vunpack.c.l.b16 %v521
    %v2718 = vunpack.c.l.b16 %v522
    %v2719 = vunpack.c.l.b16 %v523
    %v2720 = vunpack.c.l.b16 %v524
    %v2721 = vunpack.c.l.b16 %v525
    %v2722 = vunpack.c.l.b16 %v526
    %v2723 = vunpack.c.l.b16 %v527
    %v2724 = vunpack.c.l.b16 %v528
    %v2725 = vunpack.c.l.b16 %v529
    %v2726 = vunpack.c.l.b16 %v530
    %v2727 = vunpack.c.l.b16 %v531
    %v2728 = vunpack.c.l.b16 %v532
    %v2729 = vunpack.c.l.b16 %v533
    %v2730 = vunpack.c.l.b16 %v534
    %v2731 = vunpack.c.l.b16 %v535
    %v2732 = vunpack.c.l.b16 %v536
    %v2733 = vunpack.c.l.b16 %v537
    %v2734 = vunpack.c.l.b16 %v538
    %v2735 = vunpack.c.l.b16 %v539
    %v2736 = vunpack.c.l.b16 %v540
    %v2737 = vunpack.c.l.b16 %v541
    %v2738 = vunpack.c.l.b16 %v542
    %v2739 = vunpack.c.l.b16 %v543
    %v2740 = vunpack.c.l.b16 %v544
    %v2741 = vunpack.c.l.b16 %v545
    %v2742 = vunpack.c.l.b16 %v546
    %v2743 = vunpack.c.l.b16 %v547
    %v2744 = vunpack.c.l.b16 %v548
    %v2745 = vunpack.c.l.b16 %v549
    %v2746 = vunpack.c.l.b16 %v550
    %v2747 = vunpack.c.l.b16 %v551
    %v2748 = vunpack.c.l.b16 %v552
    %v2749 = vunpack.c.l.b16 %v553
    %v2750 = vunpack.c.l.b16 %v554
    %v2751 = vunpack.c.l.b16 %v555
    %v2752 = vunpack.c.l.b16 %v556
    %v2753 = vunpack.c.l.b16 %v557
    %v2754 = vunpack.c.l.b16 %v558
    %v2755 = vunpack.c.l.b16 %v559
    %v2756 = vunpack.c.l.b16 %v560
    %v2757 = vunpack.c.l.b16 %v561
    %v2758 = vunpack.c.l.b16 %v562
    %v2759 = vunpack.c.l.b16 %v563
    %v2760 = vunpack.c.l.b16 %v564
    %v2761 = vunpack.c.l.b16 %v565
    %v2762 = vunpack.c.l.b16 %v566
    %v2763 = vunpack.c.l.b16 %v567
    %v2764 = vunpack.c.l.b16 %v568
    %v2765 = vunpack.c.l.b16 %v569
    %v2766 = vunpack.c.l.b16 %v570
    %v2767 = vunpack.c.l.b16 %v571
    %v2768 = vunpack.c.l.b16 %v572
    %v2769 = vunpack.c.l.b16 %v573
    %v2770 = vunpack.c.l.b16 %v574
    %v2771 = vunpack.c.l.b16 %v575
    %v2772 = vunpack.c.l.b16 %v576
    %v2773 = vunpack.c.l.b16 %v577
    %v2774 = vunpack.c.l.b16 %v578
    %v2775 = vunpack.c.l.b16 %v579
    %v2776 = vunpack.c.l.b16 %v580
    %v2777 = vunpack.c.l.b16 %v581
    %v2778 = vunpack.c.l.b16 %v582
    %v2779 = vunpack.c.l.b16 %v583
    %v2780 = vunpack.c.l.b16 %v584
    %v2781 = vunpack.c.l.b16 %v585
    %v2782 = vunpack.c.l.b16 %v586
    %v2783 = vunpack.c.l.b16 %v587
    %v2784 = vunpack.c.l.b16 %v588
    %v2785 = vunpack.c.l.b16 %v589
    %v2786 = vunpack.c.l.b16 %v590
    %v2787 = vunpack.c.l.b16 %v591
    %v2788 = vunpack.c.l.b16 %v592
    %v2789 = vunpack.c.l.b16 %v593
    %v2790 = vunpack.c.l.b16 %v594
    %v2791 = vunpack.c.l.b16 %v595
    %v2792 = vunpack.c.l.b16 %v596
    %v2793 = vunpack.c.l.b16 %v597
    %v2794 = vunpack.c.l.b16 %v598
    %v2795 = vunpack.c.l.b16 %v599
    %v2796 = vunpack.c.l.b16 %v600
    %v2797 = vunpack.c.l.b16 %v601
    %v2798 = vunpack.c.l.b16 %v602
    %v2799 = vunpack.c.l.b16 %v603
    %v2800 = vunpack.c.l.b16 %v604
    %v2801 = vunpack.c.l.b16 %v605
    %v2802 = vunpack.c.l.b16 %v606
    %v2803 = vunpack.c.l.b16 %v607
    %v2804 = vunpack.c.l.b16 %v608
    %v2805 = vunpack.c.l.b16 %v609
    %v2806 = vunpack.c.l.b16 %v610
    %v2807 = vunpack.c.l.b16 %v611
    %v2808 = vunpack.c.l.b16 %v612
    %v2809 = vunpack.c.l.b16 %v613
    %v2810 = vunpack.c.l.b16 %v614
    %v2811 = vunpack.c.l.b16 %v615
    %v2812 = vunpack.c.l.b16 %v616
    %v2813 = vunpack.c.l.b16 %v617
    %v2814 = vunpack.c.l.b16 %v618
    %v2815 = vunpack.c.l.b16 %v619
    %v2816 = vunpack.c.l.b16 %v620
    %v2817 = vunpack.c.l.b16 %v621
    %v2818 = vunpack.c.l.b16 %v622
    %v2819 = vunpack.c.l.b16 %v623
    %v2820 = vunpack.c.l.b16 %v624
    %v2821 = vunpack.c.l.b16 %v625
    %v2822 = vunpack.c.l.b16 %v626
    %v2823 = vunpack.c.l.b16 %v627
    %v2824 = vunpack.c.l.b16 %v628
    %v2825 = vunpack.c.l.b16 %v629
    %v2826 = vunpack.c.l.b16 %v630
    %v2827 = vunpack.c.l.b16 %v631
    %v2828 = vunpack.c.l.b16 %v632
    %v2829 = vunpack.c.l.b16 %v633
    %v2830 = vunpack.c.l.b16 %v634
    %v2831 = vunpack.c.l.b16 %v635
    %v2832 = vunpack.c.l.b16 %v636
    %v2833 = vunpack.c.l.b16 %v637
    %v2834 = vunpack.c.l.b16 %v638
    %v2835 = vunpack.c.l.b16 %v639
    %v2836 = vunpack.c.l.b16 %v640
    %v2837 = vunpack.c.l.b16 %v641
    %v2838 = vunpack.c.l.b16 %v642
    %v2839 = vunpack.c.l.b16 %v643
    %v2840 = vunpack.c.l.b16 %v644
    %v2841 = vunpack.c.l.b16 %v645
    %v2842 = vunpack.c.l.b16 %v646
    %v2843 = vunpack.c.l.b16 %v647
    %v2844 = vunpack.c.l.b16 %v648
    %v2845 = vunpack.c.l.b16 %v649
    %v2846 = vunpack.c.l.b16 %v650
    %v2847 = vunpack.c.l.b16 %v651
    %v2848 = vunpack.c.l.b16 %v652
    %v2849 = vunpack.c.l.b16 %v653
    %v2850 = vunpack.c.l.b16 %v654
    %v2851 = vunpack.c.l.b16 %v655
    %v2852 = vunpack.c.l.b16 %v656
    %v2853 = vunpack.c.l.b16 %v657
    %v2854 = vunpack.c.l.b16 %v658
    %v2855 = vunpack.c.l.b16 %v659
    %v2856 = vunpack.c.l.b16 %v660
    %v2857 = vunpack.c.l.b16 %v661
    %v2858 = vunpack.c.l.b16 %v662
    %v2859 = vunpack.c.l.b16 %v663
    %v2860 = vunpack.c.l.b16 %v664
    %v2861 = vunpack.c.l.b16 %v665
    %v2862 = vunpack.c.l.b16 %v666
    %v2863 = vunpack.c.l.b16 %v667
    %v2864 = vunpack.c.l.b16 %v668
    %v2865 = vunpack.c.l.b16 %v669
    %v2866 = vunpack.c.l.b16 %v670
    %v2867 = vunpack.c.l.b16 %v671
    %v2868 = vunpack.c.l.b16 %v672
    %v2869 = vunpack.c.l.b16 %v673
    %v2870 = vunpack.c.l.b16 %v674
    %v2871 = vunpack.c.l.b16 %v675
    %v2872 = vunpack.c.l.b16 %v676
    %v2873 = vunpack.c.l.b16 %v677
    %v2874 = vunpack.c.l.b16 %v678
    %v2875 = vunpack.c.l.b16 %v679
    %v2876 = vunpack.c.l.b16 %v680
    %v2877 = vunpack.c.l.b16 %v681
    %v2878 = vunpack.c.l.b16 %v682
    %v2879 = vunpack.c.l.b16 %v683
    %v2880 = vunpack.c.l.b16 %v684
    %v2881 = vunpack.c.l.b16 %v685
    %v2882 = vunpack.c.l.b16 %v686
    %v2883 = vunpack.c.l.b16 %v687
    %v2884 = vunpack.c.l.b16 %v688
    %v2885 = vunpack.c.l.b16 %v689
    %v2886 = vunpack.c.l.b16 %v690
    %v2887 = vunpack.c.l.b16 %v691
    %v2888 = vunpack.c.l.b16 %v692
    %v2889 = vunpack.c.l.b16 %v693
    %v2890 = vunpack.c.l.b16 %v694
    %v2891 = vunpack.c.l.b16 %v695
    %v2892 = vunpack.c.l.b16 %v696
    %v2893 = vunpack.c.l.b16 %v697
    %v2894 = vunpack.c.l.b16 %v698
    %v2895 = vunpack.c.l.b16 %v699
    %v2896 = vunpack.c.l.b16 %v700
    %v2897 = vunpack.c.l.b16 %v701
    %v2898 = vunpack.c.l.b16 %v702
    %v2899 = vunpack.c.l.b16 %v703
    %v2900 = vunpack.c.l.b16 %v704
    %v2901 = vunpack.c.l.b16 %v705
    %v2902 = vunpack.c.l.b16 %v706
    %v2903 = vunpack.c.l.b16 %v707
    %v2904 = vunpack.c.l.b16 %v708
    %v2905 = vunpack.c.l.b16 %v709
    %v2906 = vunpack.c.l.b16 %v710
    %v2907 = vunpack.c.l.b16 %v711
    %v2908 = vunpack.c.l.b16 %v712
    %v2909 = vunpack.c.l.b16 %v713
    %v2910 = vunpack.c.l.b16 %v714
    %v2911 = vunpack.c.l.b16 %v715
    %v2912 = vunpack.c.l.b16 %v716
    %v2913 = vunpack.c.l.b16 %v717
    %v2914 = vunpack.c.l.b16 %v718
    %v2915 = vunpack.c.l.b16 %v719
    %v2916 = vunpack.c.l.b16 %v720
    %v2917 = vunpack.c.l.b16 %v721
    %v2918 = vunpack.c.l.b16 %v722
    %v2919 = vunpack.c.l.b16 %v723
    %v2920 = vunpack.c.l.b16 %v724
    %v2921 = vunpack.c.l.b16 %v725
    %v2922 = vunpack.c.l.b16 %v726
    %v2923 = vunpack.c.l.b16 %v727
    %v2924 = vunpack.c.l.b16 %v728
    %v2925 = vunpack.c.l.b16 %v729
    %v2926 = vunpack.c.l.b16 %v730
    %v2927 = vunpack.c.l.b16 %v731
    %v2928 = vunpack.c.l.b16 %v732
    %v2929 = vunpack.c.l.b16 %v733
    %v2930 = vunpack.c.l.b16 %v734
    %v2931 = vunpack.c.l.b16 %v735
    %v2932 = vunpack.c.l.b16 %v736
    %v2933 = vunpack.c.l.b16 %v737
    %v2934 = vunpack.c.l.b16 %v738
    %v2935 = vunpack.c.l.b16 %v739
    %v2936 = vunpack.c.l.b16 %v740
    %v2937 = vunpack.c.l.b16 %v741
    %v2938 = vunpack.c.l.b16 %v742
    %v2939 = vunpack.c.l.b16 %v743
    %v2940 = vunpack.c.l.b16 %v744
    %v2941 = vunpack.c.l.b16 %v745
    %v2942 = vunpack.c.l.b16 %v746
    %v2943 = vunpack.c.l.b16 %v747
    %v2944 = vunpack.c.l.b16 %v748
    %v2945 = vunpack.c.l.b16 %v749
    %v2946 = vunpack.c.l.b16 %v750
    %v2947 = vunpack.c.l.b16 %v751
    %v2948 = vunpack.c.l.b16 %v752
    %v2949 = vunpack.c.l.b16 %v753
    %v2950 = vunpack.c.l.b16 %v754
    %v2951 = vunpack.c.l.b16 %v755
    %v2952 = vunpack.c.l.b16 %v756
    %v2953 = vunpack.c.l.b16 %v757
    %v2954 = vunpack.c.l.b16 %v758
    %v2955 = vunpack.c.l.b16 %v759
    %v2956 = vunpack.c.l.b16 %v760
    %v2957 = vunpack.c.l.b16 %v761
    %v2958 = vunpack.c.l.b16 %v762
    %v2959 = vunpack.c.l.b16 %v763
    %v2960 = vunpack.c.l.b16 %v764
    %v2961 = vunpack.c.l.b16 %v765
    %v2962 = vunpack.c.l.b16 %v766
    %v2963 = vunpack.c.l.b16 %v767
    %v2964 = vunpack.c.l.b16 %v768
    %v2965 = vunpack.c.l.b16 %v769
    %v2966 = vunpack.c.l.b16 %v770
    %v2967 = vunpack.c.l.b16 %v771
    %v2968 = vunpack.c.l.b16 %v772
    %v2969 = vunpack.c.l.b16 %v773
    %v2970 = vunpack.c.l.b16 %v774
    %v2971 = vunpack.c.l.b16 %v775
    %v2972 = vunpack.c.l.b16 %v776
    %v2973 = vunpack.c.l.b16 %v777
    %v2974 = vunpack.c.l.b16 %v778
    %v2975 = vunpack.c.l.b16 %v779
    %v2976 = vunpack.c.l.b16 %v780
    %v2977 = vunpack.c.l.b16 %v781
    %v2978 = vunpack.c.l.b16 %v782
    %v2979 = vunpack.c.l.b16 %v783
    %v2980 = vunpack.c.l.b16 %v784
    %v2981 = vunpack.c.l.b16 %v785
    %v2982 = vunpack.c.l.b16 %v786
    %v2983 = vunpack.c.l.b16 %v787
    %v2984 = vunpack.c.l.b16 %v788
    %v2985 = vunpack.c.l.b16 %v789
    %v2986 = vunpack.c.l.b16 %v790
    %v2987 = vunpack.c.l.b16 %v791
    %v2988 = vunpack.c.l.b16 %v792
    %v2989 = vunpack.c.l.b16 %v793
    %v2990 = vunpack.c.l.b16 %v794
    %v2991 = vunpack.c.l.b16 %v795
    %v2992 = vunpack.c.l.b16 %v796
    %v2993 = vunpack.c.l.b16 %v797
    %v2994 = vunpack.c.l.b16 %v798
    %v2995 = vunpack.c.l.b16 %v799
    %v2996 = vunpack.c.l.b16 %v800
    %v2997 = vunpack.c.l.b16 %v801
    %v2998 = vunpack.c.l.b16 %v802
    %v2999 = vunpack.c.l.b16 %v803
    %v3000 = vunpack.c.l.b16 %v804
    %v3001 = vunpack.c.l.b16 %v805
    %v3002 = vunpack.c.l.b16 %v806
    %v3003 = vunpack.c.l.b16 %v807
    %v3004 = vunpack.c.l.b16 %v808
    %v3005 = vunpack.c.l.b16 %v809
    %v3006 = vunpack.c.l.b16 %v810
    %v3007 = vunpack.c.l.b16 %v811
    %v3008 = vunpack.c.l.b16 %v812
    %v3009 = vunpack.c.l.b16 %v813
    %v3010 = vunpack.c.l.b16 %v814
    %v3011 = vunpack.c.l.b16 %v815
    %v3012 = vunpack.c.l.b16 %v816
    %v3013 = vunpack.c.l.b16 %v817
    %v3014 = vunpack.c.l.b16 %v818
    %v3015 = vunpack.c.l.b16 %v819
    %v3016 = vunpack.c.l.b16 %v820
    %v3017 = vunpack.c.l.b16 %v821
    %v3018 = vunpack.c.l.b16 %v822
    %v3019 = vunpack.c.l.b16 %v823
    %v3020 = vunpack.c.l.b16 %v824
    %v3021 = vunpack.c.l.b16 %v825
    %v3022 = vunpack.c.l.b16 %v826
    %v3023 = vunpack.c.l.b16 %v827
    %v3024 = vunpack.c.l.b16 %v828
    %v3025 = vunpack.c.l.b16 %v829
    %v3026 = vunpack.c.l.b16 %v830
    %v3027 = vunpack.c.l.b16 %v831
    %v3028 = vunpack.c.l.b16 %v832
    %v3029 = vunpack.c.l.b16 %v833
    %v3030 = vunpack.c.l.b16 %v834
    %v3031 = vunpack.c.l.b16 %v835
    %v3032 = vunpack.c.l.b16 %v836
    %v3033 = vunpack.c.l.b16 %v837
    %v3034 = vunpack.c.l.b16 %v838
    %v3035 = vunpack.c.l.b16 %v839
    %v3036 = vunpack.c.l.b16 %v840
    %v3037 = vunpack.c.l.b16 %v841
    %v3038 = vunpack.c.l.b16 %v842
    %v3039 = vunpack.c.l.b16 %v843
    %v3040 = vunpack.c.l.b16 %v844
    %v3041 = vunpack.c.l.b16 %v845
    %v3042 = vunpack.c.l.b16 %v846
    %v3043 = vunpack.c.l.b16 %v847
    %v3044 = vunpack.c.l.b16 %v848
    %v3045 = vunpack.c.l.b16 %v849
    %v3046 = vunpack.c.l.b16 %v850
    %v3047 = vunpack.c.l.b16 %v851
    %v3048 = vunpack.c.l.b16 %v852
    %v3049 = vunpack.c.l.b16 %v853
    %v3050 = vunpack.c.l.b16 %v854
    %v3051 = vunpack.c.l.b16 %v855
    %v3052 = vunpack.c.l.b16 %v856
    %v3053 = vunpack.c.l.b16 %v857
    %v3054 = vunpack.c.l.b16 %v858
    %v3055 = vunpack.c.l.b16 %v859
    %v3056 = vunpack.c.l.b16 %v860
    %v3057 = vunpack.c.l.b16 %v861
    %v3058 = vunpack.c.l.b16 %v862
    %v3059 = vunpack.c.l.b16 %v863
    %v3060 = vunpack.c.l.b16 %v864
    %v3061 = vunpack.c.l.b16 %v865
    %v3062 = vunpack.c.l.b16 %v866
    %v3063 = vunpack.c.l.b16 %v867
    %v3064 = vunpack.c.l.b16 %v868
    %v3065 = vunpack.c.l.b16 %v869
    %v3066 = vunpack.c.l.b16 %v870
    %v3067 = vunpack.c.l.b16 %v871
    %v3068 = vunpack.c.l.b16 %v872
    %v3069 = vunpack.c.l.b16 %v873
    %v3070 = vunpack.c.l.b16 %v874
    %v3071 = vunpack.c.l.b16 %v875
    %v3072 = vunpack.c.l.b16 %v876
    %v3073 = vunpack.c.l.b16 %v877
    %v3074 = vunpack.c.l.b16 %v878
    %v3075 = vunpack.c.l.b16 %v879
    %v3076 = vunpack.c.l.b16 %v880
    %v3077 = vunpack.c.l.b16 %v881
    %v3078 = vunpack.c.l.b16 %v882
    %v3079 = vunpack.c.l.b16 %v883
    %v3080 = vunpack.c.l.b16 %v884
    %v3081 = vunpack.c.l.b16 %v885
    %v3082 = vunpack.c.l.b16 %v886
    %v3083 = vunpack.c.l.b16 %v887
    %v3084 = vunpack.c.l.b16 %v888
    %v3085 = vunpack.c.l.b16 %v889
    %v3086 = vunpack.c.l.b16 %v890
    %v3087 = vunpack.c.l.b16 %v891
    %v3088 = vunpack.c.l.b16 %v892
    %v3089 = vunpack.c.l.b16 %v893
    %v3090 = vunpack.c.l.b16 %v894
    %v3091 = vunpack.c.l.b16 %v895
    %v3092 = vunpack.c.l.b16 %v896
    %v3093 = vunpack.c.l.b16 %v897
    %v3094 = vunpack.c.l.b16 %v898
    %v3095 = vunpack.c.l.b16 %v899
    %v3096 = vunpack.c.l.b16 %v900
    %v3097 = vunpack.c.l.b16 %v901
    %v3098 = vunpack.c.l.b16 %v902
    %v3099 = vunpack.c.l.b16 %v903
    %v3100 = vunpack.c.l.b16 %v904
    %v3101 = vunpack.c.l.b16 %v905
    %v3102 = vunpack.c.l.b16 %v906
    %v3103 = vunpack.c.l.b16 %v907
    %v3104 = vunpack.c.l.b16 %v908
    %v3105 = vunpack.c.l.b16 %v909
    %v3106 = vunpack.c.l.b16 %v910
    %v3107 = vunpack.c.l.b16 %v911
    %v3108 = vunpack.c.l.b16 %v912
    %v3109 = vunpack.c.l.b16 %v913
    %v3110 = vunpack.c.l.b16 %v914
    %v3111 = vunpack.c.l.b16 %v915
    %v3112 = vunpack.c.l.b16 %v916
    %v3113 = vunpack.c.l.b16 %v917
    %v3114 = vunpack.c.l.b16 %v918
    %v3115 = vunpack.c.l.b16 %v919
    %v3116 = vunpack.c.l.b16 %v920
    %v3117 = vunpack.c.l.b16 %v921
    %v3118 = vunpack.c.l.b16 %v922
    %v3119 = vunpack.c.l.b16 %v923
    %v3120 = vunpack.c.l.b16 %v924
    %v3121 = vunpack.c.l.b16 %v925
    %v3122 = vunpack.c.l.b16 %v926
    %v3123 = vunpack.c.l.b16 %v927
    %v3124 = vunpack.c.l.b16 %v928
    %v3125 = vunpack.c.l.b16 %v929
    %v3126 = vunpack.c.l.b16 %v930
    %v3127 = vunpack.c.l.b16 %v931
    %v3128 = vunpack.c.l.b16 %v932
    %v3129 = vunpack.c.l.b16 %v933
    %v3130 = vunpack.c.l.b16 %v934
    %v3131 = vunpack.c.l.b16 %v935
    %v3132 = vunpack.c.l.b16 %v936
    %v3133 = vunpack.c.l.b16 %v937
    %v3134 = vunpack.c.l.b16 %v938
    %v3135 = vunpack.c.l.b16 %v939
    %v3136 = vunpack.c.l.b16 %v940
    %v3137 = vunpack.c.l.b16 %v941
    %v3138 = vunpack.c.l.b16 %v942
    %v3139 = vunpack.c.l.b16 %v943
    %v3140 = vunpack.c.l.b16 %v944
    %v3141 = vunpack.c.l.b16 %v945
    %v3142 = vunpack.c.l.b16 %v946
    %v3143 = vunpack.c.l.b16 %v947
    %v3144 = vunpack.c.l.b16 %v948
    %v3145 = vunpack.c.l.b16 %v949
    %v3146 = vunpack.c.l.b16 %v950
    %v3147 = vunpack.c.l.b16 %v951
    %v3148 = vunpack.c.l.b16 %v952
    %v3149 = vunpack.c.l.b16 %v953
    %v3150 = vunpack.c.l.b16 %v954
    %v3151 = vunpack.c.l.b16 %v955
    %v3152 = vunpack.c.l.b16 %v956
    %v3153 = vunpack.c.l.b16 %v957
    %v3154 = vunpack.c.l.b16 %v958
    %v3155 = vunpack.c.l.b16 %v959
    %v3156 = vunpack.c.l.b16 %v960
    %v3157 = vunpack.c.l.b16 %v961
    %v3158 = vunpack.c.l.b16 %v962
    %v3159 = vunpack.c.l.b16 %v963
    %v3160 = vunpack.c.l.b16 %v964
    %v3161 = vunpack.c.l.b16 %v965
    %v3162 = vunpack.c.l.b16 %v966
    %v3163 = vunpack.c.l.b16 %v967
    %v3164 = vunpack.c.l.b16 %v968
    %v3165 = vunpack.c.l.b16 %v969
    %v3166 = vunpack.c.l.b16 %v970
    %v3167 = vunpack.c.l.b16 %v971
    %v3168 = vunpack.c.l.b16 %v972
    %v3169 = vunpack.c.l.b16 %v973
    %v3170 = vunpack.c.l.b16 %v974
    %v3171 = vunpack.c.l.b16 %v975
    %v3172 = vunpack.c.l.b16 %v976
    %v3173 = vunpack.c.l.b16 %v977
    %v3174 = vunpack.c.l.b16 %v978
    %v3175 = vunpack.c.l.b16 %v979
    %v3176 = vunpack.c.l.b16 %v980
    %v3177 = vunpack.c.l.b16 %v981
    %v3178 = vunpack.c.l.b16 %v982
    %v3179 = vunpack.c.l.b16 %v983
    %v3180 = vunpack.c.l.b16 %v984
    %v3181 = vunpack.c.l.b16 %v985
    %v3182 = vunpack.c.l.b16 %v986
    %v3183 = vunpack.c.l.b16 %v987
    %v3184 = vunpack.c.l.b16 %v988
    %v3185 = vunpack.c.l.b16 %v989
    %v3186 = vunpack.c.l.b16 %v990
    %v3187 = vunpack.c.l.b16 %v991
    %v3188 = vunpack.c.l.b16 %v992
    %v3189 = vunpack.c.l.b16 %v993
    %v3190 = vunpack.c.l.b16 %v994
    %v3191 = vunpack.c.l.b16 %v995
    %v3192 = vunpack.c.l.b16 %v996
    %v3193 = vunpack.c.l.b16 %v997
    %v3194 = vunpack.c.l.b16 %v998
    %v3195 = vunpack.c.l.b16 %v999
    %v3196 = vunpack.c.l.b16 %v1000
    %v3197 = vunpack.c.l.b16 %v1001
    %v3198 = vunpack.c.l.b16 %v1002
    %v3199 = vunpack.c.l.b16 %v1003
    %v3200 = vunpack.c.l.b16 %v1004
    %v3201 = vunpack.c.l.b16 %v1005
    %v3202 = vunpack.c.l.b16 %v1006
    %v3203 = vunpack.c.l.b16 %v1007
    %v3204 = vunpack.c.l.b16 %v1008
    %v3205 = vunpack.c.l.b16 %v1009
    %v3206 = vunpack.c.l.b16 %v1010
    %v3207 = vunpack.c.l.b16 %v1011
    %v3208 = vunpack.c.l.b16 %v1012
    %v3209 = vunpack.c.l.b16 %v1013
    %v3210 = vunpack.c.l.b16 %v1014
    %v3211 = vunpack.c.l.b16 %v1015
    %v3212 = vunpack.c.l.b16 %v1016
    %v3213 = vunpack.c.l.b16 %v1017
    %v3214 = vunpack.c.l.b16 %v1018
    %v3215 = vunpack.c.l.b16 %v1019
    %v3216 = vunpack.c.l.b16 %v1020
    %v3217 = vunpack.c.l.b16 %v1021
    %v3218 = vunpack.c.l.b16 %v1022
    %v3219 = vunpack.c.l.b16 %v1023
    %v3220 = vunpack.c.l.b16 %v1024
    %v3221 = vunpack.c.l.b16 %v1025
    %v3222 = vunpack.c.l.b16 %v1026
    %v3223 = vunpack.c.l.b16 %v1027
    %v3224 = vunpack.c.l.b16 %v1028
    %v3225 = vunpack.c.l.b16 %v1029
    %v3226 = vunpack.c.l.b16 %v1030
    %v3227 = vunpack.c.l.b16 %v1031
    %v3228 = vunpack.c.l.b16 %v1032
    %v3229 = vunpack.c.l.b16 %v1033
    %v3230 = vunpack.c.l.b16 %v1034
    %v3231 = vunpack.c.l.b16 %v1035
    %v3232 = vunpack.c.l.b16 %v1036
    %v3233 = vunpack.c.l.b16 %v1037
    %v3234 = vunpack.c.l.b16 %v1038
    %v3235 = vunpack.c.l.b16 %v1039
    %v3236 = vunpack.c.l.b16 %v1040
    %v3237 = vunpack.c.l.b16 %v1041
    %v3238 = vunpack.c.l.b16 %v1042
    %v3239 = vunpack.c.l.b16 %v1043
    %v3240 = vunpack.c.l.b16 %v1044
    %v3241 = vunpack.c.l.b16 %v1045
    %v3242 = vunpack.c.l.b16 %v1046
    %v3243 = vunpack.c.l.b16 %v1047
    %v3244 = vunpack.c.l.b16 %v1048
    %v3245 = vunpack.c.l.b16 %v1049
    %v3246 = vunpack.c.l.b16 %v1050
    %v3247 = vunpack.c.l.b16 %v1051
    %v3248 = vunpack.c.l.b16 %v1052
    %v3249 = vpack.c.b16 %v2226, %v2225
    %v3250 = vpack.c.b16 %v2228, %v2227
    %v3251 = vpack.c.b16 %v2230, %v2229
    %v3252 = vpack.c.b16 %v2232, %v2231
    %v3253 = vpack.c.b16 %v2234, %v2233
    %v3254 = vpack.c.b16 %v2236, %v2235
    %v3255 = vpack.c.b16 %v2238, %v2237
    %v3256 = vpack.c.b16 %v2240, %v2239
    %v3257 = vpack.c.b16 %v2242, %v2241
    %v3258 = vpack.c.b16 %v2244, %v2243
    %v3259 = vpack.c.b16 %v2246, %v2245
    %v3260 = vpack.c.b16 %v2248, %v2247
    %v3261 = vpack.c.b16 %v2250, %v2249
    %v3262 = vpack.c.b16 %v2252, %v2251
    %v3263 = vpack.c.b16 %v2254, %v2253
    %v3264 = vpack.c.b16 %v2256, %v2255
    %v3265 = vpack.c.b16 %v2258, %v2257
    %v3266 = vpack.c.b16 %v2260, %v2259
    %v3267 = vpack.c.b16 %v2262, %v2261
    %v3268 = vpack.c.b16 %v2264, %v2263
    %v3269 = vpack.c.b16 %v2266, %v2265
    %v3270 = vpack.c.b16 %v2268, %v2267
    %v3271 = vpack.c.b16 %v2270, %v2269
    %v3272 = vpack.c.b16 %v2272, %v2271
    %v3273 = vpack.c.b16 %v2274, %v2273
    %v3274 = vpack.c.b16 %v2276, %v2275
    %v3275 = vpack.c.b16 %v2278, %v2277
    %v3276 = vpack.c.b16 %v2280, %v2279
    %v3277 = vpack.c.b16 %v2282, %v2281
    %v3278 = vpack.c.b16 %v2284, %v2283
    %v3279 = vpack.c.b16 %v2286, %v2285
    %v3280 = vpack.c.b16 %v2288, %v2287
    %v3281 = vpack.c.b16 %v2290, %v2289
    %v3282 = vpack.c.b16 %v2292, %v2291
    %v3283 = vpack.c.b16 %v2294, %v2293
    %v3284 = vpack.c.b16 %v2296, %v2295
    %v3285 = vpack.c.b16 %v2298, %v2297
    %v3286 = vpack.c.b16 %v2300, %v2299
    %v3287 = vpack.c.b16 %v2302, %v2301
    %v3288 = vpack.c.b16 %v2304, %v2303
    %v3289 = vpack.c.b16 %v2306, %v2305
    %v3290 = vpack.c.b16 %v2308, %v2307
    %v3291 = vpack.c.b16 %v2310, %v2309
    %v3292 = vpack.c.b16 %v2312, %v2311
    %v3293 = vpack.c.b16 %v2314, %v2313
    %v3294 = vpack.c.b16 %v2316, %v2315
    %v3295 = vpack.c.b16 %v2318, %v2317
    %v3296 = vpack.c.b16 %v2320, %v2319
    %v3297 = vpack.c.b16 %v2322, %v2321
    %v3298 = vpack.c.b16 %v2324, %v2323
    %v3299 = vpack.c.b16 %v2326, %v2325
    %v3300 = vpack.c.b16 %v2328, %v2327
    %v3301 = vpack.c.b16 %v2330, %v2329
    %v3302 = vpack.c.b16 %v2332, %v2331
    %v3303 = vpack.c.b16 %v2334, %v2333
    %v3304 = vpack.c.b16 %v2336, %v2335
    %v3305 = vpack.c.b16 %v2338, %v2337
    %v3306 = vpack.c.b16 %v2340, %v2339
    %v3307 = vpack.c.b16 %v2342, %v2341
    %v3308 = vpack.c.b16 %v2344, %v2343
    %v3309 = vpack.c.b16 %v2346, %v2345
    %v3310 = vpack.c.b16 %v2348, %v2347
    %v3311 = vpack.c.b16 %v2350, %v2349
    %v3312 = vpack.c.b16 %v2352, %v2351
    %v3313 = vpack.c.b16 %v2354, %v2353
    %v3314 = vpack.c.b16 %v2356, %v2355
    %v3315 = vpack.c.b16 %v2358, %v2357
    %v3316 = vpack.c.b16 %v2360, %v2359
    %v3317 = vpack.c.b16 %v2362, %v2361
    %v3318 = vpack.c.b16 %v2364, %v2363
    %v3319 = vpack.c.b16 %v2366, %v2365
    %v3320 = vpack.c.b16 %v2368, %v2367
    %v3321 = vpack.c.b16 %v2370, %v2369
    %v3322 = vpack.c.b16 %v2372, %v2371
    %v3323 = vpack.c.b16 %v2374, %v2373
    %v3324 = vpack.c.b16 %v2376, %v2375
    %v3325 = vpack.c.b16 %v2378, %v2377
    %v3326 = vpack.c.b16 %v2380, %v2379
    %v3327 = vpack.c.b16 %v2382, %v2381
    %v3328 = vpack.c.b16 %v2384, %v2383
    %v3329 = vpack.c.b16 %v2386, %v2385
    %v3330 = vpack.c.b16 %v2388, %v2387
    %v3331 = vpack.c.b16 %v2390, %v2389
    %v3332 = vpack.c.b16 %v2392, %v2391
    %v3333 = vpack.c.b16 %v2394, %v2393
    %v3334 = vpack.c.b16 %v2396, %v2395
    %v3335 = vpack.c.b16 %v2398, %v2397
    %v3336 = vpack.c.b16 %v2400, %v2399
    %v3337 = vpack.c.b16 %v2402, %v2401
    %v3338 = vpack.c.b16 %v2404, %v2403
    %v3339 = vpack.c.b16 %v2406, %v2405
    %v3340 = vpack.c.b16 %v2408, %v2407
    %v3341 = vpack.c.b16 %v2410, %v2409
    %v3342 = vpack.c.b16 %v2412, %v2411
    %v3343 = vpack.c.b16 %v2414, %v2413
    %v3344 = vpack.c.b16 %v2416, %v2415
    %v3345 = vpack.c.b16 %v2418, %v2417
    %v3346 = vpack.c.b16 %v2420, %v2419
    %v3347 = vpack.c.b16 %v2422, %v2421
    %v3348 = vpack.c.b16 %v2424, %v2423
    %v3349 = vpack.c.b16 %v2426, %v2425
    %v3350 = vpack.c.b16 %v2428, %v2427
    %v3351 = vpack.c.b16 %v2430, %v2429
    %v3352 = vpack.c.b16 %v2432, %v2431
    %v3353 = vpack.c.b16 %v2434, %v2433
    %v3354 = vpack.c.b16 %v2436, %v2435
    %v3355 = vpack.c.b16 %v2438, %v2437
    %v3356 = vpack.c.b16 %v2440, %v2439
    %v3357 = vpack.c.b16 %v2442, %v2441
    %v3358 = vpack.c.b16 %v2444, %v2443
    %v3359 = vpack.c.b16 %v2446, %v2445
    %v3360 = vpack.c.b16 %v2448, %v2447
    %v3361 = vpack.c.b16 %v2450, %v2449
    %v3362 = vpack.c.b16 %v2452, %v2451
    %v3363 = vpack.c.b16 %v2454, %v2453
    %v3364 = vpack.c.b16 %v2456, %v2455
    %v3365 = vpack.c.b16 %v2458, %v2457
    %v3366 = vpack.c.b16 %v2460, %v2459
    %v3367 = vpack.c.b16 %v2462, %v2461
    %v3368 = vpack.c.b16 %v2464, %v2463
    %v3369 = vpack.c.b16 %v2466, %v2465
    %v3370 = vpack.c.b16 %v2468, %v2467
    %v3371 = vpack.c.b16 %v2470, %v2469
    %v3372 = vpack.c.b16 %v2472, %v2471
    %v3373 = vpack.c.b16 %v2474, %v2473
    %v3374 = vpack.c.b16 %v2476, %v2475
    %v3375 = vpack.c.b16 %v2478, %v2477
    %v3376 = vpack.c.b16 %v2480, %v2479
    %v3377 = vpack.c.b16 %v2482, %v2481
    %v3378 = vpack.c.b16 %v2484, %v2483
    %v3379 = vpack.c.b16 %v2486, %v2485
    %v3380 = vpack.c.b16 %v2488, %v2487
    %v3381 = vpack.c.b16 %v2490, %v2489
    %v3382 = vpack.c.b16 %v2492, %v2491
    %v3383 = vpack.c.b16 %v2494, %v2493
    %v3384 = vpack.c.b16 %v2496, %v2495
    %v3385 = vpack.c.b16 %v2498, %v2497
    %v3386 = vpack.c.b16 %v2500, %v2499
    %v3387 = vpack.c.b16 %v2502, %v2501
    %v3388 = vpack.c.b16 %v2504, %v2503
    %v3389 = vpack.c.b16 %v2506, %v2505
    %v3390 = vpack.c.b16 %v2508, %v2507
    %v3391 = vpack.c.b16 %v2510, %v2509
    %v3392 = vpack.c.b16 %v2512, %v2511
    %v3393 = vpack.c.b16 %v2514, %v2513
    %v3394 = vpack.c.b16 %v2516, %v2515
    %v3395 = vpack.c.b16 %v2518, %v2517
    %v3396 = vpack.c.b16 %v2520, %v2519
    %v3397 = vpack.c.b16 %v2522, %v2521
    %v3398 = vpack.c.b16 %v2524, %v2523
    %v3399 = vpack.c.b16 %v2526, %v2525
    %v3400 = vpack.c.b16 %v2528, %v2527
    %v3401 = vpack.c.b16 %v2530, %v2529
    %v3402 = vpack.c.b16 %v2532, %v2531
    %v3403 = vpack.c.b16 %v2534, %v2533
    %v3404 = vpack.c.b16 %v2536, %v2535
    %v3405 = vpack.c.b16 %v2538, %v2537
    %v3406 = vpack.c.b16 %v2540, %v2539
    %v3407 = vpack.c.b16 %v2542, %v2541
    %v3408 = vpack.c.b16 %v2544, %v2543
    %v3409 = vpack.c.b16 %v2546, %v2545
    %v3410 = vpack.c.b16 %v2548, %v2547
    %v3411 = vpack.c.b16 %v2550, %v2549
    %v3412 = vpack.c.b16 %v2552, %v2551
    %v3413 = vpack.c.b16 %v2554, %v2553
    %v3414 = vpack.c.b16 %v2556, %v2555
    %v3415 = vpack.c.b16 %v2558, %v2557
    %v3416 = vpack.c.b16 %v2560, %v2559
    %v3417 = vpack.c.b16 %v2562, %v2561
    %v3418 = vpack.c.b16 %v2564, %v2563
    %v3419 = vpack.c.b16 %v2566, %v2565
    %v3420 = vpack.c.b16 %v2568, %v2567
    %v3421 = vpack.c.b16 %v2570, %v2569
    %v3422 = vpack.c.b16 %v2572, %v2571
    %v3423 = vpack.c.b16 %v2574, %v2573
    %v3424 = vpack.c.b16 %v2576, %v2575
    %v3425 = vpack.c.b16 %v2578, %v2577
    %v3426 = vpack.c.b16 %v2580, %v2579
    %v3427 = vpack.c.b16 %v2582, %v2581
    %v3428 = vpack.c.b16 %v2584, %v2583
    %v3429 = vpack.c.b16 %v2586, %v2585
    %v3430 = vpack.c.b16 %v2588, %v2587
    %v3431 = vpack.c.b16 %v2590, %v2589
    %v3432 = vpack.c.b16 %v2592, %v2591
    %v3433 = vpack.c.b16 %v2594, %v2593
    %v3434 = vpack.c.b16 %v2596, %v2595
    %v3435 = vpack.c.b16 %v2598, %v2597
    %v3436 = vpack.c.b16 %v2600, %v2599
    %v3437 = vpack.c.b16 %v2602, %v2601
    %v3438 = vpack.c.b16 %v2604, %v2603
    %v3439 = vpack.c.b16 %v2606, %v2605
    %v3440 = vpack.c.b16 %v2608, %v2607
    %v3441 = vpack.c.b16 %v2610, %v2609
    %v3442 = vpack.c.b16 %v2612, %v2611
    %v3443 = vpack.c.b16 %v2614, %v2613
    %v3444 = vpack.c.b16 %v2616, %v2615
    %v3445 = vpack.c.b16 %v2618, %v2617
    %v3446 = vpack.c.b16 %v2620, %v2619
    %v3447 = vpack.c.b16 %v2622, %v2621
    %v3448 = vpack.c.b16 %v2624, %v2623
    %v3449 = vpack.c.b16 %v2626, %v2625
    %v3450 = vpack.c.b16 %v2628, %v2627
    %v3451 = vpack.c.b16 %v2630, %v2629
    %v3452 = vpack.c.b16 %v2632, %v2631
    %v3453 = vpack.c.b16 %v2634, %v2633
    %v3454 = vpack.c.b16 %v2636, %v2635
    %v3455 = vpack.c.b16 %v2638, %v2637
    %v3456 = vpack.c.b16 %v2640, %v2639
    %v3457 = vpack.c.b16 %v2642, %v2641
    %v3458 = vpack.c.b16 %v2644, %v2643
    %v3459 = vpack.c.b16 %v2646, %v2645
    %v3460 = vpack.c.b16 %v2648, %v2647
    %v3461 = vpack.c.b16 %v2650, %v2649
    %v3462 = vpack.c.b16 %v2652, %v2651
    %v3463 = vpack.c.b16 %v2654, %v2653
    %v3464 = vpack.c.b16 %v2656, %v2655
    %v3465 = vpack.c.b16 %v2658, %v2657
    %v3466 = vpack.c.b16 %v2660, %v2659
    %v3467 = vpack.c.b16 %v2662, %v2661
    %v3468 = vpack.c.b16 %v2664, %v2663
    %v3469 = vpack.c.b16 %v2666, %v2665
    %v3470 = vpack.c.b16 %v2668, %v2667
    %v3471 = vpack.c.b16 %v2670, %v2669
    %v3472 = vpack.c.b16 %v2672, %v2671
    %v3473 = vpack.c.b16 %v2674, %v2673
    %v3474 = vpack.c.b16 %v2676, %v2675
    %v3475 = vpack.c.b16 %v2678, %v2677
    %v3476 = vpack.c.b16 %v2680, %v2679
    %v3477 = vpack.c.b16 %v2682, %v2681
    %v3478 = vpack.c.b16 %v2684, %v2683
    %v3479 = vpack.c.b16 %v2686, %v2685
    %v3480 = vpack.c.b16 %v2688, %v2687
    %v3481 = vpack.c.b16 %v2690, %v2689
    %v3482 = vpack.c.b16 %v2692, %v2691
    %v3483 = vpack.c.b16 %v2694, %v2693
    %v3484 = vpack.c.b16 %v2696, %v2695
    %v3485 = vpack.c.b16 %v2698, %v2697
    %v3486 = vpack.c.b16 %v2700, %v2699
    %v3487 = vpack.c.b16 %v2702, %v2701
    %v3488 = vpack.c.b16 %v2704, %v2703
    %v3489 = vpack.c.b16 %v2706, %v2705
    %v3490 = vpack.c.b16 %v2708, %v2707
    %v3491 = vpack.c.b16 %v2710, %v2709
    %v3492 = vpack.c.b16 %v2712, %v2711
    %v3493 = vpack.c.b16 %v2714, %v2713
    %v3494 = vpack.c.b16 %v2716, %v2715
    %v3495 = vpack.c.b16 %v2718, %v2717
    %v3496 = vpack.c.b16 %v2720, %v2719
    %v3497 = vpack.c.b16 %v2722, %v2721
    %v3498 = vpack.c.b16 %v2724, %v2723
    %v3499 = vpack.c.b16 %v2726, %v2725
    %v3500 = vpack.c.b16 %v2728, %v2727
    %v3501 = vpack.c.b16 %v2730, %v2729
    %v3502 = vpack.c.b16 %v2732, %v2731
    %v3503 = vpack.c.b16 %v2734, %v2733
    %v3504 = vpack.c.b16 %v2736, %v2735
    %v3505 = vpack.c.b16 %v2738, %v2737
    %v3506 = vpack.c.b16 %v2740, %v2739
    %v3507 = vpack.c.b16 %v2742, %v2741
    %v3508 = vpack.c.b16 %v2744, %v2743
    %v3509 = vpack.c.b16 %v2746, %v2745
    %v3510 = vpack.c.b16 %v2748, %v2747
    %v3511 = vpack.c.b16 %v2750, %v2749
    %v3512 = vpack.c.b16 %v2752, %v2751
    %v3513 = vpack.c.b16 %v2754, %v2753
    %v3514 = vpack.c.b16 %v2756, %v2755
    %v3515 = vpack.c.b16 %v2758, %v2757
    %v3516 = vpack.c.b16 %v2760, %v2759
    %v3517 = vpack.c.b16 %v2762, %v2761
    %v3518 = vpack.c.b16 %v2764, %v2763
    %v3519 = vpack.c.b16 %v2766, %v2765
    %v3520 = vpack.c.b16 %v2768, %v2767
    %v3521 = vpack.c.b16 %v2770, %v2769
    %v3522 = vpack.c.b16 %v2772, %v2771
    %v3523 = vpack.c.b16 %v2774, %v2773
    %v3524 = vpack.c.b16 %v2776, %v2775
    %v3525 = vpack.c.b16 %v2778, %v2777
    %v3526 = vpack.c.b16 %v2780, %v2779
    %v3527 = vpack.c.b16 %v2782, %v2781
    %v3528 = vpack.c.b16 %v2784, %v2783
    %v3529 = vpack.c.b16 %v2786, %v2785
    %v3530 = vpack.c.b16 %v2788, %v2787
    %v3531 = vpack.c.b16 %v2790, %v2789
    %v3532 = vpack.c.b16 %v2792, %v2791
    %v3533 = vpack.c.b16 %v2794, %v2793
    %v3534 = vpack.c.b16 %v2796, %v2795
    %v3535 = vpack.c.b16 %v2798, %v2797
    %v3536 = vpack.c.b16 %v2800, %v2799
    %v3537 = vpack.c.b16 %v2802, %v2801
    %v3538 = vpack.c.b16 %v2804, %v2803
    %v3539 = vpack.c.b16 %v2806, %v2805
    %v3540 = vpack.c.b16 %v2808, %v2807
    %v3541 = vpack.c.b16 %v2810, %v2809
    %v3542 = vpack.c.b16 %v2812, %v2811
    %v3543 = vpack.c.b16 %v2814, %v2813
    %v3544 = vpack.c.b16 %v2816, %v2815
    %v3545 = vpack.c.b16 %v2818, %v2817
    %v3546 = vpack.c.b16 %v2820, %v2819
    %v3547 = vpack.c.b16 %v2822, %v2821
    %v3548 = vpack.c.b16 %v2824, %v2823
    %v3549 = vpack.c.b16 %v2826, %v2825
    %v3550 = vpack.c.b16 %v2828, %v2827
    %v3551 = vpack.c.b16 %v2830, %v2829
    %v3552 = vpack.c.b16 %v2832, %v2831
    %v3553 = vpack.c.b16 %v2834, %v2833
    %v3554 = vpack.c.b16 %v2836, %v2835
    %v3555 = vpack.c.b16 %v2838, %v2837
    %v3556 = vpack.c.b16 %v2840, %v2839
    %v3557 = vpack.c.b16 %v2842, %v2841
    %v3558 = vpack.c.b16 %v2844, %v2843
    %v3559 = vpack.c.b16 %v2846, %v2845
    %v3560 = vpack.c.b16 %v2848, %v2847
    %v3561 = vpack.c.b16 %v2850, %v2849
    %v3562 = vpack.c.b16 %v2852, %v2851
    %v3563 = vpack.c.b16 %v2854, %v2853
    %v3564 = vpack.c.b16 %v2856, %v2855
    %v3565 = vpack.c.b16 %v2858, %v2857
    %v3566 = vpack.c.b16 %v2860, %v2859
    %v3567 = vpack.c.b16 %v2862, %v2861
    %v3568 = vpack.c.b16 %v2864, %v2863
    %v3569 = vpack.c.b16 %v2866, %v2865
    %v3570 = vpack.c.b16 %v2868, %v2867
    %v3571 = vpack.c.b16 %v2870, %v2869
    %v3572 = vpack.c.b16 %v2872, %v2871
    %v3573 = vpack.c.b16 %v2874, %v2873
    %v3574 = vpack.c.b16 %v2876, %v2875
    %v3575 = vpack.c.b16 %v2878, %v2877
    %v3576 = vpack.c.b16 %v2880, %v2879
    %v3577 = vpack.c.b16 %v2882, %v2881
    %v3578 = vpack.c.b16 %v2884, %v2883
    %v3579 = vpack.c.b16 %v2886, %v2885
    %v3580 = vpack.c.b16 %v2888, %v2887
    %v3581 = vpack.c.b16 %v2890, %v2889
    %v3582 = vpack.c.b16 %v2892, %v2891
    %v3583 = vpack.c.b16 %v2894, %v2893
    %v3584 = vpack.c.b16 %v2896, %v2895
    %v3585 = vpack.c.b16 %v2898, %v2897
    %v3586 = vpack.c.b16 %v2900, %v2899
    %v3587 = vpack.c.b16 %v2902, %v2901
    %v3588 = vpack.c.b16 %v2904, %v2903
    %v3589 = vpack.c.b16 %v2906, %v2905
    %v3590 = vpack.c.b16 %v2908, %v2907
    %v3591 = vpack.c.b16 %v2910, %v2909
    %v3592 = vpack.c.b16 %v2912, %v2911
    %v3593 = vpack.c.b16 %v2914, %v2913
    %v3594 = vpack.c.b16 %v2916, %v2915
    %v3595 = vpack.c.b16 %v2918, %v2917
    %v3596 = vpack.c.b16 %v2920, %v2919
    %v3597 = vpack.c.b16 %v2922, %v2921
    %v3598 = vpack.c.b16 %v2924, %v2923
    %v3599 = vpack.c.b16 %v2926, %v2925
    %v3600 = vpack.c.b16 %v2928, %v2927
    %v3601 = vpack.c.b16 %v2930, %v2929
    %v3602 = vpack.c.b16 %v2932, %v2931
    %v3603 = vpack.c.b16 %v2934, %v2933
    %v3604 = vpack.c.b16 %v2936, %v2935
    %v3605 = vpack.c.b16 %v2938, %v2937
    %v3606 = vpack.c.b16 %v2940, %v2939
    %v3607 = vpack.c.b16 %v2942, %v2941
    %v3608 = vpack.c.b16 %v2944, %v2943
    %v3609 = vpack.c.b16 %v2946, %v2945
    %v3610 = vpack.c.b16 %v2948, %v2947
    %v3611 = vpack.c.b16 %v2950, %v2949
    %v3612 = vpack.c.b16 %v2952, %v2951
    %v3613 = vpack.c.b16 %v2954, %v2953
    %v3614 = vpack.c.b16 %v2956, %v2955
    %v3615 = vpack.c.b16 %v2958, %v2957
    %v3616 = vpack.c.b16 %v2960, %v2959
    %v3617 = vpack.c.b16 %v2962, %v2961
    %v3618 = vpack.c.b16 %v2964, %v2963
    %v3619 = vpack.c.b16 %v2966, %v2965
    %v3620 = vpack.c.b16 %v2968, %v2967
    %v3621 = vpack.c.b16 %v2970, %v2969
    %v3622 = vpack.c.b16 %v2972, %v2971
    %v3623 = vpack.c.b16 %v2974, %v2973
    %v3624 = vpack.c.b16 %v2976, %v2975
    %v3625 = vpack.c.b16 %v2978, %v2977
    %v3626 = vpack.c.b16 %v2980, %v2979
    %v3627 = vpack.c.b16 %v2982, %v2981
    %v3628 = vpack.c.b16 %v2984, %v2983
    %v3629 = vpack.c.b16 %v2986, %v2985
    %v3630 = vpack.c.b16 %v2988, %v2987
    %v3631 = vpack.c.b16 %v2990, %v2989
    %v3632 = vpack.c.b16 %v2992, %v2991
    %v3633 = vpack.c.b16 %v2994, %v2993
    %v3634 = vpack.c.b16 %v2996, %v2995
    %v3635 = vpack.c.b16 %v2998, %v2997
    %v3636 = vpack.c.b16 %v3000, %v2999
    %v3637 = vpack.c.b16 %v3002, %v3001
    %v3638 = vpack.c.b16 %v3004, %v3003
    %v3639 = vpack.c.b16 %v3006, %v3005
    %v3640 = vpack.c.b16 %v3008, %v3007
    %v3641 = vpack.c.b16 %v3010, %v3009
    %v3642 = vpack.c.b16 %v3012, %v3011
    %v3643 = vpack.c.b16 %v3014, %v3013
    %v3644 = vpack.c.b16 %v3016, %v3015
    %v3645 = vpack.c.b16 %v3018, %v3017
    %v3646 = vpack.c.b16 %v3020, %v3019
    %v3647 = vpack.c.b16 %v3022, %v3021
    %v3648 = vpack.c.b16 %v3024, %v3023
    %v3649 = vpack.c.b16 %v3026, %v3025
    %v3650 = vpack.c.b16 %v3028, %v3027
    %v3651 = vpack.c.b16 %v3030, %v3029
    %v3652 = vpack.c.b16 %v3032, %v3031
    %v3653 = vpack.c.b16 %v3034, %v3033
    %v3654 = vpack.c.b16 %v3036, %v3035
    %v3655 = vpack.c.b16 %v3038, %v3037
    %v3656 = vpack.c.b16 %v3040, %v3039
    %v3657 = vpack.c.b16 %v3042, %v3041
    %v3658 = vpack.c.b16 %v3044, %v3043
    %v3659 = vpack.c.b16 %v3046, %v3045
    %v3660 = vpack.c.b16 %v3048, %v3047
    %v3661 = vpack.c.b16 %v3050, %v3049
    %v3662 = vpack.c.b16 %v3052, %v3051
    %v3663 = vpack.c.b16 %v3054, %v3053
    %v3664 = vpack.c.b16 %v3056, %v3055
    %v3665 = vpack.c.b16 %v3058, %v3057
    %v3666 = vpack.c.b16 %v3060, %v3059
    %v3667 = vpack.c.b16 %v3062, %v3061
    %v3668 = vpack.c.b16 %v3064, %v3063
    %v3669 = vpack.c.b16 %v3066, %v3065
    %v3670 = vpack.c.b16 %v3068, %v3067
    %v3671 = vpack.c.b16 %v3070, %v3069
    %v3672 = vpack.c.b16 %v3072, %v3071
    %v3673 = vpack.c.b16 %v3074, %v3073
    %v3674 = vpack.c.b16 %v3076, %v3075
    %v3675 = vpack.c.b16 %v3078, %v3077
    %v3676 = vpack.c.b16 %v3080, %v3079
    %v3677 = vpack.c.b16 %v3082, %v3081
    %v3678 = vpack.c.b16 %v3084, %v3083
    %v3679 = vpack.c.b16 %v3086, %v3085
    %v3680 = vpack.c.b16 %v3088, %v3087
    %v3681 = vpack.c.b16 %v3090, %v3089
    %v3682 = vpack.c.b16 %v3092, %v3091
    %v3683 = vpack.c.b16 %v3094, %v3093
    %v3684 = vpack.c.b16 %v3096, %v3095
    %v3685 = vpack.c.b16 %v3098, %v3097
    %v3686 = vpack.c.b16 %v3100, %v3099
    %v3687 = vpack.c.b16 %v3102, %v3101
    %v3688 = vpack.c.b16 %v3104, %v3103
    %v3689 = vpack.c.b16 %v3106, %v3105
    %v3690 = vpack.c.b16 %v3108, %v3107
    %v3691 = vpack.c.b16 %v3110, %v3109
    %v3692 = vpack.c.b16 %v3112, %v3111
    %v3693 = vpack.c.b16 %v3114, %v3113
    %v3694 = vpack.c.b16 %v3116, %v3115
    %v3695 = vpack.c.b16 %v3118, %v3117
    %v3696 = vpack.c.b16 %v3120, %v3119
    %v3697 = vpack.c.b16 %v3122, %v3121
    %v3698 = vpack.c.b16 %v3124, %v3123
    %v3699 = vpack.c.b16 %v3126, %v3125
    %v3700 = vpack.c.b16 %v3128, %v3127
    %v3701 = vpack.c.b16 %v3130, %v3129
    %v3702 = vpack.c.b16 %v3132, %v3131
    %v3703 = vpack.c.b16 %v3134, %v3133
    %v3704 = vpack.c.b16 %v3136, %v3135
    %v3705 = vpack.c.b16 %v3138, %v3137
    %v3706 = vpack.c.b16 %v3140, %v3139
    %v3707 = vpack.c.b16 %v3142, %v3141
    %v3708 = vpack.c.b16 %v3144, %v3143
    %v3709 = vpack.c.b16 %v3146, %v3145
    %v3710 = vpack.c.b16 %v3148, %v3147
    %v3711 = vpack.c.b16 %v3150, %v3149
    %v3712 = vpack.c.b16 %v3152, %v3151
    %v3713 = vpack.c.b16 %v3154, %v3153
    %v3714 = vpack.c.b16 %v3156, %v3155
    %v3715 = vpack.c.b16 %v3158, %v3157
    %v3716 = vpack.c.b16 %v3160, %v3159
    %v3717 = vpack.c.b16 %v3162, %v3161
    %v3718 = vpack.c.b16 %v3164, %v3163
    %v3719 = vpack.c.b16 %v3166, %v3165
    %v3720 = vpack.c.b16 %v3168, %v3167
    %v3721 = vpack.c.b16 %v3170, %v3169
    %v3722 = vpack.c.b16 %v3172, %v3171
    %v3723 = vpack.c.b16 %v3174, %v3173
    %v3724 = vpack.c.b16 %v3176, %v3175
    %v3725 = vpack.c.b16 %v3178, %v3177
    %v3726 = vpack.c.b16 %v3180, %v3179
    %v3727 = vpack.c.b16 %v3182, %v3181
    %v3728 = vpack.c.b16 %v3184, %v3183
    %v3729 = vpack.c.b16 %v3186, %v3185
    %v3730 = vpack.c.b16 %v3188, %v3187
    %v3731 = vpack.c.b16 %v3190, %v3189
    %v3732 = vpack.c.b16 %v3192, %v3191
    %v3733 = vpack.c.b16 %v3194, %v3193
    %v3734 = vpack.c.b16 %v3196, %v3195
    %v3735 = vpack.c.b16 %v3198, %v3197
    %v3736 = vpack.c.b16 %v3200, %v3199
    %v3737 = vpack.c.b16 %v3202, %v3201
    %v3738 = vpack.c.b16 %v3204, %v3203
    %v3739 = vpack.c.b16 %v3206, %v3205
    %v3740 = vpack.c.b16 %v3208, %v3207
    %v3741 = vpack.c.b16 %v3210, %v3209
    %v3742 = vpack.c.b16 %v3212, %v3211
    %v3743 = vpack.c.b16 %v3214, %v3213
    %v3744 = vpack.c.b16 %v3216, %v3215
    %v3745 = vpack.c.b16 %v3218, %v3217
    %v3746 = vpack.c.b16 %v3220, %v3219
    %v3747 = vpack.c.b16 %v3222, %v3221
    %v3748 = vpack.c.b16 %v3224, %v3223
    %v3749 = vpack.c.b16 %v3226, %v3225
    %v3750 = vpack.c.b16 %v3228, %v3227
    %v3751 = vpack.c.b16 %v3230, %v3229
    %v3752 = vpack.c.b16 %v3232, %v3231
    %v3753 = vpack.c.b16 %v3234, %v3233
    %v3754 = vpack.c.b16 %v3236, %v3235
    %v3755 = vpack.c.b16 %v3238, %v3237
    %v3756 = vpack.c.b16 %v3240, %v3239
    %v3757 = vpack.c.b16 %v3242, %v3241
    %v3758 = vpack.c.b16 %v3244, %v3243
    %v3759 = vpack.c.b16 %v3246, %v3245
    %v3760 = vpack.c.b16 %v3248, %v3247
    %4273 = vmatpush.bf16.msra.mxu0 %v3256
    %4274 = vmatpush.bf16.msra.mxu0 %v3255
    %4275 = vmatpush.bf16.msra.mxu0 %v3254
    %4276 = vmatpush.bf16.msra.mxu0 %v3253
    %4277 = vmatpush.bf16.msra.mxu0 %v3252
    %4278 = vmatpush.bf16.msra.mxu0 %v3251
    %4279 = vmatpush.bf16.msra.mxu0 %v3250
    %4280 = vmatpush.bf16.msra.mxu0 %v3249
    %4281 = vmatmul.bf16.gmra.mxu0 %v1059
    %v4282 = vpop.f32.mrf.mxu0
    %v4283 = vadd.f32 %v1055, %v4282
    %v4284 = vpop.f32.mrf.mxu0
    %4285 = vdwg.mxu0
    %4286 = vmatpush.bf16.msra.mxu0 %v3264
    %4287 = vmatpush.bf16.msra.mxu0 %v3263
    %4288 = vmatpush.bf16.msra.mxu0 %v3262
    %4289 = vmatpush.bf16.msra.mxu0 %v3261
    %4290 = vmatpush.bf16.msra.mxu0 %v3260
    %4291 = vmatpush.bf16.msra.mxu0 %v3259
    %4292 = vmatpush.bf16.msra.mxu0 %v3258
    %4293 = vmatpush.bf16.msra.mxu0 %v3257
    %4294 = vmatmul.bf16.gmra.mxu0 %v1060
    %v4295 = vpop.f32.mrf.mxu0
    %v4296 = vadd.f32 %v4283, %v4295
    %v4297 = vpop.f32.mrf.mxu0
    %4298 = vdwg.mxu0
    %4299 = vmatpush.bf16.msra.mxu0 %v3272
    %4300 = vmatpush.bf16.msra.mxu0 %v3271
    %4301 = vmatpush.bf16.msra.mxu0 %v3270
    %4302 = vmatpush.bf16.msra.mxu0 %v3269
    %4303 = vmatpush.bf16.msra.mxu0 %v3268
    %4304 = vmatpush.bf16.msra.mxu0 %v3267
    %4305 = vmatpush.bf16.msra.mxu0 %v3266
    %4306 = vmatpush.bf16.msra.mxu0 %v3265
    %4307 = vmatmul.bf16.gmra.mxu0 %v1061
    %v4308 = vpop.f32.mrf.mxu0
    %v4309 = vadd.f32 %v4296, %v4308
    %v4310 = vpop.f32.mrf.mxu0
    %4311 = vdwg.mxu0
    %4312 = vmatpush.bf16.msra.mxu0 %v3280
    %4313 = vmatpush.bf16.msra.mxu0 %v3279
    %4314 = vmatpush.bf16.msra.mxu0 %v3278
    %4315 = vmatpush.bf16.msra.mxu0 %v3277
    %4316 = vmatpush.bf16.msra.mxu0 %v3276
    %4317 = vmatpush.bf16.msra.mxu0 %v3275
    %4318 = vmatpush.bf16.msra.mxu0 %v3274
    %4319 = vmatpush.bf16.msra.mxu0 %v3273
    %4320 = vmatmul.bf16.gmra.mxu0 %v1062
    %v4321 = vpop.f32.mrf.mxu0
    %v4322 = vadd.f32 %v4309, %v4321
    %v4323 = vpop.f32.mrf.mxu0
    %4324 = vdwg.mxu0
    %4325 = vmatpush.bf16.msra.mxu0 %v3288
    %4326 = vmatpush.bf16.msra.mxu0 %v3287
    %4327 = vmatpush.bf16.msra.mxu0 %v3286
    %4328 = vmatpush.bf16.msra.mxu0 %v3285
    %4329 = vmatpush.bf16.msra.mxu0 %v3284
    %4330 = vmatpush.bf16.msra.mxu0 %v3283
    %4331 = vmatpush.bf16.msra.mxu0 %v3282
    %4332 = vmatpush.bf16.msra.mxu0 %v3281
    %4333 = vmatmul.bf16.gmra.mxu0 %v1063
    %v4334 = vpop.f32.mrf.mxu0
    %v4335 = vadd.f32 %v4322, %v4334
    %v4336 = vpop.f32.mrf.mxu0
    %4337 = vdwg.mxu0
    %4338 = vmatpush.bf16.msra.mxu0 %v3296
    %4339 = vmatpush.bf16.msra.mxu0 %v3295
    %4340 = vmatpush.bf16.msra.mxu0 %v3294
    %4341 = vmatpush.bf16.msra.mxu0 %v3293
    %4342 = vmatpush.bf16.msra.mxu0 %v3292
    %4343 = vmatpush.bf16.msra.mxu0 %v3291
    %4344 = vmatpush.bf16.msra.mxu0 %v3290
    %4345 = vmatpush.bf16.msra.mxu0 %v3289
    %4346 = vmatmul.bf16.gmra.mxu0 %v1064
    %v4347 = vpop.f32.mrf.mxu0
    %v4348 = vadd.f32 %v4335, %v4347
    %v4349 = vpop.f32.mrf.mxu0
    %4350 = vdwg.mxu0
    %4351 = vmatpush.bf16.msra.mxu0 %v3304
    %4352 = vmatpush.bf16.msra.mxu0 %v3303
    %4353 = vmatpush.bf16.msra.mxu0 %v3302
    %4354 = vmatpush.bf16.msra.mxu0 %v3301
    %4355 = vmatpush.bf16.msra.mxu0 %v3300
    %4356 = vmatpush.bf16.msra.mxu0 %v3299
    %4357 = vmatpush.bf16.msra.mxu0 %v3298
    %4358 = vmatpush.bf16.msra.mxu0 %v3297
    %4359 = vmatmul.bf16.gmra.mxu0 %v1065
    %v4360 = vpop.f32.mrf.mxu0
    %v4361 = vadd.f32 %v4348, %v4360
    %v4362 = vpop.f32.mrf.mxu0
    %4363 = vdwg.mxu0
    %4364 = vmatpush.bf16.msra.mxu0 %v3312
    %4365 = vmatpush.bf16.msra.mxu0 %v3311
    %4366 = vmatpush.bf16.msra.mxu0 %v3310
    %4367 = vmatpush.bf16.msra.mxu0 %v3309
    %4368 = vmatpush.bf16.msra.mxu0 %v3308
    %4369 = vmatpush.bf16.msra.mxu0 %v3307
    %4370 = vmatpush.bf16.msra.mxu0 %v3306
    %4371 = vmatpush.bf16.msra.mxu0 %v3305
    %4372 = vmatmul.bf16.gmra.mxu0 %v1066
    %v4373 = vpop.f32.mrf.mxu0
    %v4374 = vadd.f32 %v4361, %v4373
    %v4375 = vpop.f32.mrf.mxu0
    %4376 = vdwg.mxu0
    %4377 = vmatpush.bf16.msra.mxu0 %v3320
    %4378 = vmatpush.bf16.msra.mxu0 %v3319
    %4379 = vmatpush.bf16.msra.mxu0 %v3318
    %4380 = vmatpush.bf16.msra.mxu0 %v3317
    %4381 = vmatpush.bf16.msra.mxu0 %v3316
    %4382 = vmatpush.bf16.msra.mxu0 %v3315
    %4383 = vmatpush.bf16.msra.mxu0 %v3314
    %4384 = vmatpush.bf16.msra.mxu0 %v3313
    %4385 = vmatmul.bf16.gmra.mxu0 %v1069
    %v4386 = vpop.f32.mrf.mxu0
    %v4387 = vadd.f32 %v4374, %v4386
    %v4388 = vpop.f32.mrf.mxu0
    %4389 = vdwg.mxu0
    %4390 = vmatpush.bf16.msra.mxu0 %v3328
    %4391 = vmatpush.bf16.msra.mxu0 %v3327
    %4392 = vmatpush.bf16.msra.mxu0 %v3326
    %4393 = vmatpush.bf16.msra.mxu0 %v3325
    %4394 = vmatpush.bf16.msra.mxu0 %v3324
    %4395 = vmatpush.bf16.msra.mxu0 %v3323
    %4396 = vmatpush.bf16.msra.mxu0 %v3322
    %4397 = vmatpush.bf16.msra.mxu0 %v3321
    %4398 = vmatmul.bf16.gmra.mxu0 %v1070
    %v4399 = vpop.f32.mrf.mxu0
    %v4400 = vadd.f32 %v4387, %v4399
    %v4401 = vpop.f32.mrf.mxu0
    %4402 = vdwg.mxu0
    %4403 = vmatpush.bf16.msra.mxu0 %v3336
    %4404 = vmatpush.bf16.msra.mxu0 %v3335
    %4405 = vmatpush.bf16.msra.mxu0 %v3334
    %4406 = vmatpush.bf16.msra.mxu0 %v3333
    %4407 = vmatpush.bf16.msra.mxu0 %v3332
    %4408 = vmatpush.bf16.msra.mxu0 %v3331
    %4409 = vmatpush.bf16.msra.mxu0 %v3330
    %4410 = vmatpush.bf16.msra.mxu0 %v3329
    %4411 = vmatmul.bf16.gmra.mxu0 %v1071
    %v4412 = vpop.f32.mrf.mxu0
    %v4413 = vadd.f32 %v4400, %v4412
    %v4414 = vpop.f32.mrf.mxu0
    %4415 = vdwg.mxu0
    %4416 = vmatpush.bf16.msra.mxu0 %v3344
    %4417 = vmatpush.bf16.msra.mxu0 %v3343
    %4418 = vmatpush.bf16.msra.mxu0 %v3342
    %4419 = vmatpush.bf16.msra.mxu0 %v3341
    %4420 = vmatpush.bf16.msra.mxu0 %v3340
    %4421 = vmatpush.bf16.msra.mxu0 %v3339
    %4422 = vmatpush.bf16.msra.mxu0 %v3338
    %4423 = vmatpush.bf16.msra.mxu0 %v3337
    %4424 = vmatmul.bf16.gmra.mxu0 %v1072
    %v4425 = vpop.f32.mrf.mxu0
    %v4426 = vadd.f32 %v4413, %v4425
    %v4427 = vpop.f32.mrf.mxu0
    %4428 = vdwg.mxu0
    %4429 = vmatpush.bf16.msra.mxu0 %v3352
    %4430 = vmatpush.bf16.msra.mxu0 %v3351
    %4431 = vmatpush.bf16.msra.mxu0 %v3350
    %4432 = vmatpush.bf16.msra.mxu0 %v3349
    %4433 = vmatpush.bf16.msra.mxu0 %v3348
    %4434 = vmatpush.bf16.msra.mxu0 %v3347
    %4435 = vmatpush.bf16.msra.mxu0 %v3346
    %4436 = vmatpush.bf16.msra.mxu0 %v3345
    %4437 = vmatmul.bf16.gmra.mxu0 %v1073
    %v4438 = vpop.f32.mrf.mxu0
    %v4439 = vadd.f32 %v4426, %v4438
    %v4440 = vpop.f32.mrf.mxu0
    %4441 = vdwg.mxu0
    %4442 = vmatpush.bf16.msra.mxu0 %v3360
    %4443 = vmatpush.bf16.msra.mxu0 %v3359
    %4444 = vmatpush.bf16.msra.mxu0 %v3358
    %4445 = vmatpush.bf16.msra.mxu0 %v3357
    %4446 = vmatpush.bf16.msra.mxu0 %v3356
    %4447 = vmatpush.bf16.msra.mxu0 %v3355
    %4448 = vmatpush.bf16.msra.mxu0 %v3354
    %4449 = vmatpush.bf16.msra.mxu0 %v3353
    %4450 = vmatmul.bf16.gmra.mxu0 %v1074
    %v4451 = vpop.f32.mrf.mxu0
    %v4452 = vadd.f32 %v4439, %v4451
    %v4453 = vpop.f32.mrf.mxu0
    %4454 = vdwg.mxu0
    %4455 = vmatpush.bf16.msra.mxu0 %v3368
    %4456 = vmatpush.bf16.msra.mxu0 %v3367
    %4457 = vmatpush.bf16.msra.mxu0 %v3366
    %4458 = vmatpush.bf16.msra.mxu0 %v3365
    %4459 = vmatpush.bf16.msra.mxu0 %v3364
    %4460 = vmatpush.bf16.msra.mxu0 %v3363
    %4461 = vmatpush.bf16.msra.mxu0 %v3362
    %4462 = vmatpush.bf16.msra.mxu0 %v3361
    %4463 = vmatmul.bf16.gmra.mxu0 %v1075
    %v4464 = vpop.f32.mrf.mxu0
    %v4465 = vadd.f32 %v4452, %v4464
    %v4466 = vpop.f32.mrf.mxu0
    %4467 = vdwg.mxu0
    %4468 = vmatpush.bf16.msra.mxu0 %v3376
    %4469 = vmatpush.bf16.msra.mxu0 %v3375
    %4470 = vmatpush.bf16.msra.mxu0 %v3374
    %4471 = vmatpush.bf16.msra.mxu0 %v3373
    %4472 = vmatpush.bf16.msra.mxu0 %v3372
    %4473 = vmatpush.bf16.msra.mxu0 %v3371
    %4474 = vmatpush.bf16.msra.mxu0 %v3370
    %4475 = vmatpush.bf16.msra.mxu0 %v3369
    %4476 = vmatmul.bf16.gmra.mxu0 %v1076
    %v4477 = vpop.f32.mrf.mxu0
    %v4478 = vadd.f32 %v4465, %v4477
    %v4479 = vpop.f32.mrf.mxu0
    %4480 = vdwg.mxu0
    %4481 = vmatpush.bf16.msra.mxu0 %v3384
    %4482 = vmatpush.bf16.msra.mxu0 %v3383
    %4483 = vmatpush.bf16.msra.mxu0 %v3382
    %4484 = vmatpush.bf16.msra.mxu0 %v3381
    %4485 = vmatpush.bf16.msra.mxu0 %v3380
    %4486 = vmatpush.bf16.msra.mxu0 %v3379
    %4487 = vmatpush.bf16.msra.mxu0 %v3378
    %4488 = vmatpush.bf16.msra.mxu0 %v3377
    %4489 = vmatmul.bf16.gmra.mxu0 %v1079
    %v4490 = vpop.f32.mrf.mxu0
    %v4491 = vadd.f32 %v4478, %v4490
    %v4492 = vpop.f32.mrf.mxu0
    %4493 = vdwg.mxu0
    %4494 = vmatpush.bf16.msra.mxu0 %v3392
    %4495 = vmatpush.bf16.msra.mxu0 %v3391
    %4496 = vmatpush.bf16.msra.mxu0 %v3390
    %4497 = vmatpush.bf16.msra.mxu0 %v3389
    %4498 = vmatpush.bf16.msra.mxu0 %v3388
    %4499 = vmatpush.bf16.msra.mxu0 %v3387
    %4500 = vmatpush.bf16.msra.mxu0 %v3386
    %4501 = vmatpush.bf16.msra.mxu0 %v3385
    %4502 = vmatmul.bf16.gmra.mxu0 %v1080
    %v4503 = vpop.f32.mrf.mxu0
    %v4504 = vadd.f32 %v4491, %v4503
    %v4505 = vpop.f32.mrf.mxu0
    %4506 = vdwg.mxu0
    %4507 = vmatpush.bf16.msra.mxu0 %v3400
    %4508 = vmatpush.bf16.msra.mxu0 %v3399
    %4509 = vmatpush.bf16.msra.mxu0 %v3398
    %4510 = vmatpush.bf16.msra.mxu0 %v3397
    %4511 = vmatpush.bf16.msra.mxu0 %v3396
    %4512 = vmatpush.bf16.msra.mxu0 %v3395
    %4513 = vmatpush.bf16.msra.mxu0 %v3394
    %4514 = vmatpush.bf16.msra.mxu0 %v3393
    %4515 = vmatmul.bf16.gmra.mxu0 %v1081
    %v4516 = vpop.f32.mrf.mxu0
    %v4517 = vadd.f32 %v4504, %v4516
    %v4518 = vpop.f32.mrf.mxu0
    %4519 = vdwg.mxu0
    %4520 = vmatpush.bf16.msra.mxu0 %v3408
    %4521 = vmatpush.bf16.msra.mxu0 %v3407
    %4522 = vmatpush.bf16.msra.mxu0 %v3406
    %4523 = vmatpush.bf16.msra.mxu0 %v3405
    %4524 = vmatpush.bf16.msra.mxu0 %v3404
    %4525 = vmatpush.bf16.msra.mxu0 %v3403
    %4526 = vmatpush.bf16.msra.mxu0 %v3402
    %4527 = vmatpush.bf16.msra.mxu0 %v3401
    %4528 = vmatmul.bf16.gmra.mxu0 %v1082
    %v4529 = vpop.f32.mrf.mxu0
    %v4530 = vadd.f32 %v4517, %v4529
    %v4531 = vpop.f32.mrf.mxu0
    %4532 = vdwg.mxu0
    %4533 = vmatpush.bf16.msra.mxu0 %v3416
    %4534 = vmatpush.bf16.msra.mxu0 %v3415
    %4535 = vmatpush.bf16.msra.mxu0 %v3414
    %4536 = vmatpush.bf16.msra.mxu0 %v3413
    %4537 = vmatpush.bf16.msra.mxu0 %v3412
    %4538 = vmatpush.bf16.msra.mxu0 %v3411
    %4539 = vmatpush.bf16.msra.mxu0 %v3410
    %4540 = vmatpush.bf16.msra.mxu0 %v3409
    %4541 = vmatmul.bf16.gmra.mxu0 %v1083
    %v4542 = vpop.f32.mrf.mxu0
    %v4543 = vadd.f32 %v4530, %v4542
    %v4544 = vpop.f32.mrf.mxu0
    %4545 = vdwg.mxu0
    %4546 = vmatpush.bf16.msra.mxu0 %v3424
    %4547 = vmatpush.bf16.msra.mxu0 %v3423
    %4548 = vmatpush.bf16.msra.mxu0 %v3422
    %4549 = vmatpush.bf16.msra.mxu0 %v3421
    %4550 = vmatpush.bf16.msra.mxu0 %v3420
    %4551 = vmatpush.bf16.msra.mxu0 %v3419
    %4552 = vmatpush.bf16.msra.mxu0 %v3418
    %4553 = vmatpush.bf16.msra.mxu0 %v3417
    %4554 = vmatmul.bf16.gmra.mxu0 %v1084
    %v4555 = vpop.f32.mrf.mxu0
    %v4556 = vadd.f32 %v4543, %v4555
    %v4557 = vpop.f32.mrf.mxu0
    %4558 = vdwg.mxu0
    %4559 = vmatpush.bf16.msra.mxu0 %v3432
    %4560 = vmatpush.bf16.msra.mxu0 %v3431
    %4561 = vmatpush.bf16.msra.mxu0 %v3430
    %4562 = vmatpush.bf16.msra.mxu0 %v3429
    %4563 = vmatpush.bf16.msra.mxu0 %v3428
    %4564 = vmatpush.bf16.msra.mxu0 %v3427
    %4565 = vmatpush.bf16.msra.mxu0 %v3426
    %4566 = vmatpush.bf16.msra.mxu0 %v3425
    %4567 = vmatmul.bf16.gmra.mxu0 %v1085
    %v4568 = vpop.f32.mrf.mxu0
    %v4569 = vadd.f32 %v4556, %v4568
    %v4570 = vpop.f32.mrf.mxu0
    %4571 = vdwg.mxu0
    %4572 = vmatpush.bf16.msra.mxu0 %v3440
    %4573 = vmatpush.bf16.msra.mxu0 %v3439
    %4574 = vmatpush.bf16.msra.mxu0 %v3438
    %4575 = vmatpush.bf16.msra.mxu0 %v3437
    %4576 = vmatpush.bf16.msra.mxu0 %v3436
    %4577 = vmatpush.bf16.msra.mxu0 %v3435
    %4578 = vmatpush.bf16.msra.mxu0 %v3434
    %4579 = vmatpush.bf16.msra.mxu0 %v3433
    %4580 = vmatmul.bf16.gmra.mxu0 %v1086
    %v4581 = vpop.f32.mrf.mxu0
    %v4582 = vadd.f32 %v4569, %v4581
    %v4583 = vpop.f32.mrf.mxu0
    %4584 = vdwg.mxu0
    %4585 = vmatpush.bf16.msra.mxu0 %v3448
    %4586 = vmatpush.bf16.msra.mxu0 %v3447
    %4587 = vmatpush.bf16.msra.mxu0 %v3446
    %4588 = vmatpush.bf16.msra.mxu0 %v3445
    %4589 = vmatpush.bf16.msra.mxu0 %v3444
    %4590 = vmatpush.bf16.msra.mxu0 %v3443
    %4591 = vmatpush.bf16.msra.mxu0 %v3442
    %4592 = vmatpush.bf16.msra.mxu0 %v3441
    %4593 = vmatmul.bf16.gmra.mxu0 %v1089
    %v4594 = vpop.f32.mrf.mxu0
    %v4595 = vadd.f32 %v4582, %v4594
    %v4596 = vpop.f32.mrf.mxu0
    %4597 = vdwg.mxu0
    %4598 = vmatpush.bf16.msra.mxu0 %v3456
    %4599 = vmatpush.bf16.msra.mxu0 %v3455
    %4600 = vmatpush.bf16.msra.mxu0 %v3454
    %4601 = vmatpush.bf16.msra.mxu0 %v3453
    %4602 = vmatpush.bf16.msra.mxu0 %v3452
    %4603 = vmatpush.bf16.msra.mxu0 %v3451
    %4604 = vmatpush.bf16.msra.mxu0 %v3450
    %4605 = vmatpush.bf16.msra.mxu0 %v3449
    %4606 = vmatmul.bf16.gmra.mxu0 %v1090
    %v4607 = vpop.f32.mrf.mxu0
    %v4608 = vadd.f32 %v4595, %v4607
    %v4609 = vpop.f32.mrf.mxu0
    %4610 = vdwg.mxu0
    %4611 = vmatpush.bf16.msra.mxu0 %v3464
    %4612 = vmatpush.bf16.msra.mxu0 %v3463
    %4613 = vmatpush.bf16.msra.mxu0 %v3462
    %4614 = vmatpush.bf16.msra.mxu0 %v3461
    %4615 = vmatpush.bf16.msra.mxu0 %v3460
    %4616 = vmatpush.bf16.msra.mxu0 %v3459
    %4617 = vmatpush.bf16.msra.mxu0 %v3458
    %4618 = vmatpush.bf16.msra.mxu0 %v3457
    %4619 = vmatmul.bf16.gmra.mxu0 %v1091
    %v4620 = vpop.f32.mrf.mxu0
    %v4621 = vadd.f32 %v4608, %v4620
    %v4622 = vpop.f32.mrf.mxu0
    %4623 = vdwg.mxu0
    %4624 = vmatpush.bf16.msra.mxu0 %v3472
    %4625 = vmatpush.bf16.msra.mxu0 %v3471
    %4626 = vmatpush.bf16.msra.mxu0 %v3470
    %4627 = vmatpush.bf16.msra.mxu0 %v3469
    %4628 = vmatpush.bf16.msra.mxu0 %v3468
    %4629 = vmatpush.bf16.msra.mxu0 %v3467
    %4630 = vmatpush.bf16.msra.mxu0 %v3466
    %4631 = vmatpush.bf16.msra.mxu0 %v3465
    %4632 = vmatmul.bf16.gmra.mxu0 %v1092
    %v4633 = vpop.f32.mrf.mxu0
    %v4634 = vadd.f32 %v4621, %v4633
    %v4635 = vpop.f32.mrf.mxu0
    %4636 = vdwg.mxu0
    %4637 = vmatpush.bf16.msra.mxu0 %v3480
    %4638 = vmatpush.bf16.msra.mxu0 %v3479
    %4639 = vmatpush.bf16.msra.mxu0 %v3478
    %4640 = vmatpush.bf16.msra.mxu0 %v3477
    %4641 = vmatpush.bf16.msra.mxu0 %v3476
    %4642 = vmatpush.bf16.msra.mxu0 %v3475
    %4643 = vmatpush.bf16.msra.mxu0 %v3474
    %4644 = vmatpush.bf16.msra.mxu0 %v3473
    %4645 = vmatmul.bf16.gmra.mxu0 %v1093
    %v4646 = vpop.f32.mrf.mxu0
    %v4647 = vadd.f32 %v4634, %v4646
    %v4648 = vpop.f32.mrf.mxu0
    %4649 = vdwg.mxu0
    %4650 = vmatpush.bf16.msra.mxu0 %v3488
    %4651 = vmatpush.bf16.msra.mxu0 %v3487
    %4652 = vmatpush.bf16.msra.mxu0 %v3486
    %4653 = vmatpush.bf16.msra.mxu0 %v3485
    %4654 = vmatpush.bf16.msra.mxu0 %v3484
    %4655 = vmatpush.bf16.msra.mxu0 %v3483
    %4656 = vmatpush.bf16.msra.mxu0 %v3482
    %4657 = vmatpush.bf16.msra.mxu0 %v3481
    %4658 = vmatmul.bf16.gmra.mxu0 %v1094
    %v4659 = vpop.f32.mrf.mxu0
    %v4660 = vadd.f32 %v4647, %v4659
    %v4661 = vpop.f32.mrf.mxu0
    %4662 = vdwg.mxu0
    %4663 = vmatpush.bf16.msra.mxu0 %v3496
    %4664 = vmatpush.bf16.msra.mxu0 %v3495
    %4665 = vmatpush.bf16.msra.mxu0 %v3494
    %4666 = vmatpush.bf16.msra.mxu0 %v3493
    %4667 = vmatpush.bf16.msra.mxu0 %v3492
    %4668 = vmatpush.bf16.msra.mxu0 %v3491
    %4669 = vmatpush.bf16.msra.mxu0 %v3490
    %4670 = vmatpush.bf16.msra.mxu0 %v3489
    %4671 = vmatmul.bf16.gmra.mxu0 %v1095
    %v4672 = vpop.f32.mrf.mxu0
    %v4673 = vadd.f32 %v4660, %v4672
    %v4674 = vpop.f32.mrf.mxu0
    %4675 = vdwg.mxu0
    %4676 = vmatpush.bf16.msra.mxu0 %v3504
    %4677 = vmatpush.bf16.msra.mxu0 %v3503
    %4678 = vmatpush.bf16.msra.mxu0 %v3502
    %4679 = vmatpush.bf16.msra.mxu0 %v3501
    %4680 = vmatpush.bf16.msra.mxu0 %v3500
    %4681 = vmatpush.bf16.msra.mxu0 %v3499
    %4682 = vmatpush.bf16.msra.mxu0 %v3498
    %4683 = vmatpush.bf16.msra.mxu0 %v3497
    %4684 = vmatmul.bf16.gmra.mxu0 %v1096
    %v4685 = vpop.f32.mrf.mxu0
    %v4686 = vadd.f32 %v4673, %v4685
    %v4687 = vpop.f32.mrf.mxu0
    %4688 = vdwg.mxu0
    %4689 = vmatpush.bf16.msra.mxu0 %v3512
    %4690 = vmatpush.bf16.msra.mxu0 %v3511
    %4691 = vmatpush.bf16.msra.mxu0 %v3510
    %4692 = vmatpush.bf16.msra.mxu0 %v3509
    %4693 = vmatpush.bf16.msra.mxu0 %v3508
    %4694 = vmatpush.bf16.msra.mxu0 %v3507
    %4695 = vmatpush.bf16.msra.mxu0 %v3506
    %4696 = vmatpush.bf16.msra.mxu0 %v3505
    %4697 = vmatmul.bf16.gmra.mxu0 %v1099
    %v4698 = vpop.f32.mrf.mxu0
    %v4699 = vadd.f32 %v4686, %v4698
    %v4700 = vpop.f32.mrf.mxu0
    %4701 = vdwg.mxu0
    %4702 = vmatpush.bf16.msra.mxu0 %v3520
    %4703 = vmatpush.bf16.msra.mxu0 %v3519
    %4704 = vmatpush.bf16.msra.mxu0 %v3518
    %4705 = vmatpush.bf16.msra.mxu0 %v3517
    %4706 = vmatpush.bf16.msra.mxu0 %v3516
    %4707 = vmatpush.bf16.msra.mxu0 %v3515
    %4708 = vmatpush.bf16.msra.mxu0 %v3514
    %4709 = vmatpush.bf16.msra.mxu0 %v3513
    %4710 = vmatmul.bf16.gmra.mxu0 %v1100
    %v4711 = vpop.f32.mrf.mxu0
    %v4712 = vadd.f32 %v4699, %v4711
    %v4713 = vpop.f32.mrf.mxu0
    %4714 = vdwg.mxu0
    %4715 = vmatpush.bf16.msra.mxu0 %v3528
    %4716 = vmatpush.bf16.msra.mxu0 %v3527
    %4717 = vmatpush.bf16.msra.mxu0 %v3526
    %4718 = vmatpush.bf16.msra.mxu0 %v3525
    %4719 = vmatpush.bf16.msra.mxu0 %v3524
    %4720 = vmatpush.bf16.msra.mxu0 %v3523
    %4721 = vmatpush.bf16.msra.mxu0 %v3522
    %4722 = vmatpush.bf16.msra.mxu0 %v3521
    %4723 = vmatmul.bf16.gmra.mxu0 %v1101
    %v4724 = vpop.f32.mrf.mxu0
    %v4725 = vadd.f32 %v4712, %v4724
    %v4726 = vpop.f32.mrf.mxu0
    %4727 = vdwg.mxu0
    %4728 = vmatpush.bf16.msra.mxu0 %v3536
    %4729 = vmatpush.bf16.msra.mxu0 %v3535
    %4730 = vmatpush.bf16.msra.mxu0 %v3534
    %4731 = vmatpush.bf16.msra.mxu0 %v3533
    %4732 = vmatpush.bf16.msra.mxu0 %v3532
    %4733 = vmatpush.bf16.msra.mxu0 %v3531
    %4734 = vmatpush.bf16.msra.mxu0 %v3530
    %4735 = vmatpush.bf16.msra.mxu0 %v3529
    %4736 = vmatmul.bf16.gmra.mxu0 %v1102
    %v4737 = vpop.f32.mrf.mxu0
    %v4738 = vadd.f32 %v4725, %v4737
    %v4739 = vpop.f32.mrf.mxu0
    %4740 = vdwg.mxu0
    %4741 = vmatpush.bf16.msra.mxu0 %v3544
    %4742 = vmatpush.bf16.msra.mxu0 %v3543
    %4743 = vmatpush.bf16.msra.mxu0 %v3542
    %4744 = vmatpush.bf16.msra.mxu0 %v3541
    %4745 = vmatpush.bf16.msra.mxu0 %v3540
    %4746 = vmatpush.bf16.msra.mxu0 %v3539
    %4747 = vmatpush.bf16.msra.mxu0 %v3538
    %4748 = vmatpush.bf16.msra.mxu0 %v3537
    %4749 = vmatmul.bf16.gmra.mxu0 %v1103
    %v4750 = vpop.f32.mrf.mxu0
    %v4751 = vadd.f32 %v4738, %v4750
    %v4752 = vpop.f32.mrf.mxu0
    %4753 = vdwg.mxu0
    %4754 = vmatpush.bf16.msra.mxu0 %v3552
    %4755 = vmatpush.bf16.msra.mxu0 %v3551
    %4756 = vmatpush.bf16.msra.mxu0 %v3550
    %4757 = vmatpush.bf16.msra.mxu0 %v3549
    %4758 = vmatpush.bf16.msra.mxu0 %v3548
    %4759 = vmatpush.bf16.msra.mxu0 %v3547
    %4760 = vmatpush.bf16.msra.mxu0 %v3546
    %4761 = vmatpush.bf16.msra.mxu0 %v3545
    %4762 = vmatmul.bf16.gmra.mxu0 %v1104
    %v4763 = vpop.f32.mrf.mxu0
    %v4764 = vadd.f32 %v4751, %v4763
    %v4765 = vpop.f32.mrf.mxu0
    %4766 = vdwg.mxu0
    %4767 = vmatpush.bf16.msra.mxu0 %v3560
    %4768 = vmatpush.bf16.msra.mxu0 %v3559
    %4769 = vmatpush.bf16.msra.mxu0 %v3558
    %4770 = vmatpush.bf16.msra.mxu0 %v3557
    %4771 = vmatpush.bf16.msra.mxu0 %v3556
    %4772 = vmatpush.bf16.msra.mxu0 %v3555
    %4773 = vmatpush.bf16.msra.mxu0 %v3554
    %4774 = vmatpush.bf16.msra.mxu0 %v3553
    %4775 = vmatmul.bf16.gmra.mxu0 %v1105
    %v4776 = vpop.f32.mrf.mxu0
    %v4777 = vadd.f32 %v4764, %v4776
    %v4778 = vpop.f32.mrf.mxu0
    %4779 = vdwg.mxu0
    %4780 = vmatpush.bf16.msra.mxu0 %v3568
    %4781 = vmatpush.bf16.msra.mxu0 %v3567
    %4782 = vmatpush.bf16.msra.mxu0 %v3566
    %4783 = vmatpush.bf16.msra.mxu0 %v3565
    %4784 = vmatpush.bf16.msra.mxu0 %v3564
    %4785 = vmatpush.bf16.msra.mxu0 %v3563
    %4786 = vmatpush.bf16.msra.mxu0 %v3562
    %4787 = vmatpush.bf16.msra.mxu0 %v3561
    %4788 = vmatmul.bf16.gmra.mxu0 %v1106
    %v4789 = vpop.f32.mrf.mxu0
    %v4790 = vadd.f32 %v4777, %v4789
    %v4791 = vpop.f32.mrf.mxu0
    %4792 = vdwg.mxu0
    %4793 = vmatpush.bf16.msra.mxu0 %v3576
    %4794 = vmatpush.bf16.msra.mxu0 %v3575
    %4795 = vmatpush.bf16.msra.mxu0 %v3574
    %4796 = vmatpush.bf16.msra.mxu0 %v3573
    %4797 = vmatpush.bf16.msra.mxu0 %v3572
    %4798 = vmatpush.bf16.msra.mxu0 %v3571
    %4799 = vmatpush.bf16.msra.mxu0 %v3570
    %4800 = vmatpush.bf16.msra.mxu0 %v3569
    %4801 = vmatmul.bf16.gmra.mxu0 %v1109
    %v4802 = vpop.f32.mrf.mxu0
    %v4803 = vadd.f32 %v4790, %v4802
    %v4804 = vpop.f32.mrf.mxu0
    %4805 = vdwg.mxu0
    %4806 = vmatpush.bf16.msra.mxu0 %v3584
    %4807 = vmatpush.bf16.msra.mxu0 %v3583
    %4808 = vmatpush.bf16.msra.mxu0 %v3582
    %4809 = vmatpush.bf16.msra.mxu0 %v3581
    %4810 = vmatpush.bf16.msra.mxu0 %v3580
    %4811 = vmatpush.bf16.msra.mxu0 %v3579
    %4812 = vmatpush.bf16.msra.mxu0 %v3578
    %4813 = vmatpush.bf16.msra.mxu0 %v3577
    %4814 = vmatmul.bf16.gmra.mxu0 %v1110
    %v4815 = vpop.f32.mrf.mxu0
    %v4816 = vadd.f32 %v4803, %v4815
    %v4817 = vpop.f32.mrf.mxu0
    %4818 = vdwg.mxu0
    %4819 = vmatpush.bf16.msra.mxu0 %v3592
    %4820 = vmatpush.bf16.msra.mxu0 %v3591
    %4821 = vmatpush.bf16.msra.mxu0 %v3590
    %4822 = vmatpush.bf16.msra.mxu0 %v3589
    %4823 = vmatpush.bf16.msra.mxu0 %v3588
    %4824 = vmatpush.bf16.msra.mxu0 %v3587
    %4825 = vmatpush.bf16.msra.mxu0 %v3586
    %4826 = vmatpush.bf16.msra.mxu0 %v3585
    %4827 = vmatmul.bf16.gmra.mxu0 %v1111
    %v4828 = vpop.f32.mrf.mxu0
    %v4829 = vadd.f32 %v4816, %v4828
    %v4830 = vpop.f32.mrf.mxu0
    %4831 = vdwg.mxu0
    %4832 = vmatpush.bf16.msra.mxu0 %v3600
    %4833 = vmatpush.bf16.msra.mxu0 %v3599
    %4834 = vmatpush.bf16.msra.mxu0 %v3598
    %4835 = vmatpush.bf16.msra.mxu0 %v3597
    %4836 = vmatpush.bf16.msra.mxu0 %v3596
    %4837 = vmatpush.bf16.msra.mxu0 %v3595
    %4838 = vmatpush.bf16.msra.mxu0 %v3594
    %4839 = vmatpush.bf16.msra.mxu0 %v3593
    %4840 = vmatmul.bf16.gmra.mxu0 %v1112
    %v4841 = vpop.f32.mrf.mxu0
    %v4842 = vadd.f32 %v4829, %v4841
    %v4843 = vpop.f32.mrf.mxu0
    %4844 = vdwg.mxu0
    %4845 = vmatpush.bf16.msra.mxu0 %v3608
    %4846 = vmatpush.bf16.msra.mxu0 %v3607
    %4847 = vmatpush.bf16.msra.mxu0 %v3606
    %4848 = vmatpush.bf16.msra.mxu0 %v3605
    %4849 = vmatpush.bf16.msra.mxu0 %v3604
    %4850 = vmatpush.bf16.msra.mxu0 %v3603
    %4851 = vmatpush.bf16.msra.mxu0 %v3602
    %4852 = vmatpush.bf16.msra.mxu0 %v3601
    %4853 = vmatmul.bf16.gmra.mxu0 %v1113
    %v4854 = vpop.f32.mrf.mxu0
    %v4855 = vadd.f32 %v4842, %v4854
    %v4856 = vpop.f32.mrf.mxu0
    %4857 = vdwg.mxu0
    %4858 = vmatpush.bf16.msra.mxu0 %v3616
    %4859 = vmatpush.bf16.msra.mxu0 %v3615
    %4860 = vmatpush.bf16.msra.mxu0 %v3614
    %4861 = vmatpush.bf16.msra.mxu0 %v3613
    %4862 = vmatpush.bf16.msra.mxu0 %v3612
    %4863 = vmatpush.bf16.msra.mxu0 %v3611
    %4864 = vmatpush.bf16.msra.mxu0 %v3610
    %4865 = vmatpush.bf16.msra.mxu0 %v3609
    %4866 = vmatmul.bf16.gmra.mxu0 %v1114
    %v4867 = vpop.f32.mrf.mxu0
    %v4868 = vadd.f32 %v4855, %v4867
    %v4869 = vpop.f32.mrf.mxu0
    %4870 = vdwg.mxu0
    %4871 = vmatpush.bf16.msra.mxu0 %v3624
    %4872 = vmatpush.bf16.msra.mxu0 %v3623
    %4873 = vmatpush.bf16.msra.mxu0 %v3622
    %4874 = vmatpush.bf16.msra.mxu0 %v3621
    %4875 = vmatpush.bf16.msra.mxu0 %v3620
    %4876 = vmatpush.bf16.msra.mxu0 %v3619
    %4877 = vmatpush.bf16.msra.mxu0 %v3618
    %4878 = vmatpush.bf16.msra.mxu0 %v3617
    %4879 = vmatmul.bf16.gmra.mxu0 %v1115
    %v4880 = vpop.f32.mrf.mxu0
    %v4881 = vadd.f32 %v4868, %v4880
    %v4882 = vpop.f32.mrf.mxu0
    %4883 = vdwg.mxu0
    %4884 = vmatpush.bf16.msra.mxu0 %v3632
    %4885 = vmatpush.bf16.msra.mxu0 %v3631
    %4886 = vmatpush.bf16.msra.mxu0 %v3630
    %4887 = vmatpush.bf16.msra.mxu0 %v3629
    %4888 = vmatpush.bf16.msra.mxu0 %v3628
    %4889 = vmatpush.bf16.msra.mxu0 %v3627
    %4890 = vmatpush.bf16.msra.mxu0 %v3626
    %4891 = vmatpush.bf16.msra.mxu0 %v3625
    %4892 = vmatmul.bf16.gmra.mxu0 %v1116
    %v4893 = vpop.f32.mrf.mxu0
    %v4894 = vadd.f32 %v4881, %v4893
    %v4895 = vpop.f32.mrf.mxu0
    %4896 = vdwg.mxu0
    %4897 = vmatpush.bf16.msra.mxu0 %v3640
    %4898 = vmatpush.bf16.msra.mxu0 %v3639
    %4899 = vmatpush.bf16.msra.mxu0 %v3638
    %4900 = vmatpush.bf16.msra.mxu0 %v3637
    %4901 = vmatpush.bf16.msra.mxu0 %v3636
    %4902 = vmatpush.bf16.msra.mxu0 %v3635
    %4903 = vmatpush.bf16.msra.mxu0 %v3634
    %4904 = vmatpush.bf16.msra.mxu0 %v3633
    %4905 = vmatmul.bf16.gmra.mxu0 %v1119
    %v4906 = vpop.f32.mrf.mxu0
    %v4907 = vadd.f32 %v4894, %v4906
    %v4908 = vpop.f32.mrf.mxu0
    %4909 = vdwg.mxu0
    %4910 = vmatpush.bf16.msra.mxu0 %v3648
    %4911 = vmatpush.bf16.msra.mxu0 %v3647
    %4912 = vmatpush.bf16.msra.mxu0 %v3646
    %4913 = vmatpush.bf16.msra.mxu0 %v3645
    %4914 = vmatpush.bf16.msra.mxu0 %v3644
    %4915 = vmatpush.bf16.msra.mxu0 %v3643
    %4916 = vmatpush.bf16.msra.mxu0 %v3642
    %4917 = vmatpush.bf16.msra.mxu0 %v3641
    %4918 = vmatmul.bf16.gmra.mxu0 %v1120
    %v4919 = vpop.f32.mrf.mxu0
    %v4920 = vadd.f32 %v4907, %v4919
    %v4921 = vpop.f32.mrf.mxu0
    %4922 = vdwg.mxu0
    %4923 = vmatpush.bf16.msra.mxu0 %v3656
    %4924 = vmatpush.bf16.msra.mxu0 %v3655
    %4925 = vmatpush.bf16.msra.mxu0 %v3654
    %4926 = vmatpush.bf16.msra.mxu0 %v3653
    %4927 = vmatpush.bf16.msra.mxu0 %v3652
    %4928 = vmatpush.bf16.msra.mxu0 %v3651
    %4929 = vmatpush.bf16.msra.mxu0 %v3650
    %4930 = vmatpush.bf16.msra.mxu0 %v3649
    %4931 = vmatmul.bf16.gmra.mxu0 %v1121
    %v4932 = vpop.f32.mrf.mxu0
    %v4933 = vadd.f32 %v4920, %v4932
    %v4934 = vpop.f32.mrf.mxu0
    %4935 = vdwg.mxu0
    %4936 = vmatpush.bf16.msra.mxu0 %v3664
    %4937 = vmatpush.bf16.msra.mxu0 %v3663
    %4938 = vmatpush.bf16.msra.mxu0 %v3662
    %4939 = vmatpush.bf16.msra.mxu0 %v3661
    %4940 = vmatpush.bf16.msra.mxu0 %v3660
    %4941 = vmatpush.bf16.msra.mxu0 %v3659
    %4942 = vmatpush.bf16.msra.mxu0 %v3658
    %4943 = vmatpush.bf16.msra.mxu0 %v3657
    %4944 = vmatmul.bf16.gmra.mxu0 %v1122
    %v4945 = vpop.f32.mrf.mxu0
    %v4946 = vadd.f32 %v4933, %v4945
    %v4947 = vpop.f32.mrf.mxu0
    %4948 = vdwg.mxu0
    %4949 = vmatpush.bf16.msra.mxu0 %v3672
    %4950 = vmatpush.bf16.msra.mxu0 %v3671
    %4951 = vmatpush.bf16.msra.mxu0 %v3670
    %4952 = vmatpush.bf16.msra.mxu0 %v3669
    %4953 = vmatpush.bf16.msra.mxu0 %v3668
    %4954 = vmatpush.bf16.msra.mxu0 %v3667
    %4955 = vmatpush.bf16.msra.mxu0 %v3666
    %4956 = vmatpush.bf16.msra.mxu0 %v3665
    %4957 = vmatmul.bf16.gmra.mxu0 %v1123
    %v4958 = vpop.f32.mrf.mxu0
    %v4959 = vadd.f32 %v4946, %v4958
    %v4960 = vpop.f32.mrf.mxu0
    %4961 = vdwg.mxu0
    %4962 = vmatpush.bf16.msra.mxu0 %v3680
    %4963 = vmatpush.bf16.msra.mxu0 %v3679
    %4964 = vmatpush.bf16.msra.mxu0 %v3678
    %4965 = vmatpush.bf16.msra.mxu0 %v3677
    %4966 = vmatpush.bf16.msra.mxu0 %v3676
    %4967 = vmatpush.bf16.msra.mxu0 %v3675
    %4968 = vmatpush.bf16.msra.mxu0 %v3674
    %4969 = vmatpush.bf16.msra.mxu0 %v3673
    %4970 = vmatmul.bf16.gmra.mxu0 %v1124
    %v4971 = vpop.f32.mrf.mxu0
    %v4972 = vadd.f32 %v4959, %v4971
    %v4973 = vpop.f32.mrf.mxu0
    %4974 = vdwg.mxu0
    %4975 = vmatpush.bf16.msra.mxu0 %v3688
    %4976 = vmatpush.bf16.msra.mxu0 %v3687
    %4977 = vmatpush.bf16.msra.mxu0 %v3686
    %4978 = vmatpush.bf16.msra.mxu0 %v3685
    %4979 = vmatpush.bf16.msra.mxu0 %v3684
    %4980 = vmatpush.bf16.msra.mxu0 %v3683
    %4981 = vmatpush.bf16.msra.mxu0 %v3682
    %4982 = vmatpush.bf16.msra.mxu0 %v3681
    %4983 = vmatmul.bf16.gmra.mxu0 %v1125
    %v4984 = vpop.f32.mrf.mxu0
    %v4985 = vadd.f32 %v4972, %v4984
    %v4986 = vpop.f32.mrf.mxu0
    %4987 = vdwg.mxu0
    %4988 = vmatpush.bf16.msra.mxu0 %v3696
    %4989 = vmatpush.bf16.msra.mxu0 %v3695
    %4990 = vmatpush.bf16.msra.mxu0 %v3694
    %4991 = vmatpush.bf16.msra.mxu0 %v3693
    %4992 = vmatpush.bf16.msra.mxu0 %v3692
    %4993 = vmatpush.bf16.msra.mxu0 %v3691
    %4994 = vmatpush.bf16.msra.mxu0 %v3690
    %4995 = vmatpush.bf16.msra.mxu0 %v3689
    %4996 = vmatmul.bf16.gmra.mxu0 %v1126
    %v4997 = vpop.f32.mrf.mxu0
    %v4998 = vadd.f32 %v4985, %v4997
    %v4999 = vpop.f32.mrf.mxu0
    %5000 = vdwg.mxu0
    %5001 = vmatpush.bf16.msra.mxu0 %v3704
    %5002 = vmatpush.bf16.msra.mxu0 %v3703
    %5003 = vmatpush.bf16.msra.mxu0 %v3702
    %5004 = vmatpush.bf16.msra.mxu0 %v3701
    %5005 = vmatpush.bf16.msra.mxu0 %v3700
    %5006 = vmatpush.bf16.msra.mxu0 %v3699
    %5007 = vmatpush.bf16.msra.mxu0 %v3698
    %5008 = vmatpush.bf16.msra.mxu0 %v3697
    %5009 = vmatmul.bf16.gmra.mxu0 %v1129
    %v5010 = vpop.f32.mrf.mxu0
    %v5011 = vadd.f32 %v4998, %v5010
    %v5012 = vpop.f32.mrf.mxu0
    %5013 = vdwg.mxu0
    %5014 = vmatpush.bf16.msra.mxu0 %v3712
    %5015 = vmatpush.bf16.msra.mxu0 %v3711
    %5016 = vmatpush.bf16.msra.mxu0 %v3710
    %5017 = vmatpush.bf16.msra.mxu0 %v3709
    %5018 = vmatpush.bf16.msra.mxu0 %v3708
    %5019 = vmatpush.bf16.msra.mxu0 %v3707
    %5020 = vmatpush.bf16.msra.mxu0 %v3706
    %5021 = vmatpush.bf16.msra.mxu0 %v3705
    %5022 = vmatmul.bf16.gmra.mxu0 %v1130
    %v5023 = vpop.f32.mrf.mxu0
    %v5024 = vadd.f32 %v5011, %v5023
    %v5025 = vpop.f32.mrf.mxu0
    %5026 = vdwg.mxu0
    %5027 = vmatpush.bf16.msra.mxu0 %v3720
    %5028 = vmatpush.bf16.msra.mxu0 %v3719
    %5029 = vmatpush.bf16.msra.mxu0 %v3718
    %5030 = vmatpush.bf16.msra.mxu0 %v3717
    %5031 = vmatpush.bf16.msra.mxu0 %v3716
    %5032 = vmatpush.bf16.msra.mxu0 %v3715
    %5033 = vmatpush.bf16.msra.mxu0 %v3714
    %5034 = vmatpush.bf16.msra.mxu0 %v3713
    %5035 = vmatmul.bf16.gmra.mxu0 %v1131
    %v5036 = vpop.f32.mrf.mxu0
    %v5037 = vadd.f32 %v5024, %v5036
    %v5038 = vpop.f32.mrf.mxu0
    %5039 = vdwg.mxu0
    %5040 = vmatpush.bf16.msra.mxu0 %v3728
    %5041 = vmatpush.bf16.msra.mxu0 %v3727
    %5042 = vmatpush.bf16.msra.mxu0 %v3726
    %5043 = vmatpush.bf16.msra.mxu0 %v3725
    %5044 = vmatpush.bf16.msra.mxu0 %v3724
    %5045 = vmatpush.bf16.msra.mxu0 %v3723
    %5046 = vmatpush.bf16.msra.mxu0 %v3722
    %5047 = vmatpush.bf16.msra.mxu0 %v3721
    %5048 = vmatmul.bf16.gmra.mxu0 %v1132
    %v5049 = vpop.f32.mrf.mxu0
    %v5050 = vadd.f32 %v5037, %v5049
    %v5051 = vpop.f32.mrf.mxu0
    %5052 = vdwg.mxu0
    %5053 = vmatpush.bf16.msra.mxu0 %v3736
    %5054 = vmatpush.bf16.msra.mxu0 %v3735
    %5055 = vmatpush.bf16.msra.mxu0 %v3734
    %5056 = vmatpush.bf16.msra.mxu0 %v3733
    %5057 = vmatpush.bf16.msra.mxu0 %v3732
    %5058 = vmatpush.bf16.msra.mxu0 %v3731
    %5059 = vmatpush.bf16.msra.mxu0 %v3730
    %5060 = vmatpush.bf16.msra.mxu0 %v3729
    %5061 = vmatmul.bf16.gmra.mxu0 %v1133
    %v5062 = vpop.f32.mrf.mxu0
    %v5063 = vadd.f32 %v5050, %v5062
    %v5064 = vpop.f32.mrf.mxu0
    %5065 = vdwg.mxu0
    %5066 = vmatpush.bf16.msra.mxu0 %v3744
    %5067 = vmatpush.bf16.msra.mxu0 %v3743
    %5068 = vmatpush.bf16.msra.mxu0 %v3742
    %5069 = vmatpush.bf16.msra.mxu0 %v3741
    %5070 = vmatpush.bf16.msra.mxu0 %v3740
    %5071 = vmatpush.bf16.msra.mxu0 %v3739
    %5072 = vmatpush.bf16.msra.mxu0 %v3738
    %5073 = vmatpush.bf16.msra.mxu0 %v3737
    %5074 = vmatmul.bf16.gmra.mxu0 %v1134
    %v5075 = vpop.f32.mrf.mxu0
    %v5076 = vadd.f32 %v5063, %v5075
    %v5077 = vpop.f32.mrf.mxu0
    %5078 = vdwg.mxu0
    %5079 = vmatpush.bf16.msra.mxu0 %v3752
    %5080 = vmatpush.bf16.msra.mxu0 %v3751
    %5081 = vmatpush.bf16.msra.mxu0 %v3750
    %5082 = vmatpush.bf16.msra.mxu0 %v3749
    %5083 = vmatpush.bf16.msra.mxu0 %v3748
    %5084 = vmatpush.bf16.msra.mxu0 %v3747
    %5085 = vmatpush.bf16.msra.mxu0 %v3746
    %5086 = vmatpush.bf16.msra.mxu0 %v3745
    %5087 = vmatmul.bf16.gmra.mxu0 %v1135
    %v5088 = vpop.f32.mrf.mxu0
    %v5089 = vadd.f32 %v5076, %v5088
    %v5090 = vpop.f32.mrf.mxu0
    %5091 = vdwg.mxu0
    %5092 = vmatpush.bf16.msra.mxu0 %v3760
    %5093 = vmatpush.bf16.msra.mxu0 %v3759
    %5094 = vmatpush.bf16.msra.mxu0 %v3758
    %5095 = vmatpush.bf16.msra.mxu0 %v3757
    %5096 = vmatpush.bf16.msra.mxu0 %v3756
    %5097 = vmatpush.bf16.msra.mxu0 %v3755
    %5098 = vmatpush.bf16.msra.mxu0 %v3754
    %5099 = vmatpush.bf16.msra.mxu0 %v3753
    %5100 = vmatmul.bf16.gmra.mxu0 %v1136
    %v5101 = vpop.f32.mrf.mxu0
    %v5102 = vadd.f32 %v5089, %v5101
    %v5103 = vpop.f32.mrf.mxu0
    %5104 = vdwg.mxu0
    %v5105 = vmax.f32 %v5102, 0.0
    %v5106 = vpack.c.bf16 %v5105, %v5105
    %v5107 = vld [vmem:[%s3] sm:$0xf]
    %v5108 = vld [vmem:[%s3 + $0x4] sm:$0xf]
    %v5109 = vld [vmem:[%s3 + $0x8] sm:$0xf]
    %v5110 = vld [vmem:[%s3 + $0xc] sm:$0xf]
    %v5111 = vld [vmem:[%s3 + $0x10] sm:$0xf]
    %v5112 = vld [vmem:[%s3 + $0x14] sm:$0xf]
    %v5113 = vld [vmem:[%s3 + $0x18] sm:$0xf]
    %v5114 = vld [vmem:[%s3 + $0x1c] sm:$0xf]
    %v5115 = vld [vmem:[%s3 + $0x20] sm:$0xf]
    %v5116 = vld [vmem:[%s3 + $0x24] sm:$0xf]
    %v5117 = vld [vmem:[%s3 + $0x28] sm:$0xf]
    %v5118 = vld [vmem:[%s3 + $0x2c] sm:$0xf]
    %v5119 = vld [vmem:[%s3 + $0x30] sm:$0xf]
    %v5120 = vld [vmem:[%s3 + $0x34] sm:$0xf]
    %v5121 = vld [vmem:[%s3 + $0x38] sm:$0xf]
    %v5122 = vld [vmem:[%s3 + $0x3c] sm:$0xf]
    %v5123 = vld [vmem:[%s4] sm:$0x1]
    %v5125 = vperm.slane %v5123, 0
    %v5143 = vunpack.c.l.b16 %v5107
    %v5144 = vunpack.c.l.b16 %v5108
    %v5145 = vunpack.c.l.b16 %v5109
    %v5146 = vunpack.c.l.b16 %v5110
    %v5147 = vunpack.c.l.b16 %v5111
    %v5148 = vunpack.c.l.b16 %v5112
    %v5149 = vunpack.c.l.b16 %v5113
    %v5150 = vunpack.c.l.b16 %v5114
    %v5151 = vunpack.c.l.b16 %v5115
    %v5152 = vunpack.c.l.b16 %v5116
    %v5153 = vunpack.c.l.b16 %v5117
    %v5154 = vunpack.c.l.b16 %v5118
    %v5155 = vunpack.c.l.b16 %v5119
    %v5156 = vunpack.c.l.b16 %v5120
    %v5157 = vunpack.c.l.b16 %v5121
    %v5158 = vunpack.c.l.b16 %v5122
    %v5159 = vpack.c.b16 %v5144, %v5143
    %v5160 = vpack.c.b16 %v5146, %v5145
    %v5161 = vpack.c.b16 %v5148, %v5147
    %v5162 = vpack.c.b16 %v5150, %v5149
    %v5163 = vpack.c.b16 %v5152, %v5151
    %v5164 = vpack.c.b16 %v5154, %v5153
    %v5165 = vpack.c.b16 %v5156, %v5155
    %v5166 = vpack.c.b16 %v5158, %v5157
    %5175 = vmatpush.bf16.msra.mxu0 %v5166
    %5176 = vmatpush.bf16.msra.mxu0 %v5165
    %5177 = vmatpush.bf16.msra.mxu0 %v5164
    %5178 = vmatpush.bf16.msra.mxu0 %v5163
    %5179 = vmatpush.bf16.msra.mxu0 %v5162
    %5180 = vmatpush.bf16.msra.mxu0 %v5161
    %5181 = vmatpush.bf16.msra.mxu0 %v5160
    %5182 = vmatpush.bf16.msra.mxu0 %v5159
    %5183 = vmatmul.bf16.gmra.mxu0 %v5106
    %v5184 = vpop.f32.mrf.mxu0
    %v5185 = vadd.f32 %v5125, %v5184
    %v5186 = vpop.f32.mrf.mxu0
    %5187 = vdwg.mxu0
    %v5188 = vmax.f32 %v5185, 0.0
    %5189 = vst [vmem:[#allocation2] sm:$0x3] %v5188
    // Predicated region
    $region22: #{simple_cnn_forward.5} parent=1 // pred_check
      _
    $region23: #{simple_cnn_forward.5} parent=1 // pred_check_branch
      %5191 = sbr.rel (0) target = $region25
    $region24: #{simple_cnn_forward.5} parent=1 // pred_region
      %5193 = vsyncadd [#allocation3], 0
      %s5195 = sshll.u32 [#allocation2], 4
      %s5196 = int_to_ptr.vmem [resolvable:$true] %s5195
      %s5197 = sshll.u32 %s5, 4
      %s5198 = int_to_ptr.hbm [resolvable:$true] %s5197
      %5200 = dma.vmem_to_hbm [thread:$0]  %s5196, 32, %s5198, [#allocation3]
    $region25: #{simple_cnn_forward.5} parent=1 // pred_fallthru
      _
    // Predicated region
    $region26: #{simple_cnn_forward.5} parent=1 // pred_check
      _
    $region27: #{simple_cnn_forward.5} parent=1 // pred_check_branch
      %5202 = sbr.rel (0) target = $region29
    $region28: #{simple_cnn_forward.5} parent=1 // pred_region
      %5204 = dma.done [#allocation3], 32
    $region29: #{simple_cnn_forward.5} parent=1 // pred_fallthru
      _
    %5205 = vsyncpa [#allocation3], 1

</llo_original>
